<compile_context>
chip_gen: v7x
topology: tpu7x:2x2x1
jax: 0.10.0
libtpu: 0.0.40
codegen_flags: <defaults>
</compile_context>

<pallas_src>
import functools

import jax
import jax.numpy as jnp
from jax.experimental import pallas as pl
from jax.experimental.pallas import tpu as pltpu

CP = 128  # lane-padded channel width for all intermediate activations (lane-dense stores)


# ----------------------------------------------------------------------------
# Pallas kernels
# ----------------------------------------------------------------------------
def _conv_bn_kernel(p_ref, w_ref, shift_ref, o_ref, *, relu):
    """Conv-as-GEMM (bf16 operands, f32 accumulation) + folded-BN shift (+ReLU)."""
    acc = jnp.dot(p_ref[...], w_ref[...], preferred_element_type=jnp.float32)
    y = acc + shift_ref[...]
    if relu:
        y = jnp.maximum(y, 0.0)
    o_ref[...] = y.astype(o_ref.dtype)


def _conv_bn_res_kernel(p_ref, w_ref, shift_ref, id_ref, o_ref):
    """Conv GEMM + BN shift + residual add + ReLU fused in the epilogue."""
    acc = jnp.dot(p_ref[...], w_ref[...], preferred_element_type=jnp.float32)
    y = acc + shift_ref[...] + id_ref[...].astype(jnp.float32)
    o_ref[...] = jnp.maximum(y, 0.0).astype(o_ref.dtype)


def _conv_bn_ds_res_kernel(p_ref, w_ref, shift_ref, xd_ref, wd_ref, shiftd_ref, o_ref):
    """Conv GEMM + BN shift + fused 1x1 downsample conv/BN identity + add + ReLU."""
    acc = jnp.dot(p_ref[...], w_ref[...], preferred_element_type=jnp.float32)
    idn = jnp.dot(xd_ref[...], wd_ref[...], preferred_element_type=jnp.float32) + shiftd_ref[...]
    o_ref[...] = jnp.maximum(acc + shift_ref[...] + idn, 0.0).astype(o_ref.dtype)


def _conv_bn_res_gap_kernel(p_ref, w_ref, shift_ref, id_ref, o_ref, *, hw):
    """Final-block epilogue: conv GEMM + BN shift + residual + ReLU + global avg pool."""
    acc = jnp.dot(p_ref[...], w_ref[...], preferred_element_type=jnp.float32)
    y = jnp.maximum(acc + shift_ref[...] + id_ref[...].astype(jnp.float32), 0.0)
    if hw == 1:
        o_ref[...] = y
    else:
        n = y.shape[0] // hw
        o_ref[...] = jnp.mean(y.reshape(n, hw, y.shape[1]), axis=1)


def _max9_kernel(*refs):
    """3x3/s2 maxpool as an elementwise max over 9 lane-dense (tm, 128) shifted views."""
    o_ref = refs[-1]
    m = refs[0][...]
    for r in refs[1:-1]:
        m = jnp.maximum(m, r[...])
    o_ref[...] = m


def _gap_kernel(x_ref, o_ref):
    """Global average pool: (N, H*W, CP) -> (N, CP) with f32 accumulation (fallback)."""
    o_ref[...] = jnp.mean(x_ref[...].astype(jnp.float32), axis=1)


# ----------------------------------------------------------------------------
# Pallas wrappers
# ----------------------------------------------------------------------------
def _row_tile(m):
    if m <= 512:
        return m  # single block (full dim is always legal)
    for t in (1024, 768, 512, 256, 128):
        if m % t == 0:
            return t
    return m


_PARALLEL = pltpu.CompilerParams(dimension_semantics=("parallel",))


def conv_bn(patches, w, shift, relu):
    M, K = patches.shape
    tm = _row_tile(M)
    return pl.pallas_call(
        functools.partial(_conv_bn_kernel, relu=relu),
        out_shape=jax.ShapeDtypeStruct((M, CP), jnp.bfloat16),
        grid=(M // tm,),
        in_specs=[
            pl.BlockSpec((tm, K), lambda i: (i, 0)),
            pl.BlockSpec((K, CP), lambda i: (0, 0)),
            pl.BlockSpec((1, CP), lambda i: (0, 0)),
        ],
        out_specs=pl.BlockSpec((tm, CP), lambda i: (i, 0)),
        compiler_params=_PARALLEL,
    )(patches, w, shift)


def conv_bn_add_relu(patches, w, shift, identity):
    M, K = patches.shape
    tm = _row_tile(M)
    return pl.pallas_call(
        _conv_bn_res_kernel,
        out_shape=jax.ShapeDtypeStruct((M, CP), jnp.bfloat16),
        grid=(M // tm,),
        in_specs=[
            pl.BlockSpec((tm, K), lambda i: (i, 0)),
            pl.BlockSpec((K, CP), lambda i: (0, 0)),
            pl.BlockSpec((1, CP), lambda i: (0, 0)),
            pl.BlockSpec((tm, CP), lambda i: (i, 0)),
        ],
        out_specs=pl.BlockSpec((tm, CP), lambda i: (i, 0)),
        compiler_params=_PARALLEL,
    )(patches, w, shift, identity)


def conv_bn_add_relu_gap(patches, w, shift, identity, hw):
    """Last-block fusion: conv2 + BN + residual + ReLU + global average pool -> (N, CP) f32."""
    M, _ = patches.shape
    n = M // hw
    return pl.pallas_call(
        functools.partial(_conv_bn_res_gap_kernel, hw=hw),
        out_shape=jax.ShapeDtypeStruct((n, CP), jnp.float32),
    )(patches, w, shift, identity)


def conv_bn_downsample_add_relu(patches, w, shift, x_ds, wd, shiftd):
    M, K = patches.shape
    Kd = x_ds.shape[1]
    tm = _row_tile(M)
    return pl.pallas_call(
        _conv_bn_ds_res_kernel,
        out_shape=jax.ShapeDtypeStruct((M, CP), jnp.bfloat16),
        grid=(M // tm,),
        in_specs=[
            pl.BlockSpec((tm, K), lambda i: (i, 0)),
            pl.BlockSpec((K, CP), lambda i: (0, 0)),
            pl.BlockSpec((1, CP), lambda i: (0, 0)),
            pl.BlockSpec((tm, Kd), lambda i: (i, 0)),
            pl.BlockSpec((Kd, CP), lambda i: (0, 0)),
            pl.BlockSpec((1, CP), lambda i: (0, 0)),
        ],
        out_specs=pl.BlockSpec((tm, CP), lambda i: (i, 0)),
        compiler_params=_PARALLEL,
    )(patches, w, shift, x_ds, wd, shiftd)


def maxpool_3x3_s2(x):
    """x: (N, H, W, CP) bf16, post-ReLU (>= 0) so zero spatial padding == -inf padding."""
    N, H, W, C = x.shape
    xp = jnp.pad(x, ((0, 0), (1, 1), (1, 1), (0, 0)))
    Ho = (H + 2 - 3) // 2 + 1
    Wo = (W + 2 - 3) // 2 + 1
    M = N * Ho * Wo
    views = []
    for di in range(3):
        for dj in range(3):
            v = xp[:, di:di + 2 * (Ho - 1) + 1:2, dj:dj + 2 * (Wo - 1) + 1:2, :]
            views.append(v.reshape(M, C))
    tm = _row_tile(M)
    out = pl.pallas_call(
        _max9_kernel,
        out_shape=jax.ShapeDtypeStruct((M, C), x.dtype),
        grid=(M // tm,),
        in_specs=[pl.BlockSpec((tm, C), lambda i: (i, 0)) for _ in range(9)],
        out_specs=pl.BlockSpec((tm, C), lambda i: (i, 0)),
        compiler_params=_PARALLEL,
    )(*views)
    return out.reshape(N, Ho, Wo, C)


def global_avg_pool(x):
    """x: (N, H, W, CP) bf16 -> (N, CP) f32 (fallback; normally fused into last block)."""
    N, H, W, C = x.shape
    return pl.pallas_call(
        _gap_kernel,
        out_shape=jax.ShapeDtypeStruct((N, C), jnp.float32),
    )(x.reshape(N, H * W, C))


# ----------------------------------------------------------------------------
# Plain-JAX glue (patch extraction; fused by XLA under jit)
# ----------------------------------------------------------------------------
def _round_up(v, m):
    return ((v + m - 1) // m) * m


def extract_patches(x, k, stride, pad):
    """x: (N,H,W,C) -> patches (N*Ho*Wo, k*k*C), Ho, Wo."""
    N, H, W, C = x.shape
    xp = jnp.pad(x, ((0, 0), (pad, pad), (pad, pad), (0, 0)))
    Ho = (H + 2 * pad - k) // stride + 1
    Wo = (W + 2 * pad - k) // stride + 1
    taps = []
    for di in range(k):
        for dj in range(k):
            taps.append(
                xp[:, di:di + stride * (Ho - 1) + 1:stride,
                   dj:dj + stride * (Wo - 1) + 1:stride, :])
    p = jnp.concatenate(taps, axis=-1)  # (N, Ho, Wo, k*k*C), tap-major / channel-minor
    return p.reshape(N * Ho * Wo, k * k * C), Ho, Wo


def _pad_k(patches, k_target):
    k = patches.shape[1]
    if k < k_target:
        patches = jnp.pad(patches, ((0, 0), (0, k_target - k)))
    return patches


def basic_block(x, blk, fuse_gap=False):
    """BasicBlock: conv3x3-bn-relu, conv3x3-bn (+fused downsample identity), add, relu.

    When `fuse_gap` is True (last block, no downsample) the global average pool is fused
    into the second conv's epilogue and the (N, CP) f32 embedding is returned directly."""
    N, H, W, _ = x.shape
    s = blk["stride"]
    cin = blk["cin"]     # real input channels (activation carries them in the first lanes)
    cmid = blk["cout"]   # block width

    p1, Ho, Wo = extract_patches(x[..., :cin], 3, s, 1)
    p1 = _pad_k(p1, blk["w1"].shape[0])
    h = conv_bn(p1, blk["w1"], blk["shift1"], relu=True).reshape(N, Ho, Wo, CP)

    p2, _, _ = extract_patches(h[..., :cmid], 3, 1, 1)
    p2 = _pad_k(p2, blk["w2"].shape[0])

    M = N * Ho * Wo
    if "wd" in blk:
        x_ds = x[:, ::s, ::s, :].reshape(M, CP)  # 1x1/s downsample "patches"
        out = conv_bn_downsample_add_relu(p2, blk["w2"], blk["shift2"],
                                          x_ds, blk["wd"], blk["shiftd"])
        return out.reshape(N, Ho, Wo, CP)

    identity = x.reshape(M, CP)
    if fuse_gap:
        return conv_bn_add_relu_gap(p2, blk["w2"], blk["shift2"], identity, hw=Ho * Wo)
    out = conv_bn_add_relu(p2, blk["w2"], blk["shift2"], identity)
    return out.reshape(N, Ho, Wo, CP)


# ----------------------------------------------------------------------------
# Parameters: deterministic synthetic ResNet-18 (stripped) weights + BN folding
# ----------------------------------------------------------------------------
def _conv_init(key, k, cin, cout):
    fan_in = k * k * cin
    return jax.random.normal(key, (k, k, cin, cout), jnp.float32) * (2.0 / fan_in) ** 0.5


def _bn_init(key, c):
    k1, k2 = jax.random.split(key)
    gamma = 1.0 + 0.1 * jax.random.normal(k1, (c,), jnp.float32)
    beta = 0.1 * jax.random.normal(k2, (c,), jnp.float32)
    return (gamma, beta, jnp.zeros((c,), jnp.float32), jnp.ones((c,), jnp.float32))


def init_resnet_stripped_params(key, cin=3, c0=8):
    keys = iter(jax.random.split(key, 128))
    params = {
        "conv1_w": _conv_init(next(keys), 7, cin, c0),
        "bn1": _bn_init(next(keys), c0),
        "layers": [],
    }
    in_c = c0
    for (out_c, stride0) in [(c0, 1), (2 * c0, 2), (4 * c0, 2), (8 * c0, 2)]:
        blocks = []
        for b in range(2):
            stride = stride0 if b == 0 else 1
            blk = {
                "stride": stride,
                "conv1": _conv_init(next(keys), 3, in_c, out_c),
                "bn1": _bn_init(next(keys), out_c),
                "conv2": _conv_init(next(keys), 3, out_c, out_c),
                "bn2": _bn_init(next(keys), out_c),
            }
            if stride != 1 or in_c != out_c:
                blk["down_conv"] = _conv_init(next(keys), 1, in_c, out_c)
                blk["down_bn"] = _bn_init(next(keys), out_c)
            blocks.append(blk)
            in_c = out_c
        params["layers"].append(blocks)
    return params


def _fold(w_hwio, bn, cin_pad, k_pad=None, eps=1e-5):
    """Fold BN scale into the conv weights; pad Cin/Cout/K so kernel loads are unmasked."""
    gamma, beta, mean, var = bn
    inv = gamma * jax.lax.rsqrt(var + eps)
    shift = beta - mean * inv
    k, _, cin, cout = w_hwio.shape
    w = w_hwio * inv[None, None, None, :]
    w = jnp.pad(w, ((0, 0), (0, 0), (0, cin_pad - cin), (0, CP - cout)))
    wm = w.reshape(k * k * cin_pad, CP)
    if k_pad is not None and k_pad > wm.shape[0]:
        wm = jnp.pad(wm, ((0, k_pad - wm.shape[0]), (0, 0)))
    shift = jnp.pad(shift, (0, CP - cout)).reshape(1, CP)
    return wm.astype(jnp.bfloat16), shift.astype(jnp.float32)


def prepare_params(raw):
    pp = {"layers": []}
    cin0 = raw["conv1_w"].shape[2]
    pp["conv1_w"], pp["conv1_shift"] = _fold(
        raw["conv1_w"], raw["bn1"], cin_pad=cin0,
        k_pad=_round_up(49 * cin0, 128))            # 147 -> 256
    for layer in raw["layers"]:
        blks = []
        for b in layer:
            cin = b["conv1"].shape[2]
            cout = b["conv2"].shape[3]
            e = {"stride": b["stride"], "cin": cin, "cout": cout}
            e["w1"], e["shift1"] = _fold(b["conv1"], b["bn1"], cin_pad=cin,
                                         k_pad=_round_up(9 * cin, 128))
            e["w2"], e["shift2"] = _fold(b["conv2"], b["bn2"], cin_pad=cout,
                                         k_pad=_round_up(9 * cout, 128))
            if "down_conv" in b:
                e["wd"], e["shiftd"] = _fold(b["down_conv"], b["down_bn"], cin_pad=CP)
            blks.append(e)
        pp["layers"].append(blks)
    pp["c_out"] = int(raw["layers"][-1][-1]["conv2"].shape[-1])
    return pp


# ----------------------------------------------------------------------------
# Forward passes
# ----------------------------------------------------------------------------
def resnet_stripped_forward(x_nchw, params):
    """ResNet-18 with fc stripped: output (N, C_last, 1, 1)."""
    x = jnp.transpose(x_nchw, (0, 2, 3, 1)).astype(jnp.bfloat16)   # NHWC, bf16 operands
    N = x.shape[0]

    # Stem: 7x7/s2 conv + folded BN + ReLU (K padded 147 -> 256, Cout padded to 128 lanes).
    p, Ho, Wo = extract_patches(x, 7, 2, 3)
    p = _pad_k(p, params["conv1_w"].shape[0])
    x = conv_bn(p, params["conv1_w"], params["conv1_shift"], relu=True).reshape(N, Ho, Wo, CP)

    x = maxpool_3x3_s2(x)

    layers = params["layers"]
    emb = None
    for li, layer in enumerate(layers):
        for bi, blk in enumerate(layer):
            is_last = (li == len(layers) - 1) and (bi == len(layer) - 1)
            if is_last and "wd" not in blk:
                emb = basic_block(x, blk, fuse_gap=True)   # (N, CP) f32, GAP fused
            else:
                x = basic_block(x, blk)
    if emb is None:                                        # fallback (last block has downsample)
        emb = global_avg_pool(x)

    c_out = params["c_out"]
    return emb[:, :c_out].reshape(N, c_out, 1, 1)          # AdaptiveAvgPool2d(1) output layout


def triplet_net_forward(x1, x2, x3, params):
    """TripletNet.forward: shared embedding_net on three inputs.

    The three branches share weights and BN uses fixed inference statistics, so they are
    batched into a single backbone pass (identical results, 3x fewer kernel launches)."""
    n = x1.shape[0]
    x = jnp.concatenate([x1, x2, x3], axis=0)
    emb = resnet_stripped_forward(x, params)
    return emb[:n], emb[n:2 * n], emb[2 * n:]


if __name__ == "__main__":
    key = jax.random.PRNGKey(0)
    kx1, kx2, kx3, kp = jax.random.split(key, 4)
    # Small image-backbone shapes: batch=2 per branch, 3 channels, 32x32.
    x1 = jax.random.normal(kx1, (2, 3, 32, 32), jnp.float32)
    x2 = jax.random.normal(kx2, (2, 3, 32, 32), jnp.float32)
    x3 = jax.random.normal(kx3, (2, 3, 32, 32), jnp.float32)

    raw_params = init_resnet_stripped_params(kp, cin=3, c0=8)
    prepared = prepare_params(raw_params)

    fwd = jax.jit(functools.partial(triplet_net_forward, params=prepared))
    o1, o2, o3 = fwd(x1, x2, x3)
    jax.block_until_ready((o1, o2, o3))

    for o in (o1, o2, o3):
        assert o.shape == (2, 64, 1, 1), o.shape
        assert bool(jnp.all(jnp.isfinite(o)))
    print("KERNEL_OK")
</pallas_src>

<mosaic_0001>
module attributes {stable_mosaic.version = 11 : i64} {
  func.func @_conv_bn_kernel(%arg0: i32, %arg1: memref<768x256xbf16, #tpu.memory_space<vmem>>, %arg2: memref<256x128xbf16, #tpu.memory_space<vmem>>, %arg3: memref<1x128xf32, #tpu.memory_space<vmem>>, %arg4: memref<768x128xbf16, #tpu.memory_space<vmem>>) attributes {dimension_semantics = [#tpu.dimension_semantics<parallel>], iteration_bounds = array<i64: 2>, scalar_prefetch = 0 : i64, scratch_operands = 0 : i64, tpu.core_type = #tpu.core_type<tc>, window_params = [{transform_indices = @transform_0, window_bounds = array<i64: 768, 256>}, {pipeline_mode = #tpu.pipeline_mode<synchronous>, transform_indices = @transform_1, window_bounds = array<i64: 256, 128>}, {pipeline_mode = #tpu.pipeline_mode<synchronous>, transform_indices = @transform_2, window_bounds = array<i64: 1, 128>}, {transform_indices = @transform_3, window_bounds = array<i64: 768, 128>}]} {
    %c0 = arith.constant 0 : index
    %c0_0 = arith.constant 0 : index
    %0 = vector.load %arg1[%c0, %c0_0] : memref<768x256xbf16, #tpu.memory_space<vmem>>, vector<768x256xbf16>
    %c0_1 = arith.constant 0 : index
    %c0_2 = arith.constant 0 : index
    %1 = vector.load %arg2[%c0_1, %c0_2] : memref<256x128xbf16, #tpu.memory_space<vmem>>, vector<256x128xbf16>
    %cst = arith.constant dense<0.000000e+00> : vector<768x128xf32>
    %2 = tpu.matmul %0, %1, %cst {dimension_numbers = #tpu.dot_dimension_numbers<[1], [0], [0], [1], [0, 0, 1, 1], [], []>} : vector<768x256xbf16>, vector<256x128xbf16>, vector<768x128xf32> -> vector<768x128xf32>
    %c0_3 = arith.constant 0 : index
    %c0_4 = arith.constant 0 : index
    %3 = vector.load %arg3[%c0_3, %c0_4] : memref<1x128xf32, #tpu.memory_space<vmem>>, vector<1x128xf32>
    %4 = vector.broadcast %3 : vector<1x128xf32> to vector<768x128xf32>
    %5 = arith.addf %2, %4 : vector<768x128xf32>
    %cst_5 = arith.constant 0.000000e+00 : f32
    %6 = vector.broadcast %cst_5 : f32 to vector<768x128xf32>
    %7 = arith.maximumf %5, %6 : vector<768x128xf32>
    %8 = arith.truncf %7 : vector<768x128xf32> to vector<768x128xbf16>
    %c0_6 = arith.constant 0 : index
    %c0_7 = arith.constant 0 : index
    %9 = vector.load %arg4[%c0_6, %c0_7] : memref<768x128xbf16, #tpu.memory_space<vmem>>, vector<768x128xbf16>
    tpu.vector_store %arg4[%c0_6, %c0_7], %8 {strides = array<i32>} : memref<768x128xbf16, #tpu.memory_space<vmem>>, vector<768x128xbf16>,
    return
  }
  func.func @transform_0(%arg0: i32) -> (i32, i32) {
    %c0_i32 = arith.constant 0 : i32
    %c0_i32_0 = arith.constant 0 : i32
    return %arg0, %c0_i32 : i32, i32
  }
  func.func @transform_1(%arg0: i32) -> (i32, i32) {
    %c0_i32 = arith.constant 0 : i32
    %c0_i32_0 = arith.constant 0 : i32
    %c0_i32_1 = arith.constant 0 : i32
    return %c0_i32, %c0_i32_0 : i32, i32
  }
  func.func @transform_2(%arg0: i32) -> (i32, i32) {
    %c0_i32 = arith.constant 0 : i32
    %c0_i32_0 = arith.constant 0 : i32
    %c0_i32_1 = arith.constant 0 : i32
    return %c0_i32, %c0_i32_0 : i32, i32
  }
  func.func @transform_3(%arg0: i32) -> (i32, i32) {
    %c0_i32 = arith.constant 0 : i32
    %c0_i32_0 = arith.constant 0 : i32
    return %arg0, %c0_i32 : i32, i32
  }
}

module attributes {stable_mosaic.version = 11 : i64} {
  func.func @_max9_kernel(%arg0: i32, %arg1: memref<384x128xbf16, #tpu.memory_space<vmem>>, %arg2: memref<384x128xbf16, #tpu.memory_space<vmem>>, %arg3: memref<384x128xbf16, #tpu.memory_space<vmem>>, %arg4: memref<384x128xbf16, #tpu.memory_space<vmem>>, %arg5: memref<384x128xbf16, #tpu.memory_space<vmem>>, %arg6: memref<384x128xbf16, #tpu.memory_space<vmem>>, %arg7: memref<384x128xbf16, #tpu.memory_space<vmem>>, %arg8: memref<384x128xbf16, #tpu.memory_space<vmem>>, %arg9: memref<384x128xbf16, #tpu.memory_space<vmem>>, %arg10: memref<384x128xbf16, #tpu.memory_space<vmem>>) attributes {dimension_semantics = [#tpu.dimension_semantics<parallel>], iteration_bounds = array<i64: 1>, scalar_prefetch = 0 : i64, scratch_operands = 0 : i64, tpu.core_type = #tpu.core_type<tc>, window_params = [{transform_indices = @transform_0, window_bounds = array<i64: 384, 128>}, {transform_indices = @transform_1, window_bounds = array<i64: 384, 128>}, {transform_indices = @transform_2, window_bounds = array<i64: 384, 128>}, {transform_indices = @transform_3, window_bounds = array<i64: 384, 128>}, {transform_indices = @transform_4, window_bounds = array<i64: 384, 128>}, {transform_indices = @transform_5, window_bounds = array<i64: 384, 128>}, {transform_indices = @transform_6, window_bounds = array<i64: 384, 128>}, {transform_indices = @transform_7, window_bounds = array<i64: 384, 128>}, {transform_indices = @transform_8, window_bounds = array<i64: 384, 128>}, {transform_indices = @transform_9, window_bounds = array<i64: 384, 128>}]} {
    %c0 = arith.constant 0 : index
    %c0_0 = arith.constant 0 : index
    %0 = vector.load %arg1[%c0, %c0_0] : memref<384x128xbf16, #tpu.memory_space<vmem>>, vector<384x128xbf16>
    %c0_1 = arith.constant 0 : index
    %c0_2 = arith.constant 0 : index
    %1 = vector.load %arg2[%c0_1, %c0_2] : memref<384x128xbf16, #tpu.memory_space<vmem>>, vector<384x128xbf16>
    %2 = arith.maximumf %0, %1 : vector<384x128xbf16>
    %c0_3 = arith.constant 0 : index
    %c0_4 = arith.constant 0 : index
    %3 = vector.load %arg3[%c0_3, %c0_4] : memref<384x128xbf16, #tpu.memory_space<vmem>>, vector<384x128xbf16>
    %4 = arith.maximumf %2, %3 : vector<384x128xbf16>
    %c0_5 = arith.constant 0 : index
    %c0_6 = arith.constant 0 : index
    %5 = vector.load %arg4[%c0_5, %c0_6] : memref<384x128xbf16, #tpu.memory_space<vmem>>, vector<384x128xbf16>
    %6 = arith.maximumf %4, %5 : vector<384x128xbf16>
    %c0_7 = arith.constant 0 : index
    %c0_8 = arith.constant 0 : index
    %7 = vector.load %arg5[%c0_7, %c0_8] : memref<384x128xbf16, #tpu.memory_space<vmem>>, vector<384x128xbf16>
    %8 = arith.maximumf %6, %7 : vector<384x128xbf16>
    %c0_9 = arith.constant 0 : index
    %c0_10 = arith.constant 0 : index
    %9 = vector.load %arg6[%c0_9, %c0_10] : memref<384x128xbf16, #tpu.memory_space<vmem>>, vector<384x128xbf16>
    %10 = arith.maximumf %8, %9 : vector<384x128xbf16>
    %c0_11 = arith.constant 0 : index
    %c0_12 = arith.constant 0 : index
    %11 = vector.load %arg7[%c0_11, %c0_12] : memref<384x128xbf16, #tpu.memory_space<vmem>>, vector<384x128xbf16>
    %12 = arith.maximumf %10, %11 : vector<384x128xbf16>
    %c0_13 = arith.constant 0 : index
    %c0_14 = arith.constant 0 : index
    %13 = vector.load %arg8[%c0_13, %c0_14] : memref<384x128xbf16, #tpu.memory_space<vmem>>, vector<384x128xbf16>
    %14 = arith.maximumf %12, %13 : vector<384x128xbf16>
    %c0_15 = arith.constant 0 : index
    %c0_16 = arith.constant 0 : index
    %15 = vector.load %arg9[%c0_15, %c0_16] : memref<384x128xbf16, #tpu.memory_space<vmem>>, vector<384x128xbf16>
    %16 = arith.maximumf %14, %15 : vector<384x128xbf16>
    %c0_17 = arith.constant 0 : index
    %c0_18 = arith.constant 0 : index
    %17 = vector.load %arg10[%c0_17, %c0_18] : memref<384x128xbf16, #tpu.memory_space<vmem>>, vector<384x128xbf16>
    tpu.vector_store %arg10[%c0_17, %c0_18], %16 {strides = array<i32>} : memref<384x128xbf16, #tpu.memory_space<vmem>>, vector<384x128xbf16>,
    return
  }
  func.func @transform_0(%arg0: i32) -> (i32, i32) {
    %c0_i32 = arith.constant 0 : i32
    %c0_i32_0 = arith.constant 0 : i32
    return %arg0, %c0_i32 : i32, i32
  }
  func.func @transform_1(%arg0: i32) -> (i32, i32) {
    %c0_i32 = arith.constant 0 : i32
    %c0_i32_0 = arith.constant 0 : i32
    return %arg0, %c0_i32 : i32, i32
  }
  func.func @transform_2(%arg0: i32) -> (i32, i32) {
    %c0_i32 = arith.constant 0 : i32
    %c0_i32_0 = arith.constant 0 : i32
    return %arg0, %c0_i32 : i32, i32
  }
  func.func @transform_3(%arg0: i32) -> (i32, i32) {
    %c0_i32 = arith.constant 0 : i32
    %c0_i32_0 = arith.constant 0 : i32
    return %arg0, %c0_i32 : i32, i32
  }
  func.func @transform_4(%arg0: i32) -> (i32, i32) {
    %c0_i32 = arith.constant 0 : i32
    %c0_i32_0 = arith.constant 0 : i32
    return %arg0, %c0_i32 : i32, i32
  }
  func.func @transform_5(%arg0: i32) -> (i32, i32) {
    %c0_i32 = arith.constant 0 : i32
    %c0_i32_0 = arith.constant 0 : i32
    return %arg0, %c0_i32 : i32, i32
  }
  func.func @transform_6(%arg0: i32) -> (i32, i32) {
    %c0_i32 = arith.constant 0 : i32
    %c0_i32_0 = arith.constant 0 : i32
    return %arg0, %c0_i32 : i32, i32
  }
  func.func @transform_7(%arg0: i32) -> (i32, i32) {
    %c0_i32 = arith.constant 0 : i32
    %c0_i32_0 = arith.constant 0 : i32
    return %arg0, %c0_i32 : i32, i32
  }
  func.func @transform_8(%arg0: i32) -> (i32, i32) {
    %c0_i32 = arith.constant 0 : i32
    %c0_i32_0 = arith.constant 0 : i32
    return %arg0, %c0_i32 : i32, i32
  }
  func.func @transform_9(%arg0: i32) -> (i32, i32) {
    %c0_i32 = arith.constant 0 : i32
    %c0_i32_0 = arith.constant 0 : i32
    return %arg0, %c0_i32 : i32, i32
  }
}

module attributes {stable_mosaic.version = 11 : i64} {
  func.func @_conv_bn_kernel(%arg0: i32, %arg1: memref<384x128xbf16, #tpu.memory_space<vmem>>, %arg2: memref<128x128xbf16, #tpu.memory_space<vmem>>, %arg3: memref<1x128xf32, #tpu.memory_space<vmem>>, %arg4: memref<384x128xbf16, #tpu.memory_space<vmem>>) attributes {dimension_semantics = [#tpu.dimension_semantics<parallel>], iteration_bounds = array<i64: 1>, scalar_prefetch = 0 : i64, scratch_operands = 0 : i64, tpu.core_type = #tpu.core_type<tc>, window_params = [{transform_indices = @transform_0, window_bounds = array<i64: 384, 128>}, {pipeline_mode = #tpu.pipeline_mode<synchronous>, transform_indices = @transform_1, window_bounds = array<i64: 128, 128>}, {pipeline_mode = #tpu.pipeline_mode<synchronous>, transform_indices = @transform_2, window_bounds = array<i64: 1, 128>}, {transform_indices = @transform_3, window_bounds = array<i64: 384, 128>}]} {
    %c0 = arith.constant 0 : index
    %c0_0 = arith.constant 0 : index
    %0 = vector.load %arg1[%c0, %c0_0] : memref<384x128xbf16, #tpu.memory_space<vmem>>, vector<384x128xbf16>
    %c0_1 = arith.constant 0 : index
    %c0_2 = arith.constant 0 : index
    %1 = vector.load %arg2[%c0_1, %c0_2] : memref<128x128xbf16, #tpu.memory_space<vmem>>, vector<128x128xbf16>
    %cst = arith.constant dense<0.000000e+00> : vector<384x128xf32>
    %2 = tpu.matmul %0, %1, %cst {dimension_numbers = #tpu.dot_dimension_numbers<[1], [0], [0], [1], [0, 0, 1, 1], [], []>} : vector<384x128xbf16>, vector<128x128xbf16>, vector<384x128xf32> -> vector<384x128xf32>
    %c0_3 = arith.constant 0 : index
    %c0_4 = arith.constant 0 : index
    %3 = vector.load %arg3[%c0_3, %c0_4] : memref<1x128xf32, #tpu.memory_space<vmem>>, vector<1x128xf32>
    %4 = vector.broadcast %3 : vector<1x128xf32> to vector<384x128xf32>
    %5 = arith.addf %2, %4 : vector<384x128xf32>
    %cst_5 = arith.constant 0.000000e+00 : f32
    %6 = vector.broadcast %cst_5 : f32 to vector<384x128xf32>
    %7 = arith.maximumf %5, %6 : vector<384x128xf32>
    %8 = arith.truncf %7 : vector<384x128xf32> to vector<384x128xbf16>
    %c0_6 = arith.constant 0 : index
    %c0_7 = arith.constant 0 : index
    %9 = vector.load %arg4[%c0_6, %c0_7] : memref<384x128xbf16, #tpu.memory_space<vmem>>, vector<384x128xbf16>
    tpu.vector_store %arg4[%c0_6, %c0_7], %8 {strides = array<i32>} : memref<384x128xbf16, #tpu.memory_space<vmem>>, vector<384x128xbf16>,
    return
  }
  func.func @transform_0(%arg0: i32) -> (i32, i32) {
    %c0_i32 = arith.constant 0 : i32
    %c0_i32_0 = arith.constant 0 : i32
    return %arg0, %c0_i32 : i32, i32
  }
  func.func @transform_1(%arg0: i32) -> (i32, i32) {
    %c0_i32 = arith.constant 0 : i32
    %c0_i32_0 = arith.constant 0 : i32
    %c0_i32_1 = arith.constant 0 : i32
    return %c0_i32, %c0_i32_0 : i32, i32
  }
  func.func @transform_2(%arg0: i32) -> (i32, i32) {
    %c0_i32 = arith.constant 0 : i32
    %c0_i32_0 = arith.constant 0 : i32
    %c0_i32_1 = arith.constant 0 : i32
    return %c0_i32, %c0_i32_0 : i32, i32
  }
  func.func @transform_3(%arg0: i32) -> (i32, i32) {
    %c0_i32 = arith.constant 0 : i32
    %c0_i32_0 = arith.constant 0 : i32
    return %arg0, %c0_i32 : i32, i32
  }
}

module attributes {stable_mosaic.version = 11 : i64} {
  func.func @_conv_bn_res_kernel(%arg0: i32, %arg1: memref<384x128xbf16, #tpu.memory_space<vmem>>, %arg2: memref<128x128xbf16, #tpu.memory_space<vmem>>, %arg3: memref<1x128xf32, #tpu.memory_space<vmem>>, %arg4: memref<384x128xbf16, #tpu.memory_space<vmem>>, %arg5: memref<384x128xbf16, #tpu.memory_space<vmem>>) attributes {dimension_semantics = [#tpu.dimension_semantics<parallel>], iteration_bounds = array<i64: 1>, scalar_prefetch = 0 : i64, scratch_operands = 0 : i64, tpu.core_type = #tpu.core_type<tc>, window_params = [{transform_indices = @transform_0, window_bounds = array<i64: 384, 128>}, {pipeline_mode = #tpu.pipeline_mode<synchronous>, transform_indices = @transform_1, window_bounds = array<i64: 128, 128>}, {pipeline_mode = #tpu.pipeline_mode<synchronous>, transform_indices = @transform_2, window_bounds = array<i64: 1, 128>}, {transform_indices = @transform_3, window_bounds = array<i64: 384, 128>}, {transform_indices = @transform_4, window_bounds = array<i64: 384, 128>}]} {
    %c0 = arith.constant 0 : index
    %c0_0 = arith.constant 0 : index
    %0 = vector.load %arg1[%c0, %c0_0] : memref<384x128xbf16, #tpu.memory_space<vmem>>, vector<384x128xbf16>
    %c0_1 = arith.constant 0 : index
    %c0_2 = arith.constant 0 : index
    %1 = vector.load %arg2[%c0_1, %c0_2] : memref<128x128xbf16, #tpu.memory_space<vmem>>, vector<128x128xbf16>
    %cst = arith.constant dense<0.000000e+00> : vector<384x128xf32>
    %2 = tpu.matmul %0, %1, %cst {dimension_numbers = #tpu.dot_dimension_numbers<[1], [0], [0], [1], [0, 0, 1, 1], [], []>} : vector<384x128xbf16>, vector<128x128xbf16>, vector<384x128xf32> -> vector<384x128xf32>
    %c0_3 = arith.constant 0 : index
    %c0_4 = arith.constant 0 : index
    %3 = vector.load %arg3[%c0_3, %c0_4] : memref<1x128xf32, #tpu.memory_space<vmem>>, vector<1x128xf32>
    %4 = vector.broadcast %3 : vector<1x128xf32> to vector<384x128xf32>
    %5 = arith.addf %2, %4 : vector<384x128xf32>
    %c0_5 = arith.constant 0 : index
    %c0_6 = arith.constant 0 : index
    %6 = vector.load %arg4[%c0_5, %c0_6] : memref<384x128xbf16, #tpu.memory_space<vmem>>, vector<384x128xbf16>
    %7 = arith.extf %6 : vector<384x128xbf16> to vector<384x128xf32>
    %8 = arith.addf %5, %7 : vector<384x128xf32>
    %cst_7 = arith.constant 0.000000e+00 : f32
    %9 = vector.broadcast %cst_7 : f32 to vector<384x128xf32>
    %10 = arith.maximumf %8, %9 : vector<384x128xf32>
    %11 = arith.truncf %10 : vector<384x128xf32> to vector<384x128xbf16>
    %c0_8 = arith.constant 0 : index
    %c0_9 = arith.constant 0 : index
    %12 = vector.load %arg5[%c0_8, %c0_9] : memref<384x128xbf16, #tpu.memory_space<vmem>>, vector<384x128xbf16>
    tpu.vector_store %arg5[%c0_8, %c0_9], %11 {strides = array<i32>} : memref<384x128xbf16, #tpu.memory_space<vmem>>, vector<384x128xbf16>,
    return
  }
  func.func @transform_0(%arg0: i32) -> (i32, i32) {
    %c0_i32 = arith.constant 0 : i32
    %c0_i32_0 = arith.constant 0 : i32
    return %arg0, %c0_i32 : i32, i32
  }
  func.func @transform_1(%arg0: i32) -> (i32, i32) {
    %c0_i32 = arith.constant 0 : i32
    %c0_i32_0 = arith.constant 0 : i32
    %c0_i32_1 = arith.constant 0 : i32
    return %c0_i32, %c0_i32_0 : i32, i32
  }
  func.func @transform_2(%arg0: i32) -> (i32, i32) {
    %c0_i32 = arith.constant 0 : i32
    %c0_i32_0 = arith.constant 0 : i32
    %c0_i32_1 = arith.constant 0 : i32
    return %c0_i32, %c0_i32_0 : i32, i32
  }
  func.func @transform_3(%arg0: i32) -> (i32, i32) {
    %c0_i32 = arith.constant 0 : i32
    %c0_i32_0 = arith.constant 0 : i32
    return %arg0, %c0_i32 : i32, i32
  }
  func.func @transform_4(%arg0: i32) -> (i32, i32) {
    %c0_i32 = arith.constant 0 : i32
    %c0_i32_0 = arith.constant 0 : i32
    return %arg0, %c0_i32 : i32, i32
  }
}

module attributes {stable_mosaic.version = 11 : i64} {
  func.func @_conv_bn_kernel(%arg0: i32, %arg1: memref<96x128xbf16, #tpu.memory_space<vmem>>, %arg2: memref<128x128xbf16, #tpu.memory_space<vmem>>, %arg3: memref<1x128xf32, #tpu.memory_space<vmem>>, %arg4: memref<96x128xbf16, #tpu.memory_space<vmem>>) attributes {dimension_semantics = [#tpu.dimension_semantics<parallel>], iteration_bounds = array<i64: 1>, scalar_prefetch = 0 : i64, scratch_operands = 0 : i64, tpu.core_type = #tpu.core_type<tc>, window_params = [{transform_indices = @transform_0, window_bounds = array<i64: 96, 128>}, {pipeline_mode = #tpu.pipeline_mode<synchronous>, transform_indices = @transform_1, window_bounds = array<i64: 128, 128>}, {pipeline_mode = #tpu.pipeline_mode<synchronous>, transform_indices = @transform_2, window_bounds = array<i64: 1, 128>}, {transform_indices = @transform_3, window_bounds = array<i64: 96, 128>}]} {
    %c0 = arith.constant 0 : index
    %c0_0 = arith.constant 0 : index
    %0 = vector.load %arg1[%c0, %c0_0] : memref<96x128xbf16, #tpu.memory_space<vmem>>, vector<96x128xbf16>
    %c0_1 = arith.constant 0 : index
    %c0_2 = arith.constant 0 : index
    %1 = vector.load %arg2[%c0_1, %c0_2] : memref<128x128xbf16, #tpu.memory_space<vmem>>, vector<128x128xbf16>
    %cst = arith.constant dense<0.000000e+00> : vector<96x128xf32>
    %2 = tpu.matmul %0, %1, %cst {dimension_numbers = #tpu.dot_dimension_numbers<[1], [0], [0], [1], [0, 0, 1, 1], [], []>} : vector<96x128xbf16>, vector<128x128xbf16>, vector<96x128xf32> -> vector<96x128xf32>
    %c0_3 = arith.constant 0 : index
    %c0_4 = arith.constant 0 : index
    %3 = vector.load %arg3[%c0_3, %c0_4] : memref<1x128xf32, #tpu.memory_space<vmem>>, vector<1x128xf32>
    %4 = vector.broadcast %3 : vector<1x128xf32> to vector<96x128xf32>
    %5 = arith.addf %2, %4 : vector<96x128xf32>
    %cst_5 = arith.constant 0.000000e+00 : f32
    %6 = vector.broadcast %cst_5 : f32 to vector<96x128xf32>
    %7 = arith.maximumf %5, %6 : vector<96x128xf32>
    %8 = arith.truncf %7 : vector<96x128xf32> to vector<96x128xbf16>
    %c0_6 = arith.constant 0 : index
    %c0_7 = arith.constant 0 : index
    %9 = vector.load %arg4[%c0_6, %c0_7] : memref<96x128xbf16, #tpu.memory_space<vmem>>, vector<96x128xbf16>
    tpu.vector_store %arg4[%c0_6, %c0_7], %8 {strides = array<i32>} : memref<96x128xbf16, #tpu.memory_space<vmem>>, vector<96x128xbf16>,
    return
  }
  func.func @transform_0(%arg0: i32) -> (i32, i32) {
    %c0_i32 = arith.constant 0 : i32
    %c0_i32_0 = arith.constant 0 : i32
    return %arg0, %c0_i32 : i32, i32
  }
  func.func @transform_1(%arg0: i32) -> (i32, i32) {
    %c0_i32 = arith.constant 0 : i32
    %c0_i32_0 = arith.constant 0 : i32
    %c0_i32_1 = arith.constant 0 : i32
    return %c0_i32, %c0_i32_0 : i32, i32
  }
  func.func @transform_2(%arg0: i32) -> (i32, i32) {
    %c0_i32 = arith.constant 0 : i32
    %c0_i32_0 = arith.constant 0 : i32
    %c0_i32_1 = arith.constant 0 : i32
    return %c0_i32, %c0_i32_0 : i32, i32
  }
  func.func @transform_3(%arg0: i32) -> (i32, i32) {
    %c0_i32 = arith.constant 0 : i32
    %c0_i32_0 = arith.constant 0 : i32
    return %arg0, %c0_i32 : i32, i32
  }
}

module attributes {stable_mosaic.version = 11 : i64} {
  func.func @_conv_bn_ds_res_kernel(%arg0: i32, %arg1: memref<96x256xbf16, #tpu.memory_space<vmem>>, %arg2: memref<256x128xbf16, #tpu.memory_space<vmem>>, %arg3: memref<1x128xf32, #tpu.memory_space<vmem>>, %arg4: memref<96x128xbf16, #tpu.memory_space<vmem>>, %arg5: memref<128x128xbf16, #tpu.memory_space<vmem>>, %arg6: memref<1x128xf32, #tpu.memory_space<vmem>>, %arg7: memref<96x128xbf16, #tpu.memory_space<vmem>>) attributes {dimension_semantics = [#tpu.dimension_semantics<parallel>], iteration_bounds = array<i64: 1>, scalar_prefetch = 0 : i64, scratch_operands = 0 : i64, tpu.core_type = #tpu.core_type<tc>, window_params = [{transform_indices = @transform_0, window_bounds = array<i64: 96, 256>}, {pipeline_mode = #tpu.pipeline_mode<synchronous>, transform_indices = @transform_1, window_bounds = array<i64: 256, 128>}, {pipeline_mode = #tpu.pipeline_mode<synchronous>, transform_indices = @transform_2, window_bounds = array<i64: 1, 128>}, {transform_indices = @transform_3, window_bounds = array<i64: 96, 128>}, {pipeline_mode = #tpu.pipeline_mode<synchronous>, transform_indices = @transform_4, window_bounds = array<i64: 128, 128>}, {pipeline_mode = #tpu.pipeline_mode<synchronous>, transform_indices = @transform_5, window_bounds = array<i64: 1, 128>}, {transform_indices = @transform_6, window_bounds = array<i64: 96, 128>}]} {
    %c0 = arith.constant 0 : index
    %c0_0 = arith.constant 0 : index
    %0 = vector.load %arg1[%c0, %c0_0] : memref<96x256xbf16, #tpu.memory_space<vmem>>, vector<96x256xbf16>
    %c0_1 = arith.constant 0 : index
    %c0_2 = arith.constant 0 : index
    %1 = vector.load %arg2[%c0_1, %c0_2] : memref<256x128xbf16, #tpu.memory_space<vmem>>, vector<256x128xbf16>
    %cst = arith.constant dense<0.000000e+00> : vector<96x128xf32>
    %2 = tpu.matmul %0, %1, %cst {dimension_numbers = #tpu.dot_dimension_numbers<[1], [0], [0], [1], [0, 0, 1, 1], [], []>} : vector<96x256xbf16>, vector<256x128xbf16>, vector<96x128xf32> -> vector<96x128xf32>
    %c0_3 = arith.constant 0 : index
    %c0_4 = arith.constant 0 : index
    %3 = vector.load %arg4[%c0_3, %c0_4] : memref<96x128xbf16, #tpu.memory_space<vmem>>, vector<96x128xbf16>
    %c0_5 = arith.constant 0 : index
    %c0_6 = arith.constant 0 : index
    %4 = vector.load %arg5[%c0_5, %c0_6] : memref<128x128xbf16, #tpu.memory_space<vmem>>, vector<128x128xbf16>
    %cst_7 = arith.constant dense<0.000000e+00> : vector<96x128xf32>
    %5 = tpu.matmul %3, %4, %cst_7 {dimension_numbers = #tpu.dot_dimension_numbers<[1], [0], [0], [1], [0, 0, 1, 1], [], []>} : vector<96x128xbf16>, vector<128x128xbf16>, vector<96x128xf32> -> vector<96x128xf32>
    %c0_8 = arith.constant 0 : index
    %c0_9 = arith.constant 0 : index
    %6 = vector.load %arg6[%c0_8, %c0_9] : memref<1x128xf32, #tpu.memory_space<vmem>>, vector<1x128xf32>
    %7 = vector.broadcast %6 : vector<1x128xf32> to vector<96x128xf32>
    %8 = arith.addf %5, %7 : vector<96x128xf32>
    %c0_10 = arith.constant 0 : index
    %c0_11 = arith.constant 0 : index
    %9 = vector.load %arg3[%c0_10, %c0_11] : memref<1x128xf32, #tpu.memory_space<vmem>>, vector<1x128xf32>
    %10 = vector.broadcast %9 : vector<1x128xf32> to vector<96x128xf32>
    %11 = arith.addf %2, %10 : vector<96x128xf32>
    %12 = arith.addf %11, %8 : vector<96x128xf32>
    %cst_12 = arith.constant 0.000000e+00 : f32
    %13 = vector.broadcast %cst_12 : f32 to vector<96x128xf32>
    %14 = arith.maximumf %12, %13 : vector<96x128xf32>
    %15 = arith.truncf %14 : vector<96x128xf32> to vector<96x128xbf16>
    %c0_13 = arith.constant 0 : index
    %c0_14 = arith.constant 0 : index
    %16 = vector.load %arg7[%c0_13, %c0_14] : memref<96x128xbf16, #tpu.memory_space<vmem>>, vector<96x128xbf16>
    tpu.vector_store %arg7[%c0_13, %c0_14], %15 {strides = array<i32>} : memref<96x128xbf16, #tpu.memory_space<vmem>>, vector<96x128xbf16>,
    return
  }
  func.func @transform_0(%arg0: i32) -> (i32, i32) {
    %c0_i32 = arith.constant 0 : i32
    %c0_i32_0 = arith.constant 0 : i32
    return %arg0, %c0_i32 : i32, i32
  }
  func.func @transform_1(%arg0: i32) -> (i32, i32) {
    %c0_i32 = arith.constant 0 : i32
    %c0_i32_0 = arith.constant 0 : i32
    %c0_i32_1 = arith.constant 0 : i32
    return %c0_i32, %c0_i32_0 : i32, i32
  }
  func.func @transform_2(%arg0: i32) -> (i32, i32) {
    %c0_i32 = arith.constant 0 : i32
    %c0_i32_0 = arith.constant 0 : i32
    %c0_i32_1 = arith.constant 0 : i32
    return %c0_i32, %c0_i32_0 : i32, i32
  }
  func.func @transform_3(%arg0: i32) -> (i32, i32) {
    %c0_i32 = arith.constant 0 : i32
    %c0_i32_0 = arith.constant 0 : i32
    return %arg0, %c0_i32 : i32, i32
  }
  func.func @transform_4(%arg0: i32) -> (i32, i32) {
    %c0_i32 = arith.constant 0 : i32
    %c0_i32_0 = arith.constant 0 : i32
    %c0_i32_1 = arith.constant 0 : i32
    return %c0_i32, %c0_i32_0 : i32, i32
  }
  func.func @transform_5(%arg0: i32) -> (i32, i32) {
    %c0_i32 = arith.constant 0 : i32
    %c0_i32_0 = arith.constant 0 : i32
    %c0_i32_1 = arith.constant 0 : i32
    return %c0_i32, %c0_i32_0 : i32, i32
  }
  func.func @transform_6(%arg0: i32) -> (i32, i32) {
    %c0_i32 = arith.constant 0 : i32
    %c0_i32_0 = arith.constant 0 : i32
    return %arg0, %c0_i32 : i32, i32
  }
}

module attributes {stable_mosaic.version = 11 : i64} {
  func.func @_conv_bn_kernel(%arg0: i32, %arg1: memref<96x256xbf16, #tpu.memory_space<vmem>>, %arg2: memref<256x128xbf16, #tpu.memory_space<vmem>>, %arg3: memref<1x128xf32, #tpu.memory_space<vmem>>, %arg4: memref<96x128xbf16, #tpu.memory_space<vmem>>) attributes {dimension_semantics = [#tpu.dimension_semantics<parallel>], iteration_bounds = array<i64: 1>, scalar_prefetch = 0 : i64, scratch_operands = 0 : i64, tpu.core_type = #tpu.core_type<tc>, window_params = [{transform_indices = @transform_0, window_bounds = array<i64: 96, 256>}, {pipeline_mode = #tpu.pipeline_mode<synchronous>, transform_indices = @transform_1, window_bounds = array<i64: 256, 128>}, {pipeline_mode = #tpu.pipeline_mode<synchronous>, transform_indices = @transform_2, window_bounds = array<i64: 1, 128>}, {transform_indices = @transform_3, window_bounds = array<i64: 96, 128>}]} {
    %c0 = arith.constant 0 : index
    %c0_0 = arith.constant 0 : index
    %0 = vector.load %arg1[%c0, %c0_0] : memref<96x256xbf16, #tpu.memory_space<vmem>>, vector<96x256xbf16>
    %c0_1 = arith.constant 0 : index
    %c0_2 = arith.constant 0 : index
    %1 = vector.load %arg2[%c0_1, %c0_2] : memref<256x128xbf16, #tpu.memory_space<vmem>>, vector<256x128xbf16>
    %cst = arith.constant dense<0.000000e+00> : vector<96x128xf32>
    %2 = tpu.matmul %0, %1, %cst {dimension_numbers = #tpu.dot_dimension_numbers<[1], [0], [0], [1], [0, 0, 1, 1], [], []>} : vector<96x256xbf16>, vector<256x128xbf16>, vector<96x128xf32> -> vector<96x128xf32>
    %c0_3 = arith.constant 0 : index
    %c0_4 = arith.constant 0 : index
    %3 = vector.load %arg3[%c0_3, %c0_4] : memref<1x128xf32, #tpu.memory_space<vmem>>, vector<1x128xf32>
    %4 = vector.broadcast %3 : vector<1x128xf32> to vector<96x128xf32>
    %5 = arith.addf %2, %4 : vector<96x128xf32>
    %cst_5 = arith.constant 0.000000e+00 : f32
    %6 = vector.broadcast %cst_5 : f32 to vector<96x128xf32>
    %7 = arith.maximumf %5, %6 : vector<96x128xf32>
    %8 = arith.truncf %7 : vector<96x128xf32> to vector<96x128xbf16>
    %c0_6 = arith.constant 0 : index
    %c0_7 = arith.constant 0 : index
    %9 = vector.load %arg4[%c0_6, %c0_7] : memref<96x128xbf16, #tpu.memory_space<vmem>>, vector<96x128xbf16>
    tpu.vector_store %arg4[%c0_6, %c0_7], %8 {strides = array<i32>} : memref<96x128xbf16, #tpu.memory_space<vmem>>, vector<96x128xbf16>,
    return
  }
  func.func @transform_0(%arg0: i32) -> (i32, i32) {
    %c0_i32 = arith.constant 0 : i32
    %c0_i32_0 = arith.constant 0 : i32
    return %arg0, %c0_i32 : i32, i32
  }
  func.func @transform_1(%arg0: i32) -> (i32, i32) {
    %c0_i32 = arith.constant 0 : i32
    %c0_i32_0 = arith.constant 0 : i32
    %c0_i32_1 = arith.constant 0 : i32
    return %c0_i32, %c0_i32_0 : i32, i32
  }
  func.func @transform_2(%arg0: i32) -> (i32, i32) {
    %c0_i32 = arith.constant 0 : i32
    %c0_i32_0 = arith.constant 0 : i32
    %c0_i32_1 = arith.constant 0 : i32
    return %c0_i32, %c0_i32_0 : i32, i32
  }
  func.func @transform_3(%arg0: i32) -> (i32, i32) {
    %c0_i32 = arith.constant 0 : i32
    %c0_i32_0 = arith.constant 0 : i32
    return %arg0, %c0_i32 : i32, i32
  }
}

module attributes {stable_mosaic.version = 11 : i64} {
  func.func @_conv_bn_res_kernel(%arg0: i32, %arg1: memref<96x256xbf16, #tpu.memory_space<vmem>>, %arg2: memref<256x128xbf16, #tpu.memory_space<vmem>>, %arg3: memref<1x128xf32, #tpu.memory_space<vmem>>, %arg4: memref<96x128xbf16, #tpu.memory_space<vmem>>, %arg5: memref<96x128xbf16, #tpu.memory_space<vmem>>) attributes {dimension_semantics = [#tpu.dimension_semantics<parallel>], iteration_bounds = array<i64: 1>, scalar_prefetch = 0 : i64, scratch_operands = 0 : i64, tpu.core_type = #tpu.core_type<tc>, window_params = [{transform_indices = @transform_0, window_bounds = array<i64: 96, 256>}, {pipeline_mode = #tpu.pipeline_mode<synchronous>, transform_indices = @transform_1, window_bounds = array<i64: 256, 128>}, {pipeline_mode = #tpu.pipeline_mode<synchronous>, transform_indices = @transform_2, window_bounds = array<i64: 1, 128>}, {transform_indices = @transform_3, window_bounds = array<i64: 96, 128>}, {transform_indices = @transform_4, window_bounds = array<i64: 96, 128>}]} {
    %c0 = arith.constant 0 : index
    %c0_0 = arith.constant 0 : index
    %0 = vector.load %arg1[%c0, %c0_0] : memref<96x256xbf16, #tpu.memory_space<vmem>>, vector<96x256xbf16>
    %c0_1 = arith.constant 0 : index
    %c0_2 = arith.constant 0 : index
    %1 = vector.load %arg2[%c0_1, %c0_2] : memref<256x128xbf16, #tpu.memory_space<vmem>>, vector<256x128xbf16>
    %cst = arith.constant dense<0.000000e+00> : vector<96x128xf32>
    %2 = tpu.matmul %0, %1, %cst {dimension_numbers = #tpu.dot_dimension_numbers<[1], [0], [0], [1], [0, 0, 1, 1], [], []>} : vector<96x256xbf16>, vector<256x128xbf16>, vector<96x128xf32> -> vector<96x128xf32>
    %c0_3 = arith.constant 0 : index
    %c0_4 = arith.constant 0 : index
    %3 = vector.load %arg3[%c0_3, %c0_4] : memref<1x128xf32, #tpu.memory_space<vmem>>, vector<1x128xf32>
    %4 = vector.broadcast %3 : vector<1x128xf32> to vector<96x128xf32>
    %5 = arith.addf %2, %4 : vector<96x128xf32>
    %c0_5 = arith.constant 0 : index
    %c0_6 = arith.constant 0 : index
    %6 = vector.load %arg4[%c0_5, %c0_6] : memref<96x128xbf16, #tpu.memory_space<vmem>>, vector<96x128xbf16>
    %7 = arith.extf %6 : vector<96x128xbf16> to vector<96x128xf32>
    %8 = arith.addf %5, %7 : vector<96x128xf32>
    %cst_7 = arith.constant 0.000000e+00 : f32
    %9 = vector.broadcast %cst_7 : f32 to vector<96x128xf32>
    %10 = arith.maximumf %8, %9 : vector<96x128xf32>
    %11 = arith.truncf %10 : vector<96x128xf32> to vector<96x128xbf16>
    %c0_8 = arith.constant 0 : index
    %c0_9 = arith.constant 0 : index
    %12 = vector.load %arg5[%c0_8, %c0_9] : memref<96x128xbf16, #tpu.memory_space<vmem>>, vector<96x128xbf16>
    tpu.vector_store %arg5[%c0_8, %c0_9], %11 {strides = array<i32>} : memref<96x128xbf16, #tpu.memory_space<vmem>>, vector<96x128xbf16>,
    return
  }
  func.func @transform_0(%arg0: i32) -> (i32, i32) {
    %c0_i32 = arith.constant 0 : i32
    %c0_i32_0 = arith.constant 0 : i32
    return %arg0, %c0_i32 : i32, i32
  }
  func.func @transform_1(%arg0: i32) -> (i32, i32) {
    %c0_i32 = arith.constant 0 : i32
    %c0_i32_0 = arith.constant 0 : i32
    %c0_i32_1 = arith.constant 0 : i32
    return %c0_i32, %c0_i32_0 : i32, i32
  }
  func.func @transform_2(%arg0: i32) -> (i32, i32) {
    %c0_i32 = arith.constant 0 : i32
    %c0_i32_0 = arith.constant 0 : i32
    %c0_i32_1 = arith.constant 0 : i32
    return %c0_i32, %c0_i32_0 : i32, i32
  }
  func.func @transform_3(%arg0: i32) -> (i32, i32) {
    %c0_i32 = arith.constant 0 : i32
    %c0_i32_0 = arith.constant 0 : i32
    return %arg0, %c0_i32 : i32, i32
  }
  func.func @transform_4(%arg0: i32) -> (i32, i32) {
    %c0_i32 = arith.constant 0 : i32
    %c0_i32_0 = arith.constant 0 : i32
    return %arg0, %c0_i32 : i32, i32
  }
}

module attributes {stable_mosaic.version = 11 : i64} {
  func.func @_conv_bn_kernel(%arg0: i32, %arg1: memref<24x256xbf16, #tpu.memory_space<vmem>>, %arg2: memref<256x128xbf16, #tpu.memory_space<vmem>>, %arg3: memref<1x128xf32, #tpu.memory_space<vmem>>, %arg4: memref<24x128xbf16, #tpu.memory_space<vmem>>) attributes {dimension_semantics = [#tpu.dimension_semantics<parallel>], iteration_bounds = array<i64: 1>, scalar_prefetch = 0 : i64, scratch_operands = 0 : i64, tpu.core_type = #tpu.core_type<tc>, window_params = [{transform_indices = @transform_0, window_bounds = array<i64: 24, 256>}, {pipeline_mode = #tpu.pipeline_mode<synchronous>, transform_indices = @transform_1, window_bounds = array<i64: 256, 128>}, {pipeline_mode = #tpu.pipeline_mode<synchronous>, transform_indices = @transform_2, window_bounds = array<i64: 1, 128>}, {transform_indices = @transform_3, window_bounds = array<i64: 24, 128>}]} {
    %c0 = arith.constant 0 : index
    %c0_0 = arith.constant 0 : index
    %0 = vector.load %arg1[%c0, %c0_0] : memref<24x256xbf16, #tpu.memory_space<vmem>>, vector<24x256xbf16>
    %c0_1 = arith.constant 0 : index
    %c0_2 = arith.constant 0 : index
    %1 = vector.load %arg2[%c0_1, %c0_2] : memref<256x128xbf16, #tpu.memory_space<vmem>>, vector<256x128xbf16>
    %cst = arith.constant dense<0.000000e+00> : vector<24x128xf32>
    %2 = tpu.matmul %0, %1, %cst {dimension_numbers = #tpu.dot_dimension_numbers<[1], [0], [0], [1], [0, 0, 1, 1], [], []>} : vector<24x256xbf16>, vector<256x128xbf16>, vector<24x128xf32> -> vector<24x128xf32>
    %c0_3 = arith.constant 0 : index
    %c0_4 = arith.constant 0 : index
    %3 = vector.load %arg3[%c0_3, %c0_4] : memref<1x128xf32, #tpu.memory_space<vmem>>, vector<1x128xf32>
    %4 = vector.broadcast %3 : vector<1x128xf32> to vector<24x128xf32>
    %5 = arith.addf %2, %4 : vector<24x128xf32>
    %cst_5 = arith.constant 0.000000e+00 : f32
    %6 = vector.broadcast %cst_5 : f32 to vector<24x128xf32>
    %7 = arith.maximumf %5, %6 : vector<24x128xf32>
    %8 = arith.truncf %7 : vector<24x128xf32> to vector<24x128xbf16>
    %c0_6 = arith.constant 0 : index
    %c0_7 = arith.constant 0 : index
    %9 = vector.load %arg4[%c0_6, %c0_7] : memref<24x128xbf16, #tpu.memory_space<vmem>>, vector<24x128xbf16>
    tpu.vector_store %arg4[%c0_6, %c0_7], %8 {strides = array<i32>} : memref<24x128xbf16, #tpu.memory_space<vmem>>, vector<24x128xbf16>,
    return
  }
  func.func @transform_0(%arg0: i32) -> (i32, i32) {
    %c0_i32 = arith.constant 0 : i32
    %c0_i32_0 = arith.constant 0 : i32
    return %arg0, %c0_i32 : i32, i32
  }
  func.func @transform_1(%arg0: i32) -> (i32, i32) {
    %c0_i32 = arith.constant 0 : i32
    %c0_i32_0 = arith.constant 0 : i32
    %c0_i32_1 = arith.constant 0 : i32
    return %c0_i32, %c0_i32_0 : i32, i32
  }
  func.func @transform_2(%arg0: i32) -> (i32, i32) {
    %c0_i32 = arith.constant 0 : i32
    %c0_i32_0 = arith.constant 0 : i32
    %c0_i32_1 = arith.constant 0 : i32
    return %c0_i32, %c0_i32_0 : i32, i32
  }
  func.func @transform_3(%arg0: i32) -> (i32, i32) {
    %c0_i32 = arith.constant 0 : i32
    %c0_i32_0 = arith.constant 0 : i32
    return %arg0, %c0_i32 : i32, i32
  }
}

module attributes {stable_mosaic.version = 11 : i64} {
  func.func @_conv_bn_res_kernel(%arg0: i32, %arg1: memref<24x384xbf16, #tpu.memory_space<vmem>>, %arg2: memref<384x128xbf16, #tpu.memory_space<vmem>>, %arg3: memref<1x128xf32, #tpu.memory_space<vmem>>, %arg4: memref<24x128xbf16, #tpu.memory_space<vmem>>, %arg5: memref<24x128xbf16, #tpu.memory_space<vmem>>) attributes {dimension_semantics = [#tpu.dimension_semantics<parallel>], iteration_bounds = array<i64: 1>, scalar_prefetch = 0 : i64, scratch_operands = 0 : i64, tpu.core_type = #tpu.core_type<tc>, window_params = [{transform_indices = @transform_0, window_bounds = array<i64: 24, 384>}, {pipeline_mode = #tpu.pipeline_mode<synchronous>, transform_indices = @transform_1, window_bounds = array<i64: 384, 128>}, {pipeline_mode = #tpu.pipeline_mode<synchronous>, transform_indices = @transform_2, window_bounds = array<i64: 1, 128>}, {transform_indices = @transform_3, window_bounds = array<i64: 24, 128>}, {transform_indices = @transform_4, window_bounds = array<i64: 24, 128>}]} {
    %c0 = arith.constant 0 : index
    %c0_0 = arith.constant 0 : index
    %0 = vector.load %arg1[%c0, %c0_0] : memref<24x384xbf16, #tpu.memory_space<vmem>>, vector<24x384xbf16>
    %c0_1 = arith.constant 0 : index
    %c0_2 = arith.constant 0 : index
    %1 = vector.load %arg2[%c0_1, %c0_2] : memref<384x128xbf16, #tpu.memory_space<vmem>>, vector<384x128xbf16>
    %cst = arith.constant dense<0.000000e+00> : vector<24x128xf32>
    %2 = tpu.matmul %0, %1, %cst {dimension_numbers = #tpu.dot_dimension_numbers<[1], [0], [0], [1], [0, 0, 1, 1], [], []>} : vector<24x384xbf16>, vector<384x128xbf16>, vector<24x128xf32> -> vector<24x128xf32>
    %c0_3 = arith.constant 0 : index
    %c0_4 = arith.constant 0 : index
    %3 = vector.load %arg3[%c0_3, %c0_4] : memref<1x128xf32, #tpu.memory_space<vmem>>, vector<1x128xf32>
    %4 = vector.broadcast %3 : vector<1x128xf32> to vector<24x128xf32>
    %5 = arith.addf %2, %4 : vector<24x128xf32>
    %c0_5 = arith.constant 0 : index
    %c0_6 = arith.constant 0 : index
    %6 = vector.load %arg4[%c0_5, %c0_6] : memref<24x128xbf16, #tpu.memory_space<vmem>>, vector<24x128xbf16>
    %7 = arith.extf %6 : vector<24x128xbf16> to vector<24x128xf32>
    %8 = arith.addf %5, %7 : vector<24x128xf32>
    %cst_7 = arith.constant 0.000000e+00 : f32
    %9 = vector.broadcast %cst_7 : f32 to vector<24x128xf32>
    %10 = arith.maximumf %8, %9 : vector<24x128xf32>
    %11 = arith.truncf %10 : vector<24x128xf32> to vector<24x128xbf16>
    %c0_8 = arith.constant 0 : index
    %c0_9 = arith.constant 0 : index
    %12 = vector.load %arg5[%c0_8, %c0_9] : memref<24x128xbf16, #tpu.memory_space<vmem>>, vector<24x128xbf16>
    tpu.vector_store %arg5[%c0_8, %c0_9], %11 {strides = array<i32>} : memref<24x128xbf16, #tpu.memory_space<vmem>>, vector<24x128xbf16>,
    return
  }
  func.func @transform_0(%arg0: i32) -> (i32, i32) {
    %c0_i32 = arith.constant 0 : i32
    %c0_i32_0 = arith.constant 0 : i32
    return %arg0, %c0_i32 : i32, i32
  }
  func.func @transform_1(%arg0: i32) -> (i32, i32) {
    %c0_i32 = arith.constant 0 : i32
    %c0_i32_0 = arith.constant 0 : i32
    %c0_i32_1 = arith.constant 0 : i32
    return %c0_i32, %c0_i32_0 : i32, i32
  }
  func.func @transform_2(%arg0: i32) -> (i32, i32) {
    %c0_i32 = arith.constant 0 : i32
    %c0_i32_0 = arith.constant 0 : i32
    %c0_i32_1 = arith.constant 0 : i32
    return %c0_i32, %c0_i32_0 : i32, i32
  }
  func.func @transform_3(%arg0: i32) -> (i32, i32) {
    %c0_i32 = arith.constant 0 : i32
    %c0_i32_0 = arith.constant 0 : i32
    return %arg0, %c0_i32 : i32, i32
  }
  func.func @transform_4(%arg0: i32) -> (i32, i32) {
    %c0_i32 = arith.constant 0 : i32
    %c0_i32_0 = arith.constant 0 : i32
    return %arg0, %c0_i32 : i32, i32
  }
}

module attributes {stable_mosaic.version = 11 : i64} {
  func.func @_conv_bn_ds_res_kernel(%arg0: i32, %arg1: memref<24x384xbf16, #tpu.memory_space<vmem>>, %arg2: memref<384x128xbf16, #tpu.memory_space<vmem>>, %arg3: memref<1x128xf32, #tpu.memory_space<vmem>>, %arg4: memref<24x128xbf16, #tpu.memory_space<vmem>>, %arg5: memref<128x128xbf16, #tpu.memory_space<vmem>>, %arg6: memref<1x128xf32, #tpu.memory_space<vmem>>, %arg7: memref<24x128xbf16, #tpu.memory_space<vmem>>) attributes {dimension_semantics = [#tpu.dimension_semantics<parallel>], iteration_bounds = array<i64: 1>, scalar_prefetch = 0 : i64, scratch_operands = 0 : i64, tpu.core_type = #tpu.core_type<tc>, window_params = [{transform_indices = @transform_0, window_bounds = array<i64: 24, 384>}, {pipeline_mode = #tpu.pipeline_mode<synchronous>, transform_indices = @transform_1, window_bounds = array<i64: 384, 128>}, {pipeline_mode = #tpu.pipeline_mode<synchronous>, transform_indices = @transform_2, window_bounds = array<i64: 1, 128>}, {transform_indices = @transform_3, window_bounds = array<i64: 24, 128>}, {pipeline_mode = #tpu.pipeline_mode<synchronous>, transform_indices = @transform_4, window_bounds = array<i64: 128, 128>}, {pipeline_mode = #tpu.pipeline_mode<synchronous>, transform_indices = @transform_5, window_bounds = array<i64: 1, 128>}, {transform_indices = @transform_6, window_bounds = array<i64: 24, 128>}]} {
    %c0 = arith.constant 0 : index
    %c0_0 = arith.constant 0 : index
    %0 = vector.load %arg1[%c0, %c0_0] : memref<24x384xbf16, #tpu.memory_space<vmem>>, vector<24x384xbf16>
    %c0_1 = arith.constant 0 : index
    %c0_2 = arith.constant 0 : index
    %1 = vector.load %arg2[%c0_1, %c0_2] : memref<384x128xbf16, #tpu.memory_space<vmem>>, vector<384x128xbf16>
    %cst = arith.constant dense<0.000000e+00> : vector<24x128xf32>
    %2 = tpu.matmul %0, %1, %cst {dimension_numbers = #tpu.dot_dimension_numbers<[1], [0], [0], [1], [0, 0, 1, 1], [], []>} : vector<24x384xbf16>, vector<384x128xbf16>, vector<24x128xf32> -> vector<24x128xf32>
    %c0_3 = arith.constant 0 : index
    %c0_4 = arith.constant 0 : index
    %3 = vector.load %arg4[%c0_3, %c0_4] : memref<24x128xbf16, #tpu.memory_space<vmem>>, vector<24x128xbf16>
    %c0_5 = arith.constant 0 : index
    %c0_6 = arith.constant 0 : index
    %4 = vector.load %arg5[%c0_5, %c0_6] : memref<128x128xbf16, #tpu.memory_space<vmem>>, vector<128x128xbf16>
    %cst_7 = arith.constant dense<0.000000e+00> : vector<24x128xf32>
    %5 = tpu.matmul %3, %4, %cst_7 {dimension_numbers = #tpu.dot_dimension_numbers<[1], [0], [0], [1], [0, 0, 1, 1], [], []>} : vector<24x128xbf16>, vector<128x128xbf16>, vector<24x128xf32> -> vector<24x128xf32>
    %c0_8 = arith.constant 0 : index
    %c0_9 = arith.constant 0 : index
    %6 = vector.load %arg6[%c0_8, %c0_9] : memref<1x128xf32, #tpu.memory_space<vmem>>, vector<1x128xf32>
    %7 = vector.broadcast %6 : vector<1x128xf32> to vector<24x128xf32>
    %8 = arith.addf %5, %7 : vector<24x128xf32>
    %c0_10 = arith.constant 0 : index
    %c0_11 = arith.constant 0 : index
    %9 = vector.load %arg3[%c0_10, %c0_11] : memref<1x128xf32, #tpu.memory_space<vmem>>, vector<1x128xf32>
    %10 = vector.broadcast %9 : vector<1x128xf32> to vector<24x128xf32>
    %11 = arith.addf %2, %10 : vector<24x128xf32>
    %12 = arith.addf %11, %8 : vector<24x128xf32>
    %cst_12 = arith.constant 0.000000e+00 : f32
    %13 = vector.broadcast %cst_12 : f32 to vector<24x128xf32>
    %14 = arith.maximumf %12, %13 : vector<24x128xf32>
    %15 = arith.truncf %14 : vector<24x128xf32> to vector<24x128xbf16>
    %c0_13 = arith.constant 0 : index
    %c0_14 = arith.constant 0 : index
    %16 = vector.load %arg7[%c0_13, %c0_14] : memref<24x128xbf16, #tpu.memory_space<vmem>>, vector<24x128xbf16>
    tpu.vector_store %arg7[%c0_13, %c0_14], %15 {strides = array<i32>} : memref<24x128xbf16, #tpu.memory_space<vmem>>, vector<24x128xbf16>,
    return
  }
  func.func @transform_0(%arg0: i32) -> (i32, i32) {
    %c0_i32 = arith.constant 0 : i32
    %c0_i32_0 = arith.constant 0 : i32
    return %arg0, %c0_i32 : i32, i32
  }
  func.func @transform_1(%arg0: i32) -> (i32, i32) {
    %c0_i32 = arith.constant 0 : i32
    %c0_i32_0 = arith.constant 0 : i32
    %c0_i32_1 = arith.constant 0 : i32
    return %c0_i32, %c0_i32_0 : i32, i32
  }
  func.func @transform_2(%arg0: i32) -> (i32, i32) {
    %c0_i32 = arith.constant 0 : i32
    %c0_i32_0 = arith.constant 0 : i32
    %c0_i32_1 = arith.constant 0 : i32
    return %c0_i32, %c0_i32_0 : i32, i32
  }
  func.func @transform_3(%arg0: i32) -> (i32, i32) {
    %c0_i32 = arith.constant 0 : i32
    %c0_i32_0 = arith.constant 0 : i32
    return %arg0, %c0_i32 : i32, i32
  }
  func.func @transform_4(%arg0: i32) -> (i32, i32) {
    %c0_i32 = arith.constant 0 : i32
    %c0_i32_0 = arith.constant 0 : i32
    %c0_i32_1 = arith.constant 0 : i32
    return %c0_i32, %c0_i32_0 : i32, i32
  }
  func.func @transform_5(%arg0: i32) -> (i32, i32) {
    %c0_i32 = arith.constant 0 : i32
    %c0_i32_0 = arith.constant 0 : i32
    %c0_i32_1 = arith.constant 0 : i32
    return %c0_i32, %c0_i32_0 : i32, i32
  }
  func.func @transform_6(%arg0: i32) -> (i32, i32) {
    %c0_i32 = arith.constant 0 : i32
    %c0_i32_0 = arith.constant 0 : i32
    return %arg0, %c0_i32 : i32, i32
  }
}

module attributes {stable_mosaic.version = 11 : i64} {
  func.func @_conv_bn_kernel(%arg0: i32, %arg1: memref<24x384xbf16, #tpu.memory_space<vmem>>, %arg2: memref<384x128xbf16, #tpu.memory_space<vmem>>, %arg3: memref<1x128xf32, #tpu.memory_space<vmem>>, %arg4: memref<24x128xbf16, #tpu.memory_space<vmem>>) attributes {dimension_semantics = [#tpu.dimension_semantics<parallel>], iteration_bounds = array<i64: 1>, scalar_prefetch = 0 : i64, scratch_operands = 0 : i64, tpu.core_type = #tpu.core_type<tc>, window_params = [{transform_indices = @transform_0, window_bounds = array<i64: 24, 384>}, {pipeline_mode = #tpu.pipeline_mode<synchronous>, transform_indices = @transform_1, window_bounds = array<i64: 384, 128>}, {pipeline_mode = #tpu.pipeline_mode<synchronous>, transform_indices = @transform_2, window_bounds = array<i64: 1, 128>}, {transform_indices = @transform_3, window_bounds = array<i64: 24, 128>}]} {
    %c0 = arith.constant 0 : index
    %c0_0 = arith.constant 0 : index
    %0 = vector.load %arg1[%c0, %c0_0] : memref<24x384xbf16, #tpu.memory_space<vmem>>, vector<24x384xbf16>
    %c0_1 = arith.constant 0 : index
    %c0_2 = arith.constant 0 : index
    %1 = vector.load %arg2[%c0_1, %c0_2] : memref<384x128xbf16, #tpu.memory_space<vmem>>, vector<384x128xbf16>
    %cst = arith.constant dense<0.000000e+00> : vector<24x128xf32>
    %2 = tpu.matmul %0, %1, %cst {dimension_numbers = #tpu.dot_dimension_numbers<[1], [0], [0], [1], [0, 0, 1, 1], [], []>} : vector<24x384xbf16>, vector<384x128xbf16>, vector<24x128xf32> -> vector<24x128xf32>
    %c0_3 = arith.constant 0 : index
    %c0_4 = arith.constant 0 : index
    %3 = vector.load %arg3[%c0_3, %c0_4] : memref<1x128xf32, #tpu.memory_space<vmem>>, vector<1x128xf32>
    %4 = vector.broadcast %3 : vector<1x128xf32> to vector<24x128xf32>
    %5 = arith.addf %2, %4 : vector<24x128xf32>
    %cst_5 = arith.constant 0.000000e+00 : f32
    %6 = vector.broadcast %cst_5 : f32 to vector<24x128xf32>
    %7 = arith.maximumf %5, %6 : vector<24x128xf32>
    %8 = arith.truncf %7 : vector<24x128xf32> to vector<24x128xbf16>
    %c0_6 = arith.constant 0 : index
    %c0_7 = arith.constant 0 : index
    %9 = vector.load %arg4[%c0_6, %c0_7] : memref<24x128xbf16, #tpu.memory_space<vmem>>, vector<24x128xbf16>
    tpu.vector_store %arg4[%c0_6, %c0_7], %8 {strides = array<i32>} : memref<24x128xbf16, #tpu.memory_space<vmem>>, vector<24x128xbf16>,
    return
  }
  func.func @transform_0(%arg0: i32) -> (i32, i32) {
    %c0_i32 = arith.constant 0 : i32
    %c0_i32_0 = arith.constant 0 : i32
    return %arg0, %c0_i32 : i32, i32
  }
  func.func @transform_1(%arg0: i32) -> (i32, i32) {
    %c0_i32 = arith.constant 0 : i32
    %c0_i32_0 = arith.constant 0 : i32
    %c0_i32_1 = arith.constant 0 : i32
    return %c0_i32, %c0_i32_0 : i32, i32
  }
  func.func @transform_2(%arg0: i32) -> (i32, i32) {
    %c0_i32 = arith.constant 0 : i32
    %c0_i32_0 = arith.constant 0 : i32
    %c0_i32_1 = arith.constant 0 : i32
    return %c0_i32, %c0_i32_0 : i32, i32
  }
  func.func @transform_3(%arg0: i32) -> (i32, i32) {
    %c0_i32 = arith.constant 0 : i32
    %c0_i32_0 = arith.constant 0 : i32
    return %arg0, %c0_i32 : i32, i32
  }
}

module attributes {stable_mosaic.version = 11 : i64} {
  func.func @_conv_bn_kernel(%arg0: i32, %arg1: memref<6x384xbf16, #tpu.memory_space<vmem>>, %arg2: memref<384x128xbf16, #tpu.memory_space<vmem>>, %arg3: memref<1x128xf32, #tpu.memory_space<vmem>>, %arg4: memref<6x128xbf16, #tpu.memory_space<vmem>>) attributes {dimension_semantics = [#tpu.dimension_semantics<parallel>], iteration_bounds = array<i64: 1>, scalar_prefetch = 0 : i64, scratch_operands = 0 : i64, tpu.core_type = #tpu.core_type<tc>, window_params = [{transform_indices = @transform_0, window_bounds = array<i64: 6, 384>}, {pipeline_mode = #tpu.pipeline_mode<synchronous>, transform_indices = @transform_1, window_bounds = array<i64: 384, 128>}, {pipeline_mode = #tpu.pipeline_mode<synchronous>, transform_indices = @transform_2, window_bounds = array<i64: 1, 128>}, {transform_indices = @transform_3, window_bounds = array<i64: 6, 128>}]} {
    %c0 = arith.constant 0 : index
    %c0_0 = arith.constant 0 : index
    %0 = vector.load %arg1[%c0, %c0_0] : memref<6x384xbf16, #tpu.memory_space<vmem>>, vector<6x384xbf16>
    %c0_1 = arith.constant 0 : index
    %c0_2 = arith.constant 0 : index
    %1 = vector.load %arg2[%c0_1, %c0_2] : memref<384x128xbf16, #tpu.memory_space<vmem>>, vector<384x128xbf16>
    %cst = arith.constant dense<0.000000e+00> : vector<6x128xf32>
    %2 = tpu.matmul %0, %1, %cst {dimension_numbers = #tpu.dot_dimension_numbers<[1], [0], [0], [1], [0, 0, 1, 1], [], []>} : vector<6x384xbf16>, vector<384x128xbf16>, vector<6x128xf32> -> vector<6x128xf32>
    %c0_3 = arith.constant 0 : index
    %c0_4 = arith.constant 0 : index
    %3 = vector.load %arg3[%c0_3, %c0_4] : memref<1x128xf32, #tpu.memory_space<vmem>>, vector<1x128xf32>
    %4 = vector.broadcast %3 : vector<1x128xf32> to vector<6x128xf32>
    %5 = arith.addf %2, %4 : vector<6x128xf32>
    %cst_5 = arith.constant 0.000000e+00 : f32
    %6 = vector.broadcast %cst_5 : f32 to vector<6x128xf32>
    %7 = arith.maximumf %5, %6 : vector<6x128xf32>
    %8 = arith.truncf %7 : vector<6x128xf32> to vector<6x128xbf16>
    %c0_6 = arith.constant 0 : index
    %c0_7 = arith.constant 0 : index
    %9 = vector.load %arg4[%c0_6, %c0_7] : memref<6x128xbf16, #tpu.memory_space<vmem>>, vector<6x128xbf16>
    tpu.vector_store %arg4[%c0_6, %c0_7], %8 {strides = array<i32>} : memref<6x128xbf16, #tpu.memory_space<vmem>>, vector<6x128xbf16>,
    return
  }
  func.func @transform_0(%arg0: i32) -> (i32, i32) {
    %c0_i32 = arith.constant 0 : i32
    %c0_i32_0 = arith.constant 0 : i32
    return %arg0, %c0_i32 : i32, i32
  }
  func.func @transform_1(%arg0: i32) -> (i32, i32) {
    %c0_i32 = arith.constant 0 : i32
    %c0_i32_0 = arith.constant 0 : i32
    %c0_i32_1 = arith.constant 0 : i32
    return %c0_i32, %c0_i32_0 : i32, i32
  }
  func.func @transform_2(%arg0: i32) -> (i32, i32) {
    %c0_i32 = arith.constant 0 : i32
    %c0_i32_0 = arith.constant 0 : i32
    %c0_i32_1 = arith.constant 0 : i32
    return %c0_i32, %c0_i32_0 : i32, i32
  }
  func.func @transform_3(%arg0: i32) -> (i32, i32) {
    %c0_i32 = arith.constant 0 : i32
    %c0_i32_0 = arith.constant 0 : i32
    return %arg0, %c0_i32 : i32, i32
  }
}

module attributes {stable_mosaic.version = 11 : i64} {
  func.func @_conv_bn_res_gap_kernel(%arg0: memref<6x640xbf16, #tpu.memory_space<vmem>>, %arg1: memref<640x128xbf16, #tpu.memory_space<vmem>>, %arg2: memref<1x128xf32, #tpu.memory_space<vmem>>, %arg3: memref<6x128xbf16, #tpu.memory_space<vmem>>, %arg4: memref<6x128xf32, #tpu.memory_space<vmem>>) attributes {dimension_semantics = [], scalar_prefetch = 0 : i64, scratch_operands = 0 : i64, tpu.core_type = #tpu.core_type<tc>} {
    %c0 = arith.constant 0 : index
    %c0_0 = arith.constant 0 : index
    %0 = vector.load %arg0[%c0, %c0_0] : memref<6x640xbf16, #tpu.memory_space<vmem>>, vector<6x640xbf16>
    %c0_1 = arith.constant 0 : index
    %c0_2 = arith.constant 0 : index
    %1 = vector.load %arg1[%c0_1, %c0_2] : memref<640x128xbf16, #tpu.memory_space<vmem>>, vector<640x128xbf16>
    %cst = arith.constant dense<0.000000e+00> : vector<6x128xf32>
    %2 = tpu.matmul %0, %1, %cst {dimension_numbers = #tpu.dot_dimension_numbers<[1], [0], [0], [1], [0, 0, 1, 1], [], []>} : vector<6x640xbf16>, vector<640x128xbf16>, vector<6x128xf32> -> vector<6x128xf32>
    %c0_3 = arith.constant 0 : index
    %c0_4 = arith.constant 0 : index
    %3 = vector.load %arg2[%c0_3, %c0_4] : memref<1x128xf32, #tpu.memory_space<vmem>>, vector<1x128xf32>
    %4 = vector.broadcast %3 : vector<1x128xf32> to vector<6x128xf32>
    %5 = arith.addf %2, %4 : vector<6x128xf32>
    %c0_5 = arith.constant 0 : index
    %c0_6 = arith.constant 0 : index
    %6 = vector.load %arg3[%c0_5, %c0_6] : memref<6x128xbf16, #tpu.memory_space<vmem>>, vector<6x128xbf16>
    %7 = arith.extf %6 : vector<6x128xbf16> to vector<6x128xf32>
    %8 = arith.addf %5, %7 : vector<6x128xf32>
    %cst_7 = arith.constant 0.000000e+00 : f32
    %9 = vector.broadcast %cst_7 : f32 to vector<6x128xf32>
    %10 = arith.maximumf %8, %9 : vector<6x128xf32>
    %c0_8 = arith.constant 0 : index
    %c0_9 = arith.constant 0 : index
    %11 = vector.load %arg4[%c0_8, %c0_9] : memref<6x128xf32, #tpu.memory_space<vmem>>, vector<6x128xf32>
    tpu.vector_store %arg4[%c0_8, %c0_9], %10 {strides = array<i32>} : memref<6x128xf32, #tpu.memory_space<vmem>>, vector<6x128xf32>,
    return
  }
}

module attributes {stable_mosaic.version = 11 : i64} {
  func.func @_conv_bn_ds_res_kernel(%arg0: i32, %arg1: memref<6x640xbf16, #tpu.memory_space<vmem>>, %arg2: memref<640x128xbf16, #tpu.memory_space<vmem>>, %arg3: memref<1x128xf32, #tpu.memory_space<vmem>>, %arg4: memref<6x128xbf16, #tpu.memory_space<vmem>>, %arg5: memref<128x128xbf16, #tpu.memory_space<vmem>>, %arg6: memref<1x128xf32, #tpu.memory_space<vmem>>, %arg7: memref<6x128xbf16, #tpu.memory_space<vmem>>) attributes {dimension_semantics = [#tpu.dimension_semantics<parallel>], iteration_bounds = array<i64: 1>, scalar_prefetch = 0 : i64, scratch_operands = 0 : i64, tpu.core_type = #tpu.core_type<tc>, window_params = [{transform_indices = @transform_0, window_bounds = array<i64: 6, 640>}, {pipeline_mode = #tpu.pipeline_mode<synchronous>, transform_indices = @transform_1, window_bounds = array<i64: 640, 128>}, {pipeline_mode = #tpu.pipeline_mode<synchronous>, transform_indices = @transform_2, window_bounds = array<i64: 1, 128>}, {transform_indices = @transform_3, window_bounds = array<i64: 6, 128>}, {pipeline_mode = #tpu.pipeline_mode<synchronous>, transform_indices = @transform_4, window_bounds = array<i64: 128, 128>}, {pipeline_mode = #tpu.pipeline_mode<synchronous>, transform_indices = @transform_5, window_bounds = array<i64: 1, 128>}, {transform_indices = @transform_6, window_bounds = array<i64: 6, 128>}]} {
    %c0 = arith.constant 0 : index
    %c0_0 = arith.constant 0 : index
    %0 = vector.load %arg1[%c0, %c0_0] : memref<6x640xbf16, #tpu.memory_space<vmem>>, vector<6x640xbf16>
    %c0_1 = arith.constant 0 : index
    %c0_2 = arith.constant 0 : index
    %1 = vector.load %arg2[%c0_1, %c0_2] : memref<640x128xbf16, #tpu.memory_space<vmem>>, vector<640x128xbf16>
    %cst = arith.constant dense<0.000000e+00> : vector<6x128xf32>
    %2 = tpu.matmul %0, %1, %cst {dimension_numbers = #tpu.dot_dimension_numbers<[1], [0], [0], [1], [0, 0, 1, 1], [], []>} : vector<6x640xbf16>, vector<640x128xbf16>, vector<6x128xf32> -> vector<6x128xf32>
    %c0_3 = arith.constant 0 : index
    %c0_4 = arith.constant 0 : index
    %3 = vector.load %arg4[%c0_3, %c0_4] : memref<6x128xbf16, #tpu.memory_space<vmem>>, vector<6x128xbf16>
    %c0_5 = arith.constant 0 : index
    %c0_6 = arith.constant 0 : index
    %4 = vector.load %arg5[%c0_5, %c0_6] : memref<128x128xbf16, #tpu.memory_space<vmem>>, vector<128x128xbf16>
    %cst_7 = arith.constant dense<0.000000e+00> : vector<6x128xf32>
    %5 = tpu.matmul %3, %4, %cst_7 {dimension_numbers = #tpu.dot_dimension_numbers<[1], [0], [0], [1], [0, 0, 1, 1], [], []>} : vector<6x128xbf16>, vector<128x128xbf16>, vector<6x128xf32> -> vector<6x128xf32>
    %c0_8 = arith.constant 0 : index
    %c0_9 = arith.constant 0 : index
    %6 = vector.load %arg6[%c0_8, %c0_9] : memref<1x128xf32, #tpu.memory_space<vmem>>, vector<1x128xf32>
    %7 = vector.broadcast %6 : vector<1x128xf32> to vector<6x128xf32>
    %8 = arith.addf %5, %7 : vector<6x128xf32>
    %c0_10 = arith.constant 0 : index
    %c0_11 = arith.constant 0 : index
    %9 = vector.load %arg3[%c0_10, %c0_11] : memref<1x128xf32, #tpu.memory_space<vmem>>, vector<1x128xf32>
    %10 = vector.broadcast %9 : vector<1x128xf32> to vector<6x128xf32>
    %11 = arith.addf %2, %10 : vector<6x128xf32>
    %12 = arith.addf %11, %8 : vector<6x128xf32>
    %cst_12 = arith.constant 0.000000e+00 : f32
    %13 = vector.broadcast %cst_12 : f32 to vector<6x128xf32>
    %14 = arith.maximumf %12, %13 : vector<6x128xf32>
    %15 = arith.truncf %14 : vector<6x128xf32> to vector<6x128xbf16>
    %c0_13 = arith.constant 0 : index
    %c0_14 = arith.constant 0 : index
    %16 = vector.load %arg7[%c0_13, %c0_14] : memref<6x128xbf16, #tpu.memory_space<vmem>>, vector<6x128xbf16>
    tpu.vector_store %arg7[%c0_13, %c0_14], %15 {strides = array<i32>} : memref<6x128xbf16, #tpu.memory_space<vmem>>, vector<6x128xbf16>,
    return
  }
  func.func @transform_0(%arg0: i32) -> (i32, i32) {
    %c0_i32 = arith.constant 0 : i32
    %c0_i32_0 = arith.constant 0 : i32
    return %arg0, %c0_i32 : i32, i32
  }
  func.func @transform_1(%arg0: i32) -> (i32, i32) {
    %c0_i32 = arith.constant 0 : i32
    %c0_i32_0 = arith.constant 0 : i32
    %c0_i32_1 = arith.constant 0 : i32
    return %c0_i32, %c0_i32_0 : i32, i32
  }
  func.func @transform_2(%arg0: i32) -> (i32, i32) {
    %c0_i32 = arith.constant 0 : i32
    %c0_i32_0 = arith.constant 0 : i32
    %c0_i32_1 = arith.constant 0 : i32
    return %c0_i32, %c0_i32_0 : i32, i32
  }
  func.func @transform_3(%arg0: i32) -> (i32, i32) {
    %c0_i32 = arith.constant 0 : i32
    %c0_i32_0 = arith.constant 0 : i32
    return %arg0, %c0_i32 : i32, i32
  }
  func.func @transform_4(%arg0: i32) -> (i32, i32) {
    %c0_i32 = arith.constant 0 : i32
    %c0_i32_0 = arith.constant 0 : i32
    %c0_i32_1 = arith.constant 0 : i32
    return %c0_i32, %c0_i32_0 : i32, i32
  }
  func.func @transform_5(%arg0: i32) -> (i32, i32) {
    %c0_i32 = arith.constant 0 : i32
    %c0_i32_0 = arith.constant 0 : i32
    %c0_i32_1 = arith.constant 0 : i32
    return %c0_i32, %c0_i32_0 : i32, i32
  }
  func.func @transform_6(%arg0: i32) -> (i32, i32) {
    %c0_i32 = arith.constant 0 : i32
    %c0_i32_0 = arith.constant 0 : i32
    return %arg0, %c0_i32 : i32, i32
  }
}

module attributes {stable_mosaic.version = 11 : i64} {
  func.func @_conv_bn_kernel(%arg0: i32, %arg1: memref<6x640xbf16, #tpu.memory_space<vmem>>, %arg2: memref<640x128xbf16, #tpu.memory_space<vmem>>, %arg3: memref<1x128xf32, #tpu.memory_space<vmem>>, %arg4: memref<6x128xbf16, #tpu.memory_space<vmem>>) attributes {dimension_semantics = [#tpu.dimension_semantics<parallel>], iteration_bounds = array<i64: 1>, scalar_prefetch = 0 : i64, scratch_operands = 0 : i64, tpu.core_type = #tpu.core_type<tc>, window_params = [{transform_indices = @transform_0, window_bounds = array<i64: 6, 640>}, {pipeline_mode = #tpu.pipeline_mode<synchronous>, transform_indices = @transform_1, window_bounds = array<i64: 640, 128>}, {pipeline_mode = #tpu.pipeline_mode<synchronous>, transform_indices = @transform_2, window_bounds = array<i64: 1, 128>}, {transform_indices = @transform_3, window_bounds = array<i64: 6, 128>}]} {
    %c0 = arith.constant 0 : index
    %c0_0 = arith.constant 0 : index
    %0 = vector.load %arg1[%c0, %c0_0] : memref<6x640xbf16, #tpu.memory_space<vmem>>, vector<6x640xbf16>
    %c0_1 = arith.constant 0 : index
    %c0_2 = arith.constant 0 : index
    %1 = vector.load %arg2[%c0_1, %c0_2] : memref<640x128xbf16, #tpu.memory_space<vmem>>, vector<640x128xbf16>
    %cst = arith.constant dense<0.000000e+00> : vector<6x128xf32>
    %2 = tpu.matmul %0, %1, %cst {dimension_numbers = #tpu.dot_dimension_numbers<[1], [0], [0], [1], [0, 0, 1, 1], [], []>} : vector<6x640xbf16>, vector<640x128xbf16>, vector<6x128xf32> -> vector<6x128xf32>
    %c0_3 = arith.constant 0 : index
    %c0_4 = arith.constant 0 : index
    %3 = vector.load %arg3[%c0_3, %c0_4] : memref<1x128xf32, #tpu.memory_space<vmem>>, vector<1x128xf32>
    %4 = vector.broadcast %3 : vector<1x128xf32> to vector<6x128xf32>
    %5 = arith.addf %2, %4 : vector<6x128xf32>
    %cst_5 = arith.constant 0.000000e+00 : f32
    %6 = vector.broadcast %cst_5 : f32 to vector<6x128xf32>
    %7 = arith.maximumf %5, %6 : vector<6x128xf32>
    %8 = arith.truncf %7 : vector<6x128xf32> to vector<6x128xbf16>
    %c0_6 = arith.constant 0 : index
    %c0_7 = arith.constant 0 : index
    %9 = vector.load %arg4[%c0_6, %c0_7] : memref<6x128xbf16, #tpu.memory_space<vmem>>, vector<6x128xbf16>
    tpu.vector_store %arg4[%c0_6, %c0_7], %8 {strides = array<i32>} : memref<6x128xbf16, #tpu.memory_space<vmem>>, vector<6x128xbf16>,
    return
  }
  func.func @transform_0(%arg0: i32) -> (i32, i32) {
    %c0_i32 = arith.constant 0 : i32
    %c0_i32_0 = arith.constant 0 : i32
    return %arg0, %c0_i32 : i32, i32
  }
  func.func @transform_1(%arg0: i32) -> (i32, i32) {
    %c0_i32 = arith.constant 0 : i32
    %c0_i32_0 = arith.constant 0 : i32
    %c0_i32_1 = arith.constant 0 : i32
    return %c0_i32, %c0_i32_0 : i32, i32
  }
  func.func @transform_2(%arg0: i32) -> (i32, i32) {
    %c0_i32 = arith.constant 0 : i32
    %c0_i32_0 = arith.constant 0 : i32
    %c0_i32_1 = arith.constant 0 : i32
    return %c0_i32, %c0_i32_0 : i32, i32
  }
  func.func @transform_3(%arg0: i32) -> (i32, i32) {
    %c0_i32 = arith.constant 0 : i32
    %c0_i32_0 = arith.constant 0 : i32
    return %arg0, %c0_i32 : i32, i32
  }
}

</mosaic_0001>

<llo_original>
// kernel: triplet_net_forward.18
$region0: #{triplet_net_forward.18}
  #allocation0 [shape = 'u32[]', space=smem, size = 0x4, offset = 0x4, fixed_abs, tag = 'smem constant byte address 0x4 - core index']
  #allocation1 [shape = 'u32[144,128]{1,0:T(1,128)}', space=vmem, size = 0x12000, scoped, tag = 'internal scratch']
  %s0 = inlined_call_operand.vmem [shape: bf16[1536,256], index: 0, kind: input, shape index: {}]
  %s1 = inlined_call_operand.vmem [shape: bf16[256,128], index: 1, kind: input, shape index: {}]
  %s2 = inlined_call_operand.vmem [shape: f32[1,128], index: 2, kind: input, shape index: {}]
  %s3 = inlined_call_operand.vmem [shape: bf16[1536,128], index: 3, kind: output, shape index: {}]
  %s4 = sld [smem:[#allocation0]]
  $region45: #{triplet_net_forward.18} parent=0
    _
  %s6 = ssub.s32 1, %s4
  %s7 = scalar_select 0, %s6, %s4
  loop: start=0, step=1, limit=4
  $region2: #{triplet_net_forward.18} parent=0 // loop_pre_header
    _
  $region3: #{triplet_net_forward.18} parent=0 // loop_header
    %s9 = sphi 0, %s13
    %p10 = scmp.ge.s32.totalorder %s9, 4
    %s19 = sphi 0, %s21
    %s22 = sphi 0, %s19
    %s23 = sphi 0, %s22
    %s39 = sphi 0, %s23
    %s43 = sphi 0, %s43
    %s45 = sphi 0, %s43
    %s46 = sphi 0, %s45
    %s60 = sphi 0, %s46
    %s64 = sphi 0, %s64
    %s66 = sphi 0, %s64
    %s67 = sphi 0, %s66
    %s81 = sphi 0, %s67
    %s87 = sphi 0, %s89
    %s90 = sphi 0, %s87
    %s91 = sphi 0, %s90
    %s107 = sphi 0, %s91
  $region4: #{triplet_net_forward.18} parent=0 // loop_header_branch
    %12 = sbr.rel (%p10) target = $region8
  $region5: #{triplet_net_forward.18} parent=0 // loop_body
    %s14 = ssub.s32 %s9, 1
    %s15 = ssub.s32 %s9, 2
    %s16 = sadd.s32 %s9, 1
    %s17 = ssub.s32 %s9, %s16
    %p18 = scmp.eq.s32.totalorder %s17, 0
    %s20 = sadd.s32 %s19, 1
    %s21 = scalar_select %p18, %s19, %s20
    %p24 = pneg %p18
    %p25 = scmp.eq.s32.totalorder %s9, 1
    %p26 = por %p24, %p25
    %p27 = scmp.ne.s32.totalorder %s19, %s22
    %p28 = scmp.eq.s32.totalorder %s9, 0
    %p29 = por %p27, %p28
    %p30 = scmp.ne.s32.totalorder %s19, %s22
    %p31 = scmp.eq.s32.totalorder %s14, 1
    %p32 = por %p30, %p31
    %p33 = scmp.ne.s32.totalorder %s22, %s23
    %p34 = scmp.eq.s32.totalorder %s14, 0
    %p35 = por %p33, %p34
    %p36 = scmp.ne.s32.totalorder %s22, %s23
    %p37 = scmp.eq.s32.totalorder %s15, 1
    %p38 = por %p36, %p37
    %p40 = scmp.ne.s32.totalorder %s23, %s39
    %p41 = scmp.eq.s32.totalorder %s15, 0
    %p42 = por %p40, %p41
    %s44 = sadd.s32 %s43, 1
    %p47 = scmp.eq.s32.totalorder %s9, 1
    %p48 = scmp.ne.s32.totalorder %s43, %s45
    %p49 = scmp.eq.s32.totalorder %s9, 0
    %p50 = por %p48, %p49
    %p51 = scmp.ne.s32.totalorder %s43, %s45
    %p52 = scmp.eq.s32.totalorder %s14, 1
    %p53 = por %p51, %p52
    %p54 = scmp.ne.s32.totalorder %s45, %s46
    %p55 = scmp.eq.s32.totalorder %s14, 0
    %p56 = por %p54, %p55
    %p57 = scmp.ne.s32.totalorder %s45, %s46
    %p58 = scmp.eq.s32.totalorder %s15, 1
    %p59 = por %p57, %p58
    %p61 = scmp.ne.s32.totalorder %s46, %s60
    %p62 = scmp.eq.s32.totalorder %s15, 0
    %p63 = por %p61, %p62
    %s65 = sadd.s32 %s64, 1
    %p68 = scmp.eq.s32.totalorder %s9, 1
    %p69 = scmp.ne.s32.totalorder %s64, %s66
    %p70 = scmp.eq.s32.totalorder %s9, 0
    %p71 = por %p69, %p70
    %p72 = scmp.ne.s32.totalorder %s64, %s66
    %p73 = scmp.eq.s32.totalorder %s14, 1
    %p74 = por %p72, %p73
    %p75 = scmp.ne.s32.totalorder %s66, %s67
    %p76 = scmp.eq.s32.totalorder %s14, 0
    %p77 = por %p75, %p76
    %p78 = scmp.ne.s32.totalorder %s66, %s67
    %p79 = scmp.eq.s32.totalorder %s15, 1
    %p80 = por %p78, %p79
    %p82 = scmp.ne.s32.totalorder %s67, %s81
    %p83 = scmp.eq.s32.totalorder %s15, 0
    %p84 = por %p82, %p83
    %s85 = ssub.s32 %s9, %s16
    %p86 = scmp.eq.s32.totalorder %s85, 0
    %s88 = sadd.s32 %s87, 1
    %s89 = scalar_select %p86, %s87, %s88
    %p92 = pneg %p86
    %p93 = scmp.eq.s32.totalorder %s9, 1
    %p94 = por %p92, %p93
    %p95 = scmp.ne.s32.totalorder %s87, %s90
    %p96 = scmp.eq.s32.totalorder %s9, 0
    %p97 = por %p95, %p96
    %p98 = scmp.ne.s32.totalorder %s87, %s90
    %p99 = scmp.eq.s32.totalorder %s14, 1
    %p100 = por %p98, %p99
    %p101 = scmp.ne.s32.totalorder %s90, %s91
    %p102 = scmp.eq.s32.totalorder %s14, 0
    %p103 = por %p101, %p102
    %p104 = scmp.ne.s32.totalorder %s90, %s91
    %p105 = scmp.eq.s32.totalorder %s15, 1
    %p106 = por %p104, %p105
    %p108 = scmp.ne.s32.totalorder %s91, %s107
    %p109 = scmp.eq.s32.totalorder %s15, 0
    %p110 = por %p108, %p109
    %p111 = scmp.le.s32.totalorder 1, %s9
    %p112 = scmp.lt.s32.totalorder %s9, 3
    %p113 = pnand %p111, %p112
    %p114 = pneg %p113
    // Predicated region
    $region9: #{triplet_net_forward.18} parent=5 // pred_check
      _
    $region10: #{triplet_net_forward.18} parent=5 // pred_check_branch
      %116 = sbr.rel (%p113) target = $region12
    $region11: #{triplet_net_forward.18} parent=5 // pred_region
      %s117 = ssub.s32 %s9, 1
      // Predicated region
      $region13: #{triplet_net_forward.18} parent=11 // pred_check
        %p118 = pneg %p56
      $region14: #{triplet_net_forward.18} parent=11 // pred_check_branch
        %120 = sbr.rel (%p118) target = $region16
      $region15: #{triplet_net_forward.18} parent=11 // pred_region
        _
      $region16: #{triplet_net_forward.18} parent=11 // pred_fallthru
        _
      // Predicated region
      $region17: #{triplet_net_forward.18} parent=11 // pred_check
        %p121 = pneg %p77
      $region18: #{triplet_net_forward.18} parent=11 // pred_check_branch
        %123 = sbr.rel (%p121) target = $region20
      $region19: #{triplet_net_forward.18} parent=11 // pred_region
        _
      $region20: #{triplet_net_forward.18} parent=11 // pred_fallthru
        _
    $region12: #{triplet_net_forward.18} parent=5 // pred_fallthru
      _
    %p124 = scmp.lt.s32.totalorder %s9, 2
    // Predicated region
    $region21: #{triplet_net_forward.18} parent=5 // pred_check
      %p125 = pneg %p124
    $region22: #{triplet_net_forward.18} parent=5 // pred_check_branch
      %127 = sbr.rel (%p125) target = $region24
    $region23: #{triplet_net_forward.18} parent=5 // pred_region
      // Predicated region
      $region25: #{triplet_net_forward.18} parent=23 // pred_check
        %p128 = pneg %p29
      $region26: #{triplet_net_forward.18} parent=23 // pred_check_branch
        %130 = sbr.rel (%p128) target = $region28
      $region27: #{triplet_net_forward.18} parent=23 // pred_region
        %s131 = smul.u32 96, %s9
        %p132 = scmp.lt.s32.totalorder %s131, 191
        %s133 = scalar_select %p132, %s131, 191
        %s134 = smul.addr %s133, 2
        %s135 = smul.addr %s134, 4
        %s136 = scalar_lea.vmem %s0, %s135
        %s137 = smul.u32 96, %s9
      $region28: #{triplet_net_forward.18} parent=23 // pred_fallthru
        _
    $region24: #{triplet_net_forward.18} parent=5 // pred_fallthru
      _
    %p138 = scmp.le.s32.totalorder 1, %s9
    %p139 = scmp.lt.s32.totalorder %s9, 3
    %p140 = pnand %p138, %p139
    %p141 = pneg %p140
    // Predicated region
    $region29: #{triplet_net_forward.18} parent=5 // pred_check
      _
    $region30: #{triplet_net_forward.18} parent=5 // pred_check_branch
      %143 = sbr.rel (%p140) target = $region32
    $region31: #{triplet_net_forward.18} parent=5 // pred_region
      %s144 = ssub.s32 %s9, 1
      %s145 = smul.u32 96, %s14
      %p146 = scmp.lt.s32.totalorder %s145, 191
      %s147 = scalar_select %p146, %s145, 191
      %s148 = smul.addr %s147, 2
      %s149 = smul.addr %s148, 4
      %s150 = scalar_lea.vmem %s0, %s149
      %p151 = pneg %p35
      %p152 = pneg %p32
      %p153 = pneg %p56
      %p154 = pneg %p53
      %p155 = pneg %p77
      %p156 = pneg %p74
      %p157 = pneg %p103
      %p158 = pneg %p100
      %s159 = smul.u32 96, %s14
      %p160 = scmp.lt.s32.totalorder %s159, 191
      %s161 = scalar_select %p160, %s159, 191
      %s162 = smul.addr %s161, 4
      %s163 = scalar_lea.vmem %s3, %s162
      %s164 = smul.u32 96, %s14
      %p165 = scmp.lt.s32.totalorder %s164, 191
      %s166 = scalar_select %p165, %s164, 191
      %s167 = smul.addr %s166, 2
      %s168 = smul.addr %s167, 4
      %s169 = scalar_lea.vmem %s0, %s168
      %s170 = smul.u32 96, %s14
      %s171 = smul.u32 96, %s14
      %p172 = scmp.lt.s32.totalorder %s171, 191
      %s173 = scalar_select %p172, %s171, 191
      %s174 = smul.addr %s173, 4
      %s175 = scalar_lea.vmem %s3, %s174
      %s176 = smul.u32 96, %s14
      %v178 = vld [vmem:[%s169] sm:$0xff]
      %v179 = vld [vmem:[%s169 + $0x8] sm:$0xff]
      %v180 = vld [vmem:[%s169 + $0x10] sm:$0xff]
      %v181 = vld [vmem:[%s169 + $0x18] sm:$0xff]
      %v182 = vld [vmem:[%s169 + $0x20] sm:$0xff]
      %v183 = vld [vmem:[%s169 + $0x28] sm:$0xff]
      %v184 = vld [vmem:[%s169 + $0x30] sm:$0xff]
      %v185 = vld [vmem:[%s169 + $0x38] sm:$0xff]
      %v186 = vld [vmem:[%s169 + $0x40] sm:$0xff]
      %v187 = vld [vmem:[%s169 + $0x48] sm:$0xff]
      %v188 = vld [vmem:[%s169 + $0x50] sm:$0xff]
      %v189 = vld [vmem:[%s169 + $0x58] sm:$0xff]
      %v190 = vld [vmem:[%s169 + $0x60] sm:$0xff]
      %v191 = vld [vmem:[%s169 + $0x68] sm:$0xff]
      %v192 = vld [vmem:[%s169 + $0x70] sm:$0xff]
      %v193 = vld [vmem:[%s169 + $0x78] sm:$0xff]
      %v194 = vld [vmem:[%s169 + $0x80] sm:$0xff]
      %v195 = vld [vmem:[%s169 + $0x88] sm:$0xff]
      %v196 = vld [vmem:[%s169 + $0x90] sm:$0xff]
      %v197 = vld [vmem:[%s169 + $0x98] sm:$0xff]
      %v198 = vld [vmem:[%s169 + $0xa0] sm:$0xff]
      %v199 = vld [vmem:[%s169 + $0xa8] sm:$0xff]
      %v200 = vld [vmem:[%s169 + $0xb0] sm:$0xff]
      %v201 = vld [vmem:[%s169 + $0xb8] sm:$0xff]
      %v202 = vld [vmem:[%s169 + $0xc0] sm:$0xff]
      %v203 = vld [vmem:[%s169 + $0xc8] sm:$0xff]
      %v204 = vld [vmem:[%s169 + $0xd0] sm:$0xff]
      %v205 = vld [vmem:[%s169 + $0xd8] sm:$0xff]
      %v206 = vld [vmem:[%s169 + $0xe0] sm:$0xff]
      %v207 = vld [vmem:[%s169 + $0xe8] sm:$0xff]
      %v208 = vld [vmem:[%s169 + $0xf0] sm:$0xff]
      %v209 = vld [vmem:[%s169 + $0xf8] sm:$0xff]
      %v210 = vld [vmem:[%s169 + $0x100] sm:$0xff]
      %v211 = vld [vmem:[%s169 + $0x108] sm:$0xff]
      %v212 = vld [vmem:[%s169 + $0x110] sm:$0xff]
      %v213 = vld [vmem:[%s169 + $0x118] sm:$0xff]
      %v214 = vld [vmem:[%s169 + $0x120] sm:$0xff]
      %v215 = vld [vmem:[%s169 + $0x128] sm:$0xff]
      %v216 = vld [vmem:[%s169 + $0x130] sm:$0xff]
      %v217 = vld [vmem:[%s169 + $0x138] sm:$0xff]
      %v218 = vld [vmem:[%s169 + $0x140] sm:$0xff]
      %v219 = vld [vmem:[%s169 + $0x148] sm:$0xff]
      %v220 = vld [vmem:[%s169 + $0x150] sm:$0xff]
      %v221 = vld [vmem:[%s169 + $0x158] sm:$0xff]
      %v222 = vld [vmem:[%s169 + $0x160] sm:$0xff]
      %v223 = vld [vmem:[%s169 + $0x168] sm:$0xff]
      %v224 = vld [vmem:[%s169 + $0x170] sm:$0xff]
      %v225 = vld [vmem:[%s169 + $0x178] sm:$0xff]
      %v226 = vld [vmem:[%s169 + $0x180] sm:$0xff]
      %v227 = vld [vmem:[%s169 + $0x188] sm:$0xff]
      %v228 = vld [vmem:[%s169 + $0x190] sm:$0xff]
      %v229 = vld [vmem:[%s169 + $0x198] sm:$0xff]
      %v230 = vld [vmem:[%s169 + $0x1a0] sm:$0xff]
      %v231 = vld [vmem:[%s169 + $0x1a8] sm:$0xff]
      %v232 = vld [vmem:[%s169 + $0x1b0] sm:$0xff]
      %v233 = vld [vmem:[%s169 + $0x1b8] sm:$0xff]
      %v234 = vld [vmem:[%s169 + $0x1c0] sm:$0xff]
      %v235 = vld [vmem:[%s169 + $0x1c8] sm:$0xff]
      %v236 = vld [vmem:[%s169 + $0x1d0] sm:$0xff]
      %v237 = vld [vmem:[%s169 + $0x1d8] sm:$0xff]
      %v238 = vld [vmem:[%s169 + $0x1e0] sm:$0xff]
      %v239 = vld [vmem:[%s169 + $0x1e8] sm:$0xff]
      %v240 = vld [vmem:[%s169 + $0x1f0] sm:$0xff]
      %v241 = vld [vmem:[%s169 + $0x1f8] sm:$0xff]
      %v242 = vld [vmem:[%s169 + $0x200] sm:$0xff]
      %v243 = vld [vmem:[%s169 + $0x208] sm:$0xff]
      %v244 = vld [vmem:[%s169 + $0x210] sm:$0xff]
      %v245 = vld [vmem:[%s169 + $0x218] sm:$0xff]
      %v246 = vld [vmem:[%s169 + $0x220] sm:$0xff]
      %v247 = vld [vmem:[%s169 + $0x228] sm:$0xff]
      %v248 = vld [vmem:[%s169 + $0x230] sm:$0xff]
      %v249 = vld [vmem:[%s169 + $0x238] sm:$0xff]
      %v250 = vld [vmem:[%s169 + $0x240] sm:$0xff]
      %v251 = vld [vmem:[%s169 + $0x248] sm:$0xff]
      %v252 = vld [vmem:[%s169 + $0x250] sm:$0xff]
      %v253 = vld [vmem:[%s169 + $0x258] sm:$0xff]
      %v254 = vld [vmem:[%s169 + $0x260] sm:$0xff]
      %v255 = vld [vmem:[%s169 + $0x268] sm:$0xff]
      %v256 = vld [vmem:[%s169 + $0x270] sm:$0xff]
      %v257 = vld [vmem:[%s169 + $0x278] sm:$0xff]
      %v258 = vld [vmem:[%s169 + $0x280] sm:$0xff]
      %v259 = vld [vmem:[%s169 + $0x288] sm:$0xff]
      %v260 = vld [vmem:[%s169 + $0x290] sm:$0xff]
      %v261 = vld [vmem:[%s169 + $0x298] sm:$0xff]
      %v262 = vld [vmem:[%s169 + $0x2a0] sm:$0xff]
      %v263 = vld [vmem:[%s169 + $0x2a8] sm:$0xff]
      %v264 = vld [vmem:[%s169 + $0x2b0] sm:$0xff]
      %v265 = vld [vmem:[%s169 + $0x2b8] sm:$0xff]
      %v266 = vld [vmem:[%s169 + $0x2c0] sm:$0xff]
      %v267 = vld [vmem:[%s169 + $0x2c8] sm:$0xff]
      %v268 = vld [vmem:[%s169 + $0x2d0] sm:$0xff]
      %v269 = vld [vmem:[%s169 + $0x2d8] sm:$0xff]
      %v270 = vld [vmem:[%s169 + $0x2e0] sm:$0xff]
      %v271 = vld [vmem:[%s169 + $0x2e8] sm:$0xff]
      %v272 = vld [vmem:[%s169 + $0x2f0] sm:$0xff]
      %v273 = vld [vmem:[%s169 + $0x2f8] sm:$0xff]
      %v274 = vld [vmem:[%s1] sm:$0xf]
      %v275 = vld [vmem:[%s1 + $0x4] sm:$0xf]
      %v276 = vld [vmem:[%s1 + $0x8] sm:$0xf]
      %v277 = vld [vmem:[%s1 + $0xc] sm:$0xf]
      %v278 = vld [vmem:[%s1 + $0x10] sm:$0xf]
      %v279 = vld [vmem:[%s1 + $0x14] sm:$0xf]
      %v280 = vld [vmem:[%s1 + $0x18] sm:$0xf]
      %v281 = vld [vmem:[%s1 + $0x1c] sm:$0xf]
      %v282 = vld [vmem:[%s1 + $0x20] sm:$0xf]
      %v283 = vld [vmem:[%s1 + $0x24] sm:$0xf]
      %v284 = vld [vmem:[%s1 + $0x28] sm:$0xf]
      %v285 = vld [vmem:[%s1 + $0x2c] sm:$0xf]
      %v286 = vld [vmem:[%s1 + $0x30] sm:$0xf]
      %v287 = vld [vmem:[%s1 + $0x34] sm:$0xf]
      %v288 = vld [vmem:[%s1 + $0x38] sm:$0xf]
      %v289 = vld [vmem:[%s1 + $0x3c] sm:$0xf]
      %v290 = vld [vmem:[%s1 + $0x40] sm:$0xf]
      %v291 = vld [vmem:[%s1 + $0x44] sm:$0xf]
      %v292 = vld [vmem:[%s1 + $0x48] sm:$0xf]
      %v293 = vld [vmem:[%s1 + $0x4c] sm:$0xf]
      %v294 = vld [vmem:[%s1 + $0x50] sm:$0xf]
      %v295 = vld [vmem:[%s1 + $0x54] sm:$0xf]
      %v296 = vld [vmem:[%s1 + $0x58] sm:$0xf]
      %v297 = vld [vmem:[%s1 + $0x5c] sm:$0xf]
      %v298 = vld [vmem:[%s1 + $0x60] sm:$0xf]
      %v299 = vld [vmem:[%s1 + $0x64] sm:$0xf]
      %v300 = vld [vmem:[%s1 + $0x68] sm:$0xf]
      %v301 = vld [vmem:[%s1 + $0x6c] sm:$0xf]
      %v302 = vld [vmem:[%s1 + $0x70] sm:$0xf]
      %v303 = vld [vmem:[%s1 + $0x74] sm:$0xf]
      %v304 = vld [vmem:[%s1 + $0x78] sm:$0xf]
      %v305 = vld [vmem:[%s1 + $0x7c] sm:$0xf]
      %v306 = vld [vmem:[%s2] sm:$0x1]
      %v308 = vlaneseq
      %v309 = vshrl.u32 %v308, 7
      %v310 = vsub.s32 0, %v309
      %v311 = vrot.slane %v306, %v310
      %v409 = vunpack.c.l.b16 %v178
      %v410 = vunpack.c.h.b16 %v178
      %v411 = vunpack.c.l.b16 %v179
      %v412 = vunpack.c.h.b16 %v179
      %v413 = vunpack.c.l.b16 %v180
      %v414 = vunpack.c.h.b16 %v180
      %v415 = vunpack.c.l.b16 %v181
      %v416 = vunpack.c.h.b16 %v181
      %v417 = vunpack.c.l.b16 %v182
      %v418 = vunpack.c.h.b16 %v182
      %v419 = vunpack.c.l.b16 %v183
      %v420 = vunpack.c.h.b16 %v183
      %v421 = vunpack.c.l.b16 %v184
      %v422 = vunpack.c.h.b16 %v184
      %v423 = vunpack.c.l.b16 %v185
      %v424 = vunpack.c.h.b16 %v185
      %v425 = vunpack.c.l.b16 %v186
      %v426 = vunpack.c.h.b16 %v186
      %v427 = vunpack.c.l.b16 %v187
      %v428 = vunpack.c.h.b16 %v187
      %v429 = vunpack.c.l.b16 %v188
      %v430 = vunpack.c.h.b16 %v188
      %v431 = vunpack.c.l.b16 %v189
      %v432 = vunpack.c.h.b16 %v189
      %v433 = vunpack.c.l.b16 %v190
      %v434 = vunpack.c.h.b16 %v190
      %v435 = vunpack.c.l.b16 %v191
      %v436 = vunpack.c.h.b16 %v191
      %v437 = vunpack.c.l.b16 %v192
      %v438 = vunpack.c.h.b16 %v192
      %v439 = vunpack.c.l.b16 %v193
      %v440 = vunpack.c.h.b16 %v193
      %v441 = vunpack.c.l.b16 %v194
      %v442 = vunpack.c.h.b16 %v194
      %v443 = vunpack.c.l.b16 %v195
      %v444 = vunpack.c.h.b16 %v195
      %v445 = vunpack.c.l.b16 %v196
      %v446 = vunpack.c.h.b16 %v196
      %v447 = vunpack.c.l.b16 %v197
      %v448 = vunpack.c.h.b16 %v197
      %v449 = vunpack.c.l.b16 %v198
      %v450 = vunpack.c.h.b16 %v198
      %v451 = vunpack.c.l.b16 %v199
      %v452 = vunpack.c.h.b16 %v199
      %v453 = vunpack.c.l.b16 %v200
      %v454 = vunpack.c.h.b16 %v200
      %v455 = vunpack.c.l.b16 %v201
      %v456 = vunpack.c.h.b16 %v201
      %v457 = vunpack.c.l.b16 %v202
      %v458 = vunpack.c.h.b16 %v202
      %v459 = vunpack.c.l.b16 %v203
      %v460 = vunpack.c.h.b16 %v203
      %v461 = vunpack.c.l.b16 %v204
      %v462 = vunpack.c.h.b16 %v204
      %v463 = vunpack.c.l.b16 %v205
      %v464 = vunpack.c.h.b16 %v205
      %v465 = vunpack.c.l.b16 %v206
      %v466 = vunpack.c.h.b16 %v206
      %v467 = vunpack.c.l.b16 %v207
      %v468 = vunpack.c.h.b16 %v207
      %v469 = vunpack.c.l.b16 %v208
      %v470 = vunpack.c.h.b16 %v208
      %v471 = vunpack.c.l.b16 %v209
      %v472 = vunpack.c.h.b16 %v209
      %v473 = vunpack.c.l.b16 %v210
      %v474 = vunpack.c.h.b16 %v210
      %v475 = vunpack.c.l.b16 %v211
      %v476 = vunpack.c.h.b16 %v211
      %v477 = vunpack.c.l.b16 %v212
      %v478 = vunpack.c.h.b16 %v212
      %v479 = vunpack.c.l.b16 %v213
      %v480 = vunpack.c.h.b16 %v213
      %v481 = vunpack.c.l.b16 %v214
      %v482 = vunpack.c.h.b16 %v214
      %v483 = vunpack.c.l.b16 %v215
      %v484 = vunpack.c.h.b16 %v215
      %v485 = vunpack.c.l.b16 %v216
      %v486 = vunpack.c.h.b16 %v216
      %v487 = vunpack.c.l.b16 %v217
      %v488 = vunpack.c.h.b16 %v217
      %v489 = vunpack.c.l.b16 %v218
      %v490 = vunpack.c.h.b16 %v218
      %v491 = vunpack.c.l.b16 %v219
      %v492 = vunpack.c.h.b16 %v219
      %v493 = vunpack.c.l.b16 %v220
      %v494 = vunpack.c.h.b16 %v220
      %v495 = vunpack.c.l.b16 %v221
      %v496 = vunpack.c.h.b16 %v221
      %v497 = vunpack.c.l.b16 %v222
      %v498 = vunpack.c.h.b16 %v222
      %v499 = vunpack.c.l.b16 %v223
      %v500 = vunpack.c.h.b16 %v223
      %v501 = vunpack.c.l.b16 %v224
      %v502 = vunpack.c.h.b16 %v224
      %v503 = vunpack.c.l.b16 %v225
      %v504 = vunpack.c.h.b16 %v225
      %v505 = vunpack.c.l.b16 %v226
      %v506 = vunpack.c.h.b16 %v226
      %v507 = vunpack.c.l.b16 %v227
      %v508 = vunpack.c.h.b16 %v227
      %v509 = vunpack.c.l.b16 %v228
      %v510 = vunpack.c.h.b16 %v228
      %v511 = vunpack.c.l.b16 %v229
      %v512 = vunpack.c.h.b16 %v229
      %v513 = vunpack.c.l.b16 %v230
      %v514 = vunpack.c.h.b16 %v230
      %v515 = vunpack.c.l.b16 %v231
      %v516 = vunpack.c.h.b16 %v231
      %v517 = vunpack.c.l.b16 %v232
      %v518 = vunpack.c.h.b16 %v232
      %v519 = vunpack.c.l.b16 %v233
      %v520 = vunpack.c.h.b16 %v233
      %v521 = vunpack.c.l.b16 %v234
      %v522 = vunpack.c.h.b16 %v234
      %v523 = vunpack.c.l.b16 %v235
      %v524 = vunpack.c.h.b16 %v235
      %v525 = vunpack.c.l.b16 %v236
      %v526 = vunpack.c.h.b16 %v236
      %v527 = vunpack.c.l.b16 %v237
      %v528 = vunpack.c.h.b16 %v237
      %v529 = vunpack.c.l.b16 %v238
      %v530 = vunpack.c.h.b16 %v238
      %v531 = vunpack.c.l.b16 %v239
      %v532 = vunpack.c.h.b16 %v239
      %v533 = vunpack.c.l.b16 %v240
      %v534 = vunpack.c.h.b16 %v240
      %v535 = vunpack.c.l.b16 %v241
      %v536 = vunpack.c.h.b16 %v241
      %v537 = vunpack.c.l.b16 %v242
      %v538 = vunpack.c.h.b16 %v242
      %v539 = vunpack.c.l.b16 %v243
      %v540 = vunpack.c.h.b16 %v243
      %v541 = vunpack.c.l.b16 %v244
      %v542 = vunpack.c.h.b16 %v244
      %v543 = vunpack.c.l.b16 %v245
      %v544 = vunpack.c.h.b16 %v245
      %v545 = vunpack.c.l.b16 %v246
      %v546 = vunpack.c.h.b16 %v246
      %v547 = vunpack.c.l.b16 %v247
      %v548 = vunpack.c.h.b16 %v247
      %v549 = vunpack.c.l.b16 %v248
      %v550 = vunpack.c.h.b16 %v248
      %v551 = vunpack.c.l.b16 %v249
      %v552 = vunpack.c.h.b16 %v249
      %v553 = vunpack.c.l.b16 %v250
      %v554 = vunpack.c.h.b16 %v250
      %v555 = vunpack.c.l.b16 %v251
      %v556 = vunpack.c.h.b16 %v251
      %v557 = vunpack.c.l.b16 %v252
      %v558 = vunpack.c.h.b16 %v252
      %v559 = vunpack.c.l.b16 %v253
      %v560 = vunpack.c.h.b16 %v253
      %v561 = vunpack.c.l.b16 %v254
      %v562 = vunpack.c.h.b16 %v254
      %v563 = vunpack.c.l.b16 %v255
      %v564 = vunpack.c.h.b16 %v255
      %v565 = vunpack.c.l.b16 %v256
      %v566 = vunpack.c.h.b16 %v256
      %v567 = vunpack.c.l.b16 %v257
      %v568 = vunpack.c.h.b16 %v257
      %v569 = vunpack.c.l.b16 %v258
      %v570 = vunpack.c.h.b16 %v258
      %v571 = vunpack.c.l.b16 %v259
      %v572 = vunpack.c.h.b16 %v259
      %v573 = vunpack.c.l.b16 %v260
      %v574 = vunpack.c.h.b16 %v260
      %v575 = vunpack.c.l.b16 %v261
      %v576 = vunpack.c.h.b16 %v261
      %v577 = vunpack.c.l.b16 %v262
      %v578 = vunpack.c.h.b16 %v262
      %v579 = vunpack.c.l.b16 %v263
      %v580 = vunpack.c.h.b16 %v263
      %v581 = vunpack.c.l.b16 %v264
      %v582 = vunpack.c.h.b16 %v264
      %v583 = vunpack.c.l.b16 %v265
      %v584 = vunpack.c.h.b16 %v265
      %v585 = vunpack.c.l.b16 %v266
      %v586 = vunpack.c.h.b16 %v266
      %v587 = vunpack.c.l.b16 %v267
      %v588 = vunpack.c.h.b16 %v267
      %v589 = vunpack.c.l.b16 %v268
      %v590 = vunpack.c.h.b16 %v268
      %v591 = vunpack.c.l.b16 %v269
      %v592 = vunpack.c.h.b16 %v269
      %v593 = vunpack.c.l.b16 %v270
      %v594 = vunpack.c.h.b16 %v270
      %v595 = vunpack.c.l.b16 %v271
      %v596 = vunpack.c.h.b16 %v271
      %v597 = vunpack.c.l.b16 %v272
      %v598 = vunpack.c.h.b16 %v272
      %v599 = vunpack.c.l.b16 %v273
      %v600 = vunpack.c.h.b16 %v273
      %v601 = vpack.c.b16 %v411, %v409
      %v602 = vpack.c.b16 %v412, %v410
      %v603 = vpack.c.b16 %v415, %v413
      %v604 = vpack.c.b16 %v416, %v414
      %v605 = vpack.c.b16 %v419, %v417
      %v606 = vpack.c.b16 %v420, %v418
      %v607 = vpack.c.b16 %v423, %v421
      %v608 = vpack.c.b16 %v424, %v422
      %v609 = vpack.c.b16 %v427, %v425
      %v610 = vpack.c.b16 %v428, %v426
      %v611 = vpack.c.b16 %v431, %v429
      %v612 = vpack.c.b16 %v432, %v430
      %v613 = vpack.c.b16 %v435, %v433
      %v614 = vpack.c.b16 %v436, %v434
      %v615 = vpack.c.b16 %v439, %v437
      %v616 = vpack.c.b16 %v440, %v438
      %v617 = vpack.c.b16 %v443, %v441
      %v618 = vpack.c.b16 %v444, %v442
      %v619 = vpack.c.b16 %v447, %v445
      %v620 = vpack.c.b16 %v448, %v446
      %v621 = vpack.c.b16 %v451, %v449
      %v622 = vpack.c.b16 %v452, %v450
      %v623 = vpack.c.b16 %v455, %v453
      %v624 = vpack.c.b16 %v456, %v454
      %v625 = vpack.c.b16 %v459, %v457
      %v626 = vpack.c.b16 %v460, %v458
      %v627 = vpack.c.b16 %v463, %v461
      %v628 = vpack.c.b16 %v464, %v462
      %v629 = vpack.c.b16 %v467, %v465
      %v630 = vpack.c.b16 %v468, %v466
      %v631 = vpack.c.b16 %v471, %v469
      %v632 = vpack.c.b16 %v472, %v470
      %v633 = vpack.c.b16 %v475, %v473
      %v634 = vpack.c.b16 %v476, %v474
      %v635 = vpack.c.b16 %v479, %v477
      %v636 = vpack.c.b16 %v480, %v478
      %v637 = vpack.c.b16 %v483, %v481
      %v638 = vpack.c.b16 %v484, %v482
      %v639 = vpack.c.b16 %v487, %v485
      %v640 = vpack.c.b16 %v488, %v486
      %v641 = vpack.c.b16 %v491, %v489
      %v642 = vpack.c.b16 %v492, %v490
      %v643 = vpack.c.b16 %v495, %v493
      %v644 = vpack.c.b16 %v496, %v494
      %v645 = vpack.c.b16 %v499, %v497
      %v646 = vpack.c.b16 %v500, %v498
      %v647 = vpack.c.b16 %v503, %v501
      %v648 = vpack.c.b16 %v504, %v502
      %v649 = vpack.c.b16 %v507, %v505
      %v650 = vpack.c.b16 %v508, %v506
      %v651 = vpack.c.b16 %v511, %v509
      %v652 = vpack.c.b16 %v512, %v510
      %v653 = vpack.c.b16 %v515, %v513
      %v654 = vpack.c.b16 %v516, %v514
      %v655 = vpack.c.b16 %v519, %v517
      %v656 = vpack.c.b16 %v520, %v518
      %v657 = vpack.c.b16 %v523, %v521
      %v658 = vpack.c.b16 %v524, %v522
      %v659 = vpack.c.b16 %v527, %v525
      %v660 = vpack.c.b16 %v528, %v526
      %v661 = vpack.c.b16 %v531, %v529
      %v662 = vpack.c.b16 %v532, %v530
      %v663 = vpack.c.b16 %v535, %v533
      %v664 = vpack.c.b16 %v536, %v534
      %v665 = vpack.c.b16 %v539, %v537
      %v666 = vpack.c.b16 %v540, %v538
      %v667 = vpack.c.b16 %v543, %v541
      %v668 = vpack.c.b16 %v544, %v542
      %v669 = vpack.c.b16 %v547, %v545
      %v670 = vpack.c.b16 %v548, %v546
      %v671 = vpack.c.b16 %v551, %v549
      %v672 = vpack.c.b16 %v552, %v550
      %v673 = vpack.c.b16 %v555, %v553
      %v674 = vpack.c.b16 %v556, %v554
      %v675 = vpack.c.b16 %v559, %v557
      %v676 = vpack.c.b16 %v560, %v558
      %v677 = vpack.c.b16 %v563, %v561
      %v678 = vpack.c.b16 %v564, %v562
      %v679 = vpack.c.b16 %v567, %v565
      %v680 = vpack.c.b16 %v568, %v566
      %v681 = vpack.c.b16 %v571, %v569
      %v682 = vpack.c.b16 %v572, %v570
      %v683 = vpack.c.b16 %v575, %v573
      %v684 = vpack.c.b16 %v576, %v574
      %v685 = vpack.c.b16 %v579, %v577
      %v686 = vpack.c.b16 %v580, %v578
      %v687 = vpack.c.b16 %v583, %v581
      %v688 = vpack.c.b16 %v584, %v582
      %v689 = vpack.c.b16 %v587, %v585
      %v690 = vpack.c.b16 %v588, %v586
      %v691 = vpack.c.b16 %v591, %v589
      %v692 = vpack.c.b16 %v592, %v590
      %v693 = vpack.c.b16 %v595, %v593
      %v694 = vpack.c.b16 %v596, %v594
      %v695 = vpack.c.b16 %v599, %v597
      %v696 = vpack.c.b16 %v600, %v598
      %v825 = vunpack.c.l.b16 %v274
      %v826 = vunpack.c.l.b16 %v275
      %v827 = vunpack.c.l.b16 %v276
      %v828 = vunpack.c.l.b16 %v277
      %v829 = vunpack.c.l.b16 %v278
      %v830 = vunpack.c.l.b16 %v279
      %v831 = vunpack.c.l.b16 %v280
      %v832 = vunpack.c.l.b16 %v281
      %v833 = vunpack.c.l.b16 %v282
      %v834 = vunpack.c.l.b16 %v283
      %v835 = vunpack.c.l.b16 %v284
      %v836 = vunpack.c.l.b16 %v285
      %v837 = vunpack.c.l.b16 %v286
      %v838 = vunpack.c.l.b16 %v287
      %v839 = vunpack.c.l.b16 %v288
      %v840 = vunpack.c.l.b16 %v289
      %v841 = vunpack.c.l.b16 %v290
      %v842 = vunpack.c.l.b16 %v291
      %v843 = vunpack.c.l.b16 %v292
      %v844 = vunpack.c.l.b16 %v293
      %v845 = vunpack.c.l.b16 %v294
      %v846 = vunpack.c.l.b16 %v295
      %v847 = vunpack.c.l.b16 %v296
      %v848 = vunpack.c.l.b16 %v297
      %v849 = vunpack.c.l.b16 %v298
      %v850 = vunpack.c.l.b16 %v299
      %v851 = vunpack.c.l.b16 %v300
      %v852 = vunpack.c.l.b16 %v301
      %v853 = vunpack.c.l.b16 %v302
      %v854 = vunpack.c.l.b16 %v303
      %v855 = vunpack.c.l.b16 %v304
      %v856 = vunpack.c.l.b16 %v305
      %v857 = vpack.c.b16 %v826, %v825
      %v858 = vpack.c.b16 %v828, %v827
      %v859 = vpack.c.b16 %v830, %v829
      %v860 = vpack.c.b16 %v832, %v831
      %v861 = vpack.c.b16 %v834, %v833
      %v862 = vpack.c.b16 %v836, %v835
      %v863 = vpack.c.b16 %v838, %v837
      %v864 = vpack.c.b16 %v840, %v839
      %v865 = vpack.c.b16 %v842, %v841
      %v866 = vpack.c.b16 %v844, %v843
      %v867 = vpack.c.b16 %v846, %v845
      %v868 = vpack.c.b16 %v848, %v847
      %v869 = vpack.c.b16 %v850, %v849
      %v870 = vpack.c.b16 %v852, %v851
      %v871 = vpack.c.b16 %v854, %v853
      %v872 = vpack.c.b16 %v856, %v855
      %889 = vmatprep.subr.bf16.mxu0 0
      %890 = vmatpush1.bf16.msra.mxu0 %v857
      %891 = vmatprep.subr.bf16.mxu0 0
      %892 = vmatpush1.bf16.msra.mxu0 %v858
      %893 = vmatprep.subr.bf16.mxu0 0
      %894 = vmatpush1.bf16.msra.mxu0 %v859
      %895 = vmatprep.subr.bf16.mxu0 0
      %896 = vmatpush1.bf16.msra.mxu0 %v860
      %897 = vmatprep.subr.bf16.mxu0 0
      %898 = vmatpush1.bf16.msra.mxu0 %v861
      %899 = vmatprep.subr.bf16.mxu0 0
      %900 = vmatpush1.bf16.msra.mxu0 %v862
      %901 = vmatprep.subr.bf16.mxu0 0
      %902 = vmatpush1.bf16.msra.mxu0 %v863
      %903 = vmatprep.subr.bf16.mxu0 0
      %904 = vmatpush1.bf16.msra.mxu0 %v864
      %905 = vmatprep.subr.bf16.mxu0 0
      %906 = vmatpush1.bf16.msra.mxu0 %v865
      %907 = vmatprep.subr.bf16.mxu0 0
      %908 = vmatpush1.bf16.msra.mxu0 %v866
      %909 = vmatprep.subr.bf16.mxu0 0
      %910 = vmatpush1.bf16.msra.mxu0 %v867
      %911 = vmatprep.subr.bf16.mxu0 0
      %912 = vmatpush1.bf16.msra.mxu0 %v868
      %913 = vmatprep.subr.bf16.mxu0 0
      %914 = vmatpush1.bf16.msra.mxu0 %v869
      %915 = vmatprep.subr.bf16.mxu0 0
      %916 = vmatpush1.bf16.msra.mxu0 %v870
      %917 = vmatprep.subr.bf16.mxu0 0
      %918 = vmatpush1.bf16.msra.mxu0 %v871
      %919 = vmatprep.subr.bf16.mxu0 0
      %920 = vmatpush1.bf16.msra.mxu0 %v872
      %921 = vmatprep.mubr.bf16.mxu0 %v602
      %922 = vmatmul.mubr.bf16.gmra.mrb[0].mxu0 %v601
      %v923 = vpop.f32.mrb[0].mxu0
      %v924 = vadd.f32 %v311, %v923
      %v925 = vpop.f32.mrb[0].mxu0
      %v926 = vpop.f32.mrb[0].mxu0
      %v927 = vadd.f32 %v311, %v926
      %v928 = vpop.f32.mrb[0].mxu0
      %929 = vmatprep.mubr.bf16.mxu0 %v604
      %930 = vmatmul.mubr.bf16.gmra.mrb[0].mxu0 %v603
      %v931 = vpop.f32.mrb[0].mxu0
      %v932 = vadd.f32 %v311, %v931
      %v933 = vpop.f32.mrb[0].mxu0
      %v934 = vpop.f32.mrb[0].mxu0
      %v935 = vadd.f32 %v311, %v934
      %v936 = vpop.f32.mrb[0].mxu0
      %937 = vmatprep.mubr.bf16.mxu0 %v606
      %938 = vmatmul.mubr.bf16.gmra.mrb[0].mxu0 %v605
      %v939 = vpop.f32.mrb[0].mxu0
      %v940 = vadd.f32 %v311, %v939
      %v941 = vpop.f32.mrb[0].mxu0
      %v942 = vpop.f32.mrb[0].mxu0
      %v943 = vadd.f32 %v311, %v942
      %v944 = vpop.f32.mrb[0].mxu0
      %945 = vmatprep.mubr.bf16.mxu0 %v608
      %946 = vmatmul.mubr.bf16.gmra.mrb[0].mxu0 %v607
      %v947 = vpop.f32.mrb[0].mxu0
      %v948 = vadd.f32 %v311, %v947
      %v949 = vpop.f32.mrb[0].mxu0
      %v950 = vpop.f32.mrb[0].mxu0
      %v951 = vadd.f32 %v311, %v950
      %v952 = vpop.f32.mrb[0].mxu0
      %953 = vmatprep.mubr.bf16.mxu0 %v610
      %954 = vmatmul.mubr.bf16.gmra.mrb[0].mxu0 %v609
      %v955 = vpop.f32.mrb[0].mxu0
      %v956 = vadd.f32 %v311, %v955
      %v957 = vpop.f32.mrb[0].mxu0
      %v958 = vpop.f32.mrb[0].mxu0
      %v959 = vadd.f32 %v311, %v958
      %v960 = vpop.f32.mrb[0].mxu0
      %961 = vmatprep.mubr.bf16.mxu0 %v612
      %962 = vmatmul.mubr.bf16.gmra.mrb[0].mxu0 %v611
      %v963 = vpop.f32.mrb[0].mxu0
      %v964 = vadd.f32 %v311, %v963
      %v965 = vpop.f32.mrb[0].mxu0
      %v966 = vpop.f32.mrb[0].mxu0
      %v967 = vadd.f32 %v311, %v966
      %v968 = vpop.f32.mrb[0].mxu0
      %969 = vmatprep.mubr.bf16.mxu0 %v614
      %970 = vmatmul.mubr.bf16.gmra.mrb[0].mxu0 %v613
      %v971 = vpop.f32.mrb[0].mxu0
      %v972 = vadd.f32 %v311, %v971
      %v973 = vpop.f32.mrb[0].mxu0
      %v974 = vpop.f32.mrb[0].mxu0
      %v975 = vadd.f32 %v311, %v974
      %v976 = vpop.f32.mrb[0].mxu0
      %977 = vmatprep.mubr.bf16.mxu0 %v616
      %978 = vmatmul.mubr.bf16.gmra.mrb[0].mxu0 %v615
      %v979 = vpop.f32.mrb[0].mxu0
      %v980 = vadd.f32 %v311, %v979
      %v981 = vpop.f32.mrb[0].mxu0
      %v982 = vpop.f32.mrb[0].mxu0
      %v983 = vadd.f32 %v311, %v982
      %v984 = vpop.f32.mrb[0].mxu0
      %985 = vmatprep.mubr.bf16.mxu0 %v618
      %986 = vmatmul.mubr.bf16.gmra.mrb[0].mxu0 %v617
      %v987 = vpop.f32.mrb[0].mxu0
      %v988 = vadd.f32 %v311, %v987
      %v989 = vpop.f32.mrb[0].mxu0
      %v990 = vpop.f32.mrb[0].mxu0
      %v991 = vadd.f32 %v311, %v990
      %v992 = vpop.f32.mrb[0].mxu0
      %993 = vmatprep.mubr.bf16.mxu0 %v620
      %994 = vmatmul.mubr.bf16.gmra.mrb[0].mxu0 %v619
      %v995 = vpop.f32.mrb[0].mxu0
      %v996 = vadd.f32 %v311, %v995
      %v997 = vpop.f32.mrb[0].mxu0
      %v998 = vpop.f32.mrb[0].mxu0
      %v999 = vadd.f32 %v311, %v998
      %v1000 = vpop.f32.mrb[0].mxu0
      %1001 = vmatprep.mubr.bf16.mxu0 %v622
      %1002 = vmatmul.mubr.bf16.gmra.mrb[0].mxu0 %v621
      %v1003 = vpop.f32.mrb[0].mxu0
      %v1004 = vadd.f32 %v311, %v1003
      %v1005 = vpop.f32.mrb[0].mxu0
      %v1006 = vpop.f32.mrb[0].mxu0
      %v1007 = vadd.f32 %v311, %v1006
      %v1008 = vpop.f32.mrb[0].mxu0
      %1009 = vmatprep.mubr.bf16.mxu0 %v624
      %1010 = vmatmul.mubr.bf16.gmra.mrb[0].mxu0 %v623
      %v1011 = vpop.f32.mrb[0].mxu0
      %v1012 = vadd.f32 %v311, %v1011
      %v1013 = vpop.f32.mrb[0].mxu0
      %v1014 = vpop.f32.mrb[0].mxu0
      %v1015 = vadd.f32 %v311, %v1014
      %v1016 = vpop.f32.mrb[0].mxu0
      %1017 = vmatprep.mubr.bf16.mxu0 %v626
      %1018 = vmatmul.mubr.bf16.gmra.mrb[0].mxu0 %v625
      %v1019 = vpop.f32.mrb[0].mxu0
      %v1020 = vadd.f32 %v311, %v1019
      %v1021 = vpop.f32.mrb[0].mxu0
      %v1022 = vpop.f32.mrb[0].mxu0
      %v1023 = vadd.f32 %v311, %v1022
      %v1024 = vpop.f32.mrb[0].mxu0
      %1025 = vmatprep.mubr.bf16.mxu0 %v628
      %1026 = vmatmul.mubr.bf16.gmra.mrb[0].mxu0 %v627
      %v1027 = vpop.f32.mrb[0].mxu0
      %v1028 = vadd.f32 %v311, %v1027
      %v1029 = vpop.f32.mrb[0].mxu0
      %v1030 = vpop.f32.mrb[0].mxu0
      %v1031 = vadd.f32 %v311, %v1030
      %v1032 = vpop.f32.mrb[0].mxu0
      %1033 = vmatprep.mubr.bf16.mxu0 %v630
      %1034 = vmatmul.mubr.bf16.gmra.mrb[0].mxu0 %v629
      %v1035 = vpop.f32.mrb[0].mxu0
      %v1036 = vadd.f32 %v311, %v1035
      %v1037 = vpop.f32.mrb[0].mxu0
      %v1038 = vpop.f32.mrb[0].mxu0
      %v1039 = vadd.f32 %v311, %v1038
      %v1040 = vpop.f32.mrb[0].mxu0
      %1041 = vmatprep.mubr.bf16.mxu0 %v632
      %1042 = vmatmul.mubr.bf16.gmra.mrb[0].mxu0 %v631
      %v1043 = vpop.f32.mrb[0].mxu0
      %v1044 = vadd.f32 %v311, %v1043
      %v1045 = vpop.f32.mrb[0].mxu0
      %v1046 = vpop.f32.mrb[0].mxu0
      %v1047 = vadd.f32 %v311, %v1046
      %v1048 = vpop.f32.mrb[0].mxu0
      %1049 = vmatprep.mubr.bf16.mxu0 %v634
      %1050 = vmatmul.mubr.bf16.gmra.mrb[0].mxu0 %v633
      %v1051 = vpop.f32.mrb[0].mxu0
      %v1052 = vadd.f32 %v311, %v1051
      %v1053 = vpop.f32.mrb[0].mxu0
      %v1054 = vpop.f32.mrb[0].mxu0
      %v1055 = vadd.f32 %v311, %v1054
      %v1056 = vpop.f32.mrb[0].mxu0
      %1057 = vmatprep.mubr.bf16.mxu0 %v636
      %1058 = vmatmul.mubr.bf16.gmra.mrb[0].mxu0 %v635
      %v1059 = vpop.f32.mrb[0].mxu0
      %v1060 = vadd.f32 %v311, %v1059
      %v1061 = vpop.f32.mrb[0].mxu0
      %v1062 = vpop.f32.mrb[0].mxu0
      %v1063 = vadd.f32 %v311, %v1062
      %v1064 = vpop.f32.mrb[0].mxu0
      %1065 = vmatprep.mubr.bf16.mxu0 %v638
      %1066 = vmatmul.mubr.bf16.gmra.mrb[0].mxu0 %v637
      %v1067 = vpop.f32.mrb[0].mxu0
      %v1068 = vadd.f32 %v311, %v1067
      %v1069 = vpop.f32.mrb[0].mxu0
      %v1070 = vpop.f32.mrb[0].mxu0
      %v1071 = vadd.f32 %v311, %v1070
      %v1072 = vpop.f32.mrb[0].mxu0
      %1073 = vmatprep.mubr.bf16.mxu0 %v640
      %1074 = vmatmul.mubr.bf16.gmra.mrb[0].mxu0 %v639
      %v1075 = vpop.f32.mrb[0].mxu0
      %v1076 = vadd.f32 %v311, %v1075
      %v1077 = vpop.f32.mrb[0].mxu0
      %v1078 = vpop.f32.mrb[0].mxu0
      %v1079 = vadd.f32 %v311, %v1078
      %v1080 = vpop.f32.mrb[0].mxu0
      %1081 = vmatprep.mubr.bf16.mxu0 %v642
      %1082 = vmatmul.mubr.bf16.gmra.mrb[0].mxu0 %v641
      %v1083 = vpop.f32.mrb[0].mxu0
      %v1084 = vadd.f32 %v311, %v1083
      %v1085 = vpop.f32.mrb[0].mxu0
      %v1086 = vpop.f32.mrb[0].mxu0
      %v1087 = vadd.f32 %v311, %v1086
      %v1088 = vpop.f32.mrb[0].mxu0
      %1089 = vmatprep.mubr.bf16.mxu0 %v644
      %1090 = vmatmul.mubr.bf16.gmra.mrb[0].mxu0 %v643
      %v1091 = vpop.f32.mrb[0].mxu0
      %v1092 = vadd.f32 %v311, %v1091
      %v1093 = vpop.f32.mrb[0].mxu0
      %v1094 = vpop.f32.mrb[0].mxu0
      %v1095 = vadd.f32 %v311, %v1094
      %v1096 = vpop.f32.mrb[0].mxu0
      %1097 = vmatprep.mubr.bf16.mxu0 %v646
      %1098 = vmatmul.mubr.bf16.gmra.mrb[0].mxu0 %v645
      %v1099 = vpop.f32.mrb[0].mxu0
      %v1100 = vadd.f32 %v311, %v1099
      %v1101 = vpop.f32.mrb[0].mxu0
      %v1102 = vpop.f32.mrb[0].mxu0
      %v1103 = vadd.f32 %v311, %v1102
      %v1104 = vpop.f32.mrb[0].mxu0
      %1105 = vmatprep.mubr.bf16.mxu0 %v648
      %1106 = vmatmul.mubr.bf16.gmra.mrb[0].mxu0 %v647
      %v1107 = vpop.f32.mrb[0].mxu0
      %v1108 = vadd.f32 %v311, %v1107
      %v1109 = vpop.f32.mrb[0].mxu0
      %v1110 = vpop.f32.mrb[0].mxu0
      %v1111 = vadd.f32 %v311, %v1110
      %v1112 = vpop.f32.mrb[0].mxu0
      %1113 = vmatprep.mubr.bf16.mxu0 %v650
      %1114 = vmatmul.mubr.bf16.gmra.mrb[0].mxu0 %v649
      %v1115 = vpop.f32.mrb[0].mxu0
      %v1116 = vadd.f32 %v311, %v1115
      %v1117 = vpop.f32.mrb[0].mxu0
      %v1118 = vpop.f32.mrb[0].mxu0
      %v1119 = vadd.f32 %v311, %v1118
      %v1120 = vpop.f32.mrb[0].mxu0
      %1121 = vmatprep.mubr.bf16.mxu0 %v652
      %1122 = vmatmul.mubr.bf16.gmra.mrb[0].mxu0 %v651
      %v1123 = vpop.f32.mrb[0].mxu0
      %v1124 = vadd.f32 %v311, %v1123
      %v1125 = vpop.f32.mrb[0].mxu0
      %v1126 = vpop.f32.mrb[0].mxu0
      %v1127 = vadd.f32 %v311, %v1126
      %v1128 = vpop.f32.mrb[0].mxu0
      %1129 = vmatprep.mubr.bf16.mxu0 %v654
      %1130 = vmatmul.mubr.bf16.gmra.mrb[0].mxu0 %v653
      %v1131 = vpop.f32.mrb[0].mxu0
      %v1132 = vadd.f32 %v311, %v1131
      %v1133 = vpop.f32.mrb[0].mxu0
      %v1134 = vpop.f32.mrb[0].mxu0
      %v1135 = vadd.f32 %v311, %v1134
      %v1136 = vpop.f32.mrb[0].mxu0
      %1137 = vmatprep.mubr.bf16.mxu0 %v656
      %1138 = vmatmul.mubr.bf16.gmra.mrb[0].mxu0 %v655
      %v1139 = vpop.f32.mrb[0].mxu0
      %v1140 = vadd.f32 %v311, %v1139
      %v1141 = vpop.f32.mrb[0].mxu0
      %v1142 = vpop.f32.mrb[0].mxu0
      %v1143 = vadd.f32 %v311, %v1142
      %v1144 = vpop.f32.mrb[0].mxu0
      %1145 = vmatprep.mubr.bf16.mxu0 %v658
      %1146 = vmatmul.mubr.bf16.gmra.mrb[0].mxu0 %v657
      %v1147 = vpop.f32.mrb[0].mxu0
      %v1148 = vadd.f32 %v311, %v1147
      %v1149 = vpop.f32.mrb[0].mxu0
      %v1150 = vpop.f32.mrb[0].mxu0
      %v1151 = vadd.f32 %v311, %v1150
      %v1152 = vpop.f32.mrb[0].mxu0
      %1153 = vmatprep.mubr.bf16.mxu0 %v660
      %1154 = vmatmul.mubr.bf16.gmra.mrb[0].mxu0 %v659
      %v1155 = vpop.f32.mrb[0].mxu0
      %v1156 = vadd.f32 %v311, %v1155
      %v1157 = vpop.f32.mrb[0].mxu0
      %v1158 = vpop.f32.mrb[0].mxu0
      %v1159 = vadd.f32 %v311, %v1158
      %v1160 = vpop.f32.mrb[0].mxu0
      %1161 = vmatprep.mubr.bf16.mxu0 %v662
      %1162 = vmatmul.mubr.bf16.gmra.mrb[0].mxu0 %v661
      %v1163 = vpop.f32.mrb[0].mxu0
      %v1164 = vadd.f32 %v311, %v1163
      %v1165 = vpop.f32.mrb[0].mxu0
      %v1166 = vpop.f32.mrb[0].mxu0
      %v1167 = vadd.f32 %v311, %v1166
      %v1168 = vpop.f32.mrb[0].mxu0
      %1169 = vmatprep.mubr.bf16.mxu0 %v664
      %1170 = vmatmul.mubr.bf16.gmra.mrb[0].mxu0 %v663
      %v1171 = vpop.f32.mrb[0].mxu0
      %v1172 = vadd.f32 %v311, %v1171
      %v1173 = vpop.f32.mrb[0].mxu0
      %v1174 = vpop.f32.mrb[0].mxu0
      %v1175 = vadd.f32 %v311, %v1174
      %v1176 = vpop.f32.mrb[0].mxu0
      %1177 = vmatprep.mubr.bf16.mxu0 %v666
      %1178 = vmatmul.mubr.bf16.gmra.mrb[0].mxu0 %v665
      %v1179 = vpop.f32.mrb[0].mxu0
      %v1180 = vadd.f32 %v311, %v1179
      %v1181 = vpop.f32.mrb[0].mxu0
      %v1182 = vpop.f32.mrb[0].mxu0
      %v1183 = vadd.f32 %v311, %v1182
      %v1184 = vpop.f32.mrb[0].mxu0
      %1185 = vmatprep.mubr.bf16.mxu0 %v668
      %1186 = vmatmul.mubr.bf16.gmra.mrb[0].mxu0 %v667
      %v1187 = vpop.f32.mrb[0].mxu0
      %v1188 = vadd.f32 %v311, %v1187
      %v1189 = vpop.f32.mrb[0].mxu0
      %v1190 = vpop.f32.mrb[0].mxu0
      %v1191 = vadd.f32 %v311, %v1190
      %v1192 = vpop.f32.mrb[0].mxu0
      %1193 = vmatprep.mubr.bf16.mxu0 %v670
      %1194 = vmatmul.mubr.bf16.gmra.mrb[0].mxu0 %v669
      %v1195 = vpop.f32.mrb[0].mxu0
      %v1196 = vadd.f32 %v311, %v1195
      %v1197 = vpop.f32.mrb[0].mxu0
      %v1198 = vpop.f32.mrb[0].mxu0
      %v1199 = vadd.f32 %v311, %v1198
      %v1200 = vpop.f32.mrb[0].mxu0
      %1201 = vmatprep.mubr.bf16.mxu0 %v672
      %1202 = vmatmul.mubr.bf16.gmra.mrb[0].mxu0 %v671
      %v1203 = vpop.f32.mrb[0].mxu0
      %v1204 = vadd.f32 %v311, %v1203
      %v1205 = vpop.f32.mrb[0].mxu0
      %v1206 = vpop.f32.mrb[0].mxu0
      %v1207 = vadd.f32 %v311, %v1206
      %v1208 = vpop.f32.mrb[0].mxu0
      %1209 = vmatprep.mubr.bf16.mxu0 %v674
      %1210 = vmatmul.mubr.bf16.gmra.mrb[0].mxu0 %v673
      %v1211 = vpop.f32.mrb[0].mxu0
      %v1212 = vadd.f32 %v311, %v1211
      %v1213 = vpop.f32.mrb[0].mxu0
      %v1214 = vpop.f32.mrb[0].mxu0
      %v1215 = vadd.f32 %v311, %v1214
      %v1216 = vpop.f32.mrb[0].mxu0
      %1217 = vmatprep.mubr.bf16.mxu0 %v676
      %1218 = vmatmul.mubr.bf16.gmra.mrb[0].mxu0 %v675
      %v1219 = vpop.f32.mrb[0].mxu0
      %v1220 = vadd.f32 %v311, %v1219
      %v1221 = vpop.f32.mrb[0].mxu0
      %v1222 = vpop.f32.mrb[0].mxu0
      %v1223 = vadd.f32 %v311, %v1222
      %v1224 = vpop.f32.mrb[0].mxu0
      %1225 = vmatprep.mubr.bf16.mxu0 %v678
      %1226 = vmatmul.mubr.bf16.gmra.mrb[0].mxu0 %v677
      %v1227 = vpop.f32.mrb[0].mxu0
      %v1228 = vadd.f32 %v311, %v1227
      %v1229 = vpop.f32.mrb[0].mxu0
      %v1230 = vpop.f32.mrb[0].mxu0
      %v1231 = vadd.f32 %v311, %v1230
      %v1232 = vpop.f32.mrb[0].mxu0
      %1233 = vmatprep.mubr.bf16.mxu0 %v680
      %1234 = vmatmul.mubr.bf16.gmra.mrb[0].mxu0 %v679
      %v1235 = vpop.f32.mrb[0].mxu0
      %v1236 = vadd.f32 %v311, %v1235
      %v1237 = vpop.f32.mrb[0].mxu0
      %v1238 = vpop.f32.mrb[0].mxu0
      %v1239 = vadd.f32 %v311, %v1238
      %v1240 = vpop.f32.mrb[0].mxu0
      %1241 = vmatprep.mubr.bf16.mxu0 %v682
      %1242 = vmatmul.mubr.bf16.gmra.mrb[0].mxu0 %v681
      %v1243 = vpop.f32.mrb[0].mxu0
      %v1244 = vadd.f32 %v311, %v1243
      %v1245 = vpop.f32.mrb[0].mxu0
      %v1246 = vpop.f32.mrb[0].mxu0
      %v1247 = vadd.f32 %v311, %v1246
      %v1248 = vpop.f32.mrb[0].mxu0
      %1249 = vmatprep.mubr.bf16.mxu0 %v684
      %1250 = vmatmul.mubr.bf16.gmra.mrb[0].mxu0 %v683
      %v1251 = vpop.f32.mrb[0].mxu0
      %v1252 = vadd.f32 %v311, %v1251
      %v1253 = vpop.f32.mrb[0].mxu0
      %v1254 = vpop.f32.mrb[0].mxu0
      %v1255 = vadd.f32 %v311, %v1254
      %v1256 = vpop.f32.mrb[0].mxu0
      %1257 = vmatprep.mubr.bf16.mxu0 %v686
      %1258 = vmatmul.mubr.bf16.gmra.mrb[0].mxu0 %v685
      %v1259 = vpop.f32.mrb[0].mxu0
      %v1260 = vadd.f32 %v311, %v1259
      %v1261 = vpop.f32.mrb[0].mxu0
      %v1262 = vpop.f32.mrb[0].mxu0
      %v1263 = vadd.f32 %v311, %v1262
      %v1264 = vpop.f32.mrb[0].mxu0
      %1265 = vmatprep.mubr.bf16.mxu0 %v688
      %1266 = vmatmul.mubr.bf16.gmra.mrb[0].mxu0 %v687
      %v1267 = vpop.f32.mrb[0].mxu0
      %v1268 = vadd.f32 %v311, %v1267
      %v1269 = vpop.f32.mrb[0].mxu0
      %v1270 = vpop.f32.mrb[0].mxu0
      %v1271 = vadd.f32 %v311, %v1270
      %v1272 = vpop.f32.mrb[0].mxu0
      %1273 = vmatprep.mubr.bf16.mxu0 %v690
      %1274 = vmatmul.mubr.bf16.gmra.mrb[0].mxu0 %v689
      %v1275 = vpop.f32.mrb[0].mxu0
      %v1276 = vadd.f32 %v311, %v1275
      %v1277 = vpop.f32.mrb[0].mxu0
      %v1278 = vpop.f32.mrb[0].mxu0
      %v1279 = vadd.f32 %v311, %v1278
      %v1280 = vpop.f32.mrb[0].mxu0
      %1281 = vmatprep.mubr.bf16.mxu0 %v692
      %1282 = vmatmul.mubr.bf16.gmra.mrb[0].mxu0 %v691
      %v1283 = vpop.f32.mrb[0].mxu0
      %v1284 = vadd.f32 %v311, %v1283
      %v1285 = vpop.f32.mrb[0].mxu0
      %v1286 = vpop.f32.mrb[0].mxu0
      %v1287 = vadd.f32 %v311, %v1286
      %v1288 = vpop.f32.mrb[0].mxu0
      %1289 = vmatprep.mubr.bf16.mxu0 %v694
      %1290 = vmatmul.mubr.bf16.gmra.mrb[0].mxu0 %v693
      %v1291 = vpop.f32.mrb[0].mxu0
      %v1292 = vadd.f32 %v311, %v1291
      %v1293 = vpop.f32.mrb[0].mxu0
      %v1294 = vpop.f32.mrb[0].mxu0
      %v1295 = vadd.f32 %v311, %v1294
      %v1296 = vpop.f32.mrb[0].mxu0
      %1297 = vmatprep.mubr.bf16.mxu0 %v696
      %1298 = vmatmul.mubr.bf16.gmra.mrb[0].mxu0 %v695
      %v1299 = vpop.f32.mrb[0].mxu0
      %v1300 = vadd.f32 %v311, %v1299
      %v1301 = vpop.f32.mrb[0].mxu0
      %v1302 = vpop.f32.mrb[0].mxu0
      %v1303 = vadd.f32 %v311, %v1302
      %v1304 = vpop.f32.mrb[0].mxu0
      %1305 = vdwg.mxu0
      %v1306 = vmax.f32 %v924, 0.0
      %v1307 = vmax.f32 %v927, 0.0
      %v1308 = vmax.f32 %v932, 0.0
      %v1309 = vmax.f32 %v935, 0.0
      %v1310 = vmax.f32 %v940, 0.0
      %v1311 = vmax.f32 %v943, 0.0
      %v1312 = vmax.f32 %v948, 0.0
      %v1313 = vmax.f32 %v951, 0.0
      %v1314 = vmax.f32 %v956, 0.0
      %v1315 = vmax.f32 %v959, 0.0
      %v1316 = vmax.f32 %v964, 0.0
      %v1317 = vmax.f32 %v967, 0.0
      %v1318 = vmax.f32 %v972, 0.0
      %v1319 = vmax.f32 %v975, 0.0
      %v1320 = vmax.f32 %v980, 0.0
      %v1321 = vmax.f32 %v983, 0.0
      %v1322 = vmax.f32 %v988, 0.0
      %v1323 = vmax.f32 %v991, 0.0
      %v1324 = vmax.f32 %v996, 0.0
      %v1325 = vmax.f32 %v999, 0.0
      %v1326 = vmax.f32 %v1004, 0.0
      %v1327 = vmax.f32 %v1007, 0.0
      %v1328 = vmax.f32 %v1012, 0.0
      %v1329 = vmax.f32 %v1015, 0.0
      %v1330 = vmax.f32 %v1020, 0.0
      %v1331 = vmax.f32 %v1023, 0.0
      %v1332 = vmax.f32 %v1028, 0.0
      %v1333 = vmax.f32 %v1031, 0.0
      %v1334 = vmax.f32 %v1036, 0.0
      %v1335 = vmax.f32 %v1039, 0.0
      %v1336 = vmax.f32 %v1044, 0.0
      %v1337 = vmax.f32 %v1047, 0.0
      %v1338 = vmax.f32 %v1052, 0.0
      %v1339 = vmax.f32 %v1055, 0.0
      %v1340 = vmax.f32 %v1060, 0.0
      %v1341 = vmax.f32 %v1063, 0.0
      %v1342 = vmax.f32 %v1068, 0.0
      %v1343 = vmax.f32 %v1071, 0.0
      %v1344 = vmax.f32 %v1076, 0.0
      %v1345 = vmax.f32 %v1079, 0.0
      %v1346 = vmax.f32 %v1084, 0.0
      %v1347 = vmax.f32 %v1087, 0.0
      %v1348 = vmax.f32 %v1092, 0.0
      %v1349 = vmax.f32 %v1095, 0.0
      %v1350 = vmax.f32 %v1100, 0.0
      %v1351 = vmax.f32 %v1103, 0.0
      %v1352 = vmax.f32 %v1108, 0.0
      %v1353 = vmax.f32 %v1111, 0.0
      %v1354 = vmax.f32 %v1116, 0.0
      %v1355 = vmax.f32 %v1119, 0.0
      %v1356 = vmax.f32 %v1124, 0.0
      %v1357 = vmax.f32 %v1127, 0.0
      %v1358 = vmax.f32 %v1132, 0.0
      %v1359 = vmax.f32 %v1135, 0.0
      %v1360 = vmax.f32 %v1140, 0.0
      %v1361 = vmax.f32 %v1143, 0.0
      %v1362 = vmax.f32 %v1148, 0.0
      %v1363 = vmax.f32 %v1151, 0.0
      %v1364 = vmax.f32 %v1156, 0.0
      %v1365 = vmax.f32 %v1159, 0.0
      %v1366 = vmax.f32 %v1164, 0.0
      %v1367 = vmax.f32 %v1167, 0.0
      %v1368 = vmax.f32 %v1172, 0.0
      %v1369 = vmax.f32 %v1175, 0.0
      %v1370 = vmax.f32 %v1180, 0.0
      %v1371 = vmax.f32 %v1183, 0.0
      %v1372 = vmax.f32 %v1188, 0.0
      %v1373 = vmax.f32 %v1191, 0.0
      %v1374 = vmax.f32 %v1196, 0.0
      %v1375 = vmax.f32 %v1199, 0.0
      %v1376 = vmax.f32 %v1204, 0.0
      %v1377 = vmax.f32 %v1207, 0.0
      %v1378 = vmax.f32 %v1212, 0.0
      %v1379 = vmax.f32 %v1215, 0.0
      %v1380 = vmax.f32 %v1220, 0.0
      %v1381 = vmax.f32 %v1223, 0.0
      %v1382 = vmax.f32 %v1228, 0.0
      %v1383 = vmax.f32 %v1231, 0.0
      %v1384 = vmax.f32 %v1236, 0.0
      %v1385 = vmax.f32 %v1239, 0.0
      %v1386 = vmax.f32 %v1244, 0.0
      %v1387 = vmax.f32 %v1247, 0.0
      %v1388 = vmax.f32 %v1252, 0.0
      %v1389 = vmax.f32 %v1255, 0.0
      %v1390 = vmax.f32 %v1260, 0.0
      %v1391 = vmax.f32 %v1263, 0.0
      %v1392 = vmax.f32 %v1268, 0.0
      %v1393 = vmax.f32 %v1271, 0.0
      %v1394 = vmax.f32 %v1276, 0.0
      %v1395 = vmax.f32 %v1279, 0.0
      %v1396 = vmax.f32 %v1284, 0.0
      %v1397 = vmax.f32 %v1287, 0.0
      %v1398 = vmax.f32 %v1292, 0.0
      %v1399 = vmax.f32 %v1295, 0.0
      %v1400 = vmax.f32 %v1300, 0.0
      %v1401 = vmax.f32 %v1303, 0.0
      %v1402 = vpack.c.bf16 %v1307, %v1306
      %v1403 = vpack.c.bf16 %v1309, %v1308
      %v1404 = vpack.c.bf16 %v1311, %v1310
      %v1405 = vpack.c.bf16 %v1313, %v1312
      %v1406 = vpack.c.bf16 %v1315, %v1314
      %v1407 = vpack.c.bf16 %v1317, %v1316
      %v1408 = vpack.c.bf16 %v1319, %v1318
      %v1409 = vpack.c.bf16 %v1321, %v1320
      %v1410 = vpack.c.bf16 %v1323, %v1322
      %v1411 = vpack.c.bf16 %v1325, %v1324
      %v1412 = vpack.c.bf16 %v1327, %v1326
      %v1413 = vpack.c.bf16 %v1329, %v1328
      %v1414 = vpack.c.bf16 %v1331, %v1330
      %v1415 = vpack.c.bf16 %v1333, %v1332
      %v1416 = vpack.c.bf16 %v1335, %v1334
      %v1417 = vpack.c.bf16 %v1337, %v1336
      %v1418 = vpack.c.bf16 %v1339, %v1338
      %v1419 = vpack.c.bf16 %v1341, %v1340
      %v1420 = vpack.c.bf16 %v1343, %v1342
      %v1421 = vpack.c.bf16 %v1345, %v1344
      %v1422 = vpack.c.bf16 %v1347, %v1346
      %v1423 = vpack.c.bf16 %v1349, %v1348
      %v1424 = vpack.c.bf16 %v1351, %v1350
      %v1425 = vpack.c.bf16 %v1353, %v1352
      %v1426 = vpack.c.bf16 %v1355, %v1354
      %v1427 = vpack.c.bf16 %v1357, %v1356
      %v1428 = vpack.c.bf16 %v1359, %v1358
      %v1429 = vpack.c.bf16 %v1361, %v1360
      %v1430 = vpack.c.bf16 %v1363, %v1362
      %v1431 = vpack.c.bf16 %v1365, %v1364
      %v1432 = vpack.c.bf16 %v1367, %v1366
      %v1433 = vpack.c.bf16 %v1369, %v1368
      %v1434 = vpack.c.bf16 %v1371, %v1370
      %v1435 = vpack.c.bf16 %v1373, %v1372
      %v1436 = vpack.c.bf16 %v1375, %v1374
      %v1437 = vpack.c.bf16 %v1377, %v1376
      %v1438 = vpack.c.bf16 %v1379, %v1378
      %v1439 = vpack.c.bf16 %v1381, %v1380
      %v1440 = vpack.c.bf16 %v1383, %v1382
      %v1441 = vpack.c.bf16 %v1385, %v1384
      %v1442 = vpack.c.bf16 %v1387, %v1386
      %v1443 = vpack.c.bf16 %v1389, %v1388
      %v1444 = vpack.c.bf16 %v1391, %v1390
      %v1445 = vpack.c.bf16 %v1393, %v1392
      %v1446 = vpack.c.bf16 %v1395, %v1394
      %v1447 = vpack.c.bf16 %v1397, %v1396
      %v1448 = vpack.c.bf16 %v1399, %v1398
      %v1449 = vpack.c.bf16 %v1401, %v1400
      %v1498 = vunpack.c.l.b16 %v1402
      %v1499 = vunpack.c.h.b16 %v1402
      %v1500 = vunpack.c.l.b16 %v1403
      %v1501 = vunpack.c.h.b16 %v1403
      %v1502 = vunpack.c.l.b16 %v1404
      %v1503 = vunpack.c.h.b16 %v1404
      %v1504 = vunpack.c.l.b16 %v1405
      %v1505 = vunpack.c.h.b16 %v1405
      %v1506 = vunpack.c.l.b16 %v1406
      %v1507 = vunpack.c.h.b16 %v1406
      %v1508 = vunpack.c.l.b16 %v1407
      %v1509 = vunpack.c.h.b16 %v1407
      %v1510 = vunpack.c.l.b16 %v1408
      %v1511 = vunpack.c.h.b16 %v1408
      %v1512 = vunpack.c.l.b16 %v1409
      %v1513 = vunpack.c.h.b16 %v1409
      %v1514 = vunpack.c.l.b16 %v1410
      %v1515 = vunpack.c.h.b16 %v1410
      %v1516 = vunpack.c.l.b16 %v1411
      %v1517 = vunpack.c.h.b16 %v1411
      %v1518 = vunpack.c.l.b16 %v1412
      %v1519 = vunpack.c.h.b16 %v1412
      %v1520 = vunpack.c.l.b16 %v1413
      %v1521 = vunpack.c.h.b16 %v1413
      %v1522 = vunpack.c.l.b16 %v1414
      %v1523 = vunpack.c.h.b16 %v1414
      %v1524 = vunpack.c.l.b16 %v1415
      %v1525 = vunpack.c.h.b16 %v1415
      %v1526 = vunpack.c.l.b16 %v1416
      %v1527 = vunpack.c.h.b16 %v1416
      %v1528 = vunpack.c.l.b16 %v1417
      %v1529 = vunpack.c.h.b16 %v1417
      %v1530 = vunpack.c.l.b16 %v1418
      %v1531 = vunpack.c.h.b16 %v1418
      %v1532 = vunpack.c.l.b16 %v1419
      %v1533 = vunpack.c.h.b16 %v1419
      %v1534 = vunpack.c.l.b16 %v1420
      %v1535 = vunpack.c.h.b16 %v1420
      %v1536 = vunpack.c.l.b16 %v1421
      %v1537 = vunpack.c.h.b16 %v1421
      %v1538 = vunpack.c.l.b16 %v1422
      %v1539 = vunpack.c.h.b16 %v1422
      %v1540 = vunpack.c.l.b16 %v1423
      %v1541 = vunpack.c.h.b16 %v1423
      %v1542 = vunpack.c.l.b16 %v1424
      %v1543 = vunpack.c.h.b16 %v1424
      %v1544 = vunpack.c.l.b16 %v1425
      %v1545 = vunpack.c.h.b16 %v1425
      %v1546 = vunpack.c.l.b16 %v1426
      %v1547 = vunpack.c.h.b16 %v1426
      %v1548 = vunpack.c.l.b16 %v1427
      %v1549 = vunpack.c.h.b16 %v1427
      %v1550 = vunpack.c.l.b16 %v1428
      %v1551 = vunpack.c.h.b16 %v1428
      %v1552 = vunpack.c.l.b16 %v1429
      %v1553 = vunpack.c.h.b16 %v1429
      %v1554 = vunpack.c.l.b16 %v1430
      %v1555 = vunpack.c.h.b16 %v1430
      %v1556 = vunpack.c.l.b16 %v1431
      %v1557 = vunpack.c.h.b16 %v1431
      %v1558 = vunpack.c.l.b16 %v1432
      %v1559 = vunpack.c.h.b16 %v1432
      %v1560 = vunpack.c.l.b16 %v1433
      %v1561 = vunpack.c.h.b16 %v1433
      %v1562 = vunpack.c.l.b16 %v1434
      %v1563 = vunpack.c.h.b16 %v1434
      %v1564 = vunpack.c.l.b16 %v1435
      %v1565 = vunpack.c.h.b16 %v1435
      %v1566 = vunpack.c.l.b16 %v1436
      %v1567 = vunpack.c.h.b16 %v1436
      %v1568 = vunpack.c.l.b16 %v1437
      %v1569 = vunpack.c.h.b16 %v1437
      %v1570 = vunpack.c.l.b16 %v1438
      %v1571 = vunpack.c.h.b16 %v1438
      %v1572 = vunpack.c.l.b16 %v1439
      %v1573 = vunpack.c.h.b16 %v1439
      %v1574 = vunpack.c.l.b16 %v1440
      %v1575 = vunpack.c.h.b16 %v1440
      %v1576 = vunpack.c.l.b16 %v1441
      %v1577 = vunpack.c.h.b16 %v1441
      %v1578 = vunpack.c.l.b16 %v1442
      %v1579 = vunpack.c.h.b16 %v1442
      %v1580 = vunpack.c.l.b16 %v1443
      %v1581 = vunpack.c.h.b16 %v1443
      %v1582 = vunpack.c.l.b16 %v1444
      %v1583 = vunpack.c.h.b16 %v1444
      %v1584 = vunpack.c.l.b16 %v1445
      %v1585 = vunpack.c.h.b16 %v1445
      %v1586 = vunpack.c.l.b16 %v1446
      %v1587 = vunpack.c.h.b16 %v1446
      %v1588 = vunpack.c.l.b16 %v1447
      %v1589 = vunpack.c.h.b16 %v1447
      %v1590 = vunpack.c.l.b16 %v1448
      %v1591 = vunpack.c.h.b16 %v1448
      %v1592 = vunpack.c.l.b16 %v1449
      %v1593 = vunpack.c.h.b16 %v1449
      %v1594 = vpack.c.b16 %v1498, %v1498
      %v1595 = vpack.c.b16 %v1499, %v1499
      %v1596 = vpack.c.b16 %v1500, %v1500
      %v1597 = vpack.c.b16 %v1501, %v1501
      %v1598 = vpack.c.b16 %v1502, %v1502
      %v1599 = vpack.c.b16 %v1503, %v1503
      %v1600 = vpack.c.b16 %v1504, %v1504
      %v1601 = vpack.c.b16 %v1505, %v1505
      %v1602 = vpack.c.b16 %v1506, %v1506
      %v1603 = vpack.c.b16 %v1507, %v1507
      %v1604 = vpack.c.b16 %v1508, %v1508
      %v1605 = vpack.c.b16 %v1509, %v1509
      %v1606 = vpack.c.b16 %v1510, %v1510
      %v1607 = vpack.c.b16 %v1511, %v1511
      %v1608 = vpack.c.b16 %v1512, %v1512
      %v1609 = vpack.c.b16 %v1513, %v1513
      %v1610 = vpack.c.b16 %v1514, %v1514
      %v1611 = vpack.c.b16 %v1515, %v1515
      %v1612 = vpack.c.b16 %v1516, %v1516
      %v1613 = vpack.c.b16 %v1517, %v1517
      %v1614 = vpack.c.b16 %v1518, %v1518
      %v1615 = vpack.c.b16 %v1519, %v1519
      %v1616 = vpack.c.b16 %v1520, %v1520
      %v1617 = vpack.c.b16 %v1521, %v1521
      %v1618 = vpack.c.b16 %v1522, %v1522
      %v1619 = vpack.c.b16 %v1523, %v1523
      %v1620 = vpack.c.b16 %v1524, %v1524
      %v1621 = vpack.c.b16 %v1525, %v1525
      %v1622 = vpack.c.b16 %v1526, %v1526
      %v1623 = vpack.c.b16 %v1527, %v1527
      %v1624 = vpack.c.b16 %v1528, %v1528
      %v1625 = vpack.c.b16 %v1529, %v1529
      %v1626 = vpack.c.b16 %v1530, %v1530
      %v1627 = vpack.c.b16 %v1531, %v1531
      %v1628 = vpack.c.b16 %v1532, %v1532
      %v1629 = vpack.c.b16 %v1533, %v1533
      %v1630 = vpack.c.b16 %v1534, %v1534
      %v1631 = vpack.c.b16 %v1535, %v1535
      %v1632 = vpack.c.b16 %v1536, %v1536
      %v1633 = vpack.c.b16 %v1537, %v1537
      %v1634 = vpack.c.b16 %v1538, %v1538
      %v1635 = vpack.c.b16 %v1539, %v1539
      %v1636 = vpack.c.b16 %v1540, %v1540
      %v1637 = vpack.c.b16 %v1541, %v1541
      %v1638 = vpack.c.b16 %v1542, %v1542
      %v1639 = vpack.c.b16 %v1543, %v1543
      %v1640 = vpack.c.b16 %v1544, %v1544
      %v1641 = vpack.c.b16 %v1545, %v1545
      %v1642 = vpack.c.b16 %v1546, %v1546
      %v1643 = vpack.c.b16 %v1547, %v1547
      %v1644 = vpack.c.b16 %v1548, %v1548
      %v1645 = vpack.c.b16 %v1549, %v1549
      %v1646 = vpack.c.b16 %v1550, %v1550
      %v1647 = vpack.c.b16 %v1551, %v1551
      %v1648 = vpack.c.b16 %v1552, %v1552
      %v1649 = vpack.c.b16 %v1553, %v1553
      %v1650 = vpack.c.b16 %v1554, %v1554
      %v1651 = vpack.c.b16 %v1555, %v1555
      %v1652 = vpack.c.b16 %v1556, %v1556
      %v1653 = vpack.c.b16 %v1557, %v1557
      %v1654 = vpack.c.b16 %v1558, %v1558
      %v1655 = vpack.c.b16 %v1559, %v1559
      %v1656 = vpack.c.b16 %v1560, %v1560
      %v1657 = vpack.c.b16 %v1561, %v1561
      %v1658 = vpack.c.b16 %v1562, %v1562
      %v1659 = vpack.c.b16 %v1563, %v1563
      %v1660 = vpack.c.b16 %v1564, %v1564
      %v1661 = vpack.c.b16 %v1565, %v1565
      %v1662 = vpack.c.b16 %v1566, %v1566
      %v1663 = vpack.c.b16 %v1567, %v1567
      %v1664 = vpack.c.b16 %v1568, %v1568
      %v1665 = vpack.c.b16 %v1569, %v1569
      %v1666 = vpack.c.b16 %v1570, %v1570
      %v1667 = vpack.c.b16 %v1571, %v1571
      %v1668 = vpack.c.b16 %v1572, %v1572
      %v1669 = vpack.c.b16 %v1573, %v1573
      %v1670 = vpack.c.b16 %v1574, %v1574
      %v1671 = vpack.c.b16 %v1575, %v1575
      %v1672 = vpack.c.b16 %v1576, %v1576
      %v1673 = vpack.c.b16 %v1577, %v1577
      %v1674 = vpack.c.b16 %v1578, %v1578
      %v1675 = vpack.c.b16 %v1579, %v1579
      %v1676 = vpack.c.b16 %v1580, %v1580
      %v1677 = vpack.c.b16 %v1581, %v1581
      %v1678 = vpack.c.b16 %v1582, %v1582
      %v1679 = vpack.c.b16 %v1583, %v1583
      %v1680 = vpack.c.b16 %v1584, %v1584
      %v1681 = vpack.c.b16 %v1585, %v1585
      %v1682 = vpack.c.b16 %v1586, %v1586
      %v1683 = vpack.c.b16 %v1587, %v1587
      %v1684 = vpack.c.b16 %v1588, %v1588
      %v1685 = vpack.c.b16 %v1589, %v1589
      %v1686 = vpack.c.b16 %v1590, %v1590
      %v1687 = vpack.c.b16 %v1591, %v1591
      %v1688 = vpack.c.b16 %v1592, %v1592
      %v1689 = vpack.c.b16 %v1593, %v1593
      %1786 = vst [vmem:[%s175] sm:$0xf] %v1594
      %1787 = vst [vmem:[%s175 + $0x4] sm:$0xf] %v1595
      %1788 = vst [vmem:[%s175 + $0x8] sm:$0xf] %v1596
      %1789 = vst [vmem:[%s175 + $0xc] sm:$0xf] %v1597
      %1790 = vst [vmem:[%s175 + $0x10] sm:$0xf] %v1598
      %1791 = vst [vmem:[%s175 + $0x14] sm:$0xf] %v1599
      %1792 = vst [vmem:[%s175 + $0x18] sm:$0xf] %v1600
      %1793 = vst [vmem:[%s175 + $0x1c] sm:$0xf] %v1601
      %1794 = vst [vmem:[%s175 + $0x20] sm:$0xf] %v1602
      %1795 = vst [vmem:[%s175 + $0x24] sm:$0xf] %v1603
      %1796 = vst [vmem:[%s175 + $0x28] sm:$0xf] %v1604
      %1797 = vst [vmem:[%s175 + $0x2c] sm:$0xf] %v1605
      %1798 = vst [vmem:[%s175 + $0x30] sm:$0xf] %v1606
      %1799 = vst [vmem:[%s175 + $0x34] sm:$0xf] %v1607
      %1800 = vst [vmem:[%s175 + $0x38] sm:$0xf] %v1608
      %1801 = vst [vmem:[%s175 + $0x3c] sm:$0xf] %v1609
      %1802 = vst [vmem:[%s175 + $0x40] sm:$0xf] %v1610
      %1803 = vst [vmem:[%s175 + $0x44] sm:$0xf] %v1611
      %1804 = vst [vmem:[%s175 + $0x48] sm:$0xf] %v1612
      %1805 = vst [vmem:[%s175 + $0x4c] sm:$0xf] %v1613
      %1806 = vst [vmem:[%s175 + $0x50] sm:$0xf] %v1614
      %1807 = vst [vmem:[%s175 + $0x54] sm:$0xf] %v1615
      %1808 = vst [vmem:[%s175 + $0x58] sm:$0xf] %v1616
      %1809 = vst [vmem:[%s175 + $0x5c] sm:$0xf] %v1617
      %1810 = vst [vmem:[%s175 + $0x60] sm:$0xf] %v1618
      %1811 = vst [vmem:[%s175 + $0x64] sm:$0xf] %v1619
      %1812 = vst [vmem:[%s175 + $0x68] sm:$0xf] %v1620
      %1813 = vst [vmem:[%s175 + $0x6c] sm:$0xf] %v1621
      %1814 = vst [vmem:[%s175 + $0x70] sm:$0xf] %v1622
      %1815 = vst [vmem:[%s175 + $0x74] sm:$0xf] %v1623
      %1816 = vst [vmem:[%s175 + $0x78] sm:$0xf] %v1624
      %1817 = vst [vmem:[%s175 + $0x7c] sm:$0xf] %v1625
      %1818 = vst [vmem:[%s175 + $0x80] sm:$0xf] %v1626
      %1819 = vst [vmem:[%s175 + $0x84] sm:$0xf] %v1627
      %1820 = vst [vmem:[%s175 + $0x88] sm:$0xf] %v1628
      %1821 = vst [vmem:[%s175 + $0x8c] sm:$0xf] %v1629
      %1822 = vst [vmem:[%s175 + $0x90] sm:$0xf] %v1630
      %1823 = vst [vmem:[%s175 + $0x94] sm:$0xf] %v1631
      %1824 = vst [vmem:[%s175 + $0x98] sm:$0xf] %v1632
      %1825 = vst [vmem:[%s175 + $0x9c] sm:$0xf] %v1633
      %1826 = vst [vmem:[%s175 + $0xa0] sm:$0xf] %v1634
      %1827 = vst [vmem:[%s175 + $0xa4] sm:$0xf] %v1635
      %1828 = vst [vmem:[%s175 + $0xa8] sm:$0xf] %v1636
      %1829 = vst [vmem:[%s175 + $0xac] sm:$0xf] %v1637
      %1830 = vst [vmem:[%s175 + $0xb0] sm:$0xf] %v1638
      %1831 = vst [vmem:[%s175 + $0xb4] sm:$0xf] %v1639
      %1832 = vst [vmem:[%s175 + $0xb8] sm:$0xf] %v1640
      %1833 = vst [vmem:[%s175 + $0xbc] sm:$0xf] %v1641
      %1834 = vst [vmem:[%s175 + $0xc0] sm:$0xf] %v1642
      %1835 = vst [vmem:[%s175 + $0xc4] sm:$0xf] %v1643
      %1836 = vst [vmem:[%s175 + $0xc8] sm:$0xf] %v1644
      %1837 = vst [vmem:[%s175 + $0xcc] sm:$0xf] %v1645
      %1838 = vst [vmem:[%s175 + $0xd0] sm:$0xf] %v1646
      %1839 = vst [vmem:[%s175 + $0xd4] sm:$0xf] %v1647
      %1840 = vst [vmem:[%s175 + $0xd8] sm:$0xf] %v1648
      %1841 = vst [vmem:[%s175 + $0xdc] sm:$0xf] %v1649
      %1842 = vst [vmem:[%s175 + $0xe0] sm:$0xf] %v1650
      %1843 = vst [vmem:[%s175 + $0xe4] sm:$0xf] %v1651
      %1844 = vst [vmem:[%s175 + $0xe8] sm:$0xf] %v1652
      %1845 = vst [vmem:[%s175 + $0xec] sm:$0xf] %v1653
      %1846 = vst [vmem:[%s175 + $0xf0] sm:$0xf] %v1654
      %1847 = vst [vmem:[%s175 + $0xf4] sm:$0xf] %v1655
      %1848 = vst [vmem:[%s175 + $0xf8] sm:$0xf] %v1656
      %1849 = vst [vmem:[%s175 + $0xfc] sm:$0xf] %v1657
      %1850 = vst [vmem:[%s175 + $0x100] sm:$0xf] %v1658
      %1851 = vst [vmem:[%s175 + $0x104] sm:$0xf] %v1659
      %1852 = vst [vmem:[%s175 + $0x108] sm:$0xf] %v1660
      %1853 = vst [vmem:[%s175 + $0x10c] sm:$0xf] %v1661
      %1854 = vst [vmem:[%s175 + $0x110] sm:$0xf] %v1662
      %1855 = vst [vmem:[%s175 + $0x114] sm:$0xf] %v1663
      %1856 = vst [vmem:[%s175 + $0x118] sm:$0xf] %v1664
      %1857 = vst [vmem:[%s175 + $0x11c] sm:$0xf] %v1665
      %1858 = vst [vmem:[%s175 + $0x120] sm:$0xf] %v1666
      %1859 = vst [vmem:[%s175 + $0x124] sm:$0xf] %v1667
      %1860 = vst [vmem:[%s175 + $0x128] sm:$0xf] %v1668
      %1861 = vst [vmem:[%s175 + $0x12c] sm:$0xf] %v1669
      %1862 = vst [vmem:[%s175 + $0x130] sm:$0xf] %v1670
      %1863 = vst [vmem:[%s175 + $0x134] sm:$0xf] %v1671
      %1864 = vst [vmem:[%s175 + $0x138] sm:$0xf] %v1672
      %1865 = vst [vmem:[%s175 + $0x13c] sm:$0xf] %v1673
      %1866 = vst [vmem:[%s175 + $0x140] sm:$0xf] %v1674
      %1867 = vst [vmem:[%s175 + $0x144] sm:$0xf] %v1675
      %1868 = vst [vmem:[%s175 + $0x148] sm:$0xf] %v1676
      %1869 = vst [vmem:[%s175 + $0x14c] sm:$0xf] %v1677
      %1870 = vst [vmem:[%s175 + $0x150] sm:$0xf] %v1678
      %1871 = vst [vmem:[%s175 + $0x154] sm:$0xf] %v1679
      %1872 = vst [vmem:[%s175 + $0x158] sm:$0xf] %v1680
      %1873 = vst [vmem:[%s175 + $0x15c] sm:$0xf] %v1681
      %1874 = vst [vmem:[%s175 + $0x160] sm:$0xf] %v1682
      %1875 = vst [vmem:[%s175 + $0x164] sm:$0xf] %v1683
      %1876 = vst [vmem:[%s175 + $0x168] sm:$0xf] %v1684
      %1877 = vst [vmem:[%s175 + $0x16c] sm:$0xf] %v1685
      %1878 = vst [vmem:[%s175 + $0x170] sm:$0xf] %v1686
      %1879 = vst [vmem:[%s175 + $0x174] sm:$0xf] %v1687
      %1880 = vst [vmem:[%s175 + $0x178] sm:$0xf] %v1688
      %1881 = vst [vmem:[%s175 + $0x17c] sm:$0xf] %v1689
      %s1882 = smul.u32 96, %s14
      %p1883 = scmp.lt.s32.totalorder %s1882, 191
      %s1884 = scalar_select %p1883, %s1882, 191
      %s1885 = smul.addr %s1884, 4
      %s1886 = scalar_lea.vmem %s3, %s1885
      // Predicated region
      $region33: #{triplet_net_forward.18} parent=31 // pred_check
        %p1887 = pneg %p100
      $region34: #{triplet_net_forward.18} parent=31 // pred_check_branch
        %1889 = sbr.rel (%p1887) target = $region36
      $region35: #{triplet_net_forward.18} parent=31 // pred_region
        %s1890 = smul.u32 96, %s14
      $region36: #{triplet_net_forward.18} parent=31 // pred_fallthru
        _
    $region32: #{triplet_net_forward.18} parent=5 // pred_fallthru
      _
    %p1891 = scmp.le.s32.totalorder 2, %s9
    // Predicated region
    $region37: #{triplet_net_forward.18} parent=5 // pred_check
      %p1892 = pneg %p1891
    $region38: #{triplet_net_forward.18} parent=5 // pred_check_branch
      %1894 = sbr.rel (%p1892) target = $region40
    $region39: #{triplet_net_forward.18} parent=5 // pred_region
      %s1895 = ssub.s32 %s9, 2
      // Predicated region
      $region41: #{triplet_net_forward.18} parent=39 // pred_check
        %p1896 = pneg %p106
      $region42: #{triplet_net_forward.18} parent=39 // pred_check_branch
        %1898 = sbr.rel (%p1896) target = $region44
      $region43: #{triplet_net_forward.18} parent=39 // pred_region
        %s1899 = smul.u32 96, %s15
        %p1900 = scmp.lt.s32.totalorder %s1899, 191
        %s1901 = scalar_select %p1900, %s1899, 191
        %s1902 = smul.addr %s1901, 4
        %s1903 = scalar_lea.vmem %s3, %s1902
      $region44: #{triplet_net_forward.18} parent=39 // pred_fallthru
        _
    $region40: #{triplet_net_forward.18} parent=5 // pred_fallthru
      _
  $region6: #{triplet_net_forward.18} parent=0 // loop_footer
    %s13 = sadd.s32 1, %s9
  $region7: #{triplet_net_forward.18} parent=0 // loop_footer_branch
    %8 = sbr.rel target = $region3
  $region8: #{triplet_net_forward.18} parent=0 // loop_exit
    _

// kernel: triplet_net_forward.19
$region0: #{triplet_net_forward.19}
  #allocation0 [shape = 'u32[]', space=smem, size = 0x4, offset = 0x4, fixed_abs, tag = 'smem constant byte address 0x4 - core index']
  #allocation1 [shape = 'u32[144,128]{1,0:T(1,128)}', space=vmem, size = 0x12000, scoped, tag = 'internal scratch']
  %s0 = inlined_call_operand.vmem [shape: bf16[384,128], index: 0, kind: input, shape index: {}]
  %s1 = inlined_call_operand.vmem [shape: bf16[384,128], index: 1, kind: input, shape index: {}]
  %s2 = inlined_call_operand.vmem [shape: bf16[384,128], index: 2, kind: input, shape index: {}]
  %s3 = inlined_call_operand.vmem [shape: bf16[384,128], index: 3, kind: input, shape index: {}]
  %s4 = inlined_call_operand.vmem [shape: bf16[384,128], index: 4, kind: input, shape index: {}]
  %s5 = inlined_call_operand.vmem [shape: bf16[384,128], index: 5, kind: input, shape index: {}]
  %s6 = inlined_call_operand.vmem [shape: bf16[384,128], index: 6, kind: input, shape index: {}]
  %s7 = inlined_call_operand.vmem [shape: bf16[384,128], index: 7, kind: input, shape index: {}]
  %s8 = inlined_call_operand.vmem [shape: bf16[384,128], index: 8, kind: input, shape index: {}]
  %s9 = inlined_call_operand.vmem [shape: bf16[384,128], index: 9, kind: output, shape index: {}]
  %s10 = sld [smem:[#allocation0]]
  $region46: #{triplet_net_forward.19} parent=0
    _
  %s12 = ssub.s32 1, %s10
  %s13 = scalar_select 0, %s12, %s10
  // Predicated region
  $region2: #{triplet_net_forward.19} parent=0 // pred_check
    _
  $region3: #{triplet_net_forward.19} parent=0 // pred_check_branch
    %15 = sbr.rel (0) target = $region5
  $region4: #{triplet_net_forward.19} parent=0 // pred_region
    _
  $region5: #{triplet_net_forward.19} parent=0 // pred_fallthru
    _
  // Predicated region
  $region6: #{triplet_net_forward.19} parent=0 // pred_check
    _
  $region7: #{triplet_net_forward.19} parent=0 // pred_check_branch
    %17 = sbr.rel (0) target = $region9
  $region8: #{triplet_net_forward.19} parent=0 // pred_region
    _
  $region9: #{triplet_net_forward.19} parent=0 // pred_fallthru
    _
  // Predicated region
  $region10: #{triplet_net_forward.19} parent=0 // pred_check
    _
  $region11: #{triplet_net_forward.19} parent=0 // pred_check_branch
    %19 = sbr.rel (0) target = $region13
  $region12: #{triplet_net_forward.19} parent=0 // pred_region
    _
  $region13: #{triplet_net_forward.19} parent=0 // pred_fallthru
    _
  // Predicated region
  $region14: #{triplet_net_forward.19} parent=0 // pred_check
    _
  $region15: #{triplet_net_forward.19} parent=0 // pred_check_branch
    %21 = sbr.rel (0) target = $region17
  $region16: #{triplet_net_forward.19} parent=0 // pred_region
    _
  $region17: #{triplet_net_forward.19} parent=0 // pred_fallthru
    _
  // Predicated region
  $region18: #{triplet_net_forward.19} parent=0 // pred_check
    _
  $region19: #{triplet_net_forward.19} parent=0 // pred_check_branch
    %23 = sbr.rel (0) target = $region21
  $region20: #{triplet_net_forward.19} parent=0 // pred_region
    _
  $region21: #{triplet_net_forward.19} parent=0 // pred_fallthru
    _
  // Predicated region
  $region22: #{triplet_net_forward.19} parent=0 // pred_check
    _
  $region23: #{triplet_net_forward.19} parent=0 // pred_check_branch
    %25 = sbr.rel (0) target = $region25
  $region24: #{triplet_net_forward.19} parent=0 // pred_region
    _
  $region25: #{triplet_net_forward.19} parent=0 // pred_fallthru
    _
  // Predicated region
  $region26: #{triplet_net_forward.19} parent=0 // pred_check
    _
  $region27: #{triplet_net_forward.19} parent=0 // pred_check_branch
    %27 = sbr.rel (0) target = $region29
  $region28: #{triplet_net_forward.19} parent=0 // pred_region
    _
  $region29: #{triplet_net_forward.19} parent=0 // pred_fallthru
    _
  // Predicated region
  $region30: #{triplet_net_forward.19} parent=0 // pred_check
    _
  $region31: #{triplet_net_forward.19} parent=0 // pred_check_branch
    %29 = sbr.rel (0) target = $region33
  $region32: #{triplet_net_forward.19} parent=0 // pred_region
    _
  $region33: #{triplet_net_forward.19} parent=0 // pred_fallthru
    _
  // Predicated region
  $region34: #{triplet_net_forward.19} parent=0 // pred_check
    _
  $region35: #{triplet_net_forward.19} parent=0 // pred_check_branch
    %31 = sbr.rel (0) target = $region37
  $region36: #{triplet_net_forward.19} parent=0 // pred_region
    _
  $region37: #{triplet_net_forward.19} parent=0 // pred_fallthru
    _
  %v32 = vld [vmem:[%s0] sm:$0xf]
  %v33 = vld [vmem:[%s0 + $0x4] sm:$0xf]
  %v34 = vld [vmem:[%s0 + $0x8] sm:$0xf]
  %v35 = vld [vmem:[%s0 + $0xc] sm:$0xf]
  %v36 = vld [vmem:[%s0 + $0x10] sm:$0xf]
  %v37 = vld [vmem:[%s0 + $0x14] sm:$0xf]
  %v38 = vld [vmem:[%s0 + $0x18] sm:$0xf]
  %v39 = vld [vmem:[%s0 + $0x1c] sm:$0xf]
  %v40 = vld [vmem:[%s0 + $0x20] sm:$0xf]
  %v41 = vld [vmem:[%s0 + $0x24] sm:$0xf]
  %v42 = vld [vmem:[%s0 + $0x28] sm:$0xf]
  %v43 = vld [vmem:[%s0 + $0x2c] sm:$0xf]
  %v44 = vld [vmem:[%s0 + $0x30] sm:$0xf]
  %v45 = vld [vmem:[%s0 + $0x34] sm:$0xf]
  %v46 = vld [vmem:[%s0 + $0x38] sm:$0xf]
  %v47 = vld [vmem:[%s0 + $0x3c] sm:$0xf]
  %v48 = vld [vmem:[%s0 + $0x40] sm:$0xf]
  %v49 = vld [vmem:[%s0 + $0x44] sm:$0xf]
  %v50 = vld [vmem:[%s0 + $0x48] sm:$0xf]
  %v51 = vld [vmem:[%s0 + $0x4c] sm:$0xf]
  %v52 = vld [vmem:[%s0 + $0x50] sm:$0xf]
  %v53 = vld [vmem:[%s0 + $0x54] sm:$0xf]
  %v54 = vld [vmem:[%s0 + $0x58] sm:$0xf]
  %v55 = vld [vmem:[%s0 + $0x5c] sm:$0xf]
  %v56 = vld [vmem:[%s0 + $0x60] sm:$0xf]
  %v57 = vld [vmem:[%s0 + $0x64] sm:$0xf]
  %v58 = vld [vmem:[%s0 + $0x68] sm:$0xf]
  %v59 = vld [vmem:[%s0 + $0x6c] sm:$0xf]
  %v60 = vld [vmem:[%s0 + $0x70] sm:$0xf]
  %v61 = vld [vmem:[%s0 + $0x74] sm:$0xf]
  %v62 = vld [vmem:[%s0 + $0x78] sm:$0xf]
  %v63 = vld [vmem:[%s0 + $0x7c] sm:$0xf]
  %v64 = vld [vmem:[%s0 + $0x80] sm:$0xf]
  %v65 = vld [vmem:[%s0 + $0x84] sm:$0xf]
  %v66 = vld [vmem:[%s0 + $0x88] sm:$0xf]
  %v67 = vld [vmem:[%s0 + $0x8c] sm:$0xf]
  %v68 = vld [vmem:[%s0 + $0x90] sm:$0xf]
  %v69 = vld [vmem:[%s0 + $0x94] sm:$0xf]
  %v70 = vld [vmem:[%s0 + $0x98] sm:$0xf]
  %v71 = vld [vmem:[%s0 + $0x9c] sm:$0xf]
  %v72 = vld [vmem:[%s0 + $0xa0] sm:$0xf]
  %v73 = vld [vmem:[%s0 + $0xa4] sm:$0xf]
  %v74 = vld [vmem:[%s0 + $0xa8] sm:$0xf]
  %v75 = vld [vmem:[%s0 + $0xac] sm:$0xf]
  %v76 = vld [vmem:[%s0 + $0xb0] sm:$0xf]
  %v77 = vld [vmem:[%s0 + $0xb4] sm:$0xf]
  %v78 = vld [vmem:[%s0 + $0xb8] sm:$0xf]
  %v79 = vld [vmem:[%s0 + $0xbc] sm:$0xf]
  %v80 = vld [vmem:[%s1] sm:$0xf]
  %v81 = vld [vmem:[%s1 + $0x4] sm:$0xf]
  %v82 = vld [vmem:[%s1 + $0x8] sm:$0xf]
  %v83 = vld [vmem:[%s1 + $0xc] sm:$0xf]
  %v84 = vld [vmem:[%s1 + $0x10] sm:$0xf]
  %v85 = vld [vmem:[%s1 + $0x14] sm:$0xf]
  %v86 = vld [vmem:[%s1 + $0x18] sm:$0xf]
  %v87 = vld [vmem:[%s1 + $0x1c] sm:$0xf]
  %v88 = vld [vmem:[%s1 + $0x20] sm:$0xf]
  %v89 = vld [vmem:[%s1 + $0x24] sm:$0xf]
  %v90 = vld [vmem:[%s1 + $0x28] sm:$0xf]
  %v91 = vld [vmem:[%s1 + $0x2c] sm:$0xf]
  %v92 = vld [vmem:[%s1 + $0x30] sm:$0xf]
  %v93 = vld [vmem:[%s1 + $0x34] sm:$0xf]
  %v94 = vld [vmem:[%s1 + $0x38] sm:$0xf]
  %v95 = vld [vmem:[%s1 + $0x3c] sm:$0xf]
  %v96 = vld [vmem:[%s1 + $0x40] sm:$0xf]
  %v97 = vld [vmem:[%s1 + $0x44] sm:$0xf]
  %v98 = vld [vmem:[%s1 + $0x48] sm:$0xf]
  %v99 = vld [vmem:[%s1 + $0x4c] sm:$0xf]
  %v100 = vld [vmem:[%s1 + $0x50] sm:$0xf]
  %v101 = vld [vmem:[%s1 + $0x54] sm:$0xf]
  %v102 = vld [vmem:[%s1 + $0x58] sm:$0xf]
  %v103 = vld [vmem:[%s1 + $0x5c] sm:$0xf]
  %v104 = vld [vmem:[%s1 + $0x60] sm:$0xf]
  %v105 = vld [vmem:[%s1 + $0x64] sm:$0xf]
  %v106 = vld [vmem:[%s1 + $0x68] sm:$0xf]
  %v107 = vld [vmem:[%s1 + $0x6c] sm:$0xf]
  %v108 = vld [vmem:[%s1 + $0x70] sm:$0xf]
  %v109 = vld [vmem:[%s1 + $0x74] sm:$0xf]
  %v110 = vld [vmem:[%s1 + $0x78] sm:$0xf]
  %v111 = vld [vmem:[%s1 + $0x7c] sm:$0xf]
  %v112 = vld [vmem:[%s1 + $0x80] sm:$0xf]
  %v113 = vld [vmem:[%s1 + $0x84] sm:$0xf]
  %v114 = vld [vmem:[%s1 + $0x88] sm:$0xf]
  %v115 = vld [vmem:[%s1 + $0x8c] sm:$0xf]
  %v116 = vld [vmem:[%s1 + $0x90] sm:$0xf]
  %v117 = vld [vmem:[%s1 + $0x94] sm:$0xf]
  %v118 = vld [vmem:[%s1 + $0x98] sm:$0xf]
  %v119 = vld [vmem:[%s1 + $0x9c] sm:$0xf]
  %v120 = vld [vmem:[%s1 + $0xa0] sm:$0xf]
  %v121 = vld [vmem:[%s1 + $0xa4] sm:$0xf]
  %v122 = vld [vmem:[%s1 + $0xa8] sm:$0xf]
  %v123 = vld [vmem:[%s1 + $0xac] sm:$0xf]
  %v124 = vld [vmem:[%s1 + $0xb0] sm:$0xf]
  %v125 = vld [vmem:[%s1 + $0xb4] sm:$0xf]
  %v126 = vld [vmem:[%s1 + $0xb8] sm:$0xf]
  %v127 = vld [vmem:[%s1 + $0xbc] sm:$0xf]
  %v128 = vmax.bf16 %v32, %v80
  %v129 = vmax.bf16 %v33, %v81
  %v130 = vmax.bf16 %v34, %v82
  %v131 = vmax.bf16 %v35, %v83
  %v132 = vmax.bf16 %v36, %v84
  %v133 = vmax.bf16 %v37, %v85
  %v134 = vmax.bf16 %v38, %v86
  %v135 = vmax.bf16 %v39, %v87
  %v136 = vmax.bf16 %v40, %v88
  %v137 = vmax.bf16 %v41, %v89
  %v138 = vmax.bf16 %v42, %v90
  %v139 = vmax.bf16 %v43, %v91
  %v140 = vmax.bf16 %v44, %v92
  %v141 = vmax.bf16 %v45, %v93
  %v142 = vmax.bf16 %v46, %v94
  %v143 = vmax.bf16 %v47, %v95
  %v144 = vmax.bf16 %v48, %v96
  %v145 = vmax.bf16 %v49, %v97
  %v146 = vmax.bf16 %v50, %v98
  %v147 = vmax.bf16 %v51, %v99
  %v148 = vmax.bf16 %v52, %v100
  %v149 = vmax.bf16 %v53, %v101
  %v150 = vmax.bf16 %v54, %v102
  %v151 = vmax.bf16 %v55, %v103
  %v152 = vmax.bf16 %v56, %v104
  %v153 = vmax.bf16 %v57, %v105
  %v154 = vmax.bf16 %v58, %v106
  %v155 = vmax.bf16 %v59, %v107
  %v156 = vmax.bf16 %v60, %v108
  %v157 = vmax.bf16 %v61, %v109
  %v158 = vmax.bf16 %v62, %v110
  %v159 = vmax.bf16 %v63, %v111
  %v160 = vmax.bf16 %v64, %v112
  %v161 = vmax.bf16 %v65, %v113
  %v162 = vmax.bf16 %v66, %v114
  %v163 = vmax.bf16 %v67, %v115
  %v164 = vmax.bf16 %v68, %v116
  %v165 = vmax.bf16 %v69, %v117
  %v166 = vmax.bf16 %v70, %v118
  %v167 = vmax.bf16 %v71, %v119
  %v168 = vmax.bf16 %v72, %v120
  %v169 = vmax.bf16 %v73, %v121
  %v170 = vmax.bf16 %v74, %v122
  %v171 = vmax.bf16 %v75, %v123
  %v172 = vmax.bf16 %v76, %v124
  %v173 = vmax.bf16 %v77, %v125
  %v174 = vmax.bf16 %v78, %v126
  %v175 = vmax.bf16 %v79, %v127
  %v176 = vld [vmem:[%s2] sm:$0xf]
  %v177 = vld [vmem:[%s2 + $0x4] sm:$0xf]
  %v178 = vld [vmem:[%s2 + $0x8] sm:$0xf]
  %v179 = vld [vmem:[%s2 + $0xc] sm:$0xf]
  %v180 = vld [vmem:[%s2 + $0x10] sm:$0xf]
  %v181 = vld [vmem:[%s2 + $0x14] sm:$0xf]
  %v182 = vld [vmem:[%s2 + $0x18] sm:$0xf]
  %v183 = vld [vmem:[%s2 + $0x1c] sm:$0xf]
  %v184 = vld [vmem:[%s2 + $0x20] sm:$0xf]
  %v185 = vld [vmem:[%s2 + $0x24] sm:$0xf]
  %v186 = vld [vmem:[%s2 + $0x28] sm:$0xf]
  %v187 = vld [vmem:[%s2 + $0x2c] sm:$0xf]
  %v188 = vld [vmem:[%s2 + $0x30] sm:$0xf]
  %v189 = vld [vmem:[%s2 + $0x34] sm:$0xf]
  %v190 = vld [vmem:[%s2 + $0x38] sm:$0xf]
  %v191 = vld [vmem:[%s2 + $0x3c] sm:$0xf]
  %v192 = vld [vmem:[%s2 + $0x40] sm:$0xf]
  %v193 = vld [vmem:[%s2 + $0x44] sm:$0xf]
  %v194 = vld [vmem:[%s2 + $0x48] sm:$0xf]
  %v195 = vld [vmem:[%s2 + $0x4c] sm:$0xf]
  %v196 = vld [vmem:[%s2 + $0x50] sm:$0xf]
  %v197 = vld [vmem:[%s2 + $0x54] sm:$0xf]
  %v198 = vld [vmem:[%s2 + $0x58] sm:$0xf]
  %v199 = vld [vmem:[%s2 + $0x5c] sm:$0xf]
  %v200 = vld [vmem:[%s2 + $0x60] sm:$0xf]
  %v201 = vld [vmem:[%s2 + $0x64] sm:$0xf]
  %v202 = vld [vmem:[%s2 + $0x68] sm:$0xf]
  %v203 = vld [vmem:[%s2 + $0x6c] sm:$0xf]
  %v204 = vld [vmem:[%s2 + $0x70] sm:$0xf]
  %v205 = vld [vmem:[%s2 + $0x74] sm:$0xf]
  %v206 = vld [vmem:[%s2 + $0x78] sm:$0xf]
  %v207 = vld [vmem:[%s2 + $0x7c] sm:$0xf]
  %v208 = vld [vmem:[%s2 + $0x80] sm:$0xf]
  %v209 = vld [vmem:[%s2 + $0x84] sm:$0xf]
  %v210 = vld [vmem:[%s2 + $0x88] sm:$0xf]
  %v211 = vld [vmem:[%s2 + $0x8c] sm:$0xf]
  %v212 = vld [vmem:[%s2 + $0x90] sm:$0xf]
  %v213 = vld [vmem:[%s2 + $0x94] sm:$0xf]
  %v214 = vld [vmem:[%s2 + $0x98] sm:$0xf]
  %v215 = vld [vmem:[%s2 + $0x9c] sm:$0xf]
  %v216 = vld [vmem:[%s2 + $0xa0] sm:$0xf]
  %v217 = vld [vmem:[%s2 + $0xa4] sm:$0xf]
  %v218 = vld [vmem:[%s2 + $0xa8] sm:$0xf]
  %v219 = vld [vmem:[%s2 + $0xac] sm:$0xf]
  %v220 = vld [vmem:[%s2 + $0xb0] sm:$0xf]
  %v221 = vld [vmem:[%s2 + $0xb4] sm:$0xf]
  %v222 = vld [vmem:[%s2 + $0xb8] sm:$0xf]
  %v223 = vld [vmem:[%s2 + $0xbc] sm:$0xf]
  %v224 = vmax.bf16 %v128, %v176
  %v225 = vmax.bf16 %v129, %v177
  %v226 = vmax.bf16 %v130, %v178
  %v227 = vmax.bf16 %v131, %v179
  %v228 = vmax.bf16 %v132, %v180
  %v229 = vmax.bf16 %v133, %v181
  %v230 = vmax.bf16 %v134, %v182
  %v231 = vmax.bf16 %v135, %v183
  %v232 = vmax.bf16 %v136, %v184
  %v233 = vmax.bf16 %v137, %v185
  %v234 = vmax.bf16 %v138, %v186
  %v235 = vmax.bf16 %v139, %v187
  %v236 = vmax.bf16 %v140, %v188
  %v237 = vmax.bf16 %v141, %v189
  %v238 = vmax.bf16 %v142, %v190
  %v239 = vmax.bf16 %v143, %v191
  %v240 = vmax.bf16 %v144, %v192
  %v241 = vmax.bf16 %v145, %v193
  %v242 = vmax.bf16 %v146, %v194
  %v243 = vmax.bf16 %v147, %v195
  %v244 = vmax.bf16 %v148, %v196
  %v245 = vmax.bf16 %v149, %v197
  %v246 = vmax.bf16 %v150, %v198
  %v247 = vmax.bf16 %v151, %v199
  %v248 = vmax.bf16 %v152, %v200
  %v249 = vmax.bf16 %v153, %v201
  %v250 = vmax.bf16 %v154, %v202
  %v251 = vmax.bf16 %v155, %v203
  %v252 = vmax.bf16 %v156, %v204
  %v253 = vmax.bf16 %v157, %v205
  %v254 = vmax.bf16 %v158, %v206
  %v255 = vmax.bf16 %v159, %v207
  %v256 = vmax.bf16 %v160, %v208
  %v257 = vmax.bf16 %v161, %v209
  %v258 = vmax.bf16 %v162, %v210
  %v259 = vmax.bf16 %v163, %v211
  %v260 = vmax.bf16 %v164, %v212
  %v261 = vmax.bf16 %v165, %v213
  %v262 = vmax.bf16 %v166, %v214
  %v263 = vmax.bf16 %v167, %v215
  %v264 = vmax.bf16 %v168, %v216
  %v265 = vmax.bf16 %v169, %v217
  %v266 = vmax.bf16 %v170, %v218
  %v267 = vmax.bf16 %v171, %v219
  %v268 = vmax.bf16 %v172, %v220
  %v269 = vmax.bf16 %v173, %v221
  %v270 = vmax.bf16 %v174, %v222
  %v271 = vmax.bf16 %v175, %v223
  %v272 = vld [vmem:[%s3] sm:$0xf]
  %v273 = vld [vmem:[%s3 + $0x4] sm:$0xf]
  %v274 = vld [vmem:[%s3 + $0x8] sm:$0xf]
  %v275 = vld [vmem:[%s3 + $0xc] sm:$0xf]
  %v276 = vld [vmem:[%s3 + $0x10] sm:$0xf]
  %v277 = vld [vmem:[%s3 + $0x14] sm:$0xf]
  %v278 = vld [vmem:[%s3 + $0x18] sm:$0xf]
  %v279 = vld [vmem:[%s3 + $0x1c] sm:$0xf]
  %v280 = vld [vmem:[%s3 + $0x20] sm:$0xf]
  %v281 = vld [vmem:[%s3 + $0x24] sm:$0xf]
  %v282 = vld [vmem:[%s3 + $0x28] sm:$0xf]
  %v283 = vld [vmem:[%s3 + $0x2c] sm:$0xf]
  %v284 = vld [vmem:[%s3 + $0x30] sm:$0xf]
  %v285 = vld [vmem:[%s3 + $0x34] sm:$0xf]
  %v286 = vld [vmem:[%s3 + $0x38] sm:$0xf]
  %v287 = vld [vmem:[%s3 + $0x3c] sm:$0xf]
  %v288 = vld [vmem:[%s3 + $0x40] sm:$0xf]
  %v289 = vld [vmem:[%s3 + $0x44] sm:$0xf]
  %v290 = vld [vmem:[%s3 + $0x48] sm:$0xf]
  %v291 = vld [vmem:[%s3 + $0x4c] sm:$0xf]
  %v292 = vld [vmem:[%s3 + $0x50] sm:$0xf]
  %v293 = vld [vmem:[%s3 + $0x54] sm:$0xf]
  %v294 = vld [vmem:[%s3 + $0x58] sm:$0xf]
  %v295 = vld [vmem:[%s3 + $0x5c] sm:$0xf]
  %v296 = vld [vmem:[%s3 + $0x60] sm:$0xf]
  %v297 = vld [vmem:[%s3 + $0x64] sm:$0xf]
  %v298 = vld [vmem:[%s3 + $0x68] sm:$0xf]
  %v299 = vld [vmem:[%s3 + $0x6c] sm:$0xf]
  %v300 = vld [vmem:[%s3 + $0x70] sm:$0xf]
  %v301 = vld [vmem:[%s3 + $0x74] sm:$0xf]
  %v302 = vld [vmem:[%s3 + $0x78] sm:$0xf]
  %v303 = vld [vmem:[%s3 + $0x7c] sm:$0xf]
  %v304 = vld [vmem:[%s3 + $0x80] sm:$0xf]
  %v305 = vld [vmem:[%s3 + $0x84] sm:$0xf]
  %v306 = vld [vmem:[%s3 + $0x88] sm:$0xf]
  %v307 = vld [vmem:[%s3 + $0x8c] sm:$0xf]
  %v308 = vld [vmem:[%s3 + $0x90] sm:$0xf]
  %v309 = vld [vmem:[%s3 + $0x94] sm:$0xf]
  %v310 = vld [vmem:[%s3 + $0x98] sm:$0xf]
  %v311 = vld [vmem:[%s3 + $0x9c] sm:$0xf]
  %v312 = vld [vmem:[%s3 + $0xa0] sm:$0xf]
  %v313 = vld [vmem:[%s3 + $0xa4] sm:$0xf]
  %v314 = vld [vmem:[%s3 + $0xa8] sm:$0xf]
  %v315 = vld [vmem:[%s3 + $0xac] sm:$0xf]
  %v316 = vld [vmem:[%s3 + $0xb0] sm:$0xf]
  %v317 = vld [vmem:[%s3 + $0xb4] sm:$0xf]
  %v318 = vld [vmem:[%s3 + $0xb8] sm:$0xf]
  %v319 = vld [vmem:[%s3 + $0xbc] sm:$0xf]
  %v320 = vmax.bf16 %v224, %v272
  %v321 = vmax.bf16 %v225, %v273
  %v322 = vmax.bf16 %v226, %v274
  %v323 = vmax.bf16 %v227, %v275
  %v324 = vmax.bf16 %v228, %v276
  %v325 = vmax.bf16 %v229, %v277
  %v326 = vmax.bf16 %v230, %v278
  %v327 = vmax.bf16 %v231, %v279
  %v328 = vmax.bf16 %v232, %v280
  %v329 = vmax.bf16 %v233, %v281
  %v330 = vmax.bf16 %v234, %v282
  %v331 = vmax.bf16 %v235, %v283
  %v332 = vmax.bf16 %v236, %v284
  %v333 = vmax.bf16 %v237, %v285
  %v334 = vmax.bf16 %v238, %v286
  %v335 = vmax.bf16 %v239, %v287
  %v336 = vmax.bf16 %v240, %v288
  %v337 = vmax.bf16 %v241, %v289
  %v338 = vmax.bf16 %v242, %v290
  %v339 = vmax.bf16 %v243, %v291
  %v340 = vmax.bf16 %v244, %v292
  %v341 = vmax.bf16 %v245, %v293
  %v342 = vmax.bf16 %v246, %v294
  %v343 = vmax.bf16 %v247, %v295
  %v344 = vmax.bf16 %v248, %v296
  %v345 = vmax.bf16 %v249, %v297
  %v346 = vmax.bf16 %v250, %v298
  %v347 = vmax.bf16 %v251, %v299
  %v348 = vmax.bf16 %v252, %v300
  %v349 = vmax.bf16 %v253, %v301
  %v350 = vmax.bf16 %v254, %v302
  %v351 = vmax.bf16 %v255, %v303
  %v352 = vmax.bf16 %v256, %v304
  %v353 = vmax.bf16 %v257, %v305
  %v354 = vmax.bf16 %v258, %v306
  %v355 = vmax.bf16 %v259, %v307
  %v356 = vmax.bf16 %v260, %v308
  %v357 = vmax.bf16 %v261, %v309
  %v358 = vmax.bf16 %v262, %v310
  %v359 = vmax.bf16 %v263, %v311
  %v360 = vmax.bf16 %v264, %v312
  %v361 = vmax.bf16 %v265, %v313
  %v362 = vmax.bf16 %v266, %v314
  %v363 = vmax.bf16 %v267, %v315
  %v364 = vmax.bf16 %v268, %v316
  %v365 = vmax.bf16 %v269, %v317
  %v366 = vmax.bf16 %v270, %v318
  %v367 = vmax.bf16 %v271, %v319
  %v368 = vld [vmem:[%s4] sm:$0xf]
  %v369 = vld [vmem:[%s4 + $0x4] sm:$0xf]
  %v370 = vld [vmem:[%s4 + $0x8] sm:$0xf]
  %v371 = vld [vmem:[%s4 + $0xc] sm:$0xf]
  %v372 = vld [vmem:[%s4 + $0x10] sm:$0xf]
  %v373 = vld [vmem:[%s4 + $0x14] sm:$0xf]
  %v374 = vld [vmem:[%s4 + $0x18] sm:$0xf]
  %v375 = vld [vmem:[%s4 + $0x1c] sm:$0xf]
  %v376 = vld [vmem:[%s4 + $0x20] sm:$0xf]
  %v377 = vld [vmem:[%s4 + $0x24] sm:$0xf]
  %v378 = vld [vmem:[%s4 + $0x28] sm:$0xf]
  %v379 = vld [vmem:[%s4 + $0x2c] sm:$0xf]
  %v380 = vld [vmem:[%s4 + $0x30] sm:$0xf]
  %v381 = vld [vmem:[%s4 + $0x34] sm:$0xf]
  %v382 = vld [vmem:[%s4 + $0x38] sm:$0xf]
  %v383 = vld [vmem:[%s4 + $0x3c] sm:$0xf]
  %v384 = vld [vmem:[%s4 + $0x40] sm:$0xf]
  %v385 = vld [vmem:[%s4 + $0x44] sm:$0xf]
  %v386 = vld [vmem:[%s4 + $0x48] sm:$0xf]
  %v387 = vld [vmem:[%s4 + $0x4c] sm:$0xf]
  %v388 = vld [vmem:[%s4 + $0x50] sm:$0xf]
  %v389 = vld [vmem:[%s4 + $0x54] sm:$0xf]
  %v390 = vld [vmem:[%s4 + $0x58] sm:$0xf]
  %v391 = vld [vmem:[%s4 + $0x5c] sm:$0xf]
  %v392 = vld [vmem:[%s4 + $0x60] sm:$0xf]
  %v393 = vld [vmem:[%s4 + $0x64] sm:$0xf]
  %v394 = vld [vmem:[%s4 + $0x68] sm:$0xf]
  %v395 = vld [vmem:[%s4 + $0x6c] sm:$0xf]
  %v396 = vld [vmem:[%s4 + $0x70] sm:$0xf]
  %v397 = vld [vmem:[%s4 + $0x74] sm:$0xf]
  %v398 = vld [vmem:[%s4 + $0x78] sm:$0xf]
  %v399 = vld [vmem:[%s4 + $0x7c] sm:$0xf]
  %v400 = vld [vmem:[%s4 + $0x80] sm:$0xf]
  %v401 = vld [vmem:[%s4 + $0x84] sm:$0xf]
  %v402 = vld [vmem:[%s4 + $0x88] sm:$0xf]
  %v403 = vld [vmem:[%s4 + $0x8c] sm:$0xf]
  %v404 = vld [vmem:[%s4 + $0x90] sm:$0xf]
  %v405 = vld [vmem:[%s4 + $0x94] sm:$0xf]
  %v406 = vld [vmem:[%s4 + $0x98] sm:$0xf]
  %v407 = vld [vmem:[%s4 + $0x9c] sm:$0xf]
  %v408 = vld [vmem:[%s4 + $0xa0] sm:$0xf]
  %v409 = vld [vmem:[%s4 + $0xa4] sm:$0xf]
  %v410 = vld [vmem:[%s4 + $0xa8] sm:$0xf]
  %v411 = vld [vmem:[%s4 + $0xac] sm:$0xf]
  %v412 = vld [vmem:[%s4 + $0xb0] sm:$0xf]
  %v413 = vld [vmem:[%s4 + $0xb4] sm:$0xf]
  %v414 = vld [vmem:[%s4 + $0xb8] sm:$0xf]
  %v415 = vld [vmem:[%s4 + $0xbc] sm:$0xf]
  %v416 = vmax.bf16 %v320, %v368
  %v417 = vmax.bf16 %v321, %v369
  %v418 = vmax.bf16 %v322, %v370
  %v419 = vmax.bf16 %v323, %v371
  %v420 = vmax.bf16 %v324, %v372
  %v421 = vmax.bf16 %v325, %v373
  %v422 = vmax.bf16 %v326, %v374
  %v423 = vmax.bf16 %v327, %v375
  %v424 = vmax.bf16 %v328, %v376
  %v425 = vmax.bf16 %v329, %v377
  %v426 = vmax.bf16 %v330, %v378
  %v427 = vmax.bf16 %v331, %v379
  %v428 = vmax.bf16 %v332, %v380
  %v429 = vmax.bf16 %v333, %v381
  %v430 = vmax.bf16 %v334, %v382
  %v431 = vmax.bf16 %v335, %v383
  %v432 = vmax.bf16 %v336, %v384
  %v433 = vmax.bf16 %v337, %v385
  %v434 = vmax.bf16 %v338, %v386
  %v435 = vmax.bf16 %v339, %v387
  %v436 = vmax.bf16 %v340, %v388
  %v437 = vmax.bf16 %v341, %v389
  %v438 = vmax.bf16 %v342, %v390
  %v439 = vmax.bf16 %v343, %v391
  %v440 = vmax.bf16 %v344, %v392
  %v441 = vmax.bf16 %v345, %v393
  %v442 = vmax.bf16 %v346, %v394
  %v443 = vmax.bf16 %v347, %v395
  %v444 = vmax.bf16 %v348, %v396
  %v445 = vmax.bf16 %v349, %v397
  %v446 = vmax.bf16 %v350, %v398
  %v447 = vmax.bf16 %v351, %v399
  %v448 = vmax.bf16 %v352, %v400
  %v449 = vmax.bf16 %v353, %v401
  %v450 = vmax.bf16 %v354, %v402
  %v451 = vmax.bf16 %v355, %v403
  %v452 = vmax.bf16 %v356, %v404
  %v453 = vmax.bf16 %v357, %v405
  %v454 = vmax.bf16 %v358, %v406
  %v455 = vmax.bf16 %v359, %v407
  %v456 = vmax.bf16 %v360, %v408
  %v457 = vmax.bf16 %v361, %v409
  %v458 = vmax.bf16 %v362, %v410
  %v459 = vmax.bf16 %v363, %v411
  %v460 = vmax.bf16 %v364, %v412
  %v461 = vmax.bf16 %v365, %v413
  %v462 = vmax.bf16 %v366, %v414
  %v463 = vmax.bf16 %v367, %v415
  %v464 = vld [vmem:[%s5] sm:$0xf]
  %v465 = vld [vmem:[%s5 + $0x4] sm:$0xf]
  %v466 = vld [vmem:[%s5 + $0x8] sm:$0xf]
  %v467 = vld [vmem:[%s5 + $0xc] sm:$0xf]
  %v468 = vld [vmem:[%s5 + $0x10] sm:$0xf]
  %v469 = vld [vmem:[%s5 + $0x14] sm:$0xf]
  %v470 = vld [vmem:[%s5 + $0x18] sm:$0xf]
  %v471 = vld [vmem:[%s5 + $0x1c] sm:$0xf]
  %v472 = vld [vmem:[%s5 + $0x20] sm:$0xf]
  %v473 = vld [vmem:[%s5 + $0x24] sm:$0xf]
  %v474 = vld [vmem:[%s5 + $0x28] sm:$0xf]
  %v475 = vld [vmem:[%s5 + $0x2c] sm:$0xf]
  %v476 = vld [vmem:[%s5 + $0x30] sm:$0xf]
  %v477 = vld [vmem:[%s5 + $0x34] sm:$0xf]
  %v478 = vld [vmem:[%s5 + $0x38] sm:$0xf]
  %v479 = vld [vmem:[%s5 + $0x3c] sm:$0xf]
  %v480 = vld [vmem:[%s5 + $0x40] sm:$0xf]
  %v481 = vld [vmem:[%s5 + $0x44] sm:$0xf]
  %v482 = vld [vmem:[%s5 + $0x48] sm:$0xf]
  %v483 = vld [vmem:[%s5 + $0x4c] sm:$0xf]
  %v484 = vld [vmem:[%s5 + $0x50] sm:$0xf]
  %v485 = vld [vmem:[%s5 + $0x54] sm:$0xf]
  %v486 = vld [vmem:[%s5 + $0x58] sm:$0xf]
  %v487 = vld [vmem:[%s5 + $0x5c] sm:$0xf]
  %v488 = vld [vmem:[%s5 + $0x60] sm:$0xf]
  %v489 = vld [vmem:[%s5 + $0x64] sm:$0xf]
  %v490 = vld [vmem:[%s5 + $0x68] sm:$0xf]
  %v491 = vld [vmem:[%s5 + $0x6c] sm:$0xf]
  %v492 = vld [vmem:[%s5 + $0x70] sm:$0xf]
  %v493 = vld [vmem:[%s5 + $0x74] sm:$0xf]
  %v494 = vld [vmem:[%s5 + $0x78] sm:$0xf]
  %v495 = vld [vmem:[%s5 + $0x7c] sm:$0xf]
  %v496 = vld [vmem:[%s5 + $0x80] sm:$0xf]
  %v497 = vld [vmem:[%s5 + $0x84] sm:$0xf]
  %v498 = vld [vmem:[%s5 + $0x88] sm:$0xf]
  %v499 = vld [vmem:[%s5 + $0x8c] sm:$0xf]
  %v500 = vld [vmem:[%s5 + $0x90] sm:$0xf]
  %v501 = vld [vmem:[%s5 + $0x94] sm:$0xf]
  %v502 = vld [vmem:[%s5 + $0x98] sm:$0xf]
  %v503 = vld [vmem:[%s5 + $0x9c] sm:$0xf]
  %v504 = vld [vmem:[%s5 + $0xa0] sm:$0xf]
  %v505 = vld [vmem:[%s5 + $0xa4] sm:$0xf]
  %v506 = vld [vmem:[%s5 + $0xa8] sm:$0xf]
  %v507 = vld [vmem:[%s5 + $0xac] sm:$0xf]
  %v508 = vld [vmem:[%s5 + $0xb0] sm:$0xf]
  %v509 = vld [vmem:[%s5 + $0xb4] sm:$0xf]
  %v510 = vld [vmem:[%s5 + $0xb8] sm:$0xf]
  %v511 = vld [vmem:[%s5 + $0xbc] sm:$0xf]
  %v512 = vmax.bf16 %v416, %v464
  %v513 = vmax.bf16 %v417, %v465
  %v514 = vmax.bf16 %v418, %v466
  %v515 = vmax.bf16 %v419, %v467
  %v516 = vmax.bf16 %v420, %v468
  %v517 = vmax.bf16 %v421, %v469
  %v518 = vmax.bf16 %v422, %v470
  %v519 = vmax.bf16 %v423, %v471
  %v520 = vmax.bf16 %v424, %v472
  %v521 = vmax.bf16 %v425, %v473
  %v522 = vmax.bf16 %v426, %v474
  %v523 = vmax.bf16 %v427, %v475
  %v524 = vmax.bf16 %v428, %v476
  %v525 = vmax.bf16 %v429, %v477
  %v526 = vmax.bf16 %v430, %v478
  %v527 = vmax.bf16 %v431, %v479
  %v528 = vmax.bf16 %v432, %v480
  %v529 = vmax.bf16 %v433, %v481
  %v530 = vmax.bf16 %v434, %v482
  %v531 = vmax.bf16 %v435, %v483
  %v532 = vmax.bf16 %v436, %v484
  %v533 = vmax.bf16 %v437, %v485
  %v534 = vmax.bf16 %v438, %v486
  %v535 = vmax.bf16 %v439, %v487
  %v536 = vmax.bf16 %v440, %v488
  %v537 = vmax.bf16 %v441, %v489
  %v538 = vmax.bf16 %v442, %v490
  %v539 = vmax.bf16 %v443, %v491
  %v540 = vmax.bf16 %v444, %v492
  %v541 = vmax.bf16 %v445, %v493
  %v542 = vmax.bf16 %v446, %v494
  %v543 = vmax.bf16 %v447, %v495
  %v544 = vmax.bf16 %v448, %v496
  %v545 = vmax.bf16 %v449, %v497
  %v546 = vmax.bf16 %v450, %v498
  %v547 = vmax.bf16 %v451, %v499
  %v548 = vmax.bf16 %v452, %v500
  %v549 = vmax.bf16 %v453, %v501
  %v550 = vmax.bf16 %v454, %v502
  %v551 = vmax.bf16 %v455, %v503
  %v552 = vmax.bf16 %v456, %v504
  %v553 = vmax.bf16 %v457, %v505
  %v554 = vmax.bf16 %v458, %v506
  %v555 = vmax.bf16 %v459, %v507
  %v556 = vmax.bf16 %v460, %v508
  %v557 = vmax.bf16 %v461, %v509
  %v558 = vmax.bf16 %v462, %v510
  %v559 = vmax.bf16 %v463, %v511
  %v560 = vld [vmem:[%s6] sm:$0xf]
  %v561 = vld [vmem:[%s6 + $0x4] sm:$0xf]
  %v562 = vld [vmem:[%s6 + $0x8] sm:$0xf]
  %v563 = vld [vmem:[%s6 + $0xc] sm:$0xf]
  %v564 = vld [vmem:[%s6 + $0x10] sm:$0xf]
  %v565 = vld [vmem:[%s6 + $0x14] sm:$0xf]
  %v566 = vld [vmem:[%s6 + $0x18] sm:$0xf]
  %v567 = vld [vmem:[%s6 + $0x1c] sm:$0xf]
  %v568 = vld [vmem:[%s6 + $0x20] sm:$0xf]
  %v569 = vld [vmem:[%s6 + $0x24] sm:$0xf]
  %v570 = vld [vmem:[%s6 + $0x28] sm:$0xf]
  %v571 = vld [vmem:[%s6 + $0x2c] sm:$0xf]
  %v572 = vld [vmem:[%s6 + $0x30] sm:$0xf]
  %v573 = vld [vmem:[%s6 + $0x34] sm:$0xf]
  %v574 = vld [vmem:[%s6 + $0x38] sm:$0xf]
  %v575 = vld [vmem:[%s6 + $0x3c] sm:$0xf]
  %v576 = vld [vmem:[%s6 + $0x40] sm:$0xf]
  %v577 = vld [vmem:[%s6 + $0x44] sm:$0xf]
  %v578 = vld [vmem:[%s6 + $0x48] sm:$0xf]
  %v579 = vld [vmem:[%s6 + $0x4c] sm:$0xf]
  %v580 = vld [vmem:[%s6 + $0x50] sm:$0xf]
  %v581 = vld [vmem:[%s6 + $0x54] sm:$0xf]
  %v582 = vld [vmem:[%s6 + $0x58] sm:$0xf]
  %v583 = vld [vmem:[%s6 + $0x5c] sm:$0xf]
  %v584 = vld [vmem:[%s6 + $0x60] sm:$0xf]
  %v585 = vld [vmem:[%s6 + $0x64] sm:$0xf]
  %v586 = vld [vmem:[%s6 + $0x68] sm:$0xf]
  %v587 = vld [vmem:[%s6 + $0x6c] sm:$0xf]
  %v588 = vld [vmem:[%s6 + $0x70] sm:$0xf]
  %v589 = vld [vmem:[%s6 + $0x74] sm:$0xf]
  %v590 = vld [vmem:[%s6 + $0x78] sm:$0xf]
  %v591 = vld [vmem:[%s6 + $0x7c] sm:$0xf]
  %v592 = vld [vmem:[%s6 + $0x80] sm:$0xf]
  %v593 = vld [vmem:[%s6 + $0x84] sm:$0xf]
  %v594 = vld [vmem:[%s6 + $0x88] sm:$0xf]
  %v595 = vld [vmem:[%s6 + $0x8c] sm:$0xf]
  %v596 = vld [vmem:[%s6 + $0x90] sm:$0xf]
  %v597 = vld [vmem:[%s6 + $0x94] sm:$0xf]
  %v598 = vld [vmem:[%s6 + $0x98] sm:$0xf]
  %v599 = vld [vmem:[%s6 + $0x9c] sm:$0xf]
  %v600 = vld [vmem:[%s6 + $0xa0] sm:$0xf]
  %v601 = vld [vmem:[%s6 + $0xa4] sm:$0xf]
  %v602 = vld [vmem:[%s6 + $0xa8] sm:$0xf]
  %v603 = vld [vmem:[%s6 + $0xac] sm:$0xf]
  %v604 = vld [vmem:[%s6 + $0xb0] sm:$0xf]
  %v605 = vld [vmem:[%s6 + $0xb4] sm:$0xf]
  %v606 = vld [vmem:[%s6 + $0xb8] sm:$0xf]
  %v607 = vld [vmem:[%s6 + $0xbc] sm:$0xf]
  %v608 = vmax.bf16 %v512, %v560
  %v609 = vmax.bf16 %v513, %v561
  %v610 = vmax.bf16 %v514, %v562
  %v611 = vmax.bf16 %v515, %v563
  %v612 = vmax.bf16 %v516, %v564
  %v613 = vmax.bf16 %v517, %v565
  %v614 = vmax.bf16 %v518, %v566
  %v615 = vmax.bf16 %v519, %v567
  %v616 = vmax.bf16 %v520, %v568
  %v617 = vmax.bf16 %v521, %v569
  %v618 = vmax.bf16 %v522, %v570
  %v619 = vmax.bf16 %v523, %v571
  %v620 = vmax.bf16 %v524, %v572
  %v621 = vmax.bf16 %v525, %v573
  %v622 = vmax.bf16 %v526, %v574
  %v623 = vmax.bf16 %v527, %v575
  %v624 = vmax.bf16 %v528, %v576
  %v625 = vmax.bf16 %v529, %v577
  %v626 = vmax.bf16 %v530, %v578
  %v627 = vmax.bf16 %v531, %v579
  %v628 = vmax.bf16 %v532, %v580
  %v629 = vmax.bf16 %v533, %v581
  %v630 = vmax.bf16 %v534, %v582
  %v631 = vmax.bf16 %v535, %v583
  %v632 = vmax.bf16 %v536, %v584
  %v633 = vmax.bf16 %v537, %v585
  %v634 = vmax.bf16 %v538, %v586
  %v635 = vmax.bf16 %v539, %v587
  %v636 = vmax.bf16 %v540, %v588
  %v637 = vmax.bf16 %v541, %v589
  %v638 = vmax.bf16 %v542, %v590
  %v639 = vmax.bf16 %v543, %v591
  %v640 = vmax.bf16 %v544, %v592
  %v641 = vmax.bf16 %v545, %v593
  %v642 = vmax.bf16 %v546, %v594
  %v643 = vmax.bf16 %v547, %v595
  %v644 = vmax.bf16 %v548, %v596
  %v645 = vmax.bf16 %v549, %v597
  %v646 = vmax.bf16 %v550, %v598
  %v647 = vmax.bf16 %v551, %v599
  %v648 = vmax.bf16 %v552, %v600
  %v649 = vmax.bf16 %v553, %v601
  %v650 = vmax.bf16 %v554, %v602
  %v651 = vmax.bf16 %v555, %v603
  %v652 = vmax.bf16 %v556, %v604
  %v653 = vmax.bf16 %v557, %v605
  %v654 = vmax.bf16 %v558, %v606
  %v655 = vmax.bf16 %v559, %v607
  %v656 = vld [vmem:[%s7] sm:$0xf]
  %v657 = vld [vmem:[%s7 + $0x4] sm:$0xf]
  %v658 = vld [vmem:[%s7 + $0x8] sm:$0xf]
  %v659 = vld [vmem:[%s7 + $0xc] sm:$0xf]
  %v660 = vld [vmem:[%s7 + $0x10] sm:$0xf]
  %v661 = vld [vmem:[%s7 + $0x14] sm:$0xf]
  %v662 = vld [vmem:[%s7 + $0x18] sm:$0xf]
  %v663 = vld [vmem:[%s7 + $0x1c] sm:$0xf]
  %v664 = vld [vmem:[%s7 + $0x20] sm:$0xf]
  %v665 = vld [vmem:[%s7 + $0x24] sm:$0xf]
  %v666 = vld [vmem:[%s7 + $0x28] sm:$0xf]
  %v667 = vld [vmem:[%s7 + $0x2c] sm:$0xf]
  %v668 = vld [vmem:[%s7 + $0x30] sm:$0xf]
  %v669 = vld [vmem:[%s7 + $0x34] sm:$0xf]
  %v670 = vld [vmem:[%s7 + $0x38] sm:$0xf]
  %v671 = vld [vmem:[%s7 + $0x3c] sm:$0xf]
  %v672 = vld [vmem:[%s7 + $0x40] sm:$0xf]
  %v673 = vld [vmem:[%s7 + $0x44] sm:$0xf]
  %v674 = vld [vmem:[%s7 + $0x48] sm:$0xf]
  %v675 = vld [vmem:[%s7 + $0x4c] sm:$0xf]
  %v676 = vld [vmem:[%s7 + $0x50] sm:$0xf]
  %v677 = vld [vmem:[%s7 + $0x54] sm:$0xf]
  %v678 = vld [vmem:[%s7 + $0x58] sm:$0xf]
  %v679 = vld [vmem:[%s7 + $0x5c] sm:$0xf]
  %v680 = vld [vmem:[%s7 + $0x60] sm:$0xf]
  %v681 = vld [vmem:[%s7 + $0x64] sm:$0xf]
  %v682 = vld [vmem:[%s7 + $0x68] sm:$0xf]
  %v683 = vld [vmem:[%s7 + $0x6c] sm:$0xf]
  %v684 = vld [vmem:[%s7 + $0x70] sm:$0xf]
  %v685 = vld [vmem:[%s7 + $0x74] sm:$0xf]
  %v686 = vld [vmem:[%s7 + $0x78] sm:$0xf]
  %v687 = vld [vmem:[%s7 + $0x7c] sm:$0xf]
  %v688 = vld [vmem:[%s7 + $0x80] sm:$0xf]
  %v689 = vld [vmem:[%s7 + $0x84] sm:$0xf]
  %v690 = vld [vmem:[%s7 + $0x88] sm:$0xf]
  %v691 = vld [vmem:[%s7 + $0x8c] sm:$0xf]
  %v692 = vld [vmem:[%s7 + $0x90] sm:$0xf]
  %v693 = vld [vmem:[%s7 + $0x94] sm:$0xf]
  %v694 = vld [vmem:[%s7 + $0x98] sm:$0xf]
  %v695 = vld [vmem:[%s7 + $0x9c] sm:$0xf]
  %v696 = vld [vmem:[%s7 + $0xa0] sm:$0xf]
  %v697 = vld [vmem:[%s7 + $0xa4] sm:$0xf]
  %v698 = vld [vmem:[%s7 + $0xa8] sm:$0xf]
  %v699 = vld [vmem:[%s7 + $0xac] sm:$0xf]
  %v700 = vld [vmem:[%s7 + $0xb0] sm:$0xf]
  %v701 = vld [vmem:[%s7 + $0xb4] sm:$0xf]
  %v702 = vld [vmem:[%s7 + $0xb8] sm:$0xf]
  %v703 = vld [vmem:[%s7 + $0xbc] sm:$0xf]
  %v704 = vmax.bf16 %v608, %v656
  %v705 = vmax.bf16 %v609, %v657
  %v706 = vmax.bf16 %v610, %v658
  %v707 = vmax.bf16 %v611, %v659
  %v708 = vmax.bf16 %v612, %v660
  %v709 = vmax.bf16 %v613, %v661
  %v710 = vmax.bf16 %v614, %v662
  %v711 = vmax.bf16 %v615, %v663
  %v712 = vmax.bf16 %v616, %v664
  %v713 = vmax.bf16 %v617, %v665
  %v714 = vmax.bf16 %v618, %v666
  %v715 = vmax.bf16 %v619, %v667
  %v716 = vmax.bf16 %v620, %v668
  %v717 = vmax.bf16 %v621, %v669
  %v718 = vmax.bf16 %v622, %v670
  %v719 = vmax.bf16 %v623, %v671
  %v720 = vmax.bf16 %v624, %v672
  %v721 = vmax.bf16 %v625, %v673
  %v722 = vmax.bf16 %v626, %v674
  %v723 = vmax.bf16 %v627, %v675
  %v724 = vmax.bf16 %v628, %v676
  %v725 = vmax.bf16 %v629, %v677
  %v726 = vmax.bf16 %v630, %v678
  %v727 = vmax.bf16 %v631, %v679
  %v728 = vmax.bf16 %v632, %v680
  %v729 = vmax.bf16 %v633, %v681
  %v730 = vmax.bf16 %v634, %v682
  %v731 = vmax.bf16 %v635, %v683
  %v732 = vmax.bf16 %v636, %v684
  %v733 = vmax.bf16 %v637, %v685
  %v734 = vmax.bf16 %v638, %v686
  %v735 = vmax.bf16 %v639, %v687
  %v736 = vmax.bf16 %v640, %v688
  %v737 = vmax.bf16 %v641, %v689
  %v738 = vmax.bf16 %v642, %v690
  %v739 = vmax.bf16 %v643, %v691
  %v740 = vmax.bf16 %v644, %v692
  %v741 = vmax.bf16 %v645, %v693
  %v742 = vmax.bf16 %v646, %v694
  %v743 = vmax.bf16 %v647, %v695
  %v744 = vmax.bf16 %v648, %v696
  %v745 = vmax.bf16 %v649, %v697
  %v746 = vmax.bf16 %v650, %v698
  %v747 = vmax.bf16 %v651, %v699
  %v748 = vmax.bf16 %v652, %v700
  %v749 = vmax.bf16 %v653, %v701
  %v750 = vmax.bf16 %v654, %v702
  %v751 = vmax.bf16 %v655, %v703
  %v752 = vld [vmem:[%s8] sm:$0xf]
  %v753 = vld [vmem:[%s8 + $0x4] sm:$0xf]
  %v754 = vld [vmem:[%s8 + $0x8] sm:$0xf]
  %v755 = vld [vmem:[%s8 + $0xc] sm:$0xf]
  %v756 = vld [vmem:[%s8 + $0x10] sm:$0xf]
  %v757 = vld [vmem:[%s8 + $0x14] sm:$0xf]
  %v758 = vld [vmem:[%s8 + $0x18] sm:$0xf]
  %v759 = vld [vmem:[%s8 + $0x1c] sm:$0xf]
  %v760 = vld [vmem:[%s8 + $0x20] sm:$0xf]
  %v761 = vld [vmem:[%s8 + $0x24] sm:$0xf]
  %v762 = vld [vmem:[%s8 + $0x28] sm:$0xf]
  %v763 = vld [vmem:[%s8 + $0x2c] sm:$0xf]
  %v764 = vld [vmem:[%s8 + $0x30] sm:$0xf]
  %v765 = vld [vmem:[%s8 + $0x34] sm:$0xf]
  %v766 = vld [vmem:[%s8 + $0x38] sm:$0xf]
  %v767 = vld [vmem:[%s8 + $0x3c] sm:$0xf]
  %v768 = vld [vmem:[%s8 + $0x40] sm:$0xf]
  %v769 = vld [vmem:[%s8 + $0x44] sm:$0xf]
  %v770 = vld [vmem:[%s8 + $0x48] sm:$0xf]
  %v771 = vld [vmem:[%s8 + $0x4c] sm:$0xf]
  %v772 = vld [vmem:[%s8 + $0x50] sm:$0xf]
  %v773 = vld [vmem:[%s8 + $0x54] sm:$0xf]
  %v774 = vld [vmem:[%s8 + $0x58] sm:$0xf]
  %v775 = vld [vmem:[%s8 + $0x5c] sm:$0xf]
  %v776 = vld [vmem:[%s8 + $0x60] sm:$0xf]
  %v777 = vld [vmem:[%s8 + $0x64] sm:$0xf]
  %v778 = vld [vmem:[%s8 + $0x68] sm:$0xf]
  %v779 = vld [vmem:[%s8 + $0x6c] sm:$0xf]
  %v780 = vld [vmem:[%s8 + $0x70] sm:$0xf]
  %v781 = vld [vmem:[%s8 + $0x74] sm:$0xf]
  %v782 = vld [vmem:[%s8 + $0x78] sm:$0xf]
  %v783 = vld [vmem:[%s8 + $0x7c] sm:$0xf]
  %v784 = vld [vmem:[%s8 + $0x80] sm:$0xf]
  %v785 = vld [vmem:[%s8 + $0x84] sm:$0xf]
  %v786 = vld [vmem:[%s8 + $0x88] sm:$0xf]
  %v787 = vld [vmem:[%s8 + $0x8c] sm:$0xf]
  %v788 = vld [vmem:[%s8 + $0x90] sm:$0xf]
  %v789 = vld [vmem:[%s8 + $0x94] sm:$0xf]
  %v790 = vld [vmem:[%s8 + $0x98] sm:$0xf]
  %v791 = vld [vmem:[%s8 + $0x9c] sm:$0xf]
  %v792 = vld [vmem:[%s8 + $0xa0] sm:$0xf]
  %v793 = vld [vmem:[%s8 + $0xa4] sm:$0xf]
  %v794 = vld [vmem:[%s8 + $0xa8] sm:$0xf]
  %v795 = vld [vmem:[%s8 + $0xac] sm:$0xf]
  %v796 = vld [vmem:[%s8 + $0xb0] sm:$0xf]
  %v797 = vld [vmem:[%s8 + $0xb4] sm:$0xf]
  %v798 = vld [vmem:[%s8 + $0xb8] sm:$0xf]
  %v799 = vld [vmem:[%s8 + $0xbc] sm:$0xf]
  %v800 = vmax.bf16 %v704, %v752
  %v801 = vmax.bf16 %v705, %v753
  %v802 = vmax.bf16 %v706, %v754
  %v803 = vmax.bf16 %v707, %v755
  %v804 = vmax.bf16 %v708, %v756
  %v805 = vmax.bf16 %v709, %v757
  %v806 = vmax.bf16 %v710, %v758
  %v807 = vmax.bf16 %v711, %v759
  %v808 = vmax.bf16 %v712, %v760
  %v809 = vmax.bf16 %v713, %v761
  %v810 = vmax.bf16 %v714, %v762
  %v811 = vmax.bf16 %v715, %v763
  %v812 = vmax.bf16 %v716, %v764
  %v813 = vmax.bf16 %v717, %v765
  %v814 = vmax.bf16 %v718, %v766
  %v815 = vmax.bf16 %v719, %v767
  %v816 = vmax.bf16 %v720, %v768
  %v817 = vmax.bf16 %v721, %v769
  %v818 = vmax.bf16 %v722, %v770
  %v819 = vmax.bf16 %v723, %v771
  %v820 = vmax.bf16 %v724, %v772
  %v821 = vmax.bf16 %v725, %v773
  %v822 = vmax.bf16 %v726, %v774
  %v823 = vmax.bf16 %v727, %v775
  %v824 = vmax.bf16 %v728, %v776
  %v825 = vmax.bf16 %v729, %v777
  %v826 = vmax.bf16 %v730, %v778
  %v827 = vmax.bf16 %v731, %v779
  %v828 = vmax.bf16 %v732, %v780
  %v829 = vmax.bf16 %v733, %v781
  %v830 = vmax.bf16 %v734, %v782
  %v831 = vmax.bf16 %v735, %v783
  %v832 = vmax.bf16 %v736, %v784
  %v833 = vmax.bf16 %v737, %v785
  %v834 = vmax.bf16 %v738, %v786
  %v835 = vmax.bf16 %v739, %v787
  %v836 = vmax.bf16 %v740, %v788
  %v837 = vmax.bf16 %v741, %v789
  %v838 = vmax.bf16 %v742, %v790
  %v839 = vmax.bf16 %v743, %v791
  %v840 = vmax.bf16 %v744, %v792
  %v841 = vmax.bf16 %v745, %v793
  %v842 = vmax.bf16 %v746, %v794
  %v843 = vmax.bf16 %v747, %v795
  %v844 = vmax.bf16 %v748, %v796
  %v845 = vmax.bf16 %v749, %v797
  %v846 = vmax.bf16 %v750, %v798
  %v847 = vmax.bf16 %v751, %v799
  %848 = vst [vmem:[%s9] sm:$0xf] %v800
  %849 = vst [vmem:[%s9 + $0x4] sm:$0xf] %v801
  %850 = vst [vmem:[%s9 + $0x8] sm:$0xf] %v802
  %851 = vst [vmem:[%s9 + $0xc] sm:$0xf] %v803
  %852 = vst [vmem:[%s9 + $0x10] sm:$0xf] %v804
  %853 = vst [vmem:[%s9 + $0x14] sm:$0xf] %v805
  %854 = vst [vmem:[%s9 + $0x18] sm:$0xf] %v806
  %855 = vst [vmem:[%s9 + $0x1c] sm:$0xf] %v807
  %856 = vst [vmem:[%s9 + $0x20] sm:$0xf] %v808
  %857 = vst [vmem:[%s9 + $0x24] sm:$0xf] %v809
  %858 = vst [vmem:[%s9 + $0x28] sm:$0xf] %v810
  %859 = vst [vmem:[%s9 + $0x2c] sm:$0xf] %v811
  %860 = vst [vmem:[%s9 + $0x30] sm:$0xf] %v812
  %861 = vst [vmem:[%s9 + $0x34] sm:$0xf] %v813
  %862 = vst [vmem:[%s9 + $0x38] sm:$0xf] %v814
  %863 = vst [vmem:[%s9 + $0x3c] sm:$0xf] %v815
  %864 = vst [vmem:[%s9 + $0x40] sm:$0xf] %v816
  %865 = vst [vmem:[%s9 + $0x44] sm:$0xf] %v817
  %866 = vst [vmem:[%s9 + $0x48] sm:$0xf] %v818
  %867 = vst [vmem:[%s9 + $0x4c] sm:$0xf] %v819
  %868 = vst [vmem:[%s9 + $0x50] sm:$0xf] %v820
  %869 = vst [vmem:[%s9 + $0x54] sm:$0xf] %v821
  %870 = vst [vmem:[%s9 + $0x58] sm:$0xf] %v822
  %871 = vst [vmem:[%s9 + $0x5c] sm:$0xf] %v823
  %872 = vst [vmem:[%s9 + $0x60] sm:$0xf] %v824
  %873 = vst [vmem:[%s9 + $0x64] sm:$0xf] %v825
  %874 = vst [vmem:[%s9 + $0x68] sm:$0xf] %v826
  %875 = vst [vmem:[%s9 + $0x6c] sm:$0xf] %v827
  %876 = vst [vmem:[%s9 + $0x70] sm:$0xf] %v828
  %877 = vst [vmem:[%s9 + $0x74] sm:$0xf] %v829
  %878 = vst [vmem:[%s9 + $0x78] sm:$0xf] %v830
  %879 = vst [vmem:[%s9 + $0x7c] sm:$0xf] %v831
  %880 = vst [vmem:[%s9 + $0x80] sm:$0xf] %v832
  %881 = vst [vmem:[%s9 + $0x84] sm:$0xf] %v833
  %882 = vst [vmem:[%s9 + $0x88] sm:$0xf] %v834
  %883 = vst [vmem:[%s9 + $0x8c] sm:$0xf] %v835
  %884 = vst [vmem:[%s9 + $0x90] sm:$0xf] %v836
  %885 = vst [vmem:[%s9 + $0x94] sm:$0xf] %v837
  %886 = vst [vmem:[%s9 + $0x98] sm:$0xf] %v838
  %887 = vst [vmem:[%s9 + $0x9c] sm:$0xf] %v839
  %888 = vst [vmem:[%s9 + $0xa0] sm:$0xf] %v840
  %889 = vst [vmem:[%s9 + $0xa4] sm:$0xf] %v841
  %890 = vst [vmem:[%s9 + $0xa8] sm:$0xf] %v842
  %891 = vst [vmem:[%s9 + $0xac] sm:$0xf] %v843
  %892 = vst [vmem:[%s9 + $0xb0] sm:$0xf] %v844
  %893 = vst [vmem:[%s9 + $0xb4] sm:$0xf] %v845
  %894 = vst [vmem:[%s9 + $0xb8] sm:$0xf] %v846
  %895 = vst [vmem:[%s9 + $0xbc] sm:$0xf] %v847
  // Predicated region
  $region38: #{triplet_net_forward.19} parent=0 // pred_check
    _
  $region39: #{triplet_net_forward.19} parent=0 // pred_check_branch
    %897 = sbr.rel (0) target = $region41
  $region40: #{triplet_net_forward.19} parent=0 // pred_region
    _
  $region41: #{triplet_net_forward.19} parent=0 // pred_fallthru
    _
  // Predicated region
  $region42: #{triplet_net_forward.19} parent=0 // pred_check
    _
  $region43: #{triplet_net_forward.19} parent=0 // pred_check_branch
    %899 = sbr.rel (0) target = $region45
  $region44: #{triplet_net_forward.19} parent=0 // pred_region
    _
  $region45: #{triplet_net_forward.19} parent=0 // pred_fallthru
    _

// kernel: triplet_net_forward.20
$region0: #{triplet_net_forward.20}
  #allocation0 [shape = 'u32[]', space=smem, size = 0x4, offset = 0x4, fixed_abs, tag = 'smem constant byte address 0x4 - core index']
  #allocation1 [shape = 'u32[144,128]{1,0:T(1,128)}', space=vmem, size = 0x12000, scoped, tag = 'internal scratch']
  %s0 = inlined_call_operand.vmem [shape: bf16[384,128], index: 0, kind: input, shape index: {}]
  %s1 = inlined_call_operand.vmem [shape: bf16[128,128], index: 1, kind: input, shape index: {}]
  %s2 = inlined_call_operand.vmem [shape: f32[1,128], index: 2, kind: input, shape index: {}]
  %s3 = inlined_call_operand.vmem [shape: bf16[384,128], index: 3, kind: output, shape index: {}]
  %s4 = sld [smem:[#allocation0]]
  $region22: #{triplet_net_forward.20} parent=0
    _
  %s6 = ssub.s32 1, %s4
  %s7 = scalar_select 0, %s6, %s4
  // Predicated region
  $region2: #{triplet_net_forward.20} parent=0 // pred_check
    _
  $region3: #{triplet_net_forward.20} parent=0 // pred_check_branch
    %9 = sbr.rel (0) target = $region5
  $region4: #{triplet_net_forward.20} parent=0 // pred_region
    _
  $region5: #{triplet_net_forward.20} parent=0 // pred_fallthru
    _
  // Predicated region
  $region6: #{triplet_net_forward.20} parent=0 // pred_check
    _
  $region7: #{triplet_net_forward.20} parent=0 // pred_check_branch
    %11 = sbr.rel (0) target = $region9
  $region8: #{triplet_net_forward.20} parent=0 // pred_region
    _
  $region9: #{triplet_net_forward.20} parent=0 // pred_fallthru
    _
  // Predicated region
  $region10: #{triplet_net_forward.20} parent=0 // pred_check
    _
  $region11: #{triplet_net_forward.20} parent=0 // pred_check_branch
    %13 = sbr.rel (0) target = $region13
  $region12: #{triplet_net_forward.20} parent=0 // pred_region
    _
  $region13: #{triplet_net_forward.20} parent=0 // pred_fallthru
    _
  %v15 = vld [vmem:[%s0] sm:$0xf]
  %v16 = vld [vmem:[%s0 + $0x4] sm:$0xf]
  %v17 = vld [vmem:[%s0 + $0x8] sm:$0xf]
  %v18 = vld [vmem:[%s0 + $0xc] sm:$0xf]
  %v19 = vld [vmem:[%s0 + $0x10] sm:$0xf]
  %v20 = vld [vmem:[%s0 + $0x14] sm:$0xf]
  %v21 = vld [vmem:[%s0 + $0x18] sm:$0xf]
  %v22 = vld [vmem:[%s0 + $0x1c] sm:$0xf]
  %v23 = vld [vmem:[%s0 + $0x20] sm:$0xf]
  %v24 = vld [vmem:[%s0 + $0x24] sm:$0xf]
  %v25 = vld [vmem:[%s0 + $0x28] sm:$0xf]
  %v26 = vld [vmem:[%s0 + $0x2c] sm:$0xf]
  %v27 = vld [vmem:[%s0 + $0x30] sm:$0xf]
  %v28 = vld [vmem:[%s0 + $0x34] sm:$0xf]
  %v29 = vld [vmem:[%s0 + $0x38] sm:$0xf]
  %v30 = vld [vmem:[%s0 + $0x3c] sm:$0xf]
  %v31 = vld [vmem:[%s0 + $0x40] sm:$0xf]
  %v32 = vld [vmem:[%s0 + $0x44] sm:$0xf]
  %v33 = vld [vmem:[%s0 + $0x48] sm:$0xf]
  %v34 = vld [vmem:[%s0 + $0x4c] sm:$0xf]
  %v35 = vld [vmem:[%s0 + $0x50] sm:$0xf]
  %v36 = vld [vmem:[%s0 + $0x54] sm:$0xf]
  %v37 = vld [vmem:[%s0 + $0x58] sm:$0xf]
  %v38 = vld [vmem:[%s0 + $0x5c] sm:$0xf]
  %v39 = vld [vmem:[%s0 + $0x60] sm:$0xf]
  %v40 = vld [vmem:[%s0 + $0x64] sm:$0xf]
  %v41 = vld [vmem:[%s0 + $0x68] sm:$0xf]
  %v42 = vld [vmem:[%s0 + $0x6c] sm:$0xf]
  %v43 = vld [vmem:[%s0 + $0x70] sm:$0xf]
  %v44 = vld [vmem:[%s0 + $0x74] sm:$0xf]
  %v45 = vld [vmem:[%s0 + $0x78] sm:$0xf]
  %v46 = vld [vmem:[%s0 + $0x7c] sm:$0xf]
  %v47 = vld [vmem:[%s0 + $0x80] sm:$0xf]
  %v48 = vld [vmem:[%s0 + $0x84] sm:$0xf]
  %v49 = vld [vmem:[%s0 + $0x88] sm:$0xf]
  %v50 = vld [vmem:[%s0 + $0x8c] sm:$0xf]
  %v51 = vld [vmem:[%s0 + $0x90] sm:$0xf]
  %v52 = vld [vmem:[%s0 + $0x94] sm:$0xf]
  %v53 = vld [vmem:[%s0 + $0x98] sm:$0xf]
  %v54 = vld [vmem:[%s0 + $0x9c] sm:$0xf]
  %v55 = vld [vmem:[%s0 + $0xa0] sm:$0xf]
  %v56 = vld [vmem:[%s0 + $0xa4] sm:$0xf]
  %v57 = vld [vmem:[%s0 + $0xa8] sm:$0xf]
  %v58 = vld [vmem:[%s0 + $0xac] sm:$0xf]
  %v59 = vld [vmem:[%s0 + $0xb0] sm:$0xf]
  %v60 = vld [vmem:[%s0 + $0xb4] sm:$0xf]
  %v61 = vld [vmem:[%s0 + $0xb8] sm:$0xf]
  %v62 = vld [vmem:[%s0 + $0xbc] sm:$0xf]
  %v63 = vld [vmem:[%s1] sm:$0xf]
  %v64 = vld [vmem:[%s1 + $0x4] sm:$0xf]
  %v65 = vld [vmem:[%s1 + $0x8] sm:$0xf]
  %v66 = vld [vmem:[%s1 + $0xc] sm:$0xf]
  %v67 = vld [vmem:[%s1 + $0x10] sm:$0xf]
  %v68 = vld [vmem:[%s1 + $0x14] sm:$0xf]
  %v69 = vld [vmem:[%s1 + $0x18] sm:$0xf]
  %v70 = vld [vmem:[%s1 + $0x1c] sm:$0xf]
  %v71 = vld [vmem:[%s1 + $0x20] sm:$0xf]
  %v72 = vld [vmem:[%s1 + $0x24] sm:$0xf]
  %v73 = vld [vmem:[%s1 + $0x28] sm:$0xf]
  %v74 = vld [vmem:[%s1 + $0x2c] sm:$0xf]
  %v75 = vld [vmem:[%s1 + $0x30] sm:$0xf]
  %v76 = vld [vmem:[%s1 + $0x34] sm:$0xf]
  %v77 = vld [vmem:[%s1 + $0x38] sm:$0xf]
  %v78 = vld [vmem:[%s1 + $0x3c] sm:$0xf]
  %v79 = vld [vmem:[%s2] sm:$0x1]
  %v81 = vlaneseq
  %v82 = vshrl.u32 %v81, 7
  %v83 = vsub.s32 0, %v82
  %v84 = vrot.slane %v79, %v83
  %v134 = vunpack.c.l.b16 %v15
  %v135 = vunpack.c.l.b16 %v16
  %v136 = vunpack.c.l.b16 %v17
  %v137 = vunpack.c.l.b16 %v18
  %v138 = vunpack.c.l.b16 %v19
  %v139 = vunpack.c.l.b16 %v20
  %v140 = vunpack.c.l.b16 %v21
  %v141 = vunpack.c.l.b16 %v22
  %v142 = vunpack.c.l.b16 %v23
  %v143 = vunpack.c.l.b16 %v24
  %v144 = vunpack.c.l.b16 %v25
  %v145 = vunpack.c.l.b16 %v26
  %v146 = vunpack.c.l.b16 %v27
  %v147 = vunpack.c.l.b16 %v28
  %v148 = vunpack.c.l.b16 %v29
  %v149 = vunpack.c.l.b16 %v30
  %v150 = vunpack.c.l.b16 %v31
  %v151 = vunpack.c.l.b16 %v32
  %v152 = vunpack.c.l.b16 %v33
  %v153 = vunpack.c.l.b16 %v34
  %v154 = vunpack.c.l.b16 %v35
  %v155 = vunpack.c.l.b16 %v36
  %v156 = vunpack.c.l.b16 %v37
  %v157 = vunpack.c.l.b16 %v38
  %v158 = vunpack.c.l.b16 %v39
  %v159 = vunpack.c.l.b16 %v40
  %v160 = vunpack.c.l.b16 %v41
  %v161 = vunpack.c.l.b16 %v42
  %v162 = vunpack.c.l.b16 %v43
  %v163 = vunpack.c.l.b16 %v44
  %v164 = vunpack.c.l.b16 %v45
  %v165 = vunpack.c.l.b16 %v46
  %v166 = vunpack.c.l.b16 %v47
  %v167 = vunpack.c.l.b16 %v48
  %v168 = vunpack.c.l.b16 %v49
  %v169 = vunpack.c.l.b16 %v50
  %v170 = vunpack.c.l.b16 %v51
  %v171 = vunpack.c.l.b16 %v52
  %v172 = vunpack.c.l.b16 %v53
  %v173 = vunpack.c.l.b16 %v54
  %v174 = vunpack.c.l.b16 %v55
  %v175 = vunpack.c.l.b16 %v56
  %v176 = vunpack.c.l.b16 %v57
  %v177 = vunpack.c.l.b16 %v58
  %v178 = vunpack.c.l.b16 %v59
  %v179 = vunpack.c.l.b16 %v60
  %v180 = vunpack.c.l.b16 %v61
  %v181 = vunpack.c.l.b16 %v62
  %v182 = vpack.c.b16 %v135, %v134
  %v183 = vpack.c.b16 %v137, %v136
  %v184 = vpack.c.b16 %v139, %v138
  %v185 = vpack.c.b16 %v141, %v140
  %v186 = vpack.c.b16 %v143, %v142
  %v187 = vpack.c.b16 %v145, %v144
  %v188 = vpack.c.b16 %v147, %v146
  %v189 = vpack.c.b16 %v149, %v148
  %v190 = vpack.c.b16 %v151, %v150
  %v191 = vpack.c.b16 %v153, %v152
  %v192 = vpack.c.b16 %v155, %v154
  %v193 = vpack.c.b16 %v157, %v156
  %v194 = vpack.c.b16 %v159, %v158
  %v195 = vpack.c.b16 %v161, %v160
  %v196 = vpack.c.b16 %v163, %v162
  %v197 = vpack.c.b16 %v165, %v164
  %v198 = vpack.c.b16 %v167, %v166
  %v199 = vpack.c.b16 %v169, %v168
  %v200 = vpack.c.b16 %v171, %v170
  %v201 = vpack.c.b16 %v173, %v172
  %v202 = vpack.c.b16 %v175, %v174
  %v203 = vpack.c.b16 %v177, %v176
  %v204 = vpack.c.b16 %v179, %v178
  %v205 = vpack.c.b16 %v181, %v180
  %v246 = vunpack.c.l.b16 %v63
  %v247 = vunpack.c.l.b16 %v64
  %v248 = vunpack.c.l.b16 %v65
  %v249 = vunpack.c.l.b16 %v66
  %v250 = vunpack.c.l.b16 %v67
  %v251 = vunpack.c.l.b16 %v68
  %v252 = vunpack.c.l.b16 %v69
  %v253 = vunpack.c.l.b16 %v70
  %v254 = vunpack.c.l.b16 %v71
  %v255 = vunpack.c.l.b16 %v72
  %v256 = vunpack.c.l.b16 %v73
  %v257 = vunpack.c.l.b16 %v74
  %v258 = vunpack.c.l.b16 %v75
  %v259 = vunpack.c.l.b16 %v76
  %v260 = vunpack.c.l.b16 %v77
  %v261 = vunpack.c.l.b16 %v78
  %v262 = vpack.c.b16 %v247, %v246
  %v263 = vpack.c.b16 %v249, %v248
  %v264 = vpack.c.b16 %v251, %v250
  %v265 = vpack.c.b16 %v253, %v252
  %v266 = vpack.c.b16 %v255, %v254
  %v267 = vpack.c.b16 %v257, %v256
  %v268 = vpack.c.b16 %v259, %v258
  %v269 = vpack.c.b16 %v261, %v260
  %278 = vmatprep.subr.bf16.mxu0 0
  %279 = vmatpush1.bf16.msra.mxu0 %v262
  %280 = vmatprep.subr.bf16.mxu0 0
  %281 = vmatpush1.bf16.msra.mxu0 %v263
  %282 = vmatprep.subr.bf16.mxu0 0
  %283 = vmatpush1.bf16.msra.mxu0 %v264
  %284 = vmatprep.subr.bf16.mxu0 0
  %285 = vmatpush1.bf16.msra.mxu0 %v265
  %286 = vmatprep.subr.bf16.mxu0 0
  %287 = vmatpush1.bf16.msra.mxu0 %v266
  %288 = vmatprep.subr.bf16.mxu0 0
  %289 = vmatpush1.bf16.msra.mxu0 %v267
  %290 = vmatprep.subr.bf16.mxu0 0
  %291 = vmatpush1.bf16.msra.mxu0 %v268
  %292 = vmatprep.subr.bf16.mxu0 0
  %293 = vmatpush1.bf16.msra.mxu0 %v269
  %294 = vmatprep.subr.bf16.mxu0 0
  %295 = vmatpush1.bf16.msra.mxu0 0
  %296 = vmatprep.subr.bf16.mxu0 0
  %297 = vmatpush1.bf16.msra.mxu0 0
  %298 = vmatprep.subr.bf16.mxu0 0
  %299 = vmatpush1.bf16.msra.mxu0 0
  %300 = vmatprep.subr.bf16.mxu0 0
  %301 = vmatpush1.bf16.msra.mxu0 0
  %302 = vmatprep.subr.bf16.mxu0 0
  %303 = vmatpush1.bf16.msra.mxu0 0
  %304 = vmatprep.subr.bf16.mxu0 0
  %305 = vmatpush1.bf16.msra.mxu0 0
  %306 = vmatprep.subr.bf16.mxu0 0
  %307 = vmatpush1.bf16.msra.mxu0 0
  %308 = vmatprep.subr.bf16.mxu0 0
  %309 = vmatpush1.bf16.msra.mxu0 0
  %310 = vmatprep.mubr.bf16.mxu0 0
  %311 = vmatmul.mubr.bf16.gmra.mrb[0].mxu0 %v182
  %v312 = vpop.f32.mrb[0].mxu0
  %v313 = vadd.f32 %v84, %v312
  %v314 = vpop.f32.mrb[0].mxu0
  %v315 = vpop.f32.mrb[0].mxu0
  %v316 = vadd.f32 %v84, %v315
  %v317 = vpop.f32.mrb[0].mxu0
  %318 = vmatprep.mubr.bf16.mxu0 0
  %319 = vmatmul.mubr.bf16.gmra.mrb[0].mxu0 %v183
  %v320 = vpop.f32.mrb[0].mxu0
  %v321 = vadd.f32 %v84, %v320
  %v322 = vpop.f32.mrb[0].mxu0
  %v323 = vpop.f32.mrb[0].mxu0
  %v324 = vadd.f32 %v84, %v323
  %v325 = vpop.f32.mrb[0].mxu0
  %326 = vmatprep.mubr.bf16.mxu0 0
  %327 = vmatmul.mubr.bf16.gmra.mrb[0].mxu0 %v184
  %v328 = vpop.f32.mrb[0].mxu0
  %v329 = vadd.f32 %v84, %v328
  %v330 = vpop.f32.mrb[0].mxu0
  %v331 = vpop.f32.mrb[0].mxu0
  %v332 = vadd.f32 %v84, %v331
  %v333 = vpop.f32.mrb[0].mxu0
  %334 = vmatprep.mubr.bf16.mxu0 0
  %335 = vmatmul.mubr.bf16.gmra.mrb[0].mxu0 %v185
  %v336 = vpop.f32.mrb[0].mxu0
  %v337 = vadd.f32 %v84, %v336
  %v338 = vpop.f32.mrb[0].mxu0
  %v339 = vpop.f32.mrb[0].mxu0
  %v340 = vadd.f32 %v84, %v339
  %v341 = vpop.f32.mrb[0].mxu0
  %342 = vmatprep.mubr.bf16.mxu0 0
  %343 = vmatmul.mubr.bf16.gmra.mrb[0].mxu0 %v186
  %v344 = vpop.f32.mrb[0].mxu0
  %v345 = vadd.f32 %v84, %v344
  %v346 = vpop.f32.mrb[0].mxu0
  %v347 = vpop.f32.mrb[0].mxu0
  %v348 = vadd.f32 %v84, %v347
  %v349 = vpop.f32.mrb[0].mxu0
  %350 = vmatprep.mubr.bf16.mxu0 0
  %351 = vmatmul.mubr.bf16.gmra.mrb[0].mxu0 %v187
  %v352 = vpop.f32.mrb[0].mxu0
  %v353 = vadd.f32 %v84, %v352
  %v354 = vpop.f32.mrb[0].mxu0
  %v355 = vpop.f32.mrb[0].mxu0
  %v356 = vadd.f32 %v84, %v355
  %v357 = vpop.f32.mrb[0].mxu0
  %358 = vmatprep.mubr.bf16.mxu0 0
  %359 = vmatmul.mubr.bf16.gmra.mrb[0].mxu0 %v188
  %v360 = vpop.f32.mrb[0].mxu0
  %v361 = vadd.f32 %v84, %v360
  %v362 = vpop.f32.mrb[0].mxu0
  %v363 = vpop.f32.mrb[0].mxu0
  %v364 = vadd.f32 %v84, %v363
  %v365 = vpop.f32.mrb[0].mxu0
  %366 = vmatprep.mubr.bf16.mxu0 0
  %367 = vmatmul.mubr.bf16.gmra.mrb[0].mxu0 %v189
  %v368 = vpop.f32.mrb[0].mxu0
  %v369 = vadd.f32 %v84, %v368
  %v370 = vpop.f32.mrb[0].mxu0
  %v371 = vpop.f32.mrb[0].mxu0
  %v372 = vadd.f32 %v84, %v371
  %v373 = vpop.f32.mrb[0].mxu0
  %374 = vmatprep.mubr.bf16.mxu0 0
  %375 = vmatmul.mubr.bf16.gmra.mrb[0].mxu0 %v190
  %v376 = vpop.f32.mrb[0].mxu0
  %v377 = vadd.f32 %v84, %v376
  %v378 = vpop.f32.mrb[0].mxu0
  %v379 = vpop.f32.mrb[0].mxu0
  %v380 = vadd.f32 %v84, %v379
  %v381 = vpop.f32.mrb[0].mxu0
  %382 = vmatprep.mubr.bf16.mxu0 0
  %383 = vmatmul.mubr.bf16.gmra.mrb[0].mxu0 %v191
  %v384 = vpop.f32.mrb[0].mxu0
  %v385 = vadd.f32 %v84, %v384
  %v386 = vpop.f32.mrb[0].mxu0
  %v387 = vpop.f32.mrb[0].mxu0
  %v388 = vadd.f32 %v84, %v387
  %v389 = vpop.f32.mrb[0].mxu0
  %390 = vmatprep.mubr.bf16.mxu0 0
  %391 = vmatmul.mubr.bf16.gmra.mrb[0].mxu0 %v192
  %v392 = vpop.f32.mrb[0].mxu0
  %v393 = vadd.f32 %v84, %v392
  %v394 = vpop.f32.mrb[0].mxu0
  %v395 = vpop.f32.mrb[0].mxu0
  %v396 = vadd.f32 %v84, %v395
  %v397 = vpop.f32.mrb[0].mxu0
  %398 = vmatprep.mubr.bf16.mxu0 0
  %399 = vmatmul.mubr.bf16.gmra.mrb[0].mxu0 %v193
  %v400 = vpop.f32.mrb[0].mxu0
  %v401 = vadd.f32 %v84, %v400
  %v402 = vpop.f32.mrb[0].mxu0
  %v403 = vpop.f32.mrb[0].mxu0
  %v404 = vadd.f32 %v84, %v403
  %v405 = vpop.f32.mrb[0].mxu0
  %406 = vmatprep.mubr.bf16.mxu0 0
  %407 = vmatmul.mubr.bf16.gmra.mrb[0].mxu0 %v194
  %v408 = vpop.f32.mrb[0].mxu0
  %v409 = vadd.f32 %v84, %v408
  %v410 = vpop.f32.mrb[0].mxu0
  %v411 = vpop.f32.mrb[0].mxu0
  %v412 = vadd.f32 %v84, %v411
  %v413 = vpop.f32.mrb[0].mxu0
  %414 = vmatprep.mubr.bf16.mxu0 0
  %415 = vmatmul.mubr.bf16.gmra.mrb[0].mxu0 %v195
  %v416 = vpop.f32.mrb[0].mxu0
  %v417 = vadd.f32 %v84, %v416
  %v418 = vpop.f32.mrb[0].mxu0
  %v419 = vpop.f32.mrb[0].mxu0
  %v420 = vadd.f32 %v84, %v419
  %v421 = vpop.f32.mrb[0].mxu0
  %422 = vmatprep.mubr.bf16.mxu0 0
  %423 = vmatmul.mubr.bf16.gmra.mrb[0].mxu0 %v196
  %v424 = vpop.f32.mrb[0].mxu0
  %v425 = vadd.f32 %v84, %v424
  %v426 = vpop.f32.mrb[0].mxu0
  %v427 = vpop.f32.mrb[0].mxu0
  %v428 = vadd.f32 %v84, %v427
  %v429 = vpop.f32.mrb[0].mxu0
  %430 = vmatprep.mubr.bf16.mxu0 0
  %431 = vmatmul.mubr.bf16.gmra.mrb[0].mxu0 %v197
  %v432 = vpop.f32.mrb[0].mxu0
  %v433 = vadd.f32 %v84, %v432
  %v434 = vpop.f32.mrb[0].mxu0
  %v435 = vpop.f32.mrb[0].mxu0
  %v436 = vadd.f32 %v84, %v435
  %v437 = vpop.f32.mrb[0].mxu0
  %438 = vmatprep.mubr.bf16.mxu0 0
  %439 = vmatmul.mubr.bf16.gmra.mrb[0].mxu0 %v198
  %v440 = vpop.f32.mrb[0].mxu0
  %v441 = vadd.f32 %v84, %v440
  %v442 = vpop.f32.mrb[0].mxu0
  %v443 = vpop.f32.mrb[0].mxu0
  %v444 = vadd.f32 %v84, %v443
  %v445 = vpop.f32.mrb[0].mxu0
  %446 = vmatprep.mubr.bf16.mxu0 0
  %447 = vmatmul.mubr.bf16.gmra.mrb[0].mxu0 %v199
  %v448 = vpop.f32.mrb[0].mxu0
  %v449 = vadd.f32 %v84, %v448
  %v450 = vpop.f32.mrb[0].mxu0
  %v451 = vpop.f32.mrb[0].mxu0
  %v452 = vadd.f32 %v84, %v451
  %v453 = vpop.f32.mrb[0].mxu0
  %454 = vmatprep.mubr.bf16.mxu0 0
  %455 = vmatmul.mubr.bf16.gmra.mrb[0].mxu0 %v200
  %v456 = vpop.f32.mrb[0].mxu0
  %v457 = vadd.f32 %v84, %v456
  %v458 = vpop.f32.mrb[0].mxu0
  %v459 = vpop.f32.mrb[0].mxu0
  %v460 = vadd.f32 %v84, %v459
  %v461 = vpop.f32.mrb[0].mxu0
  %462 = vmatprep.mubr.bf16.mxu0 0
  %463 = vmatmul.mubr.bf16.gmra.mrb[0].mxu0 %v201
  %v464 = vpop.f32.mrb[0].mxu0
  %v465 = vadd.f32 %v84, %v464
  %v466 = vpop.f32.mrb[0].mxu0
  %v467 = vpop.f32.mrb[0].mxu0
  %v468 = vadd.f32 %v84, %v467
  %v469 = vpop.f32.mrb[0].mxu0
  %470 = vmatprep.mubr.bf16.mxu0 0
  %471 = vmatmul.mubr.bf16.gmra.mrb[0].mxu0 %v202
  %v472 = vpop.f32.mrb[0].mxu0
  %v473 = vadd.f32 %v84, %v472
  %v474 = vpop.f32.mrb[0].mxu0
  %v475 = vpop.f32.mrb[0].mxu0
  %v476 = vadd.f32 %v84, %v475
  %v477 = vpop.f32.mrb[0].mxu0
  %478 = vmatprep.mubr.bf16.mxu0 0
  %479 = vmatmul.mubr.bf16.gmra.mrb[0].mxu0 %v203
  %v480 = vpop.f32.mrb[0].mxu0
  %v481 = vadd.f32 %v84, %v480
  %v482 = vpop.f32.mrb[0].mxu0
  %v483 = vpop.f32.mrb[0].mxu0
  %v484 = vadd.f32 %v84, %v483
  %v485 = vpop.f32.mrb[0].mxu0
  %486 = vmatprep.mubr.bf16.mxu0 0
  %487 = vmatmul.mubr.bf16.gmra.mrb[0].mxu0 %v204
  %v488 = vpop.f32.mrb[0].mxu0
  %v489 = vadd.f32 %v84, %v488
  %v490 = vpop.f32.mrb[0].mxu0
  %v491 = vpop.f32.mrb[0].mxu0
  %v492 = vadd.f32 %v84, %v491
  %v493 = vpop.f32.mrb[0].mxu0
  %494 = vmatprep.mubr.bf16.mxu0 0
  %495 = vmatmul.mubr.bf16.gmra.mrb[0].mxu0 %v205
  %v496 = vpop.f32.mrb[0].mxu0
  %v497 = vadd.f32 %v84, %v496
  %v498 = vpop.f32.mrb[0].mxu0
  %v499 = vpop.f32.mrb[0].mxu0
  %v500 = vadd.f32 %v84, %v499
  %v501 = vpop.f32.mrb[0].mxu0
  %502 = vdwg.mxu0
  %v503 = vmax.f32 %v313, 0.0
  %v504 = vmax.f32 %v316, 0.0
  %v505 = vmax.f32 %v321, 0.0
  %v506 = vmax.f32 %v324, 0.0
  %v507 = vmax.f32 %v329, 0.0
  %v508 = vmax.f32 %v332, 0.0
  %v509 = vmax.f32 %v337, 0.0
  %v510 = vmax.f32 %v340, 0.0
  %v511 = vmax.f32 %v345, 0.0
  %v512 = vmax.f32 %v348, 0.0
  %v513 = vmax.f32 %v353, 0.0
  %v514 = vmax.f32 %v356, 0.0
  %v515 = vmax.f32 %v361, 0.0
  %v516 = vmax.f32 %v364, 0.0
  %v517 = vmax.f32 %v369, 0.0
  %v518 = vmax.f32 %v372, 0.0
  %v519 = vmax.f32 %v377, 0.0
  %v520 = vmax.f32 %v380, 0.0
  %v521 = vmax.f32 %v385, 0.0
  %v522 = vmax.f32 %v388, 0.0
  %v523 = vmax.f32 %v393, 0.0
  %v524 = vmax.f32 %v396, 0.0
  %v525 = vmax.f32 %v401, 0.0
  %v526 = vmax.f32 %v404, 0.0
  %v527 = vmax.f32 %v409, 0.0
  %v528 = vmax.f32 %v412, 0.0
  %v529 = vmax.f32 %v417, 0.0
  %v530 = vmax.f32 %v420, 0.0
  %v531 = vmax.f32 %v425, 0.0
  %v532 = vmax.f32 %v428, 0.0
  %v533 = vmax.f32 %v433, 0.0
  %v534 = vmax.f32 %v436, 0.0
  %v535 = vmax.f32 %v441, 0.0
  %v536 = vmax.f32 %v444, 0.0
  %v537 = vmax.f32 %v449, 0.0
  %v538 = vmax.f32 %v452, 0.0
  %v539 = vmax.f32 %v457, 0.0
  %v540 = vmax.f32 %v460, 0.0
  %v541 = vmax.f32 %v465, 0.0
  %v542 = vmax.f32 %v468, 0.0
  %v543 = vmax.f32 %v473, 0.0
  %v544 = vmax.f32 %v476, 0.0
  %v545 = vmax.f32 %v481, 0.0
  %v546 = vmax.f32 %v484, 0.0
  %v547 = vmax.f32 %v489, 0.0
  %v548 = vmax.f32 %v492, 0.0
  %v549 = vmax.f32 %v497, 0.0
  %v550 = vmax.f32 %v500, 0.0
  %v551 = vpack.c.bf16 %v504, %v503
  %v552 = vpack.c.bf16 %v506, %v505
  %v553 = vpack.c.bf16 %v508, %v507
  %v554 = vpack.c.bf16 %v510, %v509
  %v555 = vpack.c.bf16 %v512, %v511
  %v556 = vpack.c.bf16 %v514, %v513
  %v557 = vpack.c.bf16 %v516, %v515
  %v558 = vpack.c.bf16 %v518, %v517
  %v559 = vpack.c.bf16 %v520, %v519
  %v560 = vpack.c.bf16 %v522, %v521
  %v561 = vpack.c.bf16 %v524, %v523
  %v562 = vpack.c.bf16 %v526, %v525
  %v563 = vpack.c.bf16 %v528, %v527
  %v564 = vpack.c.bf16 %v530, %v529
  %v565 = vpack.c.bf16 %v532, %v531
  %v566 = vpack.c.bf16 %v534, %v533
  %v567 = vpack.c.bf16 %v536, %v535
  %v568 = vpack.c.bf16 %v538, %v537
  %v569 = vpack.c.bf16 %v540, %v539
  %v570 = vpack.c.bf16 %v542, %v541
  %v571 = vpack.c.bf16 %v544, %v543
  %v572 = vpack.c.bf16 %v546, %v545
  %v573 = vpack.c.bf16 %v548, %v547
  %v574 = vpack.c.bf16 %v550, %v549
  %v599 = vunpack.c.l.b16 %v551
  %v600 = vunpack.c.h.b16 %v551
  %v601 = vunpack.c.l.b16 %v552
  %v602 = vunpack.c.h.b16 %v552
  %v603 = vunpack.c.l.b16 %v553
  %v604 = vunpack.c.h.b16 %v553
  %v605 = vunpack.c.l.b16 %v554
  %v606 = vunpack.c.h.b16 %v554
  %v607 = vunpack.c.l.b16 %v555
  %v608 = vunpack.c.h.b16 %v555
  %v609 = vunpack.c.l.b16 %v556
  %v610 = vunpack.c.h.b16 %v556
  %v611 = vunpack.c.l.b16 %v557
  %v612 = vunpack.c.h.b16 %v557
  %v613 = vunpack.c.l.b16 %v558
  %v614 = vunpack.c.h.b16 %v558
  %v615 = vunpack.c.l.b16 %v559
  %v616 = vunpack.c.h.b16 %v559
  %v617 = vunpack.c.l.b16 %v560
  %v618 = vunpack.c.h.b16 %v560
  %v619 = vunpack.c.l.b16 %v561
  %v620 = vunpack.c.h.b16 %v561
  %v621 = vunpack.c.l.b16 %v562
  %v622 = vunpack.c.h.b16 %v562
  %v623 = vunpack.c.l.b16 %v563
  %v624 = vunpack.c.h.b16 %v563
  %v625 = vunpack.c.l.b16 %v564
  %v626 = vunpack.c.h.b16 %v564
  %v627 = vunpack.c.l.b16 %v565
  %v628 = vunpack.c.h.b16 %v565
  %v629 = vunpack.c.l.b16 %v566
  %v630 = vunpack.c.h.b16 %v566
  %v631 = vunpack.c.l.b16 %v567
  %v632 = vunpack.c.h.b16 %v567
  %v633 = vunpack.c.l.b16 %v568
  %v634 = vunpack.c.h.b16 %v568
  %v635 = vunpack.c.l.b16 %v569
  %v636 = vunpack.c.h.b16 %v569
  %v637 = vunpack.c.l.b16 %v570
  %v638 = vunpack.c.h.b16 %v570
  %v639 = vunpack.c.l.b16 %v571
  %v640 = vunpack.c.h.b16 %v571
  %v641 = vunpack.c.l.b16 %v572
  %v642 = vunpack.c.h.b16 %v572
  %v643 = vunpack.c.l.b16 %v573
  %v644 = vunpack.c.h.b16 %v573
  %v645 = vunpack.c.l.b16 %v574
  %v646 = vunpack.c.h.b16 %v574
  %v647 = vpack.c.b16 %v599, %v599
  %v648 = vpack.c.b16 %v600, %v600
  %v649 = vpack.c.b16 %v601, %v601
  %v650 = vpack.c.b16 %v602, %v602
  %v651 = vpack.c.b16 %v603, %v603
  %v652 = vpack.c.b16 %v604, %v604
  %v653 = vpack.c.b16 %v605, %v605
  %v654 = vpack.c.b16 %v606, %v606
  %v655 = vpack.c.b16 %v607, %v607
  %v656 = vpack.c.b16 %v608, %v608
  %v657 = vpack.c.b16 %v609, %v609
  %v658 = vpack.c.b16 %v610, %v610
  %v659 = vpack.c.b16 %v611, %v611
  %v660 = vpack.c.b16 %v612, %v612
  %v661 = vpack.c.b16 %v613, %v613
  %v662 = vpack.c.b16 %v614, %v614
  %v663 = vpack.c.b16 %v615, %v615
  %v664 = vpack.c.b16 %v616, %v616
  %v665 = vpack.c.b16 %v617, %v617
  %v666 = vpack.c.b16 %v618, %v618
  %v667 = vpack.c.b16 %v619, %v619
  %v668 = vpack.c.b16 %v620, %v620
  %v669 = vpack.c.b16 %v621, %v621
  %v670 = vpack.c.b16 %v622, %v622
  %v671 = vpack.c.b16 %v623, %v623
  %v672 = vpack.c.b16 %v624, %v624
  %v673 = vpack.c.b16 %v625, %v625
  %v674 = vpack.c.b16 %v626, %v626
  %v675 = vpack.c.b16 %v627, %v627
  %v676 = vpack.c.b16 %v628, %v628
  %v677 = vpack.c.b16 %v629, %v629
  %v678 = vpack.c.b16 %v630, %v630
  %v679 = vpack.c.b16 %v631, %v631
  %v680 = vpack.c.b16 %v632, %v632
  %v681 = vpack.c.b16 %v633, %v633
  %v682 = vpack.c.b16 %v634, %v634
  %v683 = vpack.c.b16 %v635, %v635
  %v684 = vpack.c.b16 %v636, %v636
  %v685 = vpack.c.b16 %v637, %v637
  %v686 = vpack.c.b16 %v638, %v638
  %v687 = vpack.c.b16 %v639, %v639
  %v688 = vpack.c.b16 %v640, %v640
  %v689 = vpack.c.b16 %v641, %v641
  %v690 = vpack.c.b16 %v642, %v642
  %v691 = vpack.c.b16 %v643, %v643
  %v692 = vpack.c.b16 %v644, %v644
  %v693 = vpack.c.b16 %v645, %v645
  %v694 = vpack.c.b16 %v646, %v646
  %743 = vst [vmem:[%s3] sm:$0xf] %v647
  %744 = vst [vmem:[%s3 + $0x4] sm:$0xf] %v648
  %745 = vst [vmem:[%s3 + $0x8] sm:$0xf] %v649
  %746 = vst [vmem:[%s3 + $0xc] sm:$0xf] %v650
  %747 = vst [vmem:[%s3 + $0x10] sm:$0xf] %v651
  %748 = vst [vmem:[%s3 + $0x14] sm:$0xf] %v652
  %749 = vst [vmem:[%s3 + $0x18] sm:$0xf] %v653
  %750 = vst [vmem:[%s3 + $0x1c] sm:$0xf] %v654
  %751 = vst [vmem:[%s3 + $0x20] sm:$0xf] %v655
  %752 = vst [vmem:[%s3 + $0x24] sm:$0xf] %v656
  %753 = vst [vmem:[%s3 + $0x28] sm:$0xf] %v657
  %754 = vst [vmem:[%s3 + $0x2c] sm:$0xf] %v658
  %755 = vst [vmem:[%s3 + $0x30] sm:$0xf] %v659
  %756 = vst [vmem:[%s3 + $0x34] sm:$0xf] %v660
  %757 = vst [vmem:[%s3 + $0x38] sm:$0xf] %v661
  %758 = vst [vmem:[%s3 + $0x3c] sm:$0xf] %v662
  %759 = vst [vmem:[%s3 + $0x40] sm:$0xf] %v663
  %760 = vst [vmem:[%s3 + $0x44] sm:$0xf] %v664
  %761 = vst [vmem:[%s3 + $0x48] sm:$0xf] %v665
  %762 = vst [vmem:[%s3 + $0x4c] sm:$0xf] %v666
  %763 = vst [vmem:[%s3 + $0x50] sm:$0xf] %v667
  %764 = vst [vmem:[%s3 + $0x54] sm:$0xf] %v668
  %765 = vst [vmem:[%s3 + $0x58] sm:$0xf] %v669
  %766 = vst [vmem:[%s3 + $0x5c] sm:$0xf] %v670
  %767 = vst [vmem:[%s3 + $0x60] sm:$0xf] %v671
  %768 = vst [vmem:[%s3 + $0x64] sm:$0xf] %v672
  %769 = vst [vmem:[%s3 + $0x68] sm:$0xf] %v673
  %770 = vst [vmem:[%s3 + $0x6c] sm:$0xf] %v674
  %771 = vst [vmem:[%s3 + $0x70] sm:$0xf] %v675
  %772 = vst [vmem:[%s3 + $0x74] sm:$0xf] %v676
  %773 = vst [vmem:[%s3 + $0x78] sm:$0xf] %v677
  %774 = vst [vmem:[%s3 + $0x7c] sm:$0xf] %v678
  %775 = vst [vmem:[%s3 + $0x80] sm:$0xf] %v679
  %776 = vst [vmem:[%s3 + $0x84] sm:$0xf] %v680
  %777 = vst [vmem:[%s3 + $0x88] sm:$0xf] %v681
  %778 = vst [vmem:[%s3 + $0x8c] sm:$0xf] %v682
  %779 = vst [vmem:[%s3 + $0x90] sm:$0xf] %v683
  %780 = vst [vmem:[%s3 + $0x94] sm:$0xf] %v684
  %781 = vst [vmem:[%s3 + $0x98] sm:$0xf] %v685
  %782 = vst [vmem:[%s3 + $0x9c] sm:$0xf] %v686
  %783 = vst [vmem:[%s3 + $0xa0] sm:$0xf] %v687
  %784 = vst [vmem:[%s3 + $0xa4] sm:$0xf] %v688
  %785 = vst [vmem:[%s3 + $0xa8] sm:$0xf] %v689
  %786 = vst [vmem:[%s3 + $0xac] sm:$0xf] %v690
  %787 = vst [vmem:[%s3 + $0xb0] sm:$0xf] %v691
  %788 = vst [vmem:[%s3 + $0xb4] sm:$0xf] %v692
  %789 = vst [vmem:[%s3 + $0xb8] sm:$0xf] %v693
  %790 = vst [vmem:[%s3 + $0xbc] sm:$0xf] %v694
  // Predicated region
  $region14: #{triplet_net_forward.20} parent=0 // pred_check
    _
  $region15: #{triplet_net_forward.20} parent=0 // pred_check_branch
    %792 = sbr.rel (0) target = $region17
  $region16: #{triplet_net_forward.20} parent=0 // pred_region
    _
  $region17: #{triplet_net_forward.20} parent=0 // pred_fallthru
    _
  // Predicated region
  $region18: #{triplet_net_forward.20} parent=0 // pred_check
    _
  $region19: #{triplet_net_forward.20} parent=0 // pred_check_branch
    %794 = sbr.rel (0) target = $region21
  $region20: #{triplet_net_forward.20} parent=0 // pred_region
    _
  $region21: #{triplet_net_forward.20} parent=0 // pred_fallthru
    _

// kernel: triplet_net_forward.21
$region0: #{triplet_net_forward.21}
  #allocation0 [shape = 'u32[]', space=smem, size = 0x4, offset = 0x4, fixed_abs, tag = 'smem constant byte address 0x4 - core index']
  #allocation1 [shape = 'u32[144,128]{1,0:T(1,128)}', space=vmem, size = 0x12000, scoped, tag = 'internal scratch']
  %s0 = inlined_call_operand.vmem [shape: bf16[384,128], index: 0, kind: input, shape index: {}]
  %s1 = inlined_call_operand.vmem [shape: bf16[128,128], index: 1, kind: input, shape index: {}]
  %s2 = inlined_call_operand.vmem [shape: f32[1,128], index: 2, kind: input, shape index: {}]
  %s3 = inlined_call_operand.vmem [shape: bf16[384,128], index: 3, kind: input, shape index: {}]
  %s4 = inlined_call_operand.vmem [shape: bf16[384,128], index: 4, kind: output, shape index: {}]
  %s5 = sld [smem:[#allocation0]]
  $region26: #{triplet_net_forward.21} parent=0
    _
  %s7 = ssub.s32 1, %s5
  %s8 = scalar_select 0, %s7, %s5
  // Predicated region
  $region2: #{triplet_net_forward.21} parent=0 // pred_check
    _
  $region3: #{triplet_net_forward.21} parent=0 // pred_check_branch
    %10 = sbr.rel (0) target = $region5
  $region4: #{triplet_net_forward.21} parent=0 // pred_region
    _
  $region5: #{triplet_net_forward.21} parent=0 // pred_fallthru
    _
  // Predicated region
  $region6: #{triplet_net_forward.21} parent=0 // pred_check
    _
  $region7: #{triplet_net_forward.21} parent=0 // pred_check_branch
    %12 = sbr.rel (0) target = $region9
  $region8: #{triplet_net_forward.21} parent=0 // pred_region
    _
  $region9: #{triplet_net_forward.21} parent=0 // pred_fallthru
    _
  // Predicated region
  $region10: #{triplet_net_forward.21} parent=0 // pred_check
    _
  $region11: #{triplet_net_forward.21} parent=0 // pred_check_branch
    %14 = sbr.rel (0) target = $region13
  $region12: #{triplet_net_forward.21} parent=0 // pred_region
    _
  $region13: #{triplet_net_forward.21} parent=0 // pred_fallthru
    _
  // Predicated region
  $region14: #{triplet_net_forward.21} parent=0 // pred_check
    _
  $region15: #{triplet_net_forward.21} parent=0 // pred_check_branch
    %16 = sbr.rel (0) target = $region17
  $region16: #{triplet_net_forward.21} parent=0 // pred_region
    _
  $region17: #{triplet_net_forward.21} parent=0 // pred_fallthru
    _
  %v18 = vld [vmem:[%s0] sm:$0xf]
  %v19 = vld [vmem:[%s0 + $0x4] sm:$0xf]
  %v20 = vld [vmem:[%s0 + $0x8] sm:$0xf]
  %v21 = vld [vmem:[%s0 + $0xc] sm:$0xf]
  %v22 = vld [vmem:[%s0 + $0x10] sm:$0xf]
  %v23 = vld [vmem:[%s0 + $0x14] sm:$0xf]
  %v24 = vld [vmem:[%s0 + $0x18] sm:$0xf]
  %v25 = vld [vmem:[%s0 + $0x1c] sm:$0xf]
  %v26 = vld [vmem:[%s0 + $0x20] sm:$0xf]
  %v27 = vld [vmem:[%s0 + $0x24] sm:$0xf]
  %v28 = vld [vmem:[%s0 + $0x28] sm:$0xf]
  %v29 = vld [vmem:[%s0 + $0x2c] sm:$0xf]
  %v30 = vld [vmem:[%s0 + $0x30] sm:$0xf]
  %v31 = vld [vmem:[%s0 + $0x34] sm:$0xf]
  %v32 = vld [vmem:[%s0 + $0x38] sm:$0xf]
  %v33 = vld [vmem:[%s0 + $0x3c] sm:$0xf]
  %v34 = vld [vmem:[%s0 + $0x40] sm:$0xf]
  %v35 = vld [vmem:[%s0 + $0x44] sm:$0xf]
  %v36 = vld [vmem:[%s0 + $0x48] sm:$0xf]
  %v37 = vld [vmem:[%s0 + $0x4c] sm:$0xf]
  %v38 = vld [vmem:[%s0 + $0x50] sm:$0xf]
  %v39 = vld [vmem:[%s0 + $0x54] sm:$0xf]
  %v40 = vld [vmem:[%s0 + $0x58] sm:$0xf]
  %v41 = vld [vmem:[%s0 + $0x5c] sm:$0xf]
  %v42 = vld [vmem:[%s0 + $0x60] sm:$0xf]
  %v43 = vld [vmem:[%s0 + $0x64] sm:$0xf]
  %v44 = vld [vmem:[%s0 + $0x68] sm:$0xf]
  %v45 = vld [vmem:[%s0 + $0x6c] sm:$0xf]
  %v46 = vld [vmem:[%s0 + $0x70] sm:$0xf]
  %v47 = vld [vmem:[%s0 + $0x74] sm:$0xf]
  %v48 = vld [vmem:[%s0 + $0x78] sm:$0xf]
  %v49 = vld [vmem:[%s0 + $0x7c] sm:$0xf]
  %v50 = vld [vmem:[%s0 + $0x80] sm:$0xf]
  %v51 = vld [vmem:[%s0 + $0x84] sm:$0xf]
  %v52 = vld [vmem:[%s0 + $0x88] sm:$0xf]
  %v53 = vld [vmem:[%s0 + $0x8c] sm:$0xf]
  %v54 = vld [vmem:[%s0 + $0x90] sm:$0xf]
  %v55 = vld [vmem:[%s0 + $0x94] sm:$0xf]
  %v56 = vld [vmem:[%s0 + $0x98] sm:$0xf]
  %v57 = vld [vmem:[%s0 + $0x9c] sm:$0xf]
  %v58 = vld [vmem:[%s0 + $0xa0] sm:$0xf]
  %v59 = vld [vmem:[%s0 + $0xa4] sm:$0xf]
  %v60 = vld [vmem:[%s0 + $0xa8] sm:$0xf]
  %v61 = vld [vmem:[%s0 + $0xac] sm:$0xf]
  %v62 = vld [vmem:[%s0 + $0xb0] sm:$0xf]
  %v63 = vld [vmem:[%s0 + $0xb4] sm:$0xf]
  %v64 = vld [vmem:[%s0 + $0xb8] sm:$0xf]
  %v65 = vld [vmem:[%s0 + $0xbc] sm:$0xf]
  %v66 = vld [vmem:[%s1] sm:$0xf]
  %v67 = vld [vmem:[%s1 + $0x4] sm:$0xf]
  %v68 = vld [vmem:[%s1 + $0x8] sm:$0xf]
  %v69 = vld [vmem:[%s1 + $0xc] sm:$0xf]
  %v70 = vld [vmem:[%s1 + $0x10] sm:$0xf]
  %v71 = vld [vmem:[%s1 + $0x14] sm:$0xf]
  %v72 = vld [vmem:[%s1 + $0x18] sm:$0xf]
  %v73 = vld [vmem:[%s1 + $0x1c] sm:$0xf]
  %v74 = vld [vmem:[%s1 + $0x20] sm:$0xf]
  %v75 = vld [vmem:[%s1 + $0x24] sm:$0xf]
  %v76 = vld [vmem:[%s1 + $0x28] sm:$0xf]
  %v77 = vld [vmem:[%s1 + $0x2c] sm:$0xf]
  %v78 = vld [vmem:[%s1 + $0x30] sm:$0xf]
  %v79 = vld [vmem:[%s1 + $0x34] sm:$0xf]
  %v80 = vld [vmem:[%s1 + $0x38] sm:$0xf]
  %v81 = vld [vmem:[%s1 + $0x3c] sm:$0xf]
  %v82 = vld [vmem:[%s2] sm:$0x1]
  %v84 = vlaneseq
  %v85 = vshrl.u32 %v84, 7
  %v86 = vsub.s32 0, %v85
  %v87 = vrot.slane %v82, %v86
  %v137 = vunpack.c.l.b16 %v18
  %v138 = vunpack.c.l.b16 %v19
  %v139 = vunpack.c.l.b16 %v20
  %v140 = vunpack.c.l.b16 %v21
  %v141 = vunpack.c.l.b16 %v22
  %v142 = vunpack.c.l.b16 %v23
  %v143 = vunpack.c.l.b16 %v24
  %v144 = vunpack.c.l.b16 %v25
  %v145 = vunpack.c.l.b16 %v26
  %v146 = vunpack.c.l.b16 %v27
  %v147 = vunpack.c.l.b16 %v28
  %v148 = vunpack.c.l.b16 %v29
  %v149 = vunpack.c.l.b16 %v30
  %v150 = vunpack.c.l.b16 %v31
  %v151 = vunpack.c.l.b16 %v32
  %v152 = vunpack.c.l.b16 %v33
  %v153 = vunpack.c.l.b16 %v34
  %v154 = vunpack.c.l.b16 %v35
  %v155 = vunpack.c.l.b16 %v36
  %v156 = vunpack.c.l.b16 %v37
  %v157 = vunpack.c.l.b16 %v38
  %v158 = vunpack.c.l.b16 %v39
  %v159 = vunpack.c.l.b16 %v40
  %v160 = vunpack.c.l.b16 %v41
  %v161 = vunpack.c.l.b16 %v42
  %v162 = vunpack.c.l.b16 %v43
  %v163 = vunpack.c.l.b16 %v44
  %v164 = vunpack.c.l.b16 %v45
  %v165 = vunpack.c.l.b16 %v46
  %v166 = vunpack.c.l.b16 %v47
  %v167 = vunpack.c.l.b16 %v48
  %v168 = vunpack.c.l.b16 %v49
  %v169 = vunpack.c.l.b16 %v50
  %v170 = vunpack.c.l.b16 %v51
  %v171 = vunpack.c.l.b16 %v52
  %v172 = vunpack.c.l.b16 %v53
  %v173 = vunpack.c.l.b16 %v54
  %v174 = vunpack.c.l.b16 %v55
  %v175 = vunpack.c.l.b16 %v56
  %v176 = vunpack.c.l.b16 %v57
  %v177 = vunpack.c.l.b16 %v58
  %v178 = vunpack.c.l.b16 %v59
  %v179 = vunpack.c.l.b16 %v60
  %v180 = vunpack.c.l.b16 %v61
  %v181 = vunpack.c.l.b16 %v62
  %v182 = vunpack.c.l.b16 %v63
  %v183 = vunpack.c.l.b16 %v64
  %v184 = vunpack.c.l.b16 %v65
  %v185 = vpack.c.b16 %v138, %v137
  %v186 = vpack.c.b16 %v140, %v139
  %v187 = vpack.c.b16 %v142, %v141
  %v188 = vpack.c.b16 %v144, %v143
  %v189 = vpack.c.b16 %v146, %v145
  %v190 = vpack.c.b16 %v148, %v147
  %v191 = vpack.c.b16 %v150, %v149
  %v192 = vpack.c.b16 %v152, %v151
  %v193 = vpack.c.b16 %v154, %v153
  %v194 = vpack.c.b16 %v156, %v155
  %v195 = vpack.c.b16 %v158, %v157
  %v196 = vpack.c.b16 %v160, %v159
  %v197 = vpack.c.b16 %v162, %v161
  %v198 = vpack.c.b16 %v164, %v163
  %v199 = vpack.c.b16 %v166, %v165
  %v200 = vpack.c.b16 %v168, %v167
  %v201 = vpack.c.b16 %v170, %v169
  %v202 = vpack.c.b16 %v172, %v171
  %v203 = vpack.c.b16 %v174, %v173
  %v204 = vpack.c.b16 %v176, %v175
  %v205 = vpack.c.b16 %v178, %v177
  %v206 = vpack.c.b16 %v180, %v179
  %v207 = vpack.c.b16 %v182, %v181
  %v208 = vpack.c.b16 %v184, %v183
  %v249 = vunpack.c.l.b16 %v66
  %v250 = vunpack.c.l.b16 %v67
  %v251 = vunpack.c.l.b16 %v68
  %v252 = vunpack.c.l.b16 %v69
  %v253 = vunpack.c.l.b16 %v70
  %v254 = vunpack.c.l.b16 %v71
  %v255 = vunpack.c.l.b16 %v72
  %v256 = vunpack.c.l.b16 %v73
  %v257 = vunpack.c.l.b16 %v74
  %v258 = vunpack.c.l.b16 %v75
  %v259 = vunpack.c.l.b16 %v76
  %v260 = vunpack.c.l.b16 %v77
  %v261 = vunpack.c.l.b16 %v78
  %v262 = vunpack.c.l.b16 %v79
  %v263 = vunpack.c.l.b16 %v80
  %v264 = vunpack.c.l.b16 %v81
  %v265 = vpack.c.b16 %v250, %v249
  %v266 = vpack.c.b16 %v252, %v251
  %v267 = vpack.c.b16 %v254, %v253
  %v268 = vpack.c.b16 %v256, %v255
  %v269 = vpack.c.b16 %v258, %v257
  %v270 = vpack.c.b16 %v260, %v259
  %v271 = vpack.c.b16 %v262, %v261
  %v272 = vpack.c.b16 %v264, %v263
  %281 = vmatprep.subr.bf16.mxu0 0
  %282 = vmatpush1.bf16.msra.mxu0 %v265
  %283 = vmatprep.subr.bf16.mxu0 0
  %284 = vmatpush1.bf16.msra.mxu0 %v266
  %285 = vmatprep.subr.bf16.mxu0 0
  %286 = vmatpush1.bf16.msra.mxu0 %v267
  %287 = vmatprep.subr.bf16.mxu0 0
  %288 = vmatpush1.bf16.msra.mxu0 %v268
  %289 = vmatprep.subr.bf16.mxu0 0
  %290 = vmatpush1.bf16.msra.mxu0 %v269
  %291 = vmatprep.subr.bf16.mxu0 0
  %292 = vmatpush1.bf16.msra.mxu0 %v270
  %293 = vmatprep.subr.bf16.mxu0 0
  %294 = vmatpush1.bf16.msra.mxu0 %v271
  %295 = vmatprep.subr.bf16.mxu0 0
  %296 = vmatpush1.bf16.msra.mxu0 %v272
  %297 = vmatprep.subr.bf16.mxu0 0
  %298 = vmatpush1.bf16.msra.mxu0 0
  %299 = vmatprep.subr.bf16.mxu0 0
  %300 = vmatpush1.bf16.msra.mxu0 0
  %301 = vmatprep.subr.bf16.mxu0 0
  %302 = vmatpush1.bf16.msra.mxu0 0
  %303 = vmatprep.subr.bf16.mxu0 0
  %304 = vmatpush1.bf16.msra.mxu0 0
  %305 = vmatprep.subr.bf16.mxu0 0
  %306 = vmatpush1.bf16.msra.mxu0 0
  %307 = vmatprep.subr.bf16.mxu0 0
  %308 = vmatpush1.bf16.msra.mxu0 0
  %309 = vmatprep.subr.bf16.mxu0 0
  %310 = vmatpush1.bf16.msra.mxu0 0
  %311 = vmatprep.subr.bf16.mxu0 0
  %312 = vmatpush1.bf16.msra.mxu0 0
  %313 = vmatprep.mubr.bf16.mxu0 0
  %314 = vmatmul.mubr.bf16.gmra.mrb[0].mxu0 %v185
  %v315 = vpop.f32.mrb[0].mxu0
  %v316 = vadd.f32 %v87, %v315
  %v317 = vpop.f32.mrb[0].mxu0
  %v318 = vpop.f32.mrb[0].mxu0
  %v319 = vadd.f32 %v87, %v318
  %v320 = vpop.f32.mrb[0].mxu0
  %321 = vmatprep.mubr.bf16.mxu0 0
  %322 = vmatmul.mubr.bf16.gmra.mrb[0].mxu0 %v186
  %v323 = vpop.f32.mrb[0].mxu0
  %v324 = vadd.f32 %v87, %v323
  %v325 = vpop.f32.mrb[0].mxu0
  %v326 = vpop.f32.mrb[0].mxu0
  %v327 = vadd.f32 %v87, %v326
  %v328 = vpop.f32.mrb[0].mxu0
  %329 = vmatprep.mubr.bf16.mxu0 0
  %330 = vmatmul.mubr.bf16.gmra.mrb[0].mxu0 %v187
  %v331 = vpop.f32.mrb[0].mxu0
  %v332 = vadd.f32 %v87, %v331
  %v333 = vpop.f32.mrb[0].mxu0
  %v334 = vpop.f32.mrb[0].mxu0
  %v335 = vadd.f32 %v87, %v334
  %v336 = vpop.f32.mrb[0].mxu0
  %337 = vmatprep.mubr.bf16.mxu0 0
  %338 = vmatmul.mubr.bf16.gmra.mrb[0].mxu0 %v188
  %v339 = vpop.f32.mrb[0].mxu0
  %v340 = vadd.f32 %v87, %v339
  %v341 = vpop.f32.mrb[0].mxu0
  %v342 = vpop.f32.mrb[0].mxu0
  %v343 = vadd.f32 %v87, %v342
  %v344 = vpop.f32.mrb[0].mxu0
  %345 = vmatprep.mubr.bf16.mxu0 0
  %346 = vmatmul.mubr.bf16.gmra.mrb[0].mxu0 %v189
  %v347 = vpop.f32.mrb[0].mxu0
  %v348 = vadd.f32 %v87, %v347
  %v349 = vpop.f32.mrb[0].mxu0
  %v350 = vpop.f32.mrb[0].mxu0
  %v351 = vadd.f32 %v87, %v350
  %v352 = vpop.f32.mrb[0].mxu0
  %353 = vmatprep.mubr.bf16.mxu0 0
  %354 = vmatmul.mubr.bf16.gmra.mrb[0].mxu0 %v190
  %v355 = vpop.f32.mrb[0].mxu0
  %v356 = vadd.f32 %v87, %v355
  %v357 = vpop.f32.mrb[0].mxu0
  %v358 = vpop.f32.mrb[0].mxu0
  %v359 = vadd.f32 %v87, %v358
  %v360 = vpop.f32.mrb[0].mxu0
  %361 = vmatprep.mubr.bf16.mxu0 0
  %362 = vmatmul.mubr.bf16.gmra.mrb[0].mxu0 %v191
  %v363 = vpop.f32.mrb[0].mxu0
  %v364 = vadd.f32 %v87, %v363
  %v365 = vpop.f32.mrb[0].mxu0
  %v366 = vpop.f32.mrb[0].mxu0
  %v367 = vadd.f32 %v87, %v366
  %v368 = vpop.f32.mrb[0].mxu0
  %369 = vmatprep.mubr.bf16.mxu0 0
  %370 = vmatmul.mubr.bf16.gmra.mrb[0].mxu0 %v192
  %v371 = vpop.f32.mrb[0].mxu0
  %v372 = vadd.f32 %v87, %v371
  %v373 = vpop.f32.mrb[0].mxu0
  %v374 = vpop.f32.mrb[0].mxu0
  %v375 = vadd.f32 %v87, %v374
  %v376 = vpop.f32.mrb[0].mxu0
  %377 = vmatprep.mubr.bf16.mxu0 0
  %378 = vmatmul.mubr.bf16.gmra.mrb[0].mxu0 %v193
  %v379 = vpop.f32.mrb[0].mxu0
  %v380 = vadd.f32 %v87, %v379
  %v381 = vpop.f32.mrb[0].mxu0
  %v382 = vpop.f32.mrb[0].mxu0
  %v383 = vadd.f32 %v87, %v382
  %v384 = vpop.f32.mrb[0].mxu0
  %385 = vmatprep.mubr.bf16.mxu0 0
  %386 = vmatmul.mubr.bf16.gmra.mrb[0].mxu0 %v194
  %v387 = vpop.f32.mrb[0].mxu0
  %v388 = vadd.f32 %v87, %v387
  %v389 = vpop.f32.mrb[0].mxu0
  %v390 = vpop.f32.mrb[0].mxu0
  %v391 = vadd.f32 %v87, %v390
  %v392 = vpop.f32.mrb[0].mxu0
  %393 = vmatprep.mubr.bf16.mxu0 0
  %394 = vmatmul.mubr.bf16.gmra.mrb[0].mxu0 %v195
  %v395 = vpop.f32.mrb[0].mxu0
  %v396 = vadd.f32 %v87, %v395
  %v397 = vpop.f32.mrb[0].mxu0
  %v398 = vpop.f32.mrb[0].mxu0
  %v399 = vadd.f32 %v87, %v398
  %v400 = vpop.f32.mrb[0].mxu0
  %401 = vmatprep.mubr.bf16.mxu0 0
  %402 = vmatmul.mubr.bf16.gmra.mrb[0].mxu0 %v196
  %v403 = vpop.f32.mrb[0].mxu0
  %v404 = vadd.f32 %v87, %v403
  %v405 = vpop.f32.mrb[0].mxu0
  %v406 = vpop.f32.mrb[0].mxu0
  %v407 = vadd.f32 %v87, %v406
  %v408 = vpop.f32.mrb[0].mxu0
  %409 = vmatprep.mubr.bf16.mxu0 0
  %410 = vmatmul.mubr.bf16.gmra.mrb[0].mxu0 %v197
  %v411 = vpop.f32.mrb[0].mxu0
  %v412 = vadd.f32 %v87, %v411
  %v413 = vpop.f32.mrb[0].mxu0
  %v414 = vpop.f32.mrb[0].mxu0
  %v415 = vadd.f32 %v87, %v414
  %v416 = vpop.f32.mrb[0].mxu0
  %417 = vmatprep.mubr.bf16.mxu0 0
  %418 = vmatmul.mubr.bf16.gmra.mrb[0].mxu0 %v198
  %v419 = vpop.f32.mrb[0].mxu0
  %v420 = vadd.f32 %v87, %v419
  %v421 = vpop.f32.mrb[0].mxu0
  %v422 = vpop.f32.mrb[0].mxu0
  %v423 = vadd.f32 %v87, %v422
  %v424 = vpop.f32.mrb[0].mxu0
  %425 = vmatprep.mubr.bf16.mxu0 0
  %426 = vmatmul.mubr.bf16.gmra.mrb[0].mxu0 %v199
  %v427 = vpop.f32.mrb[0].mxu0
  %v428 = vadd.f32 %v87, %v427
  %v429 = vpop.f32.mrb[0].mxu0
  %v430 = vpop.f32.mrb[0].mxu0
  %v431 = vadd.f32 %v87, %v430
  %v432 = vpop.f32.mrb[0].mxu0
  %433 = vmatprep.mubr.bf16.mxu0 0
  %434 = vmatmul.mubr.bf16.gmra.mrb[0].mxu0 %v200
  %v435 = vpop.f32.mrb[0].mxu0
  %v436 = vadd.f32 %v87, %v435
  %v437 = vpop.f32.mrb[0].mxu0
  %v438 = vpop.f32.mrb[0].mxu0
  %v439 = vadd.f32 %v87, %v438
  %v440 = vpop.f32.mrb[0].mxu0
  %441 = vmatprep.mubr.bf16.mxu0 0
  %442 = vmatmul.mubr.bf16.gmra.mrb[0].mxu0 %v201
  %v443 = vpop.f32.mrb[0].mxu0
  %v444 = vadd.f32 %v87, %v443
  %v445 = vpop.f32.mrb[0].mxu0
  %v446 = vpop.f32.mrb[0].mxu0
  %v447 = vadd.f32 %v87, %v446
  %v448 = vpop.f32.mrb[0].mxu0
  %449 = vmatprep.mubr.bf16.mxu0 0
  %450 = vmatmul.mubr.bf16.gmra.mrb[0].mxu0 %v202
  %v451 = vpop.f32.mrb[0].mxu0
  %v452 = vadd.f32 %v87, %v451
  %v453 = vpop.f32.mrb[0].mxu0
  %v454 = vpop.f32.mrb[0].mxu0
  %v455 = vadd.f32 %v87, %v454
  %v456 = vpop.f32.mrb[0].mxu0
  %457 = vmatprep.mubr.bf16.mxu0 0
  %458 = vmatmul.mubr.bf16.gmra.mrb[0].mxu0 %v203
  %v459 = vpop.f32.mrb[0].mxu0
  %v460 = vadd.f32 %v87, %v459
  %v461 = vpop.f32.mrb[0].mxu0
  %v462 = vpop.f32.mrb[0].mxu0
  %v463 = vadd.f32 %v87, %v462
  %v464 = vpop.f32.mrb[0].mxu0
  %465 = vmatprep.mubr.bf16.mxu0 0
  %466 = vmatmul.mubr.bf16.gmra.mrb[0].mxu0 %v204
  %v467 = vpop.f32.mrb[0].mxu0
  %v468 = vadd.f32 %v87, %v467
  %v469 = vpop.f32.mrb[0].mxu0
  %v470 = vpop.f32.mrb[0].mxu0
  %v471 = vadd.f32 %v87, %v470
  %v472 = vpop.f32.mrb[0].mxu0
  %473 = vmatprep.mubr.bf16.mxu0 0
  %474 = vmatmul.mubr.bf16.gmra.mrb[0].mxu0 %v205
  %v475 = vpop.f32.mrb[0].mxu0
  %v476 = vadd.f32 %v87, %v475
  %v477 = vpop.f32.mrb[0].mxu0
  %v478 = vpop.f32.mrb[0].mxu0
  %v479 = vadd.f32 %v87, %v478
  %v480 = vpop.f32.mrb[0].mxu0
  %481 = vmatprep.mubr.bf16.mxu0 0
  %482 = vmatmul.mubr.bf16.gmra.mrb[0].mxu0 %v206
  %v483 = vpop.f32.mrb[0].mxu0
  %v484 = vadd.f32 %v87, %v483
  %v485 = vpop.f32.mrb[0].mxu0
  %v486 = vpop.f32.mrb[0].mxu0
  %v487 = vadd.f32 %v87, %v486
  %v488 = vpop.f32.mrb[0].mxu0
  %489 = vmatprep.mubr.bf16.mxu0 0
  %490 = vmatmul.mubr.bf16.gmra.mrb[0].mxu0 %v207
  %v491 = vpop.f32.mrb[0].mxu0
  %v492 = vadd.f32 %v87, %v491
  %v493 = vpop.f32.mrb[0].mxu0
  %v494 = vpop.f32.mrb[0].mxu0
  %v495 = vadd.f32 %v87, %v494
  %v496 = vpop.f32.mrb[0].mxu0
  %497 = vmatprep.mubr.bf16.mxu0 0
  %498 = vmatmul.mubr.bf16.gmra.mrb[0].mxu0 %v208
  %v499 = vpop.f32.mrb[0].mxu0
  %v500 = vadd.f32 %v87, %v499
  %v501 = vpop.f32.mrb[0].mxu0
  %v502 = vpop.f32.mrb[0].mxu0
  %v503 = vadd.f32 %v87, %v502
  %v504 = vpop.f32.mrb[0].mxu0
  %505 = vdwg.mxu0
  %v506 = vld [vmem:[%s3] sm:$0xf]
  %v507 = vld [vmem:[%s3 + $0x4] sm:$0xf]
  %v508 = vld [vmem:[%s3 + $0x8] sm:$0xf]
  %v509 = vld [vmem:[%s3 + $0xc] sm:$0xf]
  %v510 = vld [vmem:[%s3 + $0x10] sm:$0xf]
  %v511 = vld [vmem:[%s3 + $0x14] sm:$0xf]
  %v512 = vld [vmem:[%s3 + $0x18] sm:$0xf]
  %v513 = vld [vmem:[%s3 + $0x1c] sm:$0xf]
  %v514 = vld [vmem:[%s3 + $0x20] sm:$0xf]
  %v515 = vld [vmem:[%s3 + $0x24] sm:$0xf]
  %v516 = vld [vmem:[%s3 + $0x28] sm:$0xf]
  %v517 = vld [vmem:[%s3 + $0x2c] sm:$0xf]
  %v518 = vld [vmem:[%s3 + $0x30] sm:$0xf]
  %v519 = vld [vmem:[%s3 + $0x34] sm:$0xf]
  %v520 = vld [vmem:[%s3 + $0x38] sm:$0xf]
  %v521 = vld [vmem:[%s3 + $0x3c] sm:$0xf]
  %v522 = vld [vmem:[%s3 + $0x40] sm:$0xf]
  %v523 = vld [vmem:[%s3 + $0x44] sm:$0xf]
  %v524 = vld [vmem:[%s3 + $0x48] sm:$0xf]
  %v525 = vld [vmem:[%s3 + $0x4c] sm:$0xf]
  %v526 = vld [vmem:[%s3 + $0x50] sm:$0xf]
  %v527 = vld [vmem:[%s3 + $0x54] sm:$0xf]
  %v528 = vld [vmem:[%s3 + $0x58] sm:$0xf]
  %v529 = vld [vmem:[%s3 + $0x5c] sm:$0xf]
  %v530 = vld [vmem:[%s3 + $0x60] sm:$0xf]
  %v531 = vld [vmem:[%s3 + $0x64] sm:$0xf]
  %v532 = vld [vmem:[%s3 + $0x68] sm:$0xf]
  %v533 = vld [vmem:[%s3 + $0x6c] sm:$0xf]
  %v534 = vld [vmem:[%s3 + $0x70] sm:$0xf]
  %v535 = vld [vmem:[%s3 + $0x74] sm:$0xf]
  %v536 = vld [vmem:[%s3 + $0x78] sm:$0xf]
  %v537 = vld [vmem:[%s3 + $0x7c] sm:$0xf]
  %v538 = vld [vmem:[%s3 + $0x80] sm:$0xf]
  %v539 = vld [vmem:[%s3 + $0x84] sm:$0xf]
  %v540 = vld [vmem:[%s3 + $0x88] sm:$0xf]
  %v541 = vld [vmem:[%s3 + $0x8c] sm:$0xf]
  %v542 = vld [vmem:[%s3 + $0x90] sm:$0xf]
  %v543 = vld [vmem:[%s3 + $0x94] sm:$0xf]
  %v544 = vld [vmem:[%s3 + $0x98] sm:$0xf]
  %v545 = vld [vmem:[%s3 + $0x9c] sm:$0xf]
  %v546 = vld [vmem:[%s3 + $0xa0] sm:$0xf]
  %v547 = vld [vmem:[%s3 + $0xa4] sm:$0xf]
  %v548 = vld [vmem:[%s3 + $0xa8] sm:$0xf]
  %v549 = vld [vmem:[%s3 + $0xac] sm:$0xf]
  %v550 = vld [vmem:[%s3 + $0xb0] sm:$0xf]
  %v551 = vld [vmem:[%s3 + $0xb4] sm:$0xf]
  %v552 = vld [vmem:[%s3 + $0xb8] sm:$0xf]
  %v553 = vld [vmem:[%s3 + $0xbc] sm:$0xf]
  %v554 = vunpack.c.l.bf16 %v506
  %v555 = vunpack.c.l.bf16 %v507
  %v556 = vunpack.c.l.bf16 %v508
  %v557 = vunpack.c.l.bf16 %v509
  %v558 = vunpack.c.l.bf16 %v510
  %v559 = vunpack.c.l.bf16 %v511
  %v560 = vunpack.c.l.bf16 %v512
  %v561 = vunpack.c.l.bf16 %v513
  %v562 = vunpack.c.l.bf16 %v514
  %v563 = vunpack.c.l.bf16 %v515
  %v564 = vunpack.c.l.bf16 %v516
  %v565 = vunpack.c.l.bf16 %v517
  %v566 = vunpack.c.l.bf16 %v518
  %v567 = vunpack.c.l.bf16 %v519
  %v568 = vunpack.c.l.bf16 %v520
  %v569 = vunpack.c.l.bf16 %v521
  %v570 = vunpack.c.l.bf16 %v522
  %v571 = vunpack.c.l.bf16 %v523
  %v572 = vunpack.c.l.bf16 %v524
  %v573 = vunpack.c.l.bf16 %v525
  %v574 = vunpack.c.l.bf16 %v526
  %v575 = vunpack.c.l.bf16 %v527
  %v576 = vunpack.c.l.bf16 %v528
  %v577 = vunpack.c.l.bf16 %v529
  %v578 = vunpack.c.l.bf16 %v530
  %v579 = vunpack.c.l.bf16 %v531
  %v580 = vunpack.c.l.bf16 %v532
  %v581 = vunpack.c.l.bf16 %v533
  %v582 = vunpack.c.l.bf16 %v534
  %v583 = vunpack.c.l.bf16 %v535
  %v584 = vunpack.c.l.bf16 %v536
  %v585 = vunpack.c.l.bf16 %v537
  %v586 = vunpack.c.l.bf16 %v538
  %v587 = vunpack.c.l.bf16 %v539
  %v588 = vunpack.c.l.bf16 %v540
  %v589 = vunpack.c.l.bf16 %v541
  %v590 = vunpack.c.l.bf16 %v542
  %v591 = vunpack.c.l.bf16 %v543
  %v592 = vunpack.c.l.bf16 %v544
  %v593 = vunpack.c.l.bf16 %v545
  %v594 = vunpack.c.l.bf16 %v546
  %v595 = vunpack.c.l.bf16 %v547
  %v596 = vunpack.c.l.bf16 %v548
  %v597 = vunpack.c.l.bf16 %v549
  %v598 = vunpack.c.l.bf16 %v550
  %v599 = vunpack.c.l.bf16 %v551
  %v600 = vunpack.c.l.bf16 %v552
  %v601 = vunpack.c.l.bf16 %v553
  %v602 = vadd.f32 %v316, %v554
  %v603 = vadd.f32 %v319, %v555
  %v604 = vadd.f32 %v324, %v556
  %v605 = vadd.f32 %v327, %v557
  %v606 = vadd.f32 %v332, %v558
  %v607 = vadd.f32 %v335, %v559
  %v608 = vadd.f32 %v340, %v560
  %v609 = vadd.f32 %v343, %v561
  %v610 = vadd.f32 %v348, %v562
  %v611 = vadd.f32 %v351, %v563
  %v612 = vadd.f32 %v356, %v564
  %v613 = vadd.f32 %v359, %v565
  %v614 = vadd.f32 %v364, %v566
  %v615 = vadd.f32 %v367, %v567
  %v616 = vadd.f32 %v372, %v568
  %v617 = vadd.f32 %v375, %v569
  %v618 = vadd.f32 %v380, %v570
  %v619 = vadd.f32 %v383, %v571
  %v620 = vadd.f32 %v388, %v572
  %v621 = vadd.f32 %v391, %v573
  %v622 = vadd.f32 %v396, %v574
  %v623 = vadd.f32 %v399, %v575
  %v624 = vadd.f32 %v404, %v576
  %v625 = vadd.f32 %v407, %v577
  %v626 = vadd.f32 %v412, %v578
  %v627 = vadd.f32 %v415, %v579
  %v628 = vadd.f32 %v420, %v580
  %v629 = vadd.f32 %v423, %v581
  %v630 = vadd.f32 %v428, %v582
  %v631 = vadd.f32 %v431, %v583
  %v632 = vadd.f32 %v436, %v584
  %v633 = vadd.f32 %v439, %v585
  %v634 = vadd.f32 %v444, %v586
  %v635 = vadd.f32 %v447, %v587
  %v636 = vadd.f32 %v452, %v588
  %v637 = vadd.f32 %v455, %v589
  %v638 = vadd.f32 %v460, %v590
  %v639 = vadd.f32 %v463, %v591
  %v640 = vadd.f32 %v468, %v592
  %v641 = vadd.f32 %v471, %v593
  %v642 = vadd.f32 %v476, %v594
  %v643 = vadd.f32 %v479, %v595
  %v644 = vadd.f32 %v484, %v596
  %v645 = vadd.f32 %v487, %v597
  %v646 = vadd.f32 %v492, %v598
  %v647 = vadd.f32 %v495, %v599
  %v648 = vadd.f32 %v500, %v600
  %v649 = vadd.f32 %v503, %v601
  %v650 = vmax.f32 %v602, 0.0
  %v651 = vmax.f32 %v603, 0.0
  %v652 = vmax.f32 %v604, 0.0
  %v653 = vmax.f32 %v605, 0.0
  %v654 = vmax.f32 %v606, 0.0
  %v655 = vmax.f32 %v607, 0.0
  %v656 = vmax.f32 %v608, 0.0
  %v657 = vmax.f32 %v609, 0.0
  %v658 = vmax.f32 %v610, 0.0
  %v659 = vmax.f32 %v611, 0.0
  %v660 = vmax.f32 %v612, 0.0
  %v661 = vmax.f32 %v613, 0.0
  %v662 = vmax.f32 %v614, 0.0
  %v663 = vmax.f32 %v615, 0.0
  %v664 = vmax.f32 %v616, 0.0
  %v665 = vmax.f32 %v617, 0.0
  %v666 = vmax.f32 %v618, 0.0
  %v667 = vmax.f32 %v619, 0.0
  %v668 = vmax.f32 %v620, 0.0
  %v669 = vmax.f32 %v621, 0.0
  %v670 = vmax.f32 %v622, 0.0
  %v671 = vmax.f32 %v623, 0.0
  %v672 = vmax.f32 %v624, 0.0
  %v673 = vmax.f32 %v625, 0.0
  %v674 = vmax.f32 %v626, 0.0
  %v675 = vmax.f32 %v627, 0.0
  %v676 = vmax.f32 %v628, 0.0
  %v677 = vmax.f32 %v629, 0.0
  %v678 = vmax.f32 %v630, 0.0
  %v679 = vmax.f32 %v631, 0.0
  %v680 = vmax.f32 %v632, 0.0
  %v681 = vmax.f32 %v633, 0.0
  %v682 = vmax.f32 %v634, 0.0
  %v683 = vmax.f32 %v635, 0.0
  %v684 = vmax.f32 %v636, 0.0
  %v685 = vmax.f32 %v637, 0.0
  %v686 = vmax.f32 %v638, 0.0
  %v687 = vmax.f32 %v639, 0.0
  %v688 = vmax.f32 %v640, 0.0
  %v689 = vmax.f32 %v641, 0.0
  %v690 = vmax.f32 %v642, 0.0
  %v691 = vmax.f32 %v643, 0.0
  %v692 = vmax.f32 %v644, 0.0
  %v693 = vmax.f32 %v645, 0.0
  %v694 = vmax.f32 %v646, 0.0
  %v695 = vmax.f32 %v647, 0.0
  %v696 = vmax.f32 %v648, 0.0
  %v697 = vmax.f32 %v649, 0.0
  %v698 = vpack.c.bf16 %v651, %v650
  %v699 = vpack.c.bf16 %v653, %v652
  %v700 = vpack.c.bf16 %v655, %v654
  %v701 = vpack.c.bf16 %v657, %v656
  %v702 = vpack.c.bf16 %v659, %v658
  %v703 = vpack.c.bf16 %v661, %v660
  %v704 = vpack.c.bf16 %v663, %v662
  %v705 = vpack.c.bf16 %v665, %v664
  %v706 = vpack.c.bf16 %v667, %v666
  %v707 = vpack.c.bf16 %v669, %v668
  %v708 = vpack.c.bf16 %v671, %v670
  %v709 = vpack.c.bf16 %v673, %v672
  %v710 = vpack.c.bf16 %v675, %v674
  %v711 = vpack.c.bf16 %v677, %v676
  %v712 = vpack.c.bf16 %v679, %v678
  %v713 = vpack.c.bf16 %v681, %v680
  %v714 = vpack.c.bf16 %v683, %v682
  %v715 = vpack.c.bf16 %v685, %v684
  %v716 = vpack.c.bf16 %v687, %v686
  %v717 = vpack.c.bf16 %v689, %v688
  %v718 = vpack.c.bf16 %v691, %v690
  %v719 = vpack.c.bf16 %v693, %v692
  %v720 = vpack.c.bf16 %v695, %v694
  %v721 = vpack.c.bf16 %v697, %v696
  %v746 = vunpack.c.l.b16 %v698
  %v747 = vunpack.c.h.b16 %v698
  %v748 = vunpack.c.l.b16 %v699
  %v749 = vunpack.c.h.b16 %v699
  %v750 = vunpack.c.l.b16 %v700
  %v751 = vunpack.c.h.b16 %v700
  %v752 = vunpack.c.l.b16 %v701
  %v753 = vunpack.c.h.b16 %v701
  %v754 = vunpack.c.l.b16 %v702
  %v755 = vunpack.c.h.b16 %v702
  %v756 = vunpack.c.l.b16 %v703
  %v757 = vunpack.c.h.b16 %v703
  %v758 = vunpack.c.l.b16 %v704
  %v759 = vunpack.c.h.b16 %v704
  %v760 = vunpack.c.l.b16 %v705
  %v761 = vunpack.c.h.b16 %v705
  %v762 = vunpack.c.l.b16 %v706
  %v763 = vunpack.c.h.b16 %v706
  %v764 = vunpack.c.l.b16 %v707
  %v765 = vunpack.c.h.b16 %v707
  %v766 = vunpack.c.l.b16 %v708
  %v767 = vunpack.c.h.b16 %v708
  %v768 = vunpack.c.l.b16 %v709
  %v769 = vunpack.c.h.b16 %v709
  %v770 = vunpack.c.l.b16 %v710
  %v771 = vunpack.c.h.b16 %v710
  %v772 = vunpack.c.l.b16 %v711
  %v773 = vunpack.c.h.b16 %v711
  %v774 = vunpack.c.l.b16 %v712
  %v775 = vunpack.c.h.b16 %v712
  %v776 = vunpack.c.l.b16 %v713
  %v777 = vunpack.c.h.b16 %v713
  %v778 = vunpack.c.l.b16 %v714
  %v779 = vunpack.c.h.b16 %v714
  %v780 = vunpack.c.l.b16 %v715
  %v781 = vunpack.c.h.b16 %v715
  %v782 = vunpack.c.l.b16 %v716
  %v783 = vunpack.c.h.b16 %v716
  %v784 = vunpack.c.l.b16 %v717
  %v785 = vunpack.c.h.b16 %v717
  %v786 = vunpack.c.l.b16 %v718
  %v787 = vunpack.c.h.b16 %v718
  %v788 = vunpack.c.l.b16 %v719
  %v789 = vunpack.c.h.b16 %v719
  %v790 = vunpack.c.l.b16 %v720
  %v791 = vunpack.c.h.b16 %v720
  %v792 = vunpack.c.l.b16 %v721
  %v793 = vunpack.c.h.b16 %v721
  %v794 = vpack.c.b16 %v746, %v746
  %v795 = vpack.c.b16 %v747, %v747
  %v796 = vpack.c.b16 %v748, %v748
  %v797 = vpack.c.b16 %v749, %v749
  %v798 = vpack.c.b16 %v750, %v750
  %v799 = vpack.c.b16 %v751, %v751
  %v800 = vpack.c.b16 %v752, %v752
  %v801 = vpack.c.b16 %v753, %v753
  %v802 = vpack.c.b16 %v754, %v754
  %v803 = vpack.c.b16 %v755, %v755
  %v804 = vpack.c.b16 %v756, %v756
  %v805 = vpack.c.b16 %v757, %v757
  %v806 = vpack.c.b16 %v758, %v758
  %v807 = vpack.c.b16 %v759, %v759
  %v808 = vpack.c.b16 %v760, %v760
  %v809 = vpack.c.b16 %v761, %v761
  %v810 = vpack.c.b16 %v762, %v762
  %v811 = vpack.c.b16 %v763, %v763
  %v812 = vpack.c.b16 %v764, %v764
  %v813 = vpack.c.b16 %v765, %v765
  %v814 = vpack.c.b16 %v766, %v766
  %v815 = vpack.c.b16 %v767, %v767
  %v816 = vpack.c.b16 %v768, %v768
  %v817 = vpack.c.b16 %v769, %v769
  %v818 = vpack.c.b16 %v770, %v770
  %v819 = vpack.c.b16 %v771, %v771
  %v820 = vpack.c.b16 %v772, %v772
  %v821 = vpack.c.b16 %v773, %v773
  %v822 = vpack.c.b16 %v774, %v774
  %v823 = vpack.c.b16 %v775, %v775
  %v824 = vpack.c.b16 %v776, %v776
  %v825 = vpack.c.b16 %v777, %v777
  %v826 = vpack.c.b16 %v778, %v778
  %v827 = vpack.c.b16 %v779, %v779
  %v828 = vpack.c.b16 %v780, %v780
  %v829 = vpack.c.b16 %v781, %v781
  %v830 = vpack.c.b16 %v782, %v782
  %v831 = vpack.c.b16 %v783, %v783
  %v832 = vpack.c.b16 %v784, %v784
  %v833 = vpack.c.b16 %v785, %v785
  %v834 = vpack.c.b16 %v786, %v786
  %v835 = vpack.c.b16 %v787, %v787
  %v836 = vpack.c.b16 %v788, %v788
  %v837 = vpack.c.b16 %v789, %v789
  %v838 = vpack.c.b16 %v790, %v790
  %v839 = vpack.c.b16 %v791, %v791
  %v840 = vpack.c.b16 %v792, %v792
  %v841 = vpack.c.b16 %v793, %v793
  %890 = vst [vmem:[%s4] sm:$0xf] %v794
  %891 = vst [vmem:[%s4 + $0x4] sm:$0xf] %v795
  %892 = vst [vmem:[%s4 + $0x8] sm:$0xf] %v796
  %893 = vst [vmem:[%s4 + $0xc] sm:$0xf] %v797
  %894 = vst [vmem:[%s4 + $0x10] sm:$0xf] %v798
  %895 = vst [vmem:[%s4 + $0x14] sm:$0xf] %v799
  %896 = vst [vmem:[%s4 + $0x18] sm:$0xf] %v800
  %897 = vst [vmem:[%s4 + $0x1c] sm:$0xf] %v801
  %898 = vst [vmem:[%s4 + $0x20] sm:$0xf] %v802
  %899 = vst [vmem:[%s4 + $0x24] sm:$0xf] %v803
  %900 = vst [vmem:[%s4 + $0x28] sm:$0xf] %v804
  %901 = vst [vmem:[%s4 + $0x2c] sm:$0xf] %v805
  %902 = vst [vmem:[%s4 + $0x30] sm:$0xf] %v806
  %903 = vst [vmem:[%s4 + $0x34] sm:$0xf] %v807
  %904 = vst [vmem:[%s4 + $0x38] sm:$0xf] %v808
  %905 = vst [vmem:[%s4 + $0x3c] sm:$0xf] %v809
  %906 = vst [vmem:[%s4 + $0x40] sm:$0xf] %v810
  %907 = vst [vmem:[%s4 + $0x44] sm:$0xf] %v811
  %908 = vst [vmem:[%s4 + $0x48] sm:$0xf] %v812
  %909 = vst [vmem:[%s4 + $0x4c] sm:$0xf] %v813
  %910 = vst [vmem:[%s4 + $0x50] sm:$0xf] %v814
  %911 = vst [vmem:[%s4 + $0x54] sm:$0xf] %v815
  %912 = vst [vmem:[%s4 + $0x58] sm:$0xf] %v816
  %913 = vst [vmem:[%s4 + $0x5c] sm:$0xf] %v817
  %914 = vst [vmem:[%s4 + $0x60] sm:$0xf] %v818
  %915 = vst [vmem:[%s4 + $0x64] sm:$0xf] %v819
  %916 = vst [vmem:[%s4 + $0x68] sm:$0xf] %v820
  %917 = vst [vmem:[%s4 + $0x6c] sm:$0xf] %v821
  %918 = vst [vmem:[%s4 + $0x70] sm:$0xf] %v822
  %919 = vst [vmem:[%s4 + $0x74] sm:$0xf] %v823
  %920 = vst [vmem:[%s4 + $0x78] sm:$0xf] %v824
  %921 = vst [vmem:[%s4 + $0x7c] sm:$0xf] %v825
  %922 = vst [vmem:[%s4 + $0x80] sm:$0xf] %v826
  %923 = vst [vmem:[%s4 + $0x84] sm:$0xf] %v827
  %924 = vst [vmem:[%s4 + $0x88] sm:$0xf] %v828
  %925 = vst [vmem:[%s4 + $0x8c] sm:$0xf] %v829
  %926 = vst [vmem:[%s4 + $0x90] sm:$0xf] %v830
  %927 = vst [vmem:[%s4 + $0x94] sm:$0xf] %v831
  %928 = vst [vmem:[%s4 + $0x98] sm:$0xf] %v832
  %929 = vst [vmem:[%s4 + $0x9c] sm:$0xf] %v833
  %930 = vst [vmem:[%s4 + $0xa0] sm:$0xf] %v834
  %931 = vst [vmem:[%s4 + $0xa4] sm:$0xf] %v835
  %932 = vst [vmem:[%s4 + $0xa8] sm:$0xf] %v836
  %933 = vst [vmem:[%s4 + $0xac] sm:$0xf] %v837
  %934 = vst [vmem:[%s4 + $0xb0] sm:$0xf] %v838
  %935 = vst [vmem:[%s4 + $0xb4] sm:$0xf] %v839
  %936 = vst [vmem:[%s4 + $0xb8] sm:$0xf] %v840
  %937 = vst [vmem:[%s4 + $0xbc] sm:$0xf] %v841
  // Predicated region
  $region18: #{triplet_net_forward.21} parent=0 // pred_check
    _
  $region19: #{triplet_net_forward.21} parent=0 // pred_check_branch
    %939 = sbr.rel (0) target = $region21
  $region20: #{triplet_net_forward.21} parent=0 // pred_region
    _
  $region21: #{triplet_net_forward.21} parent=0 // pred_fallthru
    _
  // Predicated region
  $region22: #{triplet_net_forward.21} parent=0 // pred_check
    _
  $region23: #{triplet_net_forward.21} parent=0 // pred_check_branch
    %941 = sbr.rel (0) target = $region25
  $region24: #{triplet_net_forward.21} parent=0 // pred_region
    _
  $region25: #{triplet_net_forward.21} parent=0 // pred_fallthru
    _

// kernel: triplet_net_forward.24
$region0: #{triplet_net_forward.24}
  #allocation0 [shape = 'u32[]', space=smem, size = 0x4, offset = 0x4, fixed_abs, tag = 'smem constant byte address 0x4 - core index']
  #allocation1 [shape = 'u32[144,128]{1,0:T(1,128)}', space=vmem, size = 0x12000, scoped, tag = 'internal scratch']
  %s0 = inlined_call_operand.vmem [shape: bf16[96,128], index: 0, kind: input, shape index: {}]
  %s1 = inlined_call_operand.vmem [shape: bf16[128,128], index: 1, kind: input, shape index: {}]
  %s2 = inlined_call_operand.vmem [shape: f32[1,128], index: 2, kind: input, shape index: {}]
  %s3 = inlined_call_operand.vmem [shape: bf16[96,128], index: 3, kind: output, shape index: {}]
  %s4 = sld [smem:[#allocation0]]
  $region22: #{triplet_net_forward.24} parent=0
    _
  %s6 = ssub.s32 1, %s4
  %s7 = scalar_select 0, %s6, %s4
  // Predicated region
  $region2: #{triplet_net_forward.24} parent=0 // pred_check
    _
  $region3: #{triplet_net_forward.24} parent=0 // pred_check_branch
    %9 = sbr.rel (0) target = $region5
  $region4: #{triplet_net_forward.24} parent=0 // pred_region
    _
  $region5: #{triplet_net_forward.24} parent=0 // pred_fallthru
    _
  // Predicated region
  $region6: #{triplet_net_forward.24} parent=0 // pred_check
    _
  $region7: #{triplet_net_forward.24} parent=0 // pred_check_branch
    %11 = sbr.rel (0) target = $region9
  $region8: #{triplet_net_forward.24} parent=0 // pred_region
    _
  $region9: #{triplet_net_forward.24} parent=0 // pred_fallthru
    _
  // Predicated region
  $region10: #{triplet_net_forward.24} parent=0 // pred_check
    _
  $region11: #{triplet_net_forward.24} parent=0 // pred_check_branch
    %13 = sbr.rel (0) target = $region13
  $region12: #{triplet_net_forward.24} parent=0 // pred_region
    _
  $region13: #{triplet_net_forward.24} parent=0 // pred_fallthru
    _
  %v15 = vld [vmem:[%s0] sm:$0xf]
  %v16 = vld [vmem:[%s0 + $0x4] sm:$0xf]
  %v17 = vld [vmem:[%s0 + $0x8] sm:$0xf]
  %v18 = vld [vmem:[%s0 + $0xc] sm:$0xf]
  %v19 = vld [vmem:[%s0 + $0x10] sm:$0xf]
  %v20 = vld [vmem:[%s0 + $0x14] sm:$0xf]
  %v21 = vld [vmem:[%s0 + $0x18] sm:$0xf]
  %v22 = vld [vmem:[%s0 + $0x1c] sm:$0xf]
  %v23 = vld [vmem:[%s0 + $0x20] sm:$0xf]
  %v24 = vld [vmem:[%s0 + $0x24] sm:$0xf]
  %v25 = vld [vmem:[%s0 + $0x28] sm:$0xf]
  %v26 = vld [vmem:[%s0 + $0x2c] sm:$0xf]
  %v27 = vld [vmem:[%s1] sm:$0xf]
  %v28 = vld [vmem:[%s1 + $0x4] sm:$0xf]
  %v29 = vld [vmem:[%s1 + $0x8] sm:$0xf]
  %v30 = vld [vmem:[%s1 + $0xc] sm:$0xf]
  %v31 = vld [vmem:[%s1 + $0x10] sm:$0xf]
  %v32 = vld [vmem:[%s1 + $0x14] sm:$0xf]
  %v33 = vld [vmem:[%s1 + $0x18] sm:$0xf]
  %v34 = vld [vmem:[%s1 + $0x1c] sm:$0xf]
  %v35 = vld [vmem:[%s1 + $0x20] sm:$0xf]
  %v36 = vld [vmem:[%s1 + $0x24] sm:$0xf]
  %v37 = vld [vmem:[%s1 + $0x28] sm:$0xf]
  %v38 = vld [vmem:[%s1 + $0x2c] sm:$0xf]
  %v39 = vld [vmem:[%s1 + $0x30] sm:$0xf]
  %v40 = vld [vmem:[%s1 + $0x34] sm:$0xf]
  %v41 = vld [vmem:[%s1 + $0x38] sm:$0xf]
  %v42 = vld [vmem:[%s1 + $0x3c] sm:$0xf]
  %v43 = vld [vmem:[%s2] sm:$0x1]
  %v45 = vlaneseq
  %v46 = vshrl.u32 %v45, 7
  %v47 = vsub.s32 0, %v46
  %v48 = vrot.slane %v43, %v47
  %v62 = vunpack.c.l.b16 %v15
  %v63 = vunpack.c.l.b16 %v16
  %v64 = vunpack.c.l.b16 %v17
  %v65 = vunpack.c.l.b16 %v18
  %v66 = vunpack.c.l.b16 %v19
  %v67 = vunpack.c.l.b16 %v20
  %v68 = vunpack.c.l.b16 %v21
  %v69 = vunpack.c.l.b16 %v22
  %v70 = vunpack.c.l.b16 %v23
  %v71 = vunpack.c.l.b16 %v24
  %v72 = vunpack.c.l.b16 %v25
  %v73 = vunpack.c.l.b16 %v26
  %v74 = vpack.c.b16 %v63, %v62
  %v75 = vpack.c.b16 %v65, %v64
  %v76 = vpack.c.b16 %v67, %v66
  %v77 = vpack.c.b16 %v69, %v68
  %v78 = vpack.c.b16 %v71, %v70
  %v79 = vpack.c.b16 %v73, %v72
  %v102 = vunpack.c.l.b16 %v27
  %v103 = vunpack.c.l.b16 %v28
  %v104 = vunpack.c.l.b16 %v29
  %v105 = vunpack.c.l.b16 %v30
  %v106 = vunpack.c.l.b16 %v31
  %v107 = vunpack.c.l.b16 %v32
  %v108 = vunpack.c.l.b16 %v33
  %v109 = vunpack.c.l.b16 %v34
  %v110 = vunpack.c.l.b16 %v35
  %v111 = vunpack.c.l.b16 %v36
  %v112 = vunpack.c.l.b16 %v37
  %v113 = vunpack.c.l.b16 %v38
  %v114 = vunpack.c.l.b16 %v39
  %v115 = vunpack.c.l.b16 %v40
  %v116 = vunpack.c.l.b16 %v41
  %v117 = vunpack.c.l.b16 %v42
  %v118 = vpack.c.b16 %v103, %v102
  %v119 = vpack.c.b16 %v105, %v104
  %v120 = vpack.c.b16 %v107, %v106
  %v121 = vpack.c.b16 %v109, %v108
  %v122 = vpack.c.b16 %v111, %v110
  %v123 = vpack.c.b16 %v113, %v112
  %v124 = vpack.c.b16 %v115, %v114
  %v125 = vpack.c.b16 %v117, %v116
  %134 = vmatprep.subr.bf16.mxu0 0
  %135 = vmatpush1.bf16.msra.mxu0 %v118
  %136 = vmatprep.subr.bf16.mxu0 0
  %137 = vmatpush1.bf16.msra.mxu0 %v119
  %138 = vmatprep.subr.bf16.mxu0 0
  %139 = vmatpush1.bf16.msra.mxu0 %v120
  %140 = vmatprep.subr.bf16.mxu0 0
  %141 = vmatpush1.bf16.msra.mxu0 %v121
  %142 = vmatprep.subr.bf16.mxu0 0
  %143 = vmatpush1.bf16.msra.mxu0 %v122
  %144 = vmatprep.subr.bf16.mxu0 0
  %145 = vmatpush1.bf16.msra.mxu0 %v123
  %146 = vmatprep.subr.bf16.mxu0 0
  %147 = vmatpush1.bf16.msra.mxu0 %v124
  %148 = vmatprep.subr.bf16.mxu0 0
  %149 = vmatpush1.bf16.msra.mxu0 %v125
  %150 = vmatprep.subr.bf16.mxu0 0
  %151 = vmatpush1.bf16.msra.mxu0 0
  %152 = vmatprep.subr.bf16.mxu0 0
  %153 = vmatpush1.bf16.msra.mxu0 0
  %154 = vmatprep.subr.bf16.mxu0 0
  %155 = vmatpush1.bf16.msra.mxu0 0
  %156 = vmatprep.subr.bf16.mxu0 0
  %157 = vmatpush1.bf16.msra.mxu0 0
  %158 = vmatprep.subr.bf16.mxu0 0
  %159 = vmatpush1.bf16.msra.mxu0 0
  %160 = vmatprep.subr.bf16.mxu0 0
  %161 = vmatpush1.bf16.msra.mxu0 0
  %162 = vmatprep.subr.bf16.mxu0 0
  %163 = vmatpush1.bf16.msra.mxu0 0
  %164 = vmatprep.subr.bf16.mxu0 0
  %165 = vmatpush1.bf16.msra.mxu0 0
  %166 = vmatprep.mubr.bf16.mxu0 0
  %167 = vmatmul.mubr.bf16.gmra.mrb[0].mxu0 %v74
  %v168 = vpop.f32.mrb[0].mxu0
  %v169 = vadd.f32 %v48, %v168
  %v170 = vpop.f32.mrb[0].mxu0
  %v171 = vpop.f32.mrb[0].mxu0
  %v172 = vadd.f32 %v48, %v171
  %v173 = vpop.f32.mrb[0].mxu0
  %174 = vmatprep.mubr.bf16.mxu0 0
  %175 = vmatmul.mubr.bf16.gmra.mrb[0].mxu0 %v75
  %v176 = vpop.f32.mrb[0].mxu0
  %v177 = vadd.f32 %v48, %v176
  %v178 = vpop.f32.mrb[0].mxu0
  %v179 = vpop.f32.mrb[0].mxu0
  %v180 = vadd.f32 %v48, %v179
  %v181 = vpop.f32.mrb[0].mxu0
  %182 = vmatprep.mubr.bf16.mxu0 0
  %183 = vmatmul.mubr.bf16.gmra.mrb[0].mxu0 %v76
  %v184 = vpop.f32.mrb[0].mxu0
  %v185 = vadd.f32 %v48, %v184
  %v186 = vpop.f32.mrb[0].mxu0
  %v187 = vpop.f32.mrb[0].mxu0
  %v188 = vadd.f32 %v48, %v187
  %v189 = vpop.f32.mrb[0].mxu0
  %190 = vmatprep.mubr.bf16.mxu0 0
  %191 = vmatmul.mubr.bf16.gmra.mrb[0].mxu0 %v77
  %v192 = vpop.f32.mrb[0].mxu0
  %v193 = vadd.f32 %v48, %v192
  %v194 = vpop.f32.mrb[0].mxu0
  %v195 = vpop.f32.mrb[0].mxu0
  %v196 = vadd.f32 %v48, %v195
  %v197 = vpop.f32.mrb[0].mxu0
  %198 = vmatprep.mubr.bf16.mxu0 0
  %199 = vmatmul.mubr.bf16.gmra.mrb[0].mxu0 %v78
  %v200 = vpop.f32.mrb[0].mxu0
  %v201 = vadd.f32 %v48, %v200
  %v202 = vpop.f32.mrb[0].mxu0
  %v203 = vpop.f32.mrb[0].mxu0
  %v204 = vadd.f32 %v48, %v203
  %v205 = vpop.f32.mrb[0].mxu0
  %206 = vmatprep.mubr.bf16.mxu0 0
  %207 = vmatmul.mubr.bf16.gmra.mrb[0].mxu0 %v79
  %v208 = vpop.f32.mrb[0].mxu0
  %v209 = vadd.f32 %v48, %v208
  %v210 = vpop.f32.mrb[0].mxu0
  %v211 = vpop.f32.mrb[0].mxu0
  %v212 = vadd.f32 %v48, %v211
  %v213 = vpop.f32.mrb[0].mxu0
  %214 = vdwg.mxu0
  %v215 = vmax.f32 %v169, 0.0
  %v216 = vmax.f32 %v172, 0.0
  %v217 = vmax.f32 %v177, 0.0
  %v218 = vmax.f32 %v180, 0.0
  %v219 = vmax.f32 %v185, 0.0
  %v220 = vmax.f32 %v188, 0.0
  %v221 = vmax.f32 %v193, 0.0
  %v222 = vmax.f32 %v196, 0.0
  %v223 = vmax.f32 %v201, 0.0
  %v224 = vmax.f32 %v204, 0.0
  %v225 = vmax.f32 %v209, 0.0
  %v226 = vmax.f32 %v212, 0.0
  %v227 = vpack.c.bf16 %v216, %v215
  %v228 = vpack.c.bf16 %v218, %v217
  %v229 = vpack.c.bf16 %v220, %v219
  %v230 = vpack.c.bf16 %v222, %v221
  %v231 = vpack.c.bf16 %v224, %v223
  %v232 = vpack.c.bf16 %v226, %v225
  %v239 = vunpack.c.l.b16 %v227
  %v240 = vunpack.c.h.b16 %v227
  %v241 = vunpack.c.l.b16 %v228
  %v242 = vunpack.c.h.b16 %v228
  %v243 = vunpack.c.l.b16 %v229
  %v244 = vunpack.c.h.b16 %v229
  %v245 = vunpack.c.l.b16 %v230
  %v246 = vunpack.c.h.b16 %v230
  %v247 = vunpack.c.l.b16 %v231
  %v248 = vunpack.c.h.b16 %v231
  %v249 = vunpack.c.l.b16 %v232
  %v250 = vunpack.c.h.b16 %v232
  %v251 = vpack.c.b16 %v239, %v239
  %v252 = vpack.c.b16 %v240, %v240
  %v253 = vpack.c.b16 %v241, %v241
  %v254 = vpack.c.b16 %v242, %v242
  %v255 = vpack.c.b16 %v243, %v243
  %v256 = vpack.c.b16 %v244, %v244
  %v257 = vpack.c.b16 %v245, %v245
  %v258 = vpack.c.b16 %v246, %v246
  %v259 = vpack.c.b16 %v247, %v247
  %v260 = vpack.c.b16 %v248, %v248
  %v261 = vpack.c.b16 %v249, %v249
  %v262 = vpack.c.b16 %v250, %v250
  %275 = vst [vmem:[%s3] sm:$0xf] %v251
  %276 = vst [vmem:[%s3 + $0x4] sm:$0xf] %v252
  %277 = vst [vmem:[%s3 + $0x8] sm:$0xf] %v253
  %278 = vst [vmem:[%s3 + $0xc] sm:$0xf] %v254
  %279 = vst [vmem:[%s3 + $0x10] sm:$0xf] %v255
  %280 = vst [vmem:[%s3 + $0x14] sm:$0xf] %v256
  %281 = vst [vmem:[%s3 + $0x18] sm:$0xf] %v257
  %282 = vst [vmem:[%s3 + $0x1c] sm:$0xf] %v258
  %283 = vst [vmem:[%s3 + $0x20] sm:$0xf] %v259
  %284 = vst [vmem:[%s3 + $0x24] sm:$0xf] %v260
  %285 = vst [vmem:[%s3 + $0x28] sm:$0xf] %v261
  %286 = vst [vmem:[%s3 + $0x2c] sm:$0xf] %v262
  // Predicated region
  $region14: #{triplet_net_forward.24} parent=0 // pred_check
    _
  $region15: #{triplet_net_forward.24} parent=0 // pred_check_branch
    %288 = sbr.rel (0) target = $region17
  $region16: #{triplet_net_forward.24} parent=0 // pred_region
    _
  $region17: #{triplet_net_forward.24} parent=0 // pred_fallthru
    _
  // Predicated region
  $region18: #{triplet_net_forward.24} parent=0 // pred_check
    _
  $region19: #{triplet_net_forward.24} parent=0 // pred_check_branch
    %290 = sbr.rel (0) target = $region21
  $region20: #{triplet_net_forward.24} parent=0 // pred_region
    _
  $region21: #{triplet_net_forward.24} parent=0 // pred_fallthru
    _

// kernel: triplet_net_forward.26
$region0: #{triplet_net_forward.26}
  #allocation0 [shape = 'u32[]', space=smem, size = 0x4, offset = 0x4, fixed_abs, tag = 'smem constant byte address 0x4 - core index']
  #allocation1 [shape = 'u32[144,128]{1,0:T(1,128)}', space=vmem, size = 0x12000, scoped, tag = 'internal scratch']
  %s0 = inlined_call_operand.vmem [shape: bf16[96,256], index: 0, kind: input, shape index: {}]
  %s1 = inlined_call_operand.vmem [shape: bf16[256,128], index: 1, kind: input, shape index: {}]
  %s2 = inlined_call_operand.vmem [shape: f32[1,128], index: 2, kind: input, shape index: {}]
  %s3 = inlined_call_operand.vmem [shape: bf16[96,128], index: 3, kind: output, shape index: {}]
  %s4 = sld [smem:[#allocation0]]
  $region22: #{triplet_net_forward.26} parent=0
    _
  %s6 = ssub.s32 1, %s4
  %s7 = scalar_select 0, %s6, %s4
  // Predicated region
  $region2: #{triplet_net_forward.26} parent=0 // pred_check
    _
  $region3: #{triplet_net_forward.26} parent=0 // pred_check_branch
    %9 = sbr.rel (0) target = $region5
  $region4: #{triplet_net_forward.26} parent=0 // pred_region
    _
  $region5: #{triplet_net_forward.26} parent=0 // pred_fallthru
    _
  // Predicated region
  $region6: #{triplet_net_forward.26} parent=0 // pred_check
    _
  $region7: #{triplet_net_forward.26} parent=0 // pred_check_branch
    %11 = sbr.rel (0) target = $region9
  $region8: #{triplet_net_forward.26} parent=0 // pred_region
    _
  $region9: #{triplet_net_forward.26} parent=0 // pred_fallthru
    _
  // Predicated region
  $region10: #{triplet_net_forward.26} parent=0 // pred_check
    _
  $region11: #{triplet_net_forward.26} parent=0 // pred_check_branch
    %13 = sbr.rel (0) target = $region13
  $region12: #{triplet_net_forward.26} parent=0 // pred_region
    _
  $region13: #{triplet_net_forward.26} parent=0 // pred_fallthru
    _
  %v15 = vld [vmem:[%s0] sm:$0xff]
  %v16 = vld [vmem:[%s0 + $0x8] sm:$0xff]
  %v17 = vld [vmem:[%s0 + $0x10] sm:$0xff]
  %v18 = vld [vmem:[%s0 + $0x18] sm:$0xff]
  %v19 = vld [vmem:[%s0 + $0x20] sm:$0xff]
  %v20 = vld [vmem:[%s0 + $0x28] sm:$0xff]
  %v21 = vld [vmem:[%s0 + $0x30] sm:$0xff]
  %v22 = vld [vmem:[%s0 + $0x38] sm:$0xff]
  %v23 = vld [vmem:[%s0 + $0x40] sm:$0xff]
  %v24 = vld [vmem:[%s0 + $0x48] sm:$0xff]
  %v25 = vld [vmem:[%s0 + $0x50] sm:$0xff]
  %v26 = vld [vmem:[%s0 + $0x58] sm:$0xff]
  %v27 = vld [vmem:[%s1] sm:$0xf]
  %v28 = vld [vmem:[%s1 + $0x4] sm:$0xf]
  %v29 = vld [vmem:[%s1 + $0x8] sm:$0xf]
  %v30 = vld [vmem:[%s1 + $0xc] sm:$0xf]
  %v31 = vld [vmem:[%s1 + $0x10] sm:$0xf]
  %v32 = vld [vmem:[%s1 + $0x14] sm:$0xf]
  %v33 = vld [vmem:[%s1 + $0x18] sm:$0xf]
  %v34 = vld [vmem:[%s1 + $0x1c] sm:$0xf]
  %v35 = vld [vmem:[%s1 + $0x20] sm:$0xf]
  %v36 = vld [vmem:[%s1 + $0x24] sm:$0xf]
  %v37 = vld [vmem:[%s1 + $0x28] sm:$0xf]
  %v38 = vld [vmem:[%s1 + $0x2c] sm:$0xf]
  %v39 = vld [vmem:[%s1 + $0x30] sm:$0xf]
  %v40 = vld [vmem:[%s1 + $0x34] sm:$0xf]
  %v41 = vld [vmem:[%s1 + $0x38] sm:$0xf]
  %v42 = vld [vmem:[%s1 + $0x3c] sm:$0xf]
  %v43 = vld [vmem:[%s1 + $0x40] sm:$0xf]
  %v44 = vld [vmem:[%s1 + $0x44] sm:$0xf]
  %v45 = vld [vmem:[%s1 + $0x48] sm:$0xf]
  %v46 = vld [vmem:[%s1 + $0x4c] sm:$0xf]
  %v47 = vld [vmem:[%s1 + $0x50] sm:$0xf]
  %v48 = vld [vmem:[%s1 + $0x54] sm:$0xf]
  %v49 = vld [vmem:[%s1 + $0x58] sm:$0xf]
  %v50 = vld [vmem:[%s1 + $0x5c] sm:$0xf]
  %v51 = vld [vmem:[%s1 + $0x60] sm:$0xf]
  %v52 = vld [vmem:[%s1 + $0x64] sm:$0xf]
  %v53 = vld [vmem:[%s1 + $0x68] sm:$0xf]
  %v54 = vld [vmem:[%s1 + $0x6c] sm:$0xf]
  %v55 = vld [vmem:[%s1 + $0x70] sm:$0xf]
  %v56 = vld [vmem:[%s1 + $0x74] sm:$0xf]
  %v57 = vld [vmem:[%s1 + $0x78] sm:$0xf]
  %v58 = vld [vmem:[%s1 + $0x7c] sm:$0xf]
  %v59 = vld [vmem:[%s2] sm:$0x1]
  %v61 = vlaneseq
  %v62 = vshrl.u32 %v61, 7
  %v63 = vsub.s32 0, %v62
  %v64 = vrot.slane %v59, %v63
  %v78 = vunpack.c.l.b16 %v15
  %v79 = vunpack.c.h.b16 %v15
  %v80 = vunpack.c.l.b16 %v16
  %v81 = vunpack.c.h.b16 %v16
  %v82 = vunpack.c.l.b16 %v17
  %v83 = vunpack.c.h.b16 %v17
  %v84 = vunpack.c.l.b16 %v18
  %v85 = vunpack.c.h.b16 %v18
  %v86 = vunpack.c.l.b16 %v19
  %v87 = vunpack.c.h.b16 %v19
  %v88 = vunpack.c.l.b16 %v20
  %v89 = vunpack.c.h.b16 %v20
  %v90 = vunpack.c.l.b16 %v21
  %v91 = vunpack.c.h.b16 %v21
  %v92 = vunpack.c.l.b16 %v22
  %v93 = vunpack.c.h.b16 %v22
  %v94 = vunpack.c.l.b16 %v23
  %v95 = vunpack.c.h.b16 %v23
  %v96 = vunpack.c.l.b16 %v24
  %v97 = vunpack.c.h.b16 %v24
  %v98 = vunpack.c.l.b16 %v25
  %v99 = vunpack.c.h.b16 %v25
  %v100 = vunpack.c.l.b16 %v26
  %v101 = vunpack.c.h.b16 %v26
  %v102 = vpack.c.b16 %v80, %v78
  %v103 = vpack.c.b16 %v81, %v79
  %v104 = vpack.c.b16 %v84, %v82
  %v105 = vpack.c.b16 %v85, %v83
  %v106 = vpack.c.b16 %v88, %v86
  %v107 = vpack.c.b16 %v89, %v87
  %v108 = vpack.c.b16 %v92, %v90
  %v109 = vpack.c.b16 %v93, %v91
  %v110 = vpack.c.b16 %v96, %v94
  %v111 = vpack.c.b16 %v97, %v95
  %v112 = vpack.c.b16 %v100, %v98
  %v113 = vpack.c.b16 %v101, %v99
  %v158 = vunpack.c.l.b16 %v27
  %v159 = vunpack.c.l.b16 %v28
  %v160 = vunpack.c.l.b16 %v29
  %v161 = vunpack.c.l.b16 %v30
  %v162 = vunpack.c.l.b16 %v31
  %v163 = vunpack.c.l.b16 %v32
  %v164 = vunpack.c.l.b16 %v33
  %v165 = vunpack.c.l.b16 %v34
  %v166 = vunpack.c.l.b16 %v35
  %v167 = vunpack.c.l.b16 %v36
  %v168 = vunpack.c.l.b16 %v37
  %v169 = vunpack.c.l.b16 %v38
  %v170 = vunpack.c.l.b16 %v39
  %v171 = vunpack.c.l.b16 %v40
  %v172 = vunpack.c.l.b16 %v41
  %v173 = vunpack.c.l.b16 %v42
  %v174 = vunpack.c.l.b16 %v43
  %v175 = vunpack.c.l.b16 %v44
  %v176 = vunpack.c.l.b16 %v45
  %v177 = vunpack.c.l.b16 %v46
  %v178 = vunpack.c.l.b16 %v47
  %v179 = vunpack.c.l.b16 %v48
  %v180 = vunpack.c.l.b16 %v49
  %v181 = vunpack.c.l.b16 %v50
  %v182 = vunpack.c.l.b16 %v51
  %v183 = vunpack.c.l.b16 %v52
  %v184 = vunpack.c.l.b16 %v53
  %v185 = vunpack.c.l.b16 %v54
  %v186 = vunpack.c.l.b16 %v55
  %v187 = vunpack.c.l.b16 %v56
  %v188 = vunpack.c.l.b16 %v57
  %v189 = vunpack.c.l.b16 %v58
  %v190 = vpack.c.b16 %v159, %v158
  %v191 = vpack.c.b16 %v161, %v160
  %v192 = vpack.c.b16 %v163, %v162
  %v193 = vpack.c.b16 %v165, %v164
  %v194 = vpack.c.b16 %v167, %v166
  %v195 = vpack.c.b16 %v169, %v168
  %v196 = vpack.c.b16 %v171, %v170
  %v197 = vpack.c.b16 %v173, %v172
  %v198 = vpack.c.b16 %v175, %v174
  %v199 = vpack.c.b16 %v177, %v176
  %v200 = vpack.c.b16 %v179, %v178
  %v201 = vpack.c.b16 %v181, %v180
  %v202 = vpack.c.b16 %v183, %v182
  %v203 = vpack.c.b16 %v185, %v184
  %v204 = vpack.c.b16 %v187, %v186
  %v205 = vpack.c.b16 %v189, %v188
  %222 = vmatprep.subr.bf16.mxu0 0
  %223 = vmatpush1.bf16.msra.mxu0 %v190
  %224 = vmatprep.subr.bf16.mxu0 0
  %225 = vmatpush1.bf16.msra.mxu0 %v191
  %226 = vmatprep.subr.bf16.mxu0 0
  %227 = vmatpush1.bf16.msra.mxu0 %v192
  %228 = vmatprep.subr.bf16.mxu0 0
  %229 = vmatpush1.bf16.msra.mxu0 %v193
  %230 = vmatprep.subr.bf16.mxu0 0
  %231 = vmatpush1.bf16.msra.mxu0 %v194
  %232 = vmatprep.subr.bf16.mxu0 0
  %233 = vmatpush1.bf16.msra.mxu0 %v195
  %234 = vmatprep.subr.bf16.mxu0 0
  %235 = vmatpush1.bf16.msra.mxu0 %v196
  %236 = vmatprep.subr.bf16.mxu0 0
  %237 = vmatpush1.bf16.msra.mxu0 %v197
  %238 = vmatprep.subr.bf16.mxu0 0
  %239 = vmatpush1.bf16.msra.mxu0 %v198
  %240 = vmatprep.subr.bf16.mxu0 0
  %241 = vmatpush1.bf16.msra.mxu0 %v199
  %242 = vmatprep.subr.bf16.mxu0 0
  %243 = vmatpush1.bf16.msra.mxu0 %v200
  %244 = vmatprep.subr.bf16.mxu0 0
  %245 = vmatpush1.bf16.msra.mxu0 %v201
  %246 = vmatprep.subr.bf16.mxu0 0
  %247 = vmatpush1.bf16.msra.mxu0 %v202
  %248 = vmatprep.subr.bf16.mxu0 0
  %249 = vmatpush1.bf16.msra.mxu0 %v203
  %250 = vmatprep.subr.bf16.mxu0 0
  %251 = vmatpush1.bf16.msra.mxu0 %v204
  %252 = vmatprep.subr.bf16.mxu0 0
  %253 = vmatpush1.bf16.msra.mxu0 %v205
  %254 = vmatprep.mubr.bf16.mxu0 %v103
  %255 = vmatmul.mubr.bf16.gmra.mrb[0].mxu0 %v102
  %v256 = vpop.f32.mrb[0].mxu0
  %v257 = vadd.f32 %v64, %v256
  %v258 = vpop.f32.mrb[0].mxu0
  %v259 = vpop.f32.mrb[0].mxu0
  %v260 = vadd.f32 %v64, %v259
  %v261 = vpop.f32.mrb[0].mxu0
  %262 = vmatprep.mubr.bf16.mxu0 %v105
  %263 = vmatmul.mubr.bf16.gmra.mrb[0].mxu0 %v104
  %v264 = vpop.f32.mrb[0].mxu0
  %v265 = vadd.f32 %v64, %v264
  %v266 = vpop.f32.mrb[0].mxu0
  %v267 = vpop.f32.mrb[0].mxu0
  %v268 = vadd.f32 %v64, %v267
  %v269 = vpop.f32.mrb[0].mxu0
  %270 = vmatprep.mubr.bf16.mxu0 %v107
  %271 = vmatmul.mubr.bf16.gmra.mrb[0].mxu0 %v106
  %v272 = vpop.f32.mrb[0].mxu0
  %v273 = vadd.f32 %v64, %v272
  %v274 = vpop.f32.mrb[0].mxu0
  %v275 = vpop.f32.mrb[0].mxu0
  %v276 = vadd.f32 %v64, %v275
  %v277 = vpop.f32.mrb[0].mxu0
  %278 = vmatprep.mubr.bf16.mxu0 %v109
  %279 = vmatmul.mubr.bf16.gmra.mrb[0].mxu0 %v108
  %v280 = vpop.f32.mrb[0].mxu0
  %v281 = vadd.f32 %v64, %v280
  %v282 = vpop.f32.mrb[0].mxu0
  %v283 = vpop.f32.mrb[0].mxu0
  %v284 = vadd.f32 %v64, %v283
  %v285 = vpop.f32.mrb[0].mxu0
  %286 = vmatprep.mubr.bf16.mxu0 %v111
  %287 = vmatmul.mubr.bf16.gmra.mrb[0].mxu0 %v110
  %v288 = vpop.f32.mrb[0].mxu0
  %v289 = vadd.f32 %v64, %v288
  %v290 = vpop.f32.mrb[0].mxu0
  %v291 = vpop.f32.mrb[0].mxu0
  %v292 = vadd.f32 %v64, %v291
  %v293 = vpop.f32.mrb[0].mxu0
  %294 = vmatprep.mubr.bf16.mxu0 %v113
  %295 = vmatmul.mubr.bf16.gmra.mrb[0].mxu0 %v112
  %v296 = vpop.f32.mrb[0].mxu0
  %v297 = vadd.f32 %v64, %v296
  %v298 = vpop.f32.mrb[0].mxu0
  %v299 = vpop.f32.mrb[0].mxu0
  %v300 = vadd.f32 %v64, %v299
  %v301 = vpop.f32.mrb[0].mxu0
  %302 = vdwg.mxu0
  %v303 = vmax.f32 %v257, 0.0
  %v304 = vmax.f32 %v260, 0.0
  %v305 = vmax.f32 %v265, 0.0
  %v306 = vmax.f32 %v268, 0.0
  %v307 = vmax.f32 %v273, 0.0
  %v308 = vmax.f32 %v276, 0.0
  %v309 = vmax.f32 %v281, 0.0
  %v310 = vmax.f32 %v284, 0.0
  %v311 = vmax.f32 %v289, 0.0
  %v312 = vmax.f32 %v292, 0.0
  %v313 = vmax.f32 %v297, 0.0
  %v314 = vmax.f32 %v300, 0.0
  %v315 = vpack.c.bf16 %v304, %v303
  %v316 = vpack.c.bf16 %v306, %v305
  %v317 = vpack.c.bf16 %v308, %v307
  %v318 = vpack.c.bf16 %v310, %v309
  %v319 = vpack.c.bf16 %v312, %v311
  %v320 = vpack.c.bf16 %v314, %v313
  %v327 = vunpack.c.l.b16 %v315
  %v328 = vunpack.c.h.b16 %v315
  %v329 = vunpack.c.l.b16 %v316
  %v330 = vunpack.c.h.b16 %v316
  %v331 = vunpack.c.l.b16 %v317
  %v332 = vunpack.c.h.b16 %v317
  %v333 = vunpack.c.l.b16 %v318
  %v334 = vunpack.c.h.b16 %v318
  %v335 = vunpack.c.l.b16 %v319
  %v336 = vunpack.c.h.b16 %v319
  %v337 = vunpack.c.l.b16 %v320
  %v338 = vunpack.c.h.b16 %v320
  %v339 = vpack.c.b16 %v327, %v327
  %v340 = vpack.c.b16 %v328, %v328
  %v341 = vpack.c.b16 %v329, %v329
  %v342 = vpack.c.b16 %v330, %v330
  %v343 = vpack.c.b16 %v331, %v331
  %v344 = vpack.c.b16 %v332, %v332
  %v345 = vpack.c.b16 %v333, %v333
  %v346 = vpack.c.b16 %v334, %v334
  %v347 = vpack.c.b16 %v335, %v335
  %v348 = vpack.c.b16 %v336, %v336
  %v349 = vpack.c.b16 %v337, %v337
  %v350 = vpack.c.b16 %v338, %v338
  %363 = vst [vmem:[%s3] sm:$0xf] %v339
  %364 = vst [vmem:[%s3 + $0x4] sm:$0xf] %v340
  %365 = vst [vmem:[%s3 + $0x8] sm:$0xf] %v341
  %366 = vst [vmem:[%s3 + $0xc] sm:$0xf] %v342
  %367 = vst [vmem:[%s3 + $0x10] sm:$0xf] %v343
  %368 = vst [vmem:[%s3 + $0x14] sm:$0xf] %v344
  %369 = vst [vmem:[%s3 + $0x18] sm:$0xf] %v345
  %370 = vst [vmem:[%s3 + $0x1c] sm:$0xf] %v346
  %371 = vst [vmem:[%s3 + $0x20] sm:$0xf] %v347
  %372 = vst [vmem:[%s3 + $0x24] sm:$0xf] %v348
  %373 = vst [vmem:[%s3 + $0x28] sm:$0xf] %v349
  %374 = vst [vmem:[%s3 + $0x2c] sm:$0xf] %v350
  // Predicated region
  $region14: #{triplet_net_forward.26} parent=0 // pred_check
    _
  $region15: #{triplet_net_forward.26} parent=0 // pred_check_branch
    %376 = sbr.rel (0) target = $region17
  $region16: #{triplet_net_forward.26} parent=0 // pred_region
    _
  $region17: #{triplet_net_forward.26} parent=0 // pred_fallthru
    _
  // Predicated region
  $region18: #{triplet_net_forward.26} parent=0 // pred_check
    _
  $region19: #{triplet_net_forward.26} parent=0 // pred_check_branch
    %378 = sbr.rel (0) target = $region21
  $region20: #{triplet_net_forward.26} parent=0 // pred_region
    _
  $region21: #{triplet_net_forward.26} parent=0 // pred_fallthru
    _

// kernel: triplet_net_forward.25
$region0: #{triplet_net_forward.25}
  #allocation0 [shape = 'u32[]', space=smem, size = 0x4, offset = 0x4, fixed_abs, tag = 'smem constant byte address 0x4 - core index']
  #allocation1 [shape = 'u32[144,128]{1,0:T(1,128)}', space=vmem, size = 0x12000, scoped, tag = 'internal scratch']
  %s0 = inlined_call_operand.vmem [shape: bf16[96,256], index: 0, kind: input, shape index: {}]
  %s1 = inlined_call_operand.vmem [shape: bf16[256,128], index: 1, kind: input, shape index: {}]
  %s2 = inlined_call_operand.vmem [shape: f32[1,128], index: 2, kind: input, shape index: {}]
  %s3 = inlined_call_operand.vmem [shape: bf16[96,128], index: 3, kind: input, shape index: {}]
  %s4 = inlined_call_operand.vmem [shape: bf16[128,128], index: 4, kind: input, shape index: {}]
  %s5 = inlined_call_operand.vmem [shape: f32[1,128], index: 5, kind: input, shape index: {}]
  %s6 = inlined_call_operand.vmem [shape: bf16[96,128], index: 6, kind: output, shape index: {}]
  %s7 = sld [smem:[#allocation0]]
  $region34: #{triplet_net_forward.25} parent=0
    _
  %s9 = ssub.s32 1, %s7
  %s10 = scalar_select 0, %s9, %s7
  // Predicated region
  $region2: #{triplet_net_forward.25} parent=0 // pred_check
    _
  $region3: #{triplet_net_forward.25} parent=0 // pred_check_branch
    %12 = sbr.rel (0) target = $region5
  $region4: #{triplet_net_forward.25} parent=0 // pred_region
    _
  $region5: #{triplet_net_forward.25} parent=0 // pred_fallthru
    _
  // Predicated region
  $region6: #{triplet_net_forward.25} parent=0 // pred_check
    _
  $region7: #{triplet_net_forward.25} parent=0 // pred_check_branch
    %14 = sbr.rel (0) target = $region9
  $region8: #{triplet_net_forward.25} parent=0 // pred_region
    _
  $region9: #{triplet_net_forward.25} parent=0 // pred_fallthru
    _
  // Predicated region
  $region10: #{triplet_net_forward.25} parent=0 // pred_check
    _
  $region11: #{triplet_net_forward.25} parent=0 // pred_check_branch
    %16 = sbr.rel (0) target = $region13
  $region12: #{triplet_net_forward.25} parent=0 // pred_region
    _
  $region13: #{triplet_net_forward.25} parent=0 // pred_fallthru
    _
  // Predicated region
  $region14: #{triplet_net_forward.25} parent=0 // pred_check
    _
  $region15: #{triplet_net_forward.25} parent=0 // pred_check_branch
    %18 = sbr.rel (0) target = $region17
  $region16: #{triplet_net_forward.25} parent=0 // pred_region
    _
  $region17: #{triplet_net_forward.25} parent=0 // pred_fallthru
    _
  // Predicated region
  $region18: #{triplet_net_forward.25} parent=0 // pred_check
    _
  $region19: #{triplet_net_forward.25} parent=0 // pred_check_branch
    %20 = sbr.rel (0) target = $region21
  $region20: #{triplet_net_forward.25} parent=0 // pred_region
    _
  $region21: #{triplet_net_forward.25} parent=0 // pred_fallthru
    _
  // Predicated region
  $region22: #{triplet_net_forward.25} parent=0 // pred_check
    _
  $region23: #{triplet_net_forward.25} parent=0 // pred_check_branch
    %22 = sbr.rel (0) target = $region25
  $region24: #{triplet_net_forward.25} parent=0 // pred_region
    _
  $region25: #{triplet_net_forward.25} parent=0 // pred_fallthru
    _
  %v24 = vld [vmem:[%s0] sm:$0xff]
  %v25 = vld [vmem:[%s0 + $0x8] sm:$0xff]
  %v26 = vld [vmem:[%s0 + $0x10] sm:$0xff]
  %v27 = vld [vmem:[%s0 + $0x18] sm:$0xff]
  %v28 = vld [vmem:[%s0 + $0x20] sm:$0xff]
  %v29 = vld [vmem:[%s0 + $0x28] sm:$0xff]
  %v30 = vld [vmem:[%s0 + $0x30] sm:$0xff]
  %v31 = vld [vmem:[%s0 + $0x38] sm:$0xff]
  %v32 = vld [vmem:[%s0 + $0x40] sm:$0xff]
  %v33 = vld [vmem:[%s0 + $0x48] sm:$0xff]
  %v34 = vld [vmem:[%s0 + $0x50] sm:$0xff]
  %v35 = vld [vmem:[%s0 + $0x58] sm:$0xff]
  %v36 = vld [vmem:[%s1] sm:$0xf]
  %v37 = vld [vmem:[%s1 + $0x4] sm:$0xf]
  %v38 = vld [vmem:[%s1 + $0x8] sm:$0xf]
  %v39 = vld [vmem:[%s1 + $0xc] sm:$0xf]
  %v40 = vld [vmem:[%s1 + $0x10] sm:$0xf]
  %v41 = vld [vmem:[%s1 + $0x14] sm:$0xf]
  %v42 = vld [vmem:[%s1 + $0x18] sm:$0xf]
  %v43 = vld [vmem:[%s1 + $0x1c] sm:$0xf]
  %v44 = vld [vmem:[%s1 + $0x20] sm:$0xf]
  %v45 = vld [vmem:[%s1 + $0x24] sm:$0xf]
  %v46 = vld [vmem:[%s1 + $0x28] sm:$0xf]
  %v47 = vld [vmem:[%s1 + $0x2c] sm:$0xf]
  %v48 = vld [vmem:[%s1 + $0x30] sm:$0xf]
  %v49 = vld [vmem:[%s1 + $0x34] sm:$0xf]
  %v50 = vld [vmem:[%s1 + $0x38] sm:$0xf]
  %v51 = vld [vmem:[%s1 + $0x3c] sm:$0xf]
  %v52 = vld [vmem:[%s1 + $0x40] sm:$0xf]
  %v53 = vld [vmem:[%s1 + $0x44] sm:$0xf]
  %v54 = vld [vmem:[%s1 + $0x48] sm:$0xf]
  %v55 = vld [vmem:[%s1 + $0x4c] sm:$0xf]
  %v56 = vld [vmem:[%s1 + $0x50] sm:$0xf]
  %v57 = vld [vmem:[%s1 + $0x54] sm:$0xf]
  %v58 = vld [vmem:[%s1 + $0x58] sm:$0xf]
  %v59 = vld [vmem:[%s1 + $0x5c] sm:$0xf]
  %v60 = vld [vmem:[%s1 + $0x60] sm:$0xf]
  %v61 = vld [vmem:[%s1 + $0x64] sm:$0xf]
  %v62 = vld [vmem:[%s1 + $0x68] sm:$0xf]
  %v63 = vld [vmem:[%s1 + $0x6c] sm:$0xf]
  %v64 = vld [vmem:[%s1 + $0x70] sm:$0xf]
  %v65 = vld [vmem:[%s1 + $0x74] sm:$0xf]
  %v66 = vld [vmem:[%s1 + $0x78] sm:$0xf]
  %v67 = vld [vmem:[%s1 + $0x7c] sm:$0xf]
  %v68 = vld [vmem:[%s3] sm:$0xf]
  %v69 = vld [vmem:[%s3 + $0x4] sm:$0xf]
  %v70 = vld [vmem:[%s3 + $0x8] sm:$0xf]
  %v71 = vld [vmem:[%s3 + $0xc] sm:$0xf]
  %v72 = vld [vmem:[%s3 + $0x10] sm:$0xf]
  %v73 = vld [vmem:[%s3 + $0x14] sm:$0xf]
  %v74 = vld [vmem:[%s3 + $0x18] sm:$0xf]
  %v75 = vld [vmem:[%s3 + $0x1c] sm:$0xf]
  %v76 = vld [vmem:[%s3 + $0x20] sm:$0xf]
  %v77 = vld [vmem:[%s3 + $0x24] sm:$0xf]
  %v78 = vld [vmem:[%s3 + $0x28] sm:$0xf]
  %v79 = vld [vmem:[%s3 + $0x2c] sm:$0xf]
  %v80 = vld [vmem:[%s4] sm:$0xf]
  %v81 = vld [vmem:[%s4 + $0x4] sm:$0xf]
  %v82 = vld [vmem:[%s4 + $0x8] sm:$0xf]
  %v83 = vld [vmem:[%s4 + $0xc] sm:$0xf]
  %v84 = vld [vmem:[%s4 + $0x10] sm:$0xf]
  %v85 = vld [vmem:[%s4 + $0x14] sm:$0xf]
  %v86 = vld [vmem:[%s4 + $0x18] sm:$0xf]
  %v87 = vld [vmem:[%s4 + $0x1c] sm:$0xf]
  %v88 = vld [vmem:[%s4 + $0x20] sm:$0xf]
  %v89 = vld [vmem:[%s4 + $0x24] sm:$0xf]
  %v90 = vld [vmem:[%s4 + $0x28] sm:$0xf]
  %v91 = vld [vmem:[%s4 + $0x2c] sm:$0xf]
  %v92 = vld [vmem:[%s4 + $0x30] sm:$0xf]
  %v93 = vld [vmem:[%s4 + $0x34] sm:$0xf]
  %v94 = vld [vmem:[%s4 + $0x38] sm:$0xf]
  %v95 = vld [vmem:[%s4 + $0x3c] sm:$0xf]
  %v96 = vld [vmem:[%s5] sm:$0x1]
  %v98 = vlaneseq
  %v99 = vshrl.u32 %v98, 7
  %v100 = vsub.s32 0, %v99
  %v101 = vrot.slane %v96, %v100
  %v115 = vunpack.c.l.b16 %v68
  %v116 = vunpack.c.l.b16 %v69
  %v117 = vunpack.c.l.b16 %v70
  %v118 = vunpack.c.l.b16 %v71
  %v119 = vunpack.c.l.b16 %v72
  %v120 = vunpack.c.l.b16 %v73
  %v121 = vunpack.c.l.b16 %v74
  %v122 = vunpack.c.l.b16 %v75
  %v123 = vunpack.c.l.b16 %v76
  %v124 = vunpack.c.l.b16 %v77
  %v125 = vunpack.c.l.b16 %v78
  %v126 = vunpack.c.l.b16 %v79
  %v127 = vpack.c.b16 %v116, %v115
  %v128 = vpack.c.b16 %v118, %v117
  %v129 = vpack.c.b16 %v120, %v119
  %v130 = vpack.c.b16 %v122, %v121
  %v131 = vpack.c.b16 %v124, %v123
  %v132 = vpack.c.b16 %v126, %v125
  %v155 = vunpack.c.l.b16 %v80
  %v156 = vunpack.c.l.b16 %v81
  %v157 = vunpack.c.l.b16 %v82
  %v158 = vunpack.c.l.b16 %v83
  %v159 = vunpack.c.l.b16 %v84
  %v160 = vunpack.c.l.b16 %v85
  %v161 = vunpack.c.l.b16 %v86
  %v162 = vunpack.c.l.b16 %v87
  %v163 = vunpack.c.l.b16 %v88
  %v164 = vunpack.c.l.b16 %v89
  %v165 = vunpack.c.l.b16 %v90
  %v166 = vunpack.c.l.b16 %v91
  %v167 = vunpack.c.l.b16 %v92
  %v168 = vunpack.c.l.b16 %v93
  %v169 = vunpack.c.l.b16 %v94
  %v170 = vunpack.c.l.b16 %v95
  %v171 = vpack.c.b16 %v156, %v155
  %v172 = vpack.c.b16 %v158, %v157
  %v173 = vpack.c.b16 %v160, %v159
  %v174 = vpack.c.b16 %v162, %v161
  %v175 = vpack.c.b16 %v164, %v163
  %v176 = vpack.c.b16 %v166, %v165
  %v177 = vpack.c.b16 %v168, %v167
  %v178 = vpack.c.b16 %v170, %v169
  %187 = vmatprep.subr.bf16.mxu0 0
  %188 = vmatpush1.bf16.msra.mxu0 %v171
  %189 = vmatprep.subr.bf16.mxu0 0
  %190 = vmatpush1.bf16.msra.mxu0 %v172
  %191 = vmatprep.subr.bf16.mxu0 0
  %192 = vmatpush1.bf16.msra.mxu0 %v173
  %193 = vmatprep.subr.bf16.mxu0 0
  %194 = vmatpush1.bf16.msra.mxu0 %v174
  %195 = vmatprep.subr.bf16.mxu0 0
  %196 = vmatpush1.bf16.msra.mxu0 %v175
  %197 = vmatprep.subr.bf16.mxu0 0
  %198 = vmatpush1.bf16.msra.mxu0 %v176
  %199 = vmatprep.subr.bf16.mxu0 0
  %200 = vmatpush1.bf16.msra.mxu0 %v177
  %201 = vmatprep.subr.bf16.mxu0 0
  %202 = vmatpush1.bf16.msra.mxu0 %v178
  %203 = vmatprep.subr.bf16.mxu0 0
  %204 = vmatpush1.bf16.msra.mxu0 0
  %205 = vmatprep.subr.bf16.mxu0 0
  %206 = vmatpush1.bf16.msra.mxu0 0
  %207 = vmatprep.subr.bf16.mxu0 0
  %208 = vmatpush1.bf16.msra.mxu0 0
  %209 = vmatprep.subr.bf16.mxu0 0
  %210 = vmatpush1.bf16.msra.mxu0 0
  %211 = vmatprep.subr.bf16.mxu0 0
  %212 = vmatpush1.bf16.msra.mxu0 0
  %213 = vmatprep.subr.bf16.mxu0 0
  %214 = vmatpush1.bf16.msra.mxu0 0
  %215 = vmatprep.subr.bf16.mxu0 0
  %216 = vmatpush1.bf16.msra.mxu0 0
  %217 = vmatprep.subr.bf16.mxu0 0
  %218 = vmatpush1.bf16.msra.mxu0 0
  %219 = vmatprep.mubr.bf16.mxu0 0
  %220 = vmatmul.mubr.bf16.gmra.mrb[0].mxu0 %v127
  %v221 = vpop.f32.mrb[0].mxu0
  %v222 = vadd.f32 %v101, %v221
  %v223 = vpop.f32.mrb[0].mxu0
  %v224 = vpop.f32.mrb[0].mxu0
  %v225 = vadd.f32 %v101, %v224
  %v226 = vpop.f32.mrb[0].mxu0
  %227 = vmatprep.mubr.bf16.mxu0 0
  %228 = vmatmul.mubr.bf16.gmra.mrb[0].mxu0 %v128
  %v229 = vpop.f32.mrb[0].mxu0
  %v230 = vadd.f32 %v101, %v229
  %v231 = vpop.f32.mrb[0].mxu0
  %v232 = vpop.f32.mrb[0].mxu0
  %v233 = vadd.f32 %v101, %v232
  %v234 = vpop.f32.mrb[0].mxu0
  %235 = vmatprep.mubr.bf16.mxu0 0
  %236 = vmatmul.mubr.bf16.gmra.mrb[0].mxu0 %v129
  %v237 = vpop.f32.mrb[0].mxu0
  %v238 = vadd.f32 %v101, %v237
  %v239 = vpop.f32.mrb[0].mxu0
  %v240 = vpop.f32.mrb[0].mxu0
  %v241 = vadd.f32 %v101, %v240
  %v242 = vpop.f32.mrb[0].mxu0
  %243 = vmatprep.mubr.bf16.mxu0 0
  %244 = vmatmul.mubr.bf16.gmra.mrb[0].mxu0 %v130
  %v245 = vpop.f32.mrb[0].mxu0
  %v246 = vadd.f32 %v101, %v245
  %v247 = vpop.f32.mrb[0].mxu0
  %v248 = vpop.f32.mrb[0].mxu0
  %v249 = vadd.f32 %v101, %v248
  %v250 = vpop.f32.mrb[0].mxu0
  %251 = vmatprep.mubr.bf16.mxu0 0
  %252 = vmatmul.mubr.bf16.gmra.mrb[0].mxu0 %v131
  %v253 = vpop.f32.mrb[0].mxu0
  %v254 = vadd.f32 %v101, %v253
  %v255 = vpop.f32.mrb[0].mxu0
  %v256 = vpop.f32.mrb[0].mxu0
  %v257 = vadd.f32 %v101, %v256
  %v258 = vpop.f32.mrb[0].mxu0
  %259 = vmatprep.mubr.bf16.mxu0 0
  %260 = vmatmul.mubr.bf16.gmra.mrb[0].mxu0 %v132
  %v261 = vpop.f32.mrb[0].mxu0
  %v262 = vadd.f32 %v101, %v261
  %v263 = vpop.f32.mrb[0].mxu0
  %v264 = vpop.f32.mrb[0].mxu0
  %v265 = vadd.f32 %v101, %v264
  %v266 = vpop.f32.mrb[0].mxu0
  %267 = vdwg.mxu0
  %v268 = vld [vmem:[%s2] sm:$0x1]
  %v270 = vlaneseq
  %v271 = vshrl.u32 %v270, 7
  %v272 = vsub.s32 0, %v271
  %v273 = vrot.slane %v268, %v272
  %v287 = vunpack.c.l.b16 %v24
  %v288 = vunpack.c.h.b16 %v24
  %v289 = vunpack.c.l.b16 %v25
  %v290 = vunpack.c.h.b16 %v25
  %v291 = vunpack.c.l.b16 %v26
  %v292 = vunpack.c.h.b16 %v26
  %v293 = vunpack.c.l.b16 %v27
  %v294 = vunpack.c.h.b16 %v27
  %v295 = vunpack.c.l.b16 %v28
  %v296 = vunpack.c.h.b16 %v28
  %v297 = vunpack.c.l.b16 %v29
  %v298 = vunpack.c.h.b16 %v29
  %v299 = vunpack.c.l.b16 %v30
  %v300 = vunpack.c.h.b16 %v30
  %v301 = vunpack.c.l.b16 %v31
  %v302 = vunpack.c.h.b16 %v31
  %v303 = vunpack.c.l.b16 %v32
  %v304 = vunpack.c.h.b16 %v32
  %v305 = vunpack.c.l.b16 %v33
  %v306 = vunpack.c.h.b16 %v33
  %v307 = vunpack.c.l.b16 %v34
  %v308 = vunpack.c.h.b16 %v34
  %v309 = vunpack.c.l.b16 %v35
  %v310 = vunpack.c.h.b16 %v35
  %v311 = vpack.c.b16 %v289, %v287
  %v312 = vpack.c.b16 %v290, %v288
  %v313 = vpack.c.b16 %v293, %v291
  %v314 = vpack.c.b16 %v294, %v292
  %v315 = vpack.c.b16 %v297, %v295
  %v316 = vpack.c.b16 %v298, %v296
  %v317 = vpack.c.b16 %v301, %v299
  %v318 = vpack.c.b16 %v302, %v300
  %v319 = vpack.c.b16 %v305, %v303
  %v320 = vpack.c.b16 %v306, %v304
  %v321 = vpack.c.b16 %v309, %v307
  %v322 = vpack.c.b16 %v310, %v308
  %v367 = vunpack.c.l.b16 %v36
  %v368 = vunpack.c.l.b16 %v37
  %v369 = vunpack.c.l.b16 %v38
  %v370 = vunpack.c.l.b16 %v39
  %v371 = vunpack.c.l.b16 %v40
  %v372 = vunpack.c.l.b16 %v41
  %v373 = vunpack.c.l.b16 %v42
  %v374 = vunpack.c.l.b16 %v43
  %v375 = vunpack.c.l.b16 %v44
  %v376 = vunpack.c.l.b16 %v45
  %v377 = vunpack.c.l.b16 %v46
  %v378 = vunpack.c.l.b16 %v47
  %v379 = vunpack.c.l.b16 %v48
  %v380 = vunpack.c.l.b16 %v49
  %v381 = vunpack.c.l.b16 %v50
  %v382 = vunpack.c.l.b16 %v51
  %v383 = vunpack.c.l.b16 %v52
  %v384 = vunpack.c.l.b16 %v53
  %v385 = vunpack.c.l.b16 %v54
  %v386 = vunpack.c.l.b16 %v55
  %v387 = vunpack.c.l.b16 %v56
  %v388 = vunpack.c.l.b16 %v57
  %v389 = vunpack.c.l.b16 %v58
  %v390 = vunpack.c.l.b16 %v59
  %v391 = vunpack.c.l.b16 %v60
  %v392 = vunpack.c.l.b16 %v61
  %v393 = vunpack.c.l.b16 %v62
  %v394 = vunpack.c.l.b16 %v63
  %v395 = vunpack.c.l.b16 %v64
  %v396 = vunpack.c.l.b16 %v65
  %v397 = vunpack.c.l.b16 %v66
  %v398 = vunpack.c.l.b16 %v67
  %v399 = vpack.c.b16 %v368, %v367
  %v400 = vpack.c.b16 %v370, %v369
  %v401 = vpack.c.b16 %v372, %v371
  %v402 = vpack.c.b16 %v374, %v373
  %v403 = vpack.c.b16 %v376, %v375
  %v404 = vpack.c.b16 %v378, %v377
  %v405 = vpack.c.b16 %v380, %v379
  %v406 = vpack.c.b16 %v382, %v381
  %v407 = vpack.c.b16 %v384, %v383
  %v408 = vpack.c.b16 %v386, %v385
  %v409 = vpack.c.b16 %v388, %v387
  %v410 = vpack.c.b16 %v390, %v389
  %v411 = vpack.c.b16 %v392, %v391
  %v412 = vpack.c.b16 %v394, %v393
  %v413 = vpack.c.b16 %v396, %v395
  %v414 = vpack.c.b16 %v398, %v397
  %431 = vmatprep.subr.bf16.mxu0 0
  %432 = vmatpush1.bf16.msra.mxu0 %v399
  %433 = vmatprep.subr.bf16.mxu0 0
  %434 = vmatpush1.bf16.msra.mxu0 %v400
  %435 = vmatprep.subr.bf16.mxu0 0
  %436 = vmatpush1.bf16.msra.mxu0 %v401
  %437 = vmatprep.subr.bf16.mxu0 0
  %438 = vmatpush1.bf16.msra.mxu0 %v402
  %439 = vmatprep.subr.bf16.mxu0 0
  %440 = vmatpush1.bf16.msra.mxu0 %v403
  %441 = vmatprep.subr.bf16.mxu0 0
  %442 = vmatpush1.bf16.msra.mxu0 %v404
  %443 = vmatprep.subr.bf16.mxu0 0
  %444 = vmatpush1.bf16.msra.mxu0 %v405
  %445 = vmatprep.subr.bf16.mxu0 0
  %446 = vmatpush1.bf16.msra.mxu0 %v406
  %447 = vmatprep.subr.bf16.mxu0 0
  %448 = vmatpush1.bf16.msra.mxu0 %v407
  %449 = vmatprep.subr.bf16.mxu0 0
  %450 = vmatpush1.bf16.msra.mxu0 %v408
  %451 = vmatprep.subr.bf16.mxu0 0
  %452 = vmatpush1.bf16.msra.mxu0 %v409
  %453 = vmatprep.subr.bf16.mxu0 0
  %454 = vmatpush1.bf16.msra.mxu0 %v410
  %455 = vmatprep.subr.bf16.mxu0 0
  %456 = vmatpush1.bf16.msra.mxu0 %v411
  %457 = vmatprep.subr.bf16.mxu0 0
  %458 = vmatpush1.bf16.msra.mxu0 %v412
  %459 = vmatprep.subr.bf16.mxu0 0
  %460 = vmatpush1.bf16.msra.mxu0 %v413
  %461 = vmatprep.subr.bf16.mxu0 0
  %462 = vmatpush1.bf16.msra.mxu0 %v414
  %463 = vmatprep.mubr.bf16.mxu0 %v312
  %464 = vmatmul.mubr.bf16.gmra.mrb[0].mxu0 %v311
  %v465 = vpop.f32.mrb[0].mxu0
  %v466 = vadd.f32 %v273, %v465
  %v467 = vpop.f32.mrb[0].mxu0
  %v468 = vpop.f32.mrb[0].mxu0
  %v469 = vadd.f32 %v273, %v468
  %v470 = vpop.f32.mrb[0].mxu0
  %471 = vmatprep.mubr.bf16.mxu0 %v314
  %472 = vmatmul.mubr.bf16.gmra.mrb[0].mxu0 %v313
  %v473 = vpop.f32.mrb[0].mxu0
  %v474 = vadd.f32 %v273, %v473
  %v475 = vpop.f32.mrb[0].mxu0
  %v476 = vpop.f32.mrb[0].mxu0
  %v477 = vadd.f32 %v273, %v476
  %v478 = vpop.f32.mrb[0].mxu0
  %479 = vmatprep.mubr.bf16.mxu0 %v316
  %480 = vmatmul.mubr.bf16.gmra.mrb[0].mxu0 %v315
  %v481 = vpop.f32.mrb[0].mxu0
  %v482 = vadd.f32 %v273, %v481
  %v483 = vpop.f32.mrb[0].mxu0
  %v484 = vpop.f32.mrb[0].mxu0
  %v485 = vadd.f32 %v273, %v484
  %v486 = vpop.f32.mrb[0].mxu0
  %487 = vmatprep.mubr.bf16.mxu0 %v318
  %488 = vmatmul.mubr.bf16.gmra.mrb[0].mxu0 %v317
  %v489 = vpop.f32.mrb[0].mxu0
  %v490 = vadd.f32 %v273, %v489
  %v491 = vpop.f32.mrb[0].mxu0
  %v492 = vpop.f32.mrb[0].mxu0
  %v493 = vadd.f32 %v273, %v492
  %v494 = vpop.f32.mrb[0].mxu0
  %495 = vmatprep.mubr.bf16.mxu0 %v320
  %496 = vmatmul.mubr.bf16.gmra.mrb[0].mxu0 %v319
  %v497 = vpop.f32.mrb[0].mxu0
  %v498 = vadd.f32 %v273, %v497
  %v499 = vpop.f32.mrb[0].mxu0
  %v500 = vpop.f32.mrb[0].mxu0
  %v501 = vadd.f32 %v273, %v500
  %v502 = vpop.f32.mrb[0].mxu0
  %503 = vmatprep.mubr.bf16.mxu0 %v322
  %504 = vmatmul.mubr.bf16.gmra.mrb[0].mxu0 %v321
  %v505 = vpop.f32.mrb[0].mxu0
  %v506 = vadd.f32 %v273, %v505
  %v507 = vpop.f32.mrb[0].mxu0
  %v508 = vpop.f32.mrb[0].mxu0
  %v509 = vadd.f32 %v273, %v508
  %v510 = vpop.f32.mrb[0].mxu0
  %511 = vdwg.mxu0
  %v512 = vadd.f32 %v466, %v222
  %v513 = vadd.f32 %v469, %v225
  %v514 = vadd.f32 %v474, %v230
  %v515 = vadd.f32 %v477, %v233
  %v516 = vadd.f32 %v482, %v238
  %v517 = vadd.f32 %v485, %v241
  %v518 = vadd.f32 %v490, %v246
  %v519 = vadd.f32 %v493, %v249
  %v520 = vadd.f32 %v498, %v254
  %v521 = vadd.f32 %v501, %v257
  %v522 = vadd.f32 %v506, %v262
  %v523 = vadd.f32 %v509, %v265
  %v524 = vmax.f32 %v512, 0.0
  %v525 = vmax.f32 %v513, 0.0
  %v526 = vmax.f32 %v514, 0.0
  %v527 = vmax.f32 %v515, 0.0
  %v528 = vmax.f32 %v516, 0.0
  %v529 = vmax.f32 %v517, 0.0
  %v530 = vmax.f32 %v518, 0.0
  %v531 = vmax.f32 %v519, 0.0
  %v532 = vmax.f32 %v520, 0.0
  %v533 = vmax.f32 %v521, 0.0
  %v534 = vmax.f32 %v522, 0.0
  %v535 = vmax.f32 %v523, 0.0
  %v536 = vpack.c.bf16 %v525, %v524
  %v537 = vpack.c.bf16 %v527, %v526
  %v538 = vpack.c.bf16 %v529, %v528
  %v539 = vpack.c.bf16 %v531, %v530
  %v540 = vpack.c.bf16 %v533, %v532
  %v541 = vpack.c.bf16 %v535, %v534
  %v548 = vunpack.c.l.b16 %v536
  %v549 = vunpack.c.h.b16 %v536
  %v550 = vunpack.c.l.b16 %v537
  %v551 = vunpack.c.h.b16 %v537
  %v552 = vunpack.c.l.b16 %v538
  %v553 = vunpack.c.h.b16 %v538
  %v554 = vunpack.c.l.b16 %v539
  %v555 = vunpack.c.h.b16 %v539
  %v556 = vunpack.c.l.b16 %v540
  %v557 = vunpack.c.h.b16 %v540
  %v558 = vunpack.c.l.b16 %v541
  %v559 = vunpack.c.h.b16 %v541
  %v560 = vpack.c.b16 %v548, %v548
  %v561 = vpack.c.b16 %v549, %v549
  %v562 = vpack.c.b16 %v550, %v550
  %v563 = vpack.c.b16 %v551, %v551
  %v564 = vpack.c.b16 %v552, %v552
  %v565 = vpack.c.b16 %v553, %v553
  %v566 = vpack.c.b16 %v554, %v554
  %v567 = vpack.c.b16 %v555, %v555
  %v568 = vpack.c.b16 %v556, %v556
  %v569 = vpack.c.b16 %v557, %v557
  %v570 = vpack.c.b16 %v558, %v558
  %v571 = vpack.c.b16 %v559, %v559
  %584 = vst [vmem:[%s6] sm:$0xf] %v560
  %585 = vst [vmem:[%s6 + $0x4] sm:$0xf] %v561
  %586 = vst [vmem:[%s6 + $0x8] sm:$0xf] %v562
  %587 = vst [vmem:[%s6 + $0xc] sm:$0xf] %v563
  %588 = vst [vmem:[%s6 + $0x10] sm:$0xf] %v564
  %589 = vst [vmem:[%s6 + $0x14] sm:$0xf] %v565
  %590 = vst [vmem:[%s6 + $0x18] sm:$0xf] %v566
  %591 = vst [vmem:[%s6 + $0x1c] sm:$0xf] %v567
  %592 = vst [vmem:[%s6 + $0x20] sm:$0xf] %v568
  %593 = vst [vmem:[%s6 + $0x24] sm:$0xf] %v569
  %594 = vst [vmem:[%s6 + $0x28] sm:$0xf] %v570
  %595 = vst [vmem:[%s6 + $0x2c] sm:$0xf] %v571
  // Predicated region
  $region26: #{triplet_net_forward.25} parent=0 // pred_check
    _
  $region27: #{triplet_net_forward.25} parent=0 // pred_check_branch
    %597 = sbr.rel (0) target = $region29
  $region28: #{triplet_net_forward.25} parent=0 // pred_region
    _
  $region29: #{triplet_net_forward.25} parent=0 // pred_fallthru
    _
  // Predicated region
  $region30: #{triplet_net_forward.25} parent=0 // pred_check
    _
  $region31: #{triplet_net_forward.25} parent=0 // pred_check_branch
    %599 = sbr.rel (0) target = $region33
  $region32: #{triplet_net_forward.25} parent=0 // pred_region
    _
  $region33: #{triplet_net_forward.25} parent=0 // pred_fallthru
    _

// kernel: triplet_net_forward.27
$region0: #{triplet_net_forward.27}
  #allocation0 [shape = 'u32[]', space=smem, size = 0x4, offset = 0x4, fixed_abs, tag = 'smem constant byte address 0x4 - core index']
  #allocation1 [shape = 'u32[144,128]{1,0:T(1,128)}', space=vmem, size = 0x12000, scoped, tag = 'internal scratch']
  %s0 = inlined_call_operand.vmem [shape: bf16[96,256], index: 0, kind: input, shape index: {}]
  %s1 = inlined_call_operand.vmem [shape: bf16[256,128], index: 1, kind: input, shape index: {}]
  %s2 = inlined_call_operand.vmem [shape: f32[1,128], index: 2, kind: input, shape index: {}]
  %s3 = inlined_call_operand.vmem [shape: bf16[96,128], index: 3, kind: input, shape index: {}]
  %s4 = inlined_call_operand.vmem [shape: bf16[96,128], index: 4, kind: output, shape index: {}]
  %s5 = sld [smem:[#allocation0]]
  $region26: #{triplet_net_forward.27} parent=0
    _
  %s7 = ssub.s32 1, %s5
  %s8 = scalar_select 0, %s7, %s5
  // Predicated region
  $region2: #{triplet_net_forward.27} parent=0 // pred_check
    _
  $region3: #{triplet_net_forward.27} parent=0 // pred_check_branch
    %10 = sbr.rel (0) target = $region5
  $region4: #{triplet_net_forward.27} parent=0 // pred_region
    _
  $region5: #{triplet_net_forward.27} parent=0 // pred_fallthru
    _
  // Predicated region
  $region6: #{triplet_net_forward.27} parent=0 // pred_check
    _
  $region7: #{triplet_net_forward.27} parent=0 // pred_check_branch
    %12 = sbr.rel (0) target = $region9
  $region8: #{triplet_net_forward.27} parent=0 // pred_region
    _
  $region9: #{triplet_net_forward.27} parent=0 // pred_fallthru
    _
  // Predicated region
  $region10: #{triplet_net_forward.27} parent=0 // pred_check
    _
  $region11: #{triplet_net_forward.27} parent=0 // pred_check_branch
    %14 = sbr.rel (0) target = $region13
  $region12: #{triplet_net_forward.27} parent=0 // pred_region
    _
  $region13: #{triplet_net_forward.27} parent=0 // pred_fallthru
    _
  // Predicated region
  $region14: #{triplet_net_forward.27} parent=0 // pred_check
    _
  $region15: #{triplet_net_forward.27} parent=0 // pred_check_branch
    %16 = sbr.rel (0) target = $region17
  $region16: #{triplet_net_forward.27} parent=0 // pred_region
    _
  $region17: #{triplet_net_forward.27} parent=0 // pred_fallthru
    _
  %v18 = vld [vmem:[%s0] sm:$0xff]
  %v19 = vld [vmem:[%s0 + $0x8] sm:$0xff]
  %v20 = vld [vmem:[%s0 + $0x10] sm:$0xff]
  %v21 = vld [vmem:[%s0 + $0x18] sm:$0xff]
  %v22 = vld [vmem:[%s0 + $0x20] sm:$0xff]
  %v23 = vld [vmem:[%s0 + $0x28] sm:$0xff]
  %v24 = vld [vmem:[%s0 + $0x30] sm:$0xff]
  %v25 = vld [vmem:[%s0 + $0x38] sm:$0xff]
  %v26 = vld [vmem:[%s0 + $0x40] sm:$0xff]
  %v27 = vld [vmem:[%s0 + $0x48] sm:$0xff]
  %v28 = vld [vmem:[%s0 + $0x50] sm:$0xff]
  %v29 = vld [vmem:[%s0 + $0x58] sm:$0xff]
  %v30 = vld [vmem:[%s1] sm:$0xf]
  %v31 = vld [vmem:[%s1 + $0x4] sm:$0xf]
  %v32 = vld [vmem:[%s1 + $0x8] sm:$0xf]
  %v33 = vld [vmem:[%s1 + $0xc] sm:$0xf]
  %v34 = vld [vmem:[%s1 + $0x10] sm:$0xf]
  %v35 = vld [vmem:[%s1 + $0x14] sm:$0xf]
  %v36 = vld [vmem:[%s1 + $0x18] sm:$0xf]
  %v37 = vld [vmem:[%s1 + $0x1c] sm:$0xf]
  %v38 = vld [vmem:[%s1 + $0x20] sm:$0xf]
  %v39 = vld [vmem:[%s1 + $0x24] sm:$0xf]
  %v40 = vld [vmem:[%s1 + $0x28] sm:$0xf]
  %v41 = vld [vmem:[%s1 + $0x2c] sm:$0xf]
  %v42 = vld [vmem:[%s1 + $0x30] sm:$0xf]
  %v43 = vld [vmem:[%s1 + $0x34] sm:$0xf]
  %v44 = vld [vmem:[%s1 + $0x38] sm:$0xf]
  %v45 = vld [vmem:[%s1 + $0x3c] sm:$0xf]
  %v46 = vld [vmem:[%s1 + $0x40] sm:$0xf]
  %v47 = vld [vmem:[%s1 + $0x44] sm:$0xf]
  %v48 = vld [vmem:[%s1 + $0x48] sm:$0xf]
  %v49 = vld [vmem:[%s1 + $0x4c] sm:$0xf]
  %v50 = vld [vmem:[%s1 + $0x50] sm:$0xf]
  %v51 = vld [vmem:[%s1 + $0x54] sm:$0xf]
  %v52 = vld [vmem:[%s1 + $0x58] sm:$0xf]
  %v53 = vld [vmem:[%s1 + $0x5c] sm:$0xf]
  %v54 = vld [vmem:[%s1 + $0x60] sm:$0xf]
  %v55 = vld [vmem:[%s1 + $0x64] sm:$0xf]
  %v56 = vld [vmem:[%s1 + $0x68] sm:$0xf]
  %v57 = vld [vmem:[%s1 + $0x6c] sm:$0xf]
  %v58 = vld [vmem:[%s1 + $0x70] sm:$0xf]
  %v59 = vld [vmem:[%s1 + $0x74] sm:$0xf]
  %v60 = vld [vmem:[%s1 + $0x78] sm:$0xf]
  %v61 = vld [vmem:[%s1 + $0x7c] sm:$0xf]
  %v62 = vld [vmem:[%s2] sm:$0x1]
  %v64 = vlaneseq
  %v65 = vshrl.u32 %v64, 7
  %v66 = vsub.s32 0, %v65
  %v67 = vrot.slane %v62, %v66
  %v81 = vunpack.c.l.b16 %v18
  %v82 = vunpack.c.h.b16 %v18
  %v83 = vunpack.c.l.b16 %v19
  %v84 = vunpack.c.h.b16 %v19
  %v85 = vunpack.c.l.b16 %v20
  %v86 = vunpack.c.h.b16 %v20
  %v87 = vunpack.c.l.b16 %v21
  %v88 = vunpack.c.h.b16 %v21
  %v89 = vunpack.c.l.b16 %v22
  %v90 = vunpack.c.h.b16 %v22
  %v91 = vunpack.c.l.b16 %v23
  %v92 = vunpack.c.h.b16 %v23
  %v93 = vunpack.c.l.b16 %v24
  %v94 = vunpack.c.h.b16 %v24
  %v95 = vunpack.c.l.b16 %v25
  %v96 = vunpack.c.h.b16 %v25
  %v97 = vunpack.c.l.b16 %v26
  %v98 = vunpack.c.h.b16 %v26
  %v99 = vunpack.c.l.b16 %v27
  %v100 = vunpack.c.h.b16 %v27
  %v101 = vunpack.c.l.b16 %v28
  %v102 = vunpack.c.h.b16 %v28
  %v103 = vunpack.c.l.b16 %v29
  %v104 = vunpack.c.h.b16 %v29
  %v105 = vpack.c.b16 %v83, %v81
  %v106 = vpack.c.b16 %v84, %v82
  %v107 = vpack.c.b16 %v87, %v85
  %v108 = vpack.c.b16 %v88, %v86
  %v109 = vpack.c.b16 %v91, %v89
  %v110 = vpack.c.b16 %v92, %v90
  %v111 = vpack.c.b16 %v95, %v93
  %v112 = vpack.c.b16 %v96, %v94
  %v113 = vpack.c.b16 %v99, %v97
  %v114 = vpack.c.b16 %v100, %v98
  %v115 = vpack.c.b16 %v103, %v101
  %v116 = vpack.c.b16 %v104, %v102
  %v161 = vunpack.c.l.b16 %v30
  %v162 = vunpack.c.l.b16 %v31
  %v163 = vunpack.c.l.b16 %v32
  %v164 = vunpack.c.l.b16 %v33
  %v165 = vunpack.c.l.b16 %v34
  %v166 = vunpack.c.l.b16 %v35
  %v167 = vunpack.c.l.b16 %v36
  %v168 = vunpack.c.l.b16 %v37
  %v169 = vunpack.c.l.b16 %v38
  %v170 = vunpack.c.l.b16 %v39
  %v171 = vunpack.c.l.b16 %v40
  %v172 = vunpack.c.l.b16 %v41
  %v173 = vunpack.c.l.b16 %v42
  %v174 = vunpack.c.l.b16 %v43
  %v175 = vunpack.c.l.b16 %v44
  %v176 = vunpack.c.l.b16 %v45
  %v177 = vunpack.c.l.b16 %v46
  %v178 = vunpack.c.l.b16 %v47
  %v179 = vunpack.c.l.b16 %v48
  %v180 = vunpack.c.l.b16 %v49
  %v181 = vunpack.c.l.b16 %v50
  %v182 = vunpack.c.l.b16 %v51
  %v183 = vunpack.c.l.b16 %v52
  %v184 = vunpack.c.l.b16 %v53
  %v185 = vunpack.c.l.b16 %v54
  %v186 = vunpack.c.l.b16 %v55
  %v187 = vunpack.c.l.b16 %v56
  %v188 = vunpack.c.l.b16 %v57
  %v189 = vunpack.c.l.b16 %v58
  %v190 = vunpack.c.l.b16 %v59
  %v191 = vunpack.c.l.b16 %v60
  %v192 = vunpack.c.l.b16 %v61
  %v193 = vpack.c.b16 %v162, %v161
  %v194 = vpack.c.b16 %v164, %v163
  %v195 = vpack.c.b16 %v166, %v165
  %v196 = vpack.c.b16 %v168, %v167
  %v197 = vpack.c.b16 %v170, %v169
  %v198 = vpack.c.b16 %v172, %v171
  %v199 = vpack.c.b16 %v174, %v173
  %v200 = vpack.c.b16 %v176, %v175
  %v201 = vpack.c.b16 %v178, %v177
  %v202 = vpack.c.b16 %v180, %v179
  %v203 = vpack.c.b16 %v182, %v181
  %v204 = vpack.c.b16 %v184, %v183
  %v205 = vpack.c.b16 %v186, %v185
  %v206 = vpack.c.b16 %v188, %v187
  %v207 = vpack.c.b16 %v190, %v189
  %v208 = vpack.c.b16 %v192, %v191
  %225 = vmatprep.subr.bf16.mxu0 0
  %226 = vmatpush1.bf16.msra.mxu0 %v193
  %227 = vmatprep.subr.bf16.mxu0 0
  %228 = vmatpush1.bf16.msra.mxu0 %v194
  %229 = vmatprep.subr.bf16.mxu0 0
  %230 = vmatpush1.bf16.msra.mxu0 %v195
  %231 = vmatprep.subr.bf16.mxu0 0
  %232 = vmatpush1.bf16.msra.mxu0 %v196
  %233 = vmatprep.subr.bf16.mxu0 0
  %234 = vmatpush1.bf16.msra.mxu0 %v197
  %235 = vmatprep.subr.bf16.mxu0 0
  %236 = vmatpush1.bf16.msra.mxu0 %v198
  %237 = vmatprep.subr.bf16.mxu0 0
  %238 = vmatpush1.bf16.msra.mxu0 %v199
  %239 = vmatprep.subr.bf16.mxu0 0
  %240 = vmatpush1.bf16.msra.mxu0 %v200
  %241 = vmatprep.subr.bf16.mxu0 0
  %242 = vmatpush1.bf16.msra.mxu0 %v201
  %243 = vmatprep.subr.bf16.mxu0 0
  %244 = vmatpush1.bf16.msra.mxu0 %v202
  %245 = vmatprep.subr.bf16.mxu0 0
  %246 = vmatpush1.bf16.msra.mxu0 %v203
  %247 = vmatprep.subr.bf16.mxu0 0
  %248 = vmatpush1.bf16.msra.mxu0 %v204
  %249 = vmatprep.subr.bf16.mxu0 0
  %250 = vmatpush1.bf16.msra.mxu0 %v205
  %251 = vmatprep.subr.bf16.mxu0 0
  %252 = vmatpush1.bf16.msra.mxu0 %v206
  %253 = vmatprep.subr.bf16.mxu0 0
  %254 = vmatpush1.bf16.msra.mxu0 %v207
  %255 = vmatprep.subr.bf16.mxu0 0
  %256 = vmatpush1.bf16.msra.mxu0 %v208
  %257 = vmatprep.mubr.bf16.mxu0 %v106
  %258 = vmatmul.mubr.bf16.gmra.mrb[0].mxu0 %v105
  %v259 = vpop.f32.mrb[0].mxu0
  %v260 = vadd.f32 %v67, %v259
  %v261 = vpop.f32.mrb[0].mxu0
  %v262 = vpop.f32.mrb[0].mxu0
  %v263 = vadd.f32 %v67, %v262
  %v264 = vpop.f32.mrb[0].mxu0
  %265 = vmatprep.mubr.bf16.mxu0 %v108
  %266 = vmatmul.mubr.bf16.gmra.mrb[0].mxu0 %v107
  %v267 = vpop.f32.mrb[0].mxu0
  %v268 = vadd.f32 %v67, %v267
  %v269 = vpop.f32.mrb[0].mxu0
  %v270 = vpop.f32.mrb[0].mxu0
  %v271 = vadd.f32 %v67, %v270
  %v272 = vpop.f32.mrb[0].mxu0
  %273 = vmatprep.mubr.bf16.mxu0 %v110
  %274 = vmatmul.mubr.bf16.gmra.mrb[0].mxu0 %v109
  %v275 = vpop.f32.mrb[0].mxu0
  %v276 = vadd.f32 %v67, %v275
  %v277 = vpop.f32.mrb[0].mxu0
  %v278 = vpop.f32.mrb[0].mxu0
  %v279 = vadd.f32 %v67, %v278
  %v280 = vpop.f32.mrb[0].mxu0
  %281 = vmatprep.mubr.bf16.mxu0 %v112
  %282 = vmatmul.mubr.bf16.gmra.mrb[0].mxu0 %v111
  %v283 = vpop.f32.mrb[0].mxu0
  %v284 = vadd.f32 %v67, %v283
  %v285 = vpop.f32.mrb[0].mxu0
  %v286 = vpop.f32.mrb[0].mxu0
  %v287 = vadd.f32 %v67, %v286
  %v288 = vpop.f32.mrb[0].mxu0
  %289 = vmatprep.mubr.bf16.mxu0 %v114
  %290 = vmatmul.mubr.bf16.gmra.mrb[0].mxu0 %v113
  %v291 = vpop.f32.mrb[0].mxu0
  %v292 = vadd.f32 %v67, %v291
  %v293 = vpop.f32.mrb[0].mxu0
  %v294 = vpop.f32.mrb[0].mxu0
  %v295 = vadd.f32 %v67, %v294
  %v296 = vpop.f32.mrb[0].mxu0
  %297 = vmatprep.mubr.bf16.mxu0 %v116
  %298 = vmatmul.mubr.bf16.gmra.mrb[0].mxu0 %v115
  %v299 = vpop.f32.mrb[0].mxu0
  %v300 = vadd.f32 %v67, %v299
  %v301 = vpop.f32.mrb[0].mxu0
  %v302 = vpop.f32.mrb[0].mxu0
  %v303 = vadd.f32 %v67, %v302
  %v304 = vpop.f32.mrb[0].mxu0
  %305 = vdwg.mxu0
  %v306 = vld [vmem:[%s3] sm:$0xf]
  %v307 = vld [vmem:[%s3 + $0x4] sm:$0xf]
  %v308 = vld [vmem:[%s3 + $0x8] sm:$0xf]
  %v309 = vld [vmem:[%s3 + $0xc] sm:$0xf]
  %v310 = vld [vmem:[%s3 + $0x10] sm:$0xf]
  %v311 = vld [vmem:[%s3 + $0x14] sm:$0xf]
  %v312 = vld [vmem:[%s3 + $0x18] sm:$0xf]
  %v313 = vld [vmem:[%s3 + $0x1c] sm:$0xf]
  %v314 = vld [vmem:[%s3 + $0x20] sm:$0xf]
  %v315 = vld [vmem:[%s3 + $0x24] sm:$0xf]
  %v316 = vld [vmem:[%s3 + $0x28] sm:$0xf]
  %v317 = vld [vmem:[%s3 + $0x2c] sm:$0xf]
  %v318 = vunpack.c.l.bf16 %v306
  %v319 = vunpack.c.l.bf16 %v307
  %v320 = vunpack.c.l.bf16 %v308
  %v321 = vunpack.c.l.bf16 %v309
  %v322 = vunpack.c.l.bf16 %v310
  %v323 = vunpack.c.l.bf16 %v311
  %v324 = vunpack.c.l.bf16 %v312
  %v325 = vunpack.c.l.bf16 %v313
  %v326 = vunpack.c.l.bf16 %v314
  %v327 = vunpack.c.l.bf16 %v315
  %v328 = vunpack.c.l.bf16 %v316
  %v329 = vunpack.c.l.bf16 %v317
  %v330 = vadd.f32 %v260, %v318
  %v331 = vadd.f32 %v263, %v319
  %v332 = vadd.f32 %v268, %v320
  %v333 = vadd.f32 %v271, %v321
  %v334 = vadd.f32 %v276, %v322
  %v335 = vadd.f32 %v279, %v323
  %v336 = vadd.f32 %v284, %v324
  %v337 = vadd.f32 %v287, %v325
  %v338 = vadd.f32 %v292, %v326
  %v339 = vadd.f32 %v295, %v327
  %v340 = vadd.f32 %v300, %v328
  %v341 = vadd.f32 %v303, %v329
  %v342 = vmax.f32 %v330, 0.0
  %v343 = vmax.f32 %v331, 0.0
  %v344 = vmax.f32 %v332, 0.0
  %v345 = vmax.f32 %v333, 0.0
  %v346 = vmax.f32 %v334, 0.0
  %v347 = vmax.f32 %v335, 0.0
  %v348 = vmax.f32 %v336, 0.0
  %v349 = vmax.f32 %v337, 0.0
  %v350 = vmax.f32 %v338, 0.0
  %v351 = vmax.f32 %v339, 0.0
  %v352 = vmax.f32 %v340, 0.0
  %v353 = vmax.f32 %v341, 0.0
  %v354 = vpack.c.bf16 %v343, %v342
  %v355 = vpack.c.bf16 %v345, %v344
  %v356 = vpack.c.bf16 %v347, %v346
  %v357 = vpack.c.bf16 %v349, %v348
  %v358 = vpack.c.bf16 %v351, %v350
  %v359 = vpack.c.bf16 %v353, %v352
  %v366 = vunpack.c.l.b16 %v354
  %v367 = vunpack.c.h.b16 %v354
  %v368 = vunpack.c.l.b16 %v355
  %v369 = vunpack.c.h.b16 %v355
  %v370 = vunpack.c.l.b16 %v356
  %v371 = vunpack.c.h.b16 %v356
  %v372 = vunpack.c.l.b16 %v357
  %v373 = vunpack.c.h.b16 %v357
  %v374 = vunpack.c.l.b16 %v358
  %v375 = vunpack.c.h.b16 %v358
  %v376 = vunpack.c.l.b16 %v359
  %v377 = vunpack.c.h.b16 %v359
  %v378 = vpack.c.b16 %v366, %v366
  %v379 = vpack.c.b16 %v367, %v367
  %v380 = vpack.c.b16 %v368, %v368
  %v381 = vpack.c.b16 %v369, %v369
  %v382 = vpack.c.b16 %v370, %v370
  %v383 = vpack.c.b16 %v371, %v371
  %v384 = vpack.c.b16 %v372, %v372
  %v385 = vpack.c.b16 %v373, %v373
  %v386 = vpack.c.b16 %v374, %v374
  %v387 = vpack.c.b16 %v375, %v375
  %v388 = vpack.c.b16 %v376, %v376
  %v389 = vpack.c.b16 %v377, %v377
  %402 = vst [vmem:[%s4] sm:$0xf] %v378
  %403 = vst [vmem:[%s4 + $0x4] sm:$0xf] %v379
  %404 = vst [vmem:[%s4 + $0x8] sm:$0xf] %v380
  %405 = vst [vmem:[%s4 + $0xc] sm:$0xf] %v381
  %406 = vst [vmem:[%s4 + $0x10] sm:$0xf] %v382
  %407 = vst [vmem:[%s4 + $0x14] sm:$0xf] %v383
  %408 = vst [vmem:[%s4 + $0x18] sm:$0xf] %v384
  %409 = vst [vmem:[%s4 + $0x1c] sm:$0xf] %v385
  %410 = vst [vmem:[%s4 + $0x20] sm:$0xf] %v386
  %411 = vst [vmem:[%s4 + $0x24] sm:$0xf] %v387
  %412 = vst [vmem:[%s4 + $0x28] sm:$0xf] %v388
  %413 = vst [vmem:[%s4 + $0x2c] sm:$0xf] %v389
  // Predicated region
  $region18: #{triplet_net_forward.27} parent=0 // pred_check
    _
  $region19: #{triplet_net_forward.27} parent=0 // pred_check_branch
    %415 = sbr.rel (0) target = $region21
  $region20: #{triplet_net_forward.27} parent=0 // pred_region
    _
  $region21: #{triplet_net_forward.27} parent=0 // pred_fallthru
    _
  // Predicated region
  $region22: #{triplet_net_forward.27} parent=0 // pred_check
    _
  $region23: #{triplet_net_forward.27} parent=0 // pred_check_branch
    %417 = sbr.rel (0) target = $region25
  $region24: #{triplet_net_forward.27} parent=0 // pred_region
    _
  $region25: #{triplet_net_forward.27} parent=0 // pred_fallthru
    _

// kernel: triplet_net_forward.28
$region0: #{triplet_net_forward.28}
  #allocation0 [shape = 'u32[]', space=smem, size = 0x4, offset = 0x4, fixed_abs, tag = 'smem constant byte address 0x4 - core index']
  #allocation1 [shape = 'u32[144,128]{1,0:T(1,128)}', space=vmem, size = 0x12000, scoped, tag = 'internal scratch']
  %s0 = inlined_call_operand.vmem [shape: bf16[24,256], index: 0, kind: input, shape index: {}]
  %s1 = inlined_call_operand.vmem [shape: bf16[256,128], index: 1, kind: input, shape index: {}]
  %s2 = inlined_call_operand.vmem [shape: f32[1,128], index: 2, kind: input, shape index: {}]
  %s3 = inlined_call_operand.vmem [shape: bf16[24,128], index: 3, kind: output, shape index: {}]
  %s4 = sld [smem:[#allocation0]]
  $region22: #{triplet_net_forward.28} parent=0
    _
  %s6 = ssub.s32 1, %s4
  %s7 = scalar_select 0, %s6, %s4
  // Predicated region
  $region2: #{triplet_net_forward.28} parent=0 // pred_check
    _
  $region3: #{triplet_net_forward.28} parent=0 // pred_check_branch
    %9 = sbr.rel (0) target = $region5
  $region4: #{triplet_net_forward.28} parent=0 // pred_region
    _
  $region5: #{triplet_net_forward.28} parent=0 // pred_fallthru
    _
  // Predicated region
  $region6: #{triplet_net_forward.28} parent=0 // pred_check
    _
  $region7: #{triplet_net_forward.28} parent=0 // pred_check_branch
    %11 = sbr.rel (0) target = $region9
  $region8: #{triplet_net_forward.28} parent=0 // pred_region
    _
  $region9: #{triplet_net_forward.28} parent=0 // pred_fallthru
    _
  // Predicated region
  $region10: #{triplet_net_forward.28} parent=0 // pred_check
    _
  $region11: #{triplet_net_forward.28} parent=0 // pred_check_branch
    %13 = sbr.rel (0) target = $region13
  $region12: #{triplet_net_forward.28} parent=0 // pred_region
    _
  $region13: #{triplet_net_forward.28} parent=0 // pred_fallthru
    _
  %v15 = vld [vmem:[%s0] sm:$0xff]
  %v16 = vld [vmem:[%s0 + $0x8] sm:$0xff]
  %v17 = vld [vmem:[%s0 + $0x10] sm:$0xff]
  %v18 = vld [vmem:[%s1] sm:$0xf]
  %v19 = vld [vmem:[%s1 + $0x4] sm:$0xf]
  %v20 = vld [vmem:[%s1 + $0x8] sm:$0xf]
  %v21 = vld [vmem:[%s1 + $0xc] sm:$0xf]
  %v22 = vld [vmem:[%s1 + $0x10] sm:$0xf]
  %v23 = vld [vmem:[%s1 + $0x14] sm:$0xf]
  %v24 = vld [vmem:[%s1 + $0x18] sm:$0xf]
  %v25 = vld [vmem:[%s1 + $0x1c] sm:$0xf]
  %v26 = vld [vmem:[%s1 + $0x20] sm:$0xf]
  %v27 = vld [vmem:[%s1 + $0x24] sm:$0xf]
  %v28 = vld [vmem:[%s1 + $0x28] sm:$0xf]
  %v29 = vld [vmem:[%s1 + $0x2c] sm:$0xf]
  %v30 = vld [vmem:[%s1 + $0x30] sm:$0xf]
  %v31 = vld [vmem:[%s1 + $0x34] sm:$0xf]
  %v32 = vld [vmem:[%s1 + $0x38] sm:$0xf]
  %v33 = vld [vmem:[%s1 + $0x3c] sm:$0xf]
  %v34 = vld [vmem:[%s1 + $0x40] sm:$0xf]
  %v35 = vld [vmem:[%s1 + $0x44] sm:$0xf]
  %v36 = vld [vmem:[%s1 + $0x48] sm:$0xf]
  %v37 = vld [vmem:[%s1 + $0x4c] sm:$0xf]
  %v38 = vld [vmem:[%s1 + $0x50] sm:$0xf]
  %v39 = vld [vmem:[%s1 + $0x54] sm:$0xf]
  %v40 = vld [vmem:[%s1 + $0x58] sm:$0xf]
  %v41 = vld [vmem:[%s1 + $0x5c] sm:$0xf]
  %v42 = vld [vmem:[%s1 + $0x60] sm:$0xf]
  %v43 = vld [vmem:[%s1 + $0x64] sm:$0xf]
  %v44 = vld [vmem:[%s1 + $0x68] sm:$0xf]
  %v45 = vld [vmem:[%s1 + $0x6c] sm:$0xf]
  %v46 = vld [vmem:[%s1 + $0x70] sm:$0xf]
  %v47 = vld [vmem:[%s1 + $0x74] sm:$0xf]
  %v48 = vld [vmem:[%s1 + $0x78] sm:$0xf]
  %v49 = vld [vmem:[%s1 + $0x7c] sm:$0xf]
  %v50 = vld [vmem:[%s2] sm:$0x1]
  %v52 = vlaneseq
  %v53 = vshrl.u32 %v52, 7
  %v54 = vsub.s32 0, %v53
  %v55 = vrot.slane %v50, %v54
  %v60 = vunpack.c.l.b16 %v15
  %v61 = vunpack.c.h.b16 %v15
  %v62 = vunpack.c.l.b16 %v16
  %v63 = vunpack.c.h.b16 %v16
  %v64 = vunpack.c.l.b16 %v17
  %v65 = vunpack.c.h.b16 %v17
  %v66 = vpack.c.b16 %v62, %v60
  %v67 = vpack.c.b16 %v63, %v61
  %v68 = vpack.c.b16 %v64, %v64
  %v69 = vpack.c.b16 %v65, %v65
  %v106 = vunpack.c.l.b16 %v18
  %v107 = vunpack.c.l.b16 %v19
  %v108 = vunpack.c.l.b16 %v20
  %v109 = vunpack.c.l.b16 %v21
  %v110 = vunpack.c.l.b16 %v22
  %v111 = vunpack.c.l.b16 %v23
  %v112 = vunpack.c.l.b16 %v24
  %v113 = vunpack.c.l.b16 %v25
  %v114 = vunpack.c.l.b16 %v26
  %v115 = vunpack.c.l.b16 %v27
  %v116 = vunpack.c.l.b16 %v28
  %v117 = vunpack.c.l.b16 %v29
  %v118 = vunpack.c.l.b16 %v30
  %v119 = vunpack.c.l.b16 %v31
  %v120 = vunpack.c.l.b16 %v32
  %v121 = vunpack.c.l.b16 %v33
  %v122 = vunpack.c.l.b16 %v34
  %v123 = vunpack.c.l.b16 %v35
  %v124 = vunpack.c.l.b16 %v36
  %v125 = vunpack.c.l.b16 %v37
  %v126 = vunpack.c.l.b16 %v38
  %v127 = vunpack.c.l.b16 %v39
  %v128 = vunpack.c.l.b16 %v40
  %v129 = vunpack.c.l.b16 %v41
  %v130 = vunpack.c.l.b16 %v42
  %v131 = vunpack.c.l.b16 %v43
  %v132 = vunpack.c.l.b16 %v44
  %v133 = vunpack.c.l.b16 %v45
  %v134 = vunpack.c.l.b16 %v46
  %v135 = vunpack.c.l.b16 %v47
  %v136 = vunpack.c.l.b16 %v48
  %v137 = vunpack.c.l.b16 %v49
  %v138 = vpack.c.b16 %v107, %v106
  %v139 = vpack.c.b16 %v109, %v108
  %v140 = vpack.c.b16 %v111, %v110
  %v141 = vpack.c.b16 %v113, %v112
  %v142 = vpack.c.b16 %v115, %v114
  %v143 = vpack.c.b16 %v117, %v116
  %v144 = vpack.c.b16 %v119, %v118
  %v145 = vpack.c.b16 %v121, %v120
  %v146 = vpack.c.b16 %v123, %v122
  %v147 = vpack.c.b16 %v125, %v124
  %v148 = vpack.c.b16 %v127, %v126
  %v149 = vpack.c.b16 %v129, %v128
  %v150 = vpack.c.b16 %v131, %v130
  %v151 = vpack.c.b16 %v133, %v132
  %v152 = vpack.c.b16 %v135, %v134
  %v153 = vpack.c.b16 %v137, %v136
  %170 = vmatprep.subr.bf16.mxu0 0
  %171 = vmatpush1.bf16.msra.mxu0 %v138
  %172 = vmatprep.subr.bf16.mxu0 0
  %173 = vmatpush1.bf16.msra.mxu0 %v139
  %174 = vmatprep.subr.bf16.mxu0 0
  %175 = vmatpush1.bf16.msra.mxu0 %v140
  %176 = vmatprep.subr.bf16.mxu0 0
  %177 = vmatpush1.bf16.msra.mxu0 %v141
  %178 = vmatprep.subr.bf16.mxu0 0
  %179 = vmatpush1.bf16.msra.mxu0 %v142
  %180 = vmatprep.subr.bf16.mxu0 0
  %181 = vmatpush1.bf16.msra.mxu0 %v143
  %182 = vmatprep.subr.bf16.mxu0 0
  %183 = vmatpush1.bf16.msra.mxu0 %v144
  %184 = vmatprep.subr.bf16.mxu0 0
  %185 = vmatpush1.bf16.msra.mxu0 %v145
  %186 = vmatprep.subr.bf16.mxu0 0
  %187 = vmatpush1.bf16.msra.mxu0 %v146
  %188 = vmatprep.subr.bf16.mxu0 0
  %189 = vmatpush1.bf16.msra.mxu0 %v147
  %190 = vmatprep.subr.bf16.mxu0 0
  %191 = vmatpush1.bf16.msra.mxu0 %v148
  %192 = vmatprep.subr.bf16.mxu0 0
  %193 = vmatpush1.bf16.msra.mxu0 %v149
  %194 = vmatprep.subr.bf16.mxu0 0
  %195 = vmatpush1.bf16.msra.mxu0 %v150
  %196 = vmatprep.subr.bf16.mxu0 0
  %197 = vmatpush1.bf16.msra.mxu0 %v151
  %198 = vmatprep.subr.bf16.mxu0 0
  %199 = vmatpush1.bf16.msra.mxu0 %v152
  %200 = vmatprep.subr.bf16.mxu0 0
  %201 = vmatpush1.bf16.msra.mxu0 %v153
  %202 = vmatprep.mubr.bf16.mxu0 %v67
  %203 = vmatmul.mubr.bf16.gmra.mrb[0].mxu0 %v66
  %v204 = vpop.f32.mrb[0].mxu0
  %v205 = vadd.f32 %v55, %v204
  %v206 = vpop.f32.mrb[0].mxu0
  %v207 = vpop.f32.mrb[0].mxu0
  %v208 = vadd.f32 %v55, %v207
  %v209 = vpop.f32.mrb[0].mxu0
  %210 = vmatprep.mubr.bf16.mxu0 %v69
  %211 = vmatmul.mubr.bf16.gmra.mrb[0].mxu0 %v68
  %v212 = vpop.f32.mrb[0].mxu0
  %v213 = vadd.f32 %v55, %v212
  %v214 = vpop.f32.mrb[0].mxu0
  %v215 = vpop.f32.mrb[0].mxu0
  %v216 = vpop.f32.mrb[0].mxu0
  %217 = vdwg.mxu0
  %v218 = vmax.f32 %v205, 0.0
  %v219 = vmax.f32 %v208, 0.0
  %v220 = vmax.f32 %v213, 0.0
  %v221 = vpack.c.bf16 %v219, %v218
  %v222 = vpack.c.bf16 %v220, %v220
  %v225 = vunpack.c.l.b16 %v221
  %v226 = vunpack.c.h.b16 %v221
  %v227 = vunpack.c.l.b16 %v222
  %v228 = vpack.c.b16 %v225, %v225
  %v229 = vpack.c.b16 %v226, %v226
  %v230 = vpack.c.b16 %v227, %v227
  %234 = vst [vmem:[%s3] sm:$0xf] %v228
  %235 = vst [vmem:[%s3 + $0x4] sm:$0xf] %v229
  %236 = vst [vmem:[%s3 + $0x8] sm:$0xf] %v230
  // Predicated region
  $region14: #{triplet_net_forward.28} parent=0 // pred_check
    _
  $region15: #{triplet_net_forward.28} parent=0 // pred_check_branch
    %238 = sbr.rel (0) target = $region17
  $region16: #{triplet_net_forward.28} parent=0 // pred_region
    _
  $region17: #{triplet_net_forward.28} parent=0 // pred_fallthru
    _
  // Predicated region
  $region18: #{triplet_net_forward.28} parent=0 // pred_check
    _
  $region19: #{triplet_net_forward.28} parent=0 // pred_check_branch
    %240 = sbr.rel (0) target = $region21
  $region20: #{triplet_net_forward.28} parent=0 // pred_region
    _
  $region21: #{triplet_net_forward.28} parent=0 // pred_fallthru
    _

// kernel: triplet_net_forward.31
$region0: #{triplet_net_forward.31}
  #allocation0 [shape = 'u32[]', space=smem, size = 0x4, offset = 0x4, fixed_abs, tag = 'smem constant byte address 0x4 - core index']
  #allocation1 [shape = 'u32[144,128]{1,0:T(1,128)}', space=vmem, size = 0x12000, scoped, tag = 'internal scratch']
  %s0 = inlined_call_operand.vmem [shape: bf16[24,384], index: 0, kind: input, shape index: {}]
  %s1 = inlined_call_operand.vmem [shape: bf16[384,128], index: 1, kind: input, shape index: {}]
  %s2 = inlined_call_operand.vmem [shape: f32[1,128], index: 2, kind: input, shape index: {}]
  %s3 = inlined_call_operand.vmem [shape: bf16[24,128], index: 3, kind: input, shape index: {}]
  %s4 = inlined_call_operand.vmem [shape: bf16[24,128], index: 4, kind: output, shape index: {}]
  %s5 = sld [smem:[#allocation0]]
  $region26: #{triplet_net_forward.31} parent=0
    _
  %s7 = ssub.s32 1, %s5
  %s8 = scalar_select 0, %s7, %s5
  // Predicated region
  $region2: #{triplet_net_forward.31} parent=0 // pred_check
    _
  $region3: #{triplet_net_forward.31} parent=0 // pred_check_branch
    %10 = sbr.rel (0) target = $region5
  $region4: #{triplet_net_forward.31} parent=0 // pred_region
    _
  $region5: #{triplet_net_forward.31} parent=0 // pred_fallthru
    _
  // Predicated region
  $region6: #{triplet_net_forward.31} parent=0 // pred_check
    _
  $region7: #{triplet_net_forward.31} parent=0 // pred_check_branch
    %12 = sbr.rel (0) target = $region9
  $region8: #{triplet_net_forward.31} parent=0 // pred_region
    _
  $region9: #{triplet_net_forward.31} parent=0 // pred_fallthru
    _
  // Predicated region
  $region10: #{triplet_net_forward.31} parent=0 // pred_check
    _
  $region11: #{triplet_net_forward.31} parent=0 // pred_check_branch
    %14 = sbr.rel (0) target = $region13
  $region12: #{triplet_net_forward.31} parent=0 // pred_region
    _
  $region13: #{triplet_net_forward.31} parent=0 // pred_fallthru
    _
  // Predicated region
  $region14: #{triplet_net_forward.31} parent=0 // pred_check
    _
  $region15: #{triplet_net_forward.31} parent=0 // pred_check_branch
    %16 = sbr.rel (0) target = $region17
  $region16: #{triplet_net_forward.31} parent=0 // pred_region
    _
  $region17: #{triplet_net_forward.31} parent=0 // pred_fallthru
    _
  %v18 = vld [vmem:[%s0] sm:$0xff]
  %v19 = vld [vmem:[%s0 + $0x8] sm:$0xf]
  %v20 = vld [vmem:[%s0 + $0xc] sm:$0xff]
  %v21 = vld [vmem:[%s0 + $0x14] sm:$0xf]
  %v22 = vld [vmem:[%s0 + $0x18] sm:$0xff]
  %v23 = vld [vmem:[%s0 + $0x20] sm:$0xf]
  %v24 = vld [vmem:[%s1] sm:$0xf]
  %v25 = vld [vmem:[%s1 + $0x4] sm:$0xf]
  %v26 = vld [vmem:[%s1 + $0x8] sm:$0xf]
  %v27 = vld [vmem:[%s1 + $0xc] sm:$0xf]
  %v28 = vld [vmem:[%s1 + $0x10] sm:$0xf]
  %v29 = vld [vmem:[%s1 + $0x14] sm:$0xf]
  %v30 = vld [vmem:[%s1 + $0x18] sm:$0xf]
  %v31 = vld [vmem:[%s1 + $0x1c] sm:$0xf]
  %v32 = vld [vmem:[%s1 + $0x20] sm:$0xf]
  %v33 = vld [vmem:[%s1 + $0x24] sm:$0xf]
  %v34 = vld [vmem:[%s1 + $0x28] sm:$0xf]
  %v35 = vld [vmem:[%s1 + $0x2c] sm:$0xf]
  %v36 = vld [vmem:[%s1 + $0x30] sm:$0xf]
  %v37 = vld [vmem:[%s1 + $0x34] sm:$0xf]
  %v38 = vld [vmem:[%s1 + $0x38] sm:$0xf]
  %v39 = vld [vmem:[%s1 + $0x3c] sm:$0xf]
  %v40 = vld [vmem:[%s1 + $0x40] sm:$0xf]
  %v41 = vld [vmem:[%s1 + $0x44] sm:$0xf]
  %v42 = vld [vmem:[%s1 + $0x48] sm:$0xf]
  %v43 = vld [vmem:[%s1 + $0x4c] sm:$0xf]
  %v44 = vld [vmem:[%s1 + $0x50] sm:$0xf]
  %v45 = vld [vmem:[%s1 + $0x54] sm:$0xf]
  %v46 = vld [vmem:[%s1 + $0x58] sm:$0xf]
  %v47 = vld [vmem:[%s1 + $0x5c] sm:$0xf]
  %v48 = vld [vmem:[%s1 + $0x60] sm:$0xf]
  %v49 = vld [vmem:[%s1 + $0x64] sm:$0xf]
  %v50 = vld [vmem:[%s1 + $0x68] sm:$0xf]
  %v51 = vld [vmem:[%s1 + $0x6c] sm:$0xf]
  %v52 = vld [vmem:[%s1 + $0x70] sm:$0xf]
  %v53 = vld [vmem:[%s1 + $0x74] sm:$0xf]
  %v54 = vld [vmem:[%s1 + $0x78] sm:$0xf]
  %v55 = vld [vmem:[%s1 + $0x7c] sm:$0xf]
  %v56 = vld [vmem:[%s1 + $0x80] sm:$0xf]
  %v57 = vld [vmem:[%s1 + $0x84] sm:$0xf]
  %v58 = vld [vmem:[%s1 + $0x88] sm:$0xf]
  %v59 = vld [vmem:[%s1 + $0x8c] sm:$0xf]
  %v60 = vld [vmem:[%s1 + $0x90] sm:$0xf]
  %v61 = vld [vmem:[%s1 + $0x94] sm:$0xf]
  %v62 = vld [vmem:[%s1 + $0x98] sm:$0xf]
  %v63 = vld [vmem:[%s1 + $0x9c] sm:$0xf]
  %v64 = vld [vmem:[%s1 + $0xa0] sm:$0xf]
  %v65 = vld [vmem:[%s1 + $0xa4] sm:$0xf]
  %v66 = vld [vmem:[%s1 + $0xa8] sm:$0xf]
  %v67 = vld [vmem:[%s1 + $0xac] sm:$0xf]
  %v68 = vld [vmem:[%s1 + $0xb0] sm:$0xf]
  %v69 = vld [vmem:[%s1 + $0xb4] sm:$0xf]
  %v70 = vld [vmem:[%s1 + $0xb8] sm:$0xf]
  %v71 = vld [vmem:[%s1 + $0xbc] sm:$0xf]
  %v72 = vld [vmem:[%s2] sm:$0x1]
  %v74 = vlaneseq
  %v75 = vshrl.u32 %v74, 7
  %v76 = vsub.s32 0, %v75
  %v77 = vrot.slane %v72, %v76
  %v85 = vunpack.c.l.b16 %v18
  %v86 = vunpack.c.h.b16 %v18
  %v87 = vunpack.c.l.b16 %v19
  %v88 = vunpack.c.l.b16 %v20
  %v89 = vunpack.c.h.b16 %v20
  %v90 = vunpack.c.l.b16 %v21
  %v91 = vunpack.c.l.b16 %v22
  %v92 = vunpack.c.h.b16 %v22
  %v93 = vunpack.c.l.b16 %v23
  %v94 = vpack.c.b16 %v88, %v85
  %v95 = vpack.c.b16 %v89, %v86
  %v96 = vpack.c.b16 %v90, %v87
  %v97 = vpack.c.b16 %v91, %v91
  %v98 = vpack.c.b16 %v92, %v92
  %v99 = vpack.c.b16 %v93, %v93
  %v154 = vunpack.c.l.b16 %v24
  %v155 = vunpack.c.l.b16 %v25
  %v156 = vunpack.c.l.b16 %v26
  %v157 = vunpack.c.l.b16 %v27
  %v158 = vunpack.c.l.b16 %v28
  %v159 = vunpack.c.l.b16 %v29
  %v160 = vunpack.c.l.b16 %v30
  %v161 = vunpack.c.l.b16 %v31
  %v162 = vunpack.c.l.b16 %v32
  %v163 = vunpack.c.l.b16 %v33
  %v164 = vunpack.c.l.b16 %v34
  %v165 = vunpack.c.l.b16 %v35
  %v166 = vunpack.c.l.b16 %v36
  %v167 = vunpack.c.l.b16 %v37
  %v168 = vunpack.c.l.b16 %v38
  %v169 = vunpack.c.l.b16 %v39
  %v170 = vunpack.c.l.b16 %v40
  %v171 = vunpack.c.l.b16 %v41
  %v172 = vunpack.c.l.b16 %v42
  %v173 = vunpack.c.l.b16 %v43
  %v174 = vunpack.c.l.b16 %v44
  %v175 = vunpack.c.l.b16 %v45
  %v176 = vunpack.c.l.b16 %v46
  %v177 = vunpack.c.l.b16 %v47
  %v178 = vunpack.c.l.b16 %v48
  %v179 = vunpack.c.l.b16 %v49
  %v180 = vunpack.c.l.b16 %v50
  %v181 = vunpack.c.l.b16 %v51
  %v182 = vunpack.c.l.b16 %v52
  %v183 = vunpack.c.l.b16 %v53
  %v184 = vunpack.c.l.b16 %v54
  %v185 = vunpack.c.l.b16 %v55
  %v186 = vunpack.c.l.b16 %v56
  %v187 = vunpack.c.l.b16 %v57
  %v188 = vunpack.c.l.b16 %v58
  %v189 = vunpack.c.l.b16 %v59
  %v190 = vunpack.c.l.b16 %v60
  %v191 = vunpack.c.l.b16 %v61
  %v192 = vunpack.c.l.b16 %v62
  %v193 = vunpack.c.l.b16 %v63
  %v194 = vunpack.c.l.b16 %v64
  %v195 = vunpack.c.l.b16 %v65
  %v196 = vunpack.c.l.b16 %v66
  %v197 = vunpack.c.l.b16 %v67
  %v198 = vunpack.c.l.b16 %v68
  %v199 = vunpack.c.l.b16 %v69
  %v200 = vunpack.c.l.b16 %v70
  %v201 = vunpack.c.l.b16 %v71
  %v202 = vpack.c.b16 %v155, %v154
  %v203 = vpack.c.b16 %v157, %v156
  %v204 = vpack.c.b16 %v159, %v158
  %v205 = vpack.c.b16 %v161, %v160
  %v206 = vpack.c.b16 %v163, %v162
  %v207 = vpack.c.b16 %v165, %v164
  %v208 = vpack.c.b16 %v167, %v166
  %v209 = vpack.c.b16 %v169, %v168
  %v210 = vpack.c.b16 %v171, %v170
  %v211 = vpack.c.b16 %v173, %v172
  %v212 = vpack.c.b16 %v175, %v174
  %v213 = vpack.c.b16 %v177, %v176
  %v214 = vpack.c.b16 %v179, %v178
  %v215 = vpack.c.b16 %v181, %v180
  %v216 = vpack.c.b16 %v183, %v182
  %v217 = vpack.c.b16 %v185, %v184
  %v218 = vpack.c.b16 %v187, %v186
  %v219 = vpack.c.b16 %v189, %v188
  %v220 = vpack.c.b16 %v191, %v190
  %v221 = vpack.c.b16 %v193, %v192
  %v222 = vpack.c.b16 %v195, %v194
  %v223 = vpack.c.b16 %v197, %v196
  %v224 = vpack.c.b16 %v199, %v198
  %v225 = vpack.c.b16 %v201, %v200
  %250 = vmatprep.subr.bf16.mxu0 0
  %251 = vmatpush1.bf16.msra.mxu0 %v202
  %252 = vmatprep.subr.bf16.mxu0 0
  %253 = vmatpush1.bf16.msra.mxu0 %v203
  %254 = vmatprep.subr.bf16.mxu0 0
  %255 = vmatpush1.bf16.msra.mxu0 %v204
  %256 = vmatprep.subr.bf16.mxu0 0
  %257 = vmatpush1.bf16.msra.mxu0 %v205
  %258 = vmatprep.subr.bf16.mxu0 0
  %259 = vmatpush1.bf16.msra.mxu0 %v206
  %260 = vmatprep.subr.bf16.mxu0 0
  %261 = vmatpush1.bf16.msra.mxu0 %v207
  %262 = vmatprep.subr.bf16.mxu0 0
  %263 = vmatpush1.bf16.msra.mxu0 %v208
  %264 = vmatprep.subr.bf16.mxu0 0
  %265 = vmatpush1.bf16.msra.mxu0 %v209
  %266 = vmatprep.subr.bf16.mxu0 0
  %267 = vmatpush1.bf16.msra.mxu0 %v210
  %268 = vmatprep.subr.bf16.mxu0 0
  %269 = vmatpush1.bf16.msra.mxu0 %v211
  %270 = vmatprep.subr.bf16.mxu0 0
  %271 = vmatpush1.bf16.msra.mxu0 %v212
  %272 = vmatprep.subr.bf16.mxu0 0
  %273 = vmatpush1.bf16.msra.mxu0 %v213
  %274 = vmatprep.subr.bf16.mxu0 0
  %275 = vmatpush1.bf16.msra.mxu0 %v214
  %276 = vmatprep.subr.bf16.mxu0 0
  %277 = vmatpush1.bf16.msra.mxu0 %v215
  %278 = vmatprep.subr.bf16.mxu0 0
  %279 = vmatpush1.bf16.msra.mxu0 %v216
  %280 = vmatprep.subr.bf16.mxu0 0
  %281 = vmatpush1.bf16.msra.mxu0 %v217
  %282 = vmatprep.mubr.bf16.mxu0 %v95
  %283 = vmatmul.mubr.bf16.gmra.mrb[0].mxu0 %v94
  %v284 = vpop.f32.mrb[0].mxu0
  %v285 = vadd.f32 %v77, %v284
  %v286 = vpop.f32.mrb[0].mxu0
  %v287 = vpop.f32.mrb[0].mxu0
  %v288 = vadd.f32 %v77, %v287
  %v289 = vpop.f32.mrb[0].mxu0
  %290 = vmatprep.mubr.bf16.mxu0 %v98
  %291 = vmatmul.mubr.bf16.gmra.mrb[0].mxu0 %v97
  %v292 = vpop.f32.mrb[0].mxu0
  %v293 = vadd.f32 %v77, %v292
  %v294 = vpop.f32.mrb[0].mxu0
  %v295 = vpop.f32.mrb[0].mxu0
  %v296 = vpop.f32.mrb[0].mxu0
  %297 = vdwg.mxu0
  %298 = vmatprep.subr.bf16.mxu0 0
  %299 = vmatpush1.bf16.msra.mxu0 %v218
  %300 = vmatprep.subr.bf16.mxu0 0
  %301 = vmatpush1.bf16.msra.mxu0 %v219
  %302 = vmatprep.subr.bf16.mxu0 0
  %303 = vmatpush1.bf16.msra.mxu0 %v220
  %304 = vmatprep.subr.bf16.mxu0 0
  %305 = vmatpush1.bf16.msra.mxu0 %v221
  %306 = vmatprep.subr.bf16.mxu0 0
  %307 = vmatpush1.bf16.msra.mxu0 %v222
  %308 = vmatprep.subr.bf16.mxu0 0
  %309 = vmatpush1.bf16.msra.mxu0 %v223
  %310 = vmatprep.subr.bf16.mxu0 0
  %311 = vmatpush1.bf16.msra.mxu0 %v224
  %312 = vmatprep.subr.bf16.mxu0 0
  %313 = vmatpush1.bf16.msra.mxu0 %v225
  %314 = vmatprep.subr.bf16.mxu0 0
  %315 = vmatpush1.bf16.msra.mxu0 0
  %316 = vmatprep.subr.bf16.mxu0 0
  %317 = vmatpush1.bf16.msra.mxu0 0
  %318 = vmatprep.subr.bf16.mxu0 0
  %319 = vmatpush1.bf16.msra.mxu0 0
  %320 = vmatprep.subr.bf16.mxu0 0
  %321 = vmatpush1.bf16.msra.mxu0 0
  %322 = vmatprep.subr.bf16.mxu0 0
  %323 = vmatpush1.bf16.msra.mxu0 0
  %324 = vmatprep.subr.bf16.mxu0 0
  %325 = vmatpush1.bf16.msra.mxu0 0
  %326 = vmatprep.subr.bf16.mxu0 0
  %327 = vmatpush1.bf16.msra.mxu0 0
  %328 = vmatprep.subr.bf16.mxu0 0
  %329 = vmatpush1.bf16.msra.mxu0 0
  %330 = vmatprep.mubr.bf16.mxu0 0
  %331 = vmatmul.mubr.bf16.gmra.mrb[0].mxu0 %v96
  %v332 = vpop.f32.mrb[0].mxu0
  %v333 = vadd.f32 %v285, %v332
  %v334 = vpop.f32.mrb[0].mxu0
  %v335 = vpop.f32.mrb[0].mxu0
  %v336 = vadd.f32 %v288, %v335
  %v337 = vpop.f32.mrb[0].mxu0
  %338 = vmatprep.mubr.bf16.mxu0 0
  %339 = vmatmul.mubr.bf16.gmra.mrb[0].mxu0 %v99
  %v340 = vpop.f32.mrb[0].mxu0
  %v341 = vadd.f32 %v293, %v340
  %v342 = vpop.f32.mrb[0].mxu0
  %v343 = vpop.f32.mrb[0].mxu0
  %v344 = vpop.f32.mrb[0].mxu0
  %345 = vdwg.mxu0
  %v346 = vld [vmem:[%s3] sm:$0xf]
  %v347 = vld [vmem:[%s3 + $0x4] sm:$0xf]
  %v348 = vld [vmem:[%s3 + $0x8] sm:$0xf]
  %v349 = vunpack.c.l.bf16 %v346
  %v350 = vunpack.c.l.bf16 %v347
  %v351 = vunpack.c.l.bf16 %v348
  %v352 = vadd.f32 %v333, %v349
  %v353 = vadd.f32 %v336, %v350
  %v354 = vadd.f32 %v341, %v351
  %v355 = vmax.f32 %v352, 0.0
  %v356 = vmax.f32 %v353, 0.0
  %v357 = vmax.f32 %v354, 0.0
  %v358 = vpack.c.bf16 %v356, %v355
  %v359 = vpack.c.bf16 %v357, %v357
  %v362 = vunpack.c.l.b16 %v358
  %v363 = vunpack.c.h.b16 %v358
  %v364 = vunpack.c.l.b16 %v359
  %v365 = vpack.c.b16 %v362, %v362
  %v366 = vpack.c.b16 %v363, %v363
  %v367 = vpack.c.b16 %v364, %v364
  %371 = vst [vmem:[%s4] sm:$0xf] %v365
  %372 = vst [vmem:[%s4 + $0x4] sm:$0xf] %v366
  %373 = vst [vmem:[%s4 + $0x8] sm:$0xf] %v367
  // Predicated region
  $region18: #{triplet_net_forward.31} parent=0 // pred_check
    _
  $region19: #{triplet_net_forward.31} parent=0 // pred_check_branch
    %375 = sbr.rel (0) target = $region21
  $region20: #{triplet_net_forward.31} parent=0 // pred_region
    _
  $region21: #{triplet_net_forward.31} parent=0 // pred_fallthru
    _
  // Predicated region
  $region22: #{triplet_net_forward.31} parent=0 // pred_check
    _
  $region23: #{triplet_net_forward.31} parent=0 // pred_check_branch
    %377 = sbr.rel (0) target = $region25
  $region24: #{triplet_net_forward.31} parent=0 // pred_region
    _
  $region25: #{triplet_net_forward.31} parent=0 // pred_fallthru
    _

// kernel: triplet_net_forward.30
$region0: #{triplet_net_forward.30}
  #allocation0 [shape = 'u32[]', space=smem, size = 0x4, offset = 0x4, fixed_abs, tag = 'smem constant byte address 0x4 - core index']
  #allocation1 [shape = 'u32[144,128]{1,0:T(1,128)}', space=vmem, size = 0x12000, scoped, tag = 'internal scratch']
  %s0 = inlined_call_operand.vmem [shape: bf16[24,384], index: 0, kind: input, shape index: {}]
  %s1 = inlined_call_operand.vmem [shape: bf16[384,128], index: 1, kind: input, shape index: {}]
  %s2 = inlined_call_operand.vmem [shape: f32[1,128], index: 2, kind: input, shape index: {}]
  %s3 = inlined_call_operand.vmem [shape: bf16[24,128], index: 3, kind: output, shape index: {}]
  %s4 = sld [smem:[#allocation0]]
  $region22: #{triplet_net_forward.30} parent=0
    _
  %s6 = ssub.s32 1, %s4
  %s7 = scalar_select 0, %s6, %s4
  // Predicated region
  $region2: #{triplet_net_forward.30} parent=0 // pred_check
    _
  $region3: #{triplet_net_forward.30} parent=0 // pred_check_branch
    %9 = sbr.rel (0) target = $region5
  $region4: #{triplet_net_forward.30} parent=0 // pred_region
    _
  $region5: #{triplet_net_forward.30} parent=0 // pred_fallthru
    _
  // Predicated region
  $region6: #{triplet_net_forward.30} parent=0 // pred_check
    _
  $region7: #{triplet_net_forward.30} parent=0 // pred_check_branch
    %11 = sbr.rel (0) target = $region9
  $region8: #{triplet_net_forward.30} parent=0 // pred_region
    _
  $region9: #{triplet_net_forward.30} parent=0 // pred_fallthru
    _
  // Predicated region
  $region10: #{triplet_net_forward.30} parent=0 // pred_check
    _
  $region11: #{triplet_net_forward.30} parent=0 // pred_check_branch
    %13 = sbr.rel (0) target = $region13
  $region12: #{triplet_net_forward.30} parent=0 // pred_region
    _
  $region13: #{triplet_net_forward.30} parent=0 // pred_fallthru
    _
  %v15 = vld [vmem:[%s0] sm:$0xff]
  %v16 = vld [vmem:[%s0 + $0x8] sm:$0xf]
  %v17 = vld [vmem:[%s0 + $0xc] sm:$0xff]
  %v18 = vld [vmem:[%s0 + $0x14] sm:$0xf]
  %v19 = vld [vmem:[%s0 + $0x18] sm:$0xff]
  %v20 = vld [vmem:[%s0 + $0x20] sm:$0xf]
  %v21 = vld [vmem:[%s1] sm:$0xf]
  %v22 = vld [vmem:[%s1 + $0x4] sm:$0xf]
  %v23 = vld [vmem:[%s1 + $0x8] sm:$0xf]
  %v24 = vld [vmem:[%s1 + $0xc] sm:$0xf]
  %v25 = vld [vmem:[%s1 + $0x10] sm:$0xf]
  %v26 = vld [vmem:[%s1 + $0x14] sm:$0xf]
  %v27 = vld [vmem:[%s1 + $0x18] sm:$0xf]
  %v28 = vld [vmem:[%s1 + $0x1c] sm:$0xf]
  %v29 = vld [vmem:[%s1 + $0x20] sm:$0xf]
  %v30 = vld [vmem:[%s1 + $0x24] sm:$0xf]
  %v31 = vld [vmem:[%s1 + $0x28] sm:$0xf]
  %v32 = vld [vmem:[%s1 + $0x2c] sm:$0xf]
  %v33 = vld [vmem:[%s1 + $0x30] sm:$0xf]
  %v34 = vld [vmem:[%s1 + $0x34] sm:$0xf]
  %v35 = vld [vmem:[%s1 + $0x38] sm:$0xf]
  %v36 = vld [vmem:[%s1 + $0x3c] sm:$0xf]
  %v37 = vld [vmem:[%s1 + $0x40] sm:$0xf]
  %v38 = vld [vmem:[%s1 + $0x44] sm:$0xf]
  %v39 = vld [vmem:[%s1 + $0x48] sm:$0xf]
  %v40 = vld [vmem:[%s1 + $0x4c] sm:$0xf]
  %v41 = vld [vmem:[%s1 + $0x50] sm:$0xf]
  %v42 = vld [vmem:[%s1 + $0x54] sm:$0xf]
  %v43 = vld [vmem:[%s1 + $0x58] sm:$0xf]
  %v44 = vld [vmem:[%s1 + $0x5c] sm:$0xf]
  %v45 = vld [vmem:[%s1 + $0x60] sm:$0xf]
  %v46 = vld [vmem:[%s1 + $0x64] sm:$0xf]
  %v47 = vld [vmem:[%s1 + $0x68] sm:$0xf]
  %v48 = vld [vmem:[%s1 + $0x6c] sm:$0xf]
  %v49 = vld [vmem:[%s1 + $0x70] sm:$0xf]
  %v50 = vld [vmem:[%s1 + $0x74] sm:$0xf]
  %v51 = vld [vmem:[%s1 + $0x78] sm:$0xf]
  %v52 = vld [vmem:[%s1 + $0x7c] sm:$0xf]
  %v53 = vld [vmem:[%s1 + $0x80] sm:$0xf]
  %v54 = vld [vmem:[%s1 + $0x84] sm:$0xf]
  %v55 = vld [vmem:[%s1 + $0x88] sm:$0xf]
  %v56 = vld [vmem:[%s1 + $0x8c] sm:$0xf]
  %v57 = vld [vmem:[%s1 + $0x90] sm:$0xf]
  %v58 = vld [vmem:[%s1 + $0x94] sm:$0xf]
  %v59 = vld [vmem:[%s1 + $0x98] sm:$0xf]
  %v60 = vld [vmem:[%s1 + $0x9c] sm:$0xf]
  %v61 = vld [vmem:[%s1 + $0xa0] sm:$0xf]
  %v62 = vld [vmem:[%s1 + $0xa4] sm:$0xf]
  %v63 = vld [vmem:[%s1 + $0xa8] sm:$0xf]
  %v64 = vld [vmem:[%s1 + $0xac] sm:$0xf]
  %v65 = vld [vmem:[%s1 + $0xb0] sm:$0xf]
  %v66 = vld [vmem:[%s1 + $0xb4] sm:$0xf]
  %v67 = vld [vmem:[%s1 + $0xb8] sm:$0xf]
  %v68 = vld [vmem:[%s1 + $0xbc] sm:$0xf]
  %v69 = vld [vmem:[%s2] sm:$0x1]
  %v71 = vlaneseq
  %v72 = vshrl.u32 %v71, 7
  %v73 = vsub.s32 0, %v72
  %v74 = vrot.slane %v69, %v73
  %v82 = vunpack.c.l.b16 %v15
  %v83 = vunpack.c.h.b16 %v15
  %v84 = vunpack.c.l.b16 %v16
  %v85 = vunpack.c.l.b16 %v17
  %v86 = vunpack.c.h.b16 %v17
  %v87 = vunpack.c.l.b16 %v18
  %v88 = vunpack.c.l.b16 %v19
  %v89 = vunpack.c.h.b16 %v19
  %v90 = vunpack.c.l.b16 %v20
  %v91 = vpack.c.b16 %v85, %v82
  %v92 = vpack.c.b16 %v86, %v83
  %v93 = vpack.c.b16 %v87, %v84
  %v94 = vpack.c.b16 %v88, %v88
  %v95 = vpack.c.b16 %v89, %v89
  %v96 = vpack.c.b16 %v90, %v90
  %v151 = vunpack.c.l.b16 %v21
  %v152 = vunpack.c.l.b16 %v22
  %v153 = vunpack.c.l.b16 %v23
  %v154 = vunpack.c.l.b16 %v24
  %v155 = vunpack.c.l.b16 %v25
  %v156 = vunpack.c.l.b16 %v26
  %v157 = vunpack.c.l.b16 %v27
  %v158 = vunpack.c.l.b16 %v28
  %v159 = vunpack.c.l.b16 %v29
  %v160 = vunpack.c.l.b16 %v30
  %v161 = vunpack.c.l.b16 %v31
  %v162 = vunpack.c.l.b16 %v32
  %v163 = vunpack.c.l.b16 %v33
  %v164 = vunpack.c.l.b16 %v34
  %v165 = vunpack.c.l.b16 %v35
  %v166 = vunpack.c.l.b16 %v36
  %v167 = vunpack.c.l.b16 %v37
  %v168 = vunpack.c.l.b16 %v38
  %v169 = vunpack.c.l.b16 %v39
  %v170 = vunpack.c.l.b16 %v40
  %v171 = vunpack.c.l.b16 %v41
  %v172 = vunpack.c.l.b16 %v42
  %v173 = vunpack.c.l.b16 %v43
  %v174 = vunpack.c.l.b16 %v44
  %v175 = vunpack.c.l.b16 %v45
  %v176 = vunpack.c.l.b16 %v46
  %v177 = vunpack.c.l.b16 %v47
  %v178 = vunpack.c.l.b16 %v48
  %v179 = vunpack.c.l.b16 %v49
  %v180 = vunpack.c.l.b16 %v50
  %v181 = vunpack.c.l.b16 %v51
  %v182 = vunpack.c.l.b16 %v52
  %v183 = vunpack.c.l.b16 %v53
  %v184 = vunpack.c.l.b16 %v54
  %v185 = vunpack.c.l.b16 %v55
  %v186 = vunpack.c.l.b16 %v56
  %v187 = vunpack.c.l.b16 %v57
  %v188 = vunpack.c.l.b16 %v58
  %v189 = vunpack.c.l.b16 %v59
  %v190 = vunpack.c.l.b16 %v60
  %v191 = vunpack.c.l.b16 %v61
  %v192 = vunpack.c.l.b16 %v62
  %v193 = vunpack.c.l.b16 %v63
  %v194 = vunpack.c.l.b16 %v64
  %v195 = vunpack.c.l.b16 %v65
  %v196 = vunpack.c.l.b16 %v66
  %v197 = vunpack.c.l.b16 %v67
  %v198 = vunpack.c.l.b16 %v68
  %v199 = vpack.c.b16 %v152, %v151
  %v200 = vpack.c.b16 %v154, %v153
  %v201 = vpack.c.b16 %v156, %v155
  %v202 = vpack.c.b16 %v158, %v157
  %v203 = vpack.c.b16 %v160, %v159
  %v204 = vpack.c.b16 %v162, %v161
  %v205 = vpack.c.b16 %v164, %v163
  %v206 = vpack.c.b16 %v166, %v165
  %v207 = vpack.c.b16 %v168, %v167
  %v208 = vpack.c.b16 %v170, %v169
  %v209 = vpack.c.b16 %v172, %v171
  %v210 = vpack.c.b16 %v174, %v173
  %v211 = vpack.c.b16 %v176, %v175
  %v212 = vpack.c.b16 %v178, %v177
  %v213 = vpack.c.b16 %v180, %v179
  %v214 = vpack.c.b16 %v182, %v181
  %v215 = vpack.c.b16 %v184, %v183
  %v216 = vpack.c.b16 %v186, %v185
  %v217 = vpack.c.b16 %v188, %v187
  %v218 = vpack.c.b16 %v190, %v189
  %v219 = vpack.c.b16 %v192, %v191
  %v220 = vpack.c.b16 %v194, %v193
  %v221 = vpack.c.b16 %v196, %v195
  %v222 = vpack.c.b16 %v198, %v197
  %247 = vmatprep.subr.bf16.mxu0 0
  %248 = vmatpush1.bf16.msra.mxu0 %v199
  %249 = vmatprep.subr.bf16.mxu0 0
  %250 = vmatpush1.bf16.msra.mxu0 %v200
  %251 = vmatprep.subr.bf16.mxu0 0
  %252 = vmatpush1.bf16.msra.mxu0 %v201
  %253 = vmatprep.subr.bf16.mxu0 0
  %254 = vmatpush1.bf16.msra.mxu0 %v202
  %255 = vmatprep.subr.bf16.mxu0 0
  %256 = vmatpush1.bf16.msra.mxu0 %v203
  %257 = vmatprep.subr.bf16.mxu0 0
  %258 = vmatpush1.bf16.msra.mxu0 %v204
  %259 = vmatprep.subr.bf16.mxu0 0
  %260 = vmatpush1.bf16.msra.mxu0 %v205
  %261 = vmatprep.subr.bf16.mxu0 0
  %262 = vmatpush1.bf16.msra.mxu0 %v206
  %263 = vmatprep.subr.bf16.mxu0 0
  %264 = vmatpush1.bf16.msra.mxu0 %v207
  %265 = vmatprep.subr.bf16.mxu0 0
  %266 = vmatpush1.bf16.msra.mxu0 %v208
  %267 = vmatprep.subr.bf16.mxu0 0
  %268 = vmatpush1.bf16.msra.mxu0 %v209
  %269 = vmatprep.subr.bf16.mxu0 0
  %270 = vmatpush1.bf16.msra.mxu0 %v210
  %271 = vmatprep.subr.bf16.mxu0 0
  %272 = vmatpush1.bf16.msra.mxu0 %v211
  %273 = vmatprep.subr.bf16.mxu0 0
  %274 = vmatpush1.bf16.msra.mxu0 %v212
  %275 = vmatprep.subr.bf16.mxu0 0
  %276 = vmatpush1.bf16.msra.mxu0 %v213
  %277 = vmatprep.subr.bf16.mxu0 0
  %278 = vmatpush1.bf16.msra.mxu0 %v214
  %279 = vmatprep.mubr.bf16.mxu0 %v92
  %280 = vmatmul.mubr.bf16.gmra.mrb[0].mxu0 %v91
  %v281 = vpop.f32.mrb[0].mxu0
  %v282 = vadd.f32 %v74, %v281
  %v283 = vpop.f32.mrb[0].mxu0
  %v284 = vpop.f32.mrb[0].mxu0
  %v285 = vadd.f32 %v74, %v284
  %v286 = vpop.f32.mrb[0].mxu0
  %287 = vmatprep.mubr.bf16.mxu0 %v95
  %288 = vmatmul.mubr.bf16.gmra.mrb[0].mxu0 %v94
  %v289 = vpop.f32.mrb[0].mxu0
  %v290 = vadd.f32 %v74, %v289
  %v291 = vpop.f32.mrb[0].mxu0
  %v292 = vpop.f32.mrb[0].mxu0
  %v293 = vpop.f32.mrb[0].mxu0
  %294 = vdwg.mxu0
  %295 = vmatprep.subr.bf16.mxu0 0
  %296 = vmatpush1.bf16.msra.mxu0 %v215
  %297 = vmatprep.subr.bf16.mxu0 0
  %298 = vmatpush1.bf16.msra.mxu0 %v216
  %299 = vmatprep.subr.bf16.mxu0 0
  %300 = vmatpush1.bf16.msra.mxu0 %v217
  %301 = vmatprep.subr.bf16.mxu0 0
  %302 = vmatpush1.bf16.msra.mxu0 %v218
  %303 = vmatprep.subr.bf16.mxu0 0
  %304 = vmatpush1.bf16.msra.mxu0 %v219
  %305 = vmatprep.subr.bf16.mxu0 0
  %306 = vmatpush1.bf16.msra.mxu0 %v220
  %307 = vmatprep.subr.bf16.mxu0 0
  %308 = vmatpush1.bf16.msra.mxu0 %v221
  %309 = vmatprep.subr.bf16.mxu0 0
  %310 = vmatpush1.bf16.msra.mxu0 %v222
  %311 = vmatprep.subr.bf16.mxu0 0
  %312 = vmatpush1.bf16.msra.mxu0 0
  %313 = vmatprep.subr.bf16.mxu0 0
  %314 = vmatpush1.bf16.msra.mxu0 0
  %315 = vmatprep.subr.bf16.mxu0 0
  %316 = vmatpush1.bf16.msra.mxu0 0
  %317 = vmatprep.subr.bf16.mxu0 0
  %318 = vmatpush1.bf16.msra.mxu0 0
  %319 = vmatprep.subr.bf16.mxu0 0
  %320 = vmatpush1.bf16.msra.mxu0 0
  %321 = vmatprep.subr.bf16.mxu0 0
  %322 = vmatpush1.bf16.msra.mxu0 0
  %323 = vmatprep.subr.bf16.mxu0 0
  %324 = vmatpush1.bf16.msra.mxu0 0
  %325 = vmatprep.subr.bf16.mxu0 0
  %326 = vmatpush1.bf16.msra.mxu0 0
  %327 = vmatprep.mubr.bf16.mxu0 0
  %328 = vmatmul.mubr.bf16.gmra.mrb[0].mxu0 %v93
  %v329 = vpop.f32.mrb[0].mxu0
  %v330 = vadd.f32 %v282, %v329
  %v331 = vpop.f32.mrb[0].mxu0
  %v332 = vpop.f32.mrb[0].mxu0
  %v333 = vadd.f32 %v285, %v332
  %v334 = vpop.f32.mrb[0].mxu0
  %335 = vmatprep.mubr.bf16.mxu0 0
  %336 = vmatmul.mubr.bf16.gmra.mrb[0].mxu0 %v96
  %v337 = vpop.f32.mrb[0].mxu0
  %v338 = vadd.f32 %v290, %v337
  %v339 = vpop.f32.mrb[0].mxu0
  %v340 = vpop.f32.mrb[0].mxu0
  %v341 = vpop.f32.mrb[0].mxu0
  %342 = vdwg.mxu0
  %v343 = vmax.f32 %v330, 0.0
  %v344 = vmax.f32 %v333, 0.0
  %v345 = vmax.f32 %v338, 0.0
  %v346 = vpack.c.bf16 %v344, %v343
  %v347 = vpack.c.bf16 %v345, %v345
  %v350 = vunpack.c.l.b16 %v346
  %v351 = vunpack.c.h.b16 %v346
  %v352 = vunpack.c.l.b16 %v347
  %v353 = vpack.c.b16 %v350, %v350
  %v354 = vpack.c.b16 %v351, %v351
  %v355 = vpack.c.b16 %v352, %v352
  %359 = vst [vmem:[%s3] sm:$0xf] %v353
  %360 = vst [vmem:[%s3 + $0x4] sm:$0xf] %v354
  %361 = vst [vmem:[%s3 + $0x8] sm:$0xf] %v355
  // Predicated region
  $region14: #{triplet_net_forward.30} parent=0 // pred_check
    _
  $region15: #{triplet_net_forward.30} parent=0 // pred_check_branch
    %363 = sbr.rel (0) target = $region17
  $region16: #{triplet_net_forward.30} parent=0 // pred_region
    _
  $region17: #{triplet_net_forward.30} parent=0 // pred_fallthru
    _
  // Predicated region
  $region18: #{triplet_net_forward.30} parent=0 // pred_check
    _
  $region19: #{triplet_net_forward.30} parent=0 // pred_check_branch
    %365 = sbr.rel (0) target = $region21
  $region20: #{triplet_net_forward.30} parent=0 // pred_region
    _
  $region21: #{triplet_net_forward.30} parent=0 // pred_fallthru
    _

// kernel: triplet_net_forward.29
$region0: #{triplet_net_forward.29}
  #allocation0 [shape = 'u32[]', space=smem, size = 0x4, offset = 0x4, fixed_abs, tag = 'smem constant byte address 0x4 - core index']
  #allocation1 [shape = 'u32[144,128]{1,0:T(1,128)}', space=vmem, size = 0x12000, scoped, tag = 'internal scratch']
  %s0 = inlined_call_operand.vmem [shape: bf16[24,384], index: 0, kind: input, shape index: {}]
  %s1 = inlined_call_operand.vmem [shape: bf16[384,128], index: 1, kind: input, shape index: {}]
  %s2 = inlined_call_operand.vmem [shape: f32[1,128], index: 2, kind: input, shape index: {}]
  %s3 = inlined_call_operand.vmem [shape: bf16[24,128], index: 3, kind: input, shape index: {}]
  %s4 = inlined_call_operand.vmem [shape: bf16[128,128], index: 4, kind: input, shape index: {}]
  %s5 = inlined_call_operand.vmem [shape: f32[1,128], index: 5, kind: input, shape index: {}]
  %s6 = inlined_call_operand.vmem [shape: bf16[24,128], index: 6, kind: output, shape index: {}]
  %s7 = sld [smem:[#allocation0]]
  $region34: #{triplet_net_forward.29} parent=0
    _
  %s9 = ssub.s32 1, %s7
  %s10 = scalar_select 0, %s9, %s7
  // Predicated region
  $region2: #{triplet_net_forward.29} parent=0 // pred_check
    _
  $region3: #{triplet_net_forward.29} parent=0 // pred_check_branch
    %12 = sbr.rel (0) target = $region5
  $region4: #{triplet_net_forward.29} parent=0 // pred_region
    _
  $region5: #{triplet_net_forward.29} parent=0 // pred_fallthru
    _
  // Predicated region
  $region6: #{triplet_net_forward.29} parent=0 // pred_check
    _
  $region7: #{triplet_net_forward.29} parent=0 // pred_check_branch
    %14 = sbr.rel (0) target = $region9
  $region8: #{triplet_net_forward.29} parent=0 // pred_region
    _
  $region9: #{triplet_net_forward.29} parent=0 // pred_fallthru
    _
  // Predicated region
  $region10: #{triplet_net_forward.29} parent=0 // pred_check
    _
  $region11: #{triplet_net_forward.29} parent=0 // pred_check_branch
    %16 = sbr.rel (0) target = $region13
  $region12: #{triplet_net_forward.29} parent=0 // pred_region
    _
  $region13: #{triplet_net_forward.29} parent=0 // pred_fallthru
    _
  // Predicated region
  $region14: #{triplet_net_forward.29} parent=0 // pred_check
    _
  $region15: #{triplet_net_forward.29} parent=0 // pred_check_branch
    %18 = sbr.rel (0) target = $region17
  $region16: #{triplet_net_forward.29} parent=0 // pred_region
    _
  $region17: #{triplet_net_forward.29} parent=0 // pred_fallthru
    _
  // Predicated region
  $region18: #{triplet_net_forward.29} parent=0 // pred_check
    _
  $region19: #{triplet_net_forward.29} parent=0 // pred_check_branch
    %20 = sbr.rel (0) target = $region21
  $region20: #{triplet_net_forward.29} parent=0 // pred_region
    _
  $region21: #{triplet_net_forward.29} parent=0 // pred_fallthru
    _
  // Predicated region
  $region22: #{triplet_net_forward.29} parent=0 // pred_check
    _
  $region23: #{triplet_net_forward.29} parent=0 // pred_check_branch
    %22 = sbr.rel (0) target = $region25
  $region24: #{triplet_net_forward.29} parent=0 // pred_region
    _
  $region25: #{triplet_net_forward.29} parent=0 // pred_fallthru
    _
  %v24 = vld [vmem:[%s0] sm:$0xff]
  %v25 = vld [vmem:[%s0 + $0x8] sm:$0xf]
  %v26 = vld [vmem:[%s0 + $0xc] sm:$0xff]
  %v27 = vld [vmem:[%s0 + $0x14] sm:$0xf]
  %v28 = vld [vmem:[%s0 + $0x18] sm:$0xff]
  %v29 = vld [vmem:[%s0 + $0x20] sm:$0xf]
  %v30 = vld [vmem:[%s1] sm:$0xf]
  %v31 = vld [vmem:[%s1 + $0x4] sm:$0xf]
  %v32 = vld [vmem:[%s1 + $0x8] sm:$0xf]
  %v33 = vld [vmem:[%s1 + $0xc] sm:$0xf]
  %v34 = vld [vmem:[%s1 + $0x10] sm:$0xf]
  %v35 = vld [vmem:[%s1 + $0x14] sm:$0xf]
  %v36 = vld [vmem:[%s1 + $0x18] sm:$0xf]
  %v37 = vld [vmem:[%s1 + $0x1c] sm:$0xf]
  %v38 = vld [vmem:[%s1 + $0x20] sm:$0xf]
  %v39 = vld [vmem:[%s1 + $0x24] sm:$0xf]
  %v40 = vld [vmem:[%s1 + $0x28] sm:$0xf]
  %v41 = vld [vmem:[%s1 + $0x2c] sm:$0xf]
  %v42 = vld [vmem:[%s1 + $0x30] sm:$0xf]
  %v43 = vld [vmem:[%s1 + $0x34] sm:$0xf]
  %v44 = vld [vmem:[%s1 + $0x38] sm:$0xf]
  %v45 = vld [vmem:[%s1 + $0x3c] sm:$0xf]
  %v46 = vld [vmem:[%s1 + $0x40] sm:$0xf]
  %v47 = vld [vmem:[%s1 + $0x44] sm:$0xf]
  %v48 = vld [vmem:[%s1 + $0x48] sm:$0xf]
  %v49 = vld [vmem:[%s1 + $0x4c] sm:$0xf]
  %v50 = vld [vmem:[%s1 + $0x50] sm:$0xf]
  %v51 = vld [vmem:[%s1 + $0x54] sm:$0xf]
  %v52 = vld [vmem:[%s1 + $0x58] sm:$0xf]
  %v53 = vld [vmem:[%s1 + $0x5c] sm:$0xf]
  %v54 = vld [vmem:[%s1 + $0x60] sm:$0xf]
  %v55 = vld [vmem:[%s1 + $0x64] sm:$0xf]
  %v56 = vld [vmem:[%s1 + $0x68] sm:$0xf]
  %v57 = vld [vmem:[%s1 + $0x6c] sm:$0xf]
  %v58 = vld [vmem:[%s1 + $0x70] sm:$0xf]
  %v59 = vld [vmem:[%s1 + $0x74] sm:$0xf]
  %v60 = vld [vmem:[%s1 + $0x78] sm:$0xf]
  %v61 = vld [vmem:[%s1 + $0x7c] sm:$0xf]
  %v62 = vld [vmem:[%s1 + $0x80] sm:$0xf]
  %v63 = vld [vmem:[%s1 + $0x84] sm:$0xf]
  %v64 = vld [vmem:[%s1 + $0x88] sm:$0xf]
  %v65 = vld [vmem:[%s1 + $0x8c] sm:$0xf]
  %v66 = vld [vmem:[%s1 + $0x90] sm:$0xf]
  %v67 = vld [vmem:[%s1 + $0x94] sm:$0xf]
  %v68 = vld [vmem:[%s1 + $0x98] sm:$0xf]
  %v69 = vld [vmem:[%s1 + $0x9c] sm:$0xf]
  %v70 = vld [vmem:[%s1 + $0xa0] sm:$0xf]
  %v71 = vld [vmem:[%s1 + $0xa4] sm:$0xf]
  %v72 = vld [vmem:[%s1 + $0xa8] sm:$0xf]
  %v73 = vld [vmem:[%s1 + $0xac] sm:$0xf]
  %v74 = vld [vmem:[%s1 + $0xb0] sm:$0xf]
  %v75 = vld [vmem:[%s1 + $0xb4] sm:$0xf]
  %v76 = vld [vmem:[%s1 + $0xb8] sm:$0xf]
  %v77 = vld [vmem:[%s1 + $0xbc] sm:$0xf]
  %v78 = vld [vmem:[%s3] sm:$0xf]
  %v79 = vld [vmem:[%s3 + $0x4] sm:$0xf]
  %v80 = vld [vmem:[%s3 + $0x8] sm:$0xf]
  %v81 = vld [vmem:[%s4] sm:$0xf]
  %v82 = vld [vmem:[%s4 + $0x4] sm:$0xf]
  %v83 = vld [vmem:[%s4 + $0x8] sm:$0xf]
  %v84 = vld [vmem:[%s4 + $0xc] sm:$0xf]
  %v85 = vld [vmem:[%s4 + $0x10] sm:$0xf]
  %v86 = vld [vmem:[%s4 + $0x14] sm:$0xf]
  %v87 = vld [vmem:[%s4 + $0x18] sm:$0xf]
  %v88 = vld [vmem:[%s4 + $0x1c] sm:$0xf]
  %v89 = vld [vmem:[%s4 + $0x20] sm:$0xf]
  %v90 = vld [vmem:[%s4 + $0x24] sm:$0xf]
  %v91 = vld [vmem:[%s4 + $0x28] sm:$0xf]
  %v92 = vld [vmem:[%s4 + $0x2c] sm:$0xf]
  %v93 = vld [vmem:[%s4 + $0x30] sm:$0xf]
  %v94 = vld [vmem:[%s4 + $0x34] sm:$0xf]
  %v95 = vld [vmem:[%s4 + $0x38] sm:$0xf]
  %v96 = vld [vmem:[%s4 + $0x3c] sm:$0xf]
  %v97 = vld [vmem:[%s5] sm:$0x1]
  %v99 = vlaneseq
  %v100 = vshrl.u32 %v99, 7
  %v101 = vsub.s32 0, %v100
  %v102 = vrot.slane %v97, %v101
  %v107 = vunpack.c.l.b16 %v78
  %v108 = vunpack.c.l.b16 %v79
  %v109 = vunpack.c.l.b16 %v80
  %v110 = vpack.c.b16 %v108, %v107
  %v111 = vpack.c.b16 %v109, %v109
  %v130 = vunpack.c.l.b16 %v81
  %v131 = vunpack.c.l.b16 %v82
  %v132 = vunpack.c.l.b16 %v83
  %v133 = vunpack.c.l.b16 %v84
  %v134 = vunpack.c.l.b16 %v85
  %v135 = vunpack.c.l.b16 %v86
  %v136 = vunpack.c.l.b16 %v87
  %v137 = vunpack.c.l.b16 %v88
  %v138 = vunpack.c.l.b16 %v89
  %v139 = vunpack.c.l.b16 %v90
  %v140 = vunpack.c.l.b16 %v91
  %v141 = vunpack.c.l.b16 %v92
  %v142 = vunpack.c.l.b16 %v93
  %v143 = vunpack.c.l.b16 %v94
  %v144 = vunpack.c.l.b16 %v95
  %v145 = vunpack.c.l.b16 %v96
  %v146 = vpack.c.b16 %v131, %v130
  %v147 = vpack.c.b16 %v133, %v132
  %v148 = vpack.c.b16 %v135, %v134
  %v149 = vpack.c.b16 %v137, %v136
  %v150 = vpack.c.b16 %v139, %v138
  %v151 = vpack.c.b16 %v141, %v140
  %v152 = vpack.c.b16 %v143, %v142
  %v153 = vpack.c.b16 %v145, %v144
  %162 = vmatprep.subr.bf16.mxu0 0
  %163 = vmatpush1.bf16.msra.mxu0 %v146
  %164 = vmatprep.subr.bf16.mxu0 0
  %165 = vmatpush1.bf16.msra.mxu0 %v147
  %166 = vmatprep.subr.bf16.mxu0 0
  %167 = vmatpush1.bf16.msra.mxu0 %v148
  %168 = vmatprep.subr.bf16.mxu0 0
  %169 = vmatpush1.bf16.msra.mxu0 %v149
  %170 = vmatprep.subr.bf16.mxu0 0
  %171 = vmatpush1.bf16.msra.mxu0 %v150
  %172 = vmatprep.subr.bf16.mxu0 0
  %173 = vmatpush1.bf16.msra.mxu0 %v151
  %174 = vmatprep.subr.bf16.mxu0 0
  %175 = vmatpush1.bf16.msra.mxu0 %v152
  %176 = vmatprep.subr.bf16.mxu0 0
  %177 = vmatpush1.bf16.msra.mxu0 %v153
  %178 = vmatprep.subr.bf16.mxu0 0
  %179 = vmatpush1.bf16.msra.mxu0 0
  %180 = vmatprep.subr.bf16.mxu0 0
  %181 = vmatpush1.bf16.msra.mxu0 0
  %182 = vmatprep.subr.bf16.mxu0 0
  %183 = vmatpush1.bf16.msra.mxu0 0
  %184 = vmatprep.subr.bf16.mxu0 0
  %185 = vmatpush1.bf16.msra.mxu0 0
  %186 = vmatprep.subr.bf16.mxu0 0
  %187 = vmatpush1.bf16.msra.mxu0 0
  %188 = vmatprep.subr.bf16.mxu0 0
  %189 = vmatpush1.bf16.msra.mxu0 0
  %190 = vmatprep.subr.bf16.mxu0 0
  %191 = vmatpush1.bf16.msra.mxu0 0
  %192 = vmatprep.subr.bf16.mxu0 0
  %193 = vmatpush1.bf16.msra.mxu0 0
  %194 = vmatprep.mubr.bf16.mxu0 0
  %195 = vmatmul.mubr.bf16.gmra.mrb[0].mxu0 %v110
  %v196 = vpop.f32.mrb[0].mxu0
  %v197 = vadd.f32 %v102, %v196
  %v198 = vpop.f32.mrb[0].mxu0
  %v199 = vpop.f32.mrb[0].mxu0
  %v200 = vadd.f32 %v102, %v199
  %v201 = vpop.f32.mrb[0].mxu0
  %202 = vmatprep.mubr.bf16.mxu0 0
  %203 = vmatmul.mubr.bf16.gmra.mrb[0].mxu0 %v111
  %v204 = vpop.f32.mrb[0].mxu0
  %v205 = vadd.f32 %v102, %v204
  %v206 = vpop.f32.mrb[0].mxu0
  %v207 = vpop.f32.mrb[0].mxu0
  %v208 = vpop.f32.mrb[0].mxu0
  %209 = vdwg.mxu0
  %v210 = vld [vmem:[%s2] sm:$0x1]
  %v212 = vlaneseq
  %v213 = vshrl.u32 %v212, 7
  %v214 = vsub.s32 0, %v213
  %v215 = vrot.slane %v210, %v214
  %v223 = vunpack.c.l.b16 %v24
  %v224 = vunpack.c.h.b16 %v24
  %v225 = vunpack.c.l.b16 %v25
  %v226 = vunpack.c.l.b16 %v26
  %v227 = vunpack.c.h.b16 %v26
  %v228 = vunpack.c.l.b16 %v27
  %v229 = vunpack.c.l.b16 %v28
  %v230 = vunpack.c.h.b16 %v28
  %v231 = vunpack.c.l.b16 %v29
  %v232 = vpack.c.b16 %v226, %v223
  %v233 = vpack.c.b16 %v227, %v224
  %v234 = vpack.c.b16 %v228, %v225
  %v235 = vpack.c.b16 %v229, %v229
  %v236 = vpack.c.b16 %v230, %v230
  %v237 = vpack.c.b16 %v231, %v231
  %v292 = vunpack.c.l.b16 %v30
  %v293 = vunpack.c.l.b16 %v31
  %v294 = vunpack.c.l.b16 %v32
  %v295 = vunpack.c.l.b16 %v33
  %v296 = vunpack.c.l.b16 %v34
  %v297 = vunpack.c.l.b16 %v35
  %v298 = vunpack.c.l.b16 %v36
  %v299 = vunpack.c.l.b16 %v37
  %v300 = vunpack.c.l.b16 %v38
  %v301 = vunpack.c.l.b16 %v39
  %v302 = vunpack.c.l.b16 %v40
  %v303 = vunpack.c.l.b16 %v41
  %v304 = vunpack.c.l.b16 %v42
  %v305 = vunpack.c.l.b16 %v43
  %v306 = vunpack.c.l.b16 %v44
  %v307 = vunpack.c.l.b16 %v45
  %v308 = vunpack.c.l.b16 %v46
  %v309 = vunpack.c.l.b16 %v47
  %v310 = vunpack.c.l.b16 %v48
  %v311 = vunpack.c.l.b16 %v49
  %v312 = vunpack.c.l.b16 %v50
  %v313 = vunpack.c.l.b16 %v51
  %v314 = vunpack.c.l.b16 %v52
  %v315 = vunpack.c.l.b16 %v53
  %v316 = vunpack.c.l.b16 %v54
  %v317 = vunpack.c.l.b16 %v55
  %v318 = vunpack.c.l.b16 %v56
  %v319 = vunpack.c.l.b16 %v57
  %v320 = vunpack.c.l.b16 %v58
  %v321 = vunpack.c.l.b16 %v59
  %v322 = vunpack.c.l.b16 %v60
  %v323 = vunpack.c.l.b16 %v61
  %v324 = vunpack.c.l.b16 %v62
  %v325 = vunpack.c.l.b16 %v63
  %v326 = vunpack.c.l.b16 %v64
  %v327 = vunpack.c.l.b16 %v65
  %v328 = vunpack.c.l.b16 %v66
  %v329 = vunpack.c.l.b16 %v67
  %v330 = vunpack.c.l.b16 %v68
  %v331 = vunpack.c.l.b16 %v69
  %v332 = vunpack.c.l.b16 %v70
  %v333 = vunpack.c.l.b16 %v71
  %v334 = vunpack.c.l.b16 %v72
  %v335 = vunpack.c.l.b16 %v73
  %v336 = vunpack.c.l.b16 %v74
  %v337 = vunpack.c.l.b16 %v75
  %v338 = vunpack.c.l.b16 %v76
  %v339 = vunpack.c.l.b16 %v77
  %v340 = vpack.c.b16 %v293, %v292
  %v341 = vpack.c.b16 %v295, %v294
  %v342 = vpack.c.b16 %v297, %v296
  %v343 = vpack.c.b16 %v299, %v298
  %v344 = vpack.c.b16 %v301, %v300
  %v345 = vpack.c.b16 %v303, %v302
  %v346 = vpack.c.b16 %v305, %v304
  %v347 = vpack.c.b16 %v307, %v306
  %v348 = vpack.c.b16 %v309, %v308
  %v349 = vpack.c.b16 %v311, %v310
  %v350 = vpack.c.b16 %v313, %v312
  %v351 = vpack.c.b16 %v315, %v314
  %v352 = vpack.c.b16 %v317, %v316
  %v353 = vpack.c.b16 %v319, %v318
  %v354 = vpack.c.b16 %v321, %v320
  %v355 = vpack.c.b16 %v323, %v322
  %v356 = vpack.c.b16 %v325, %v324
  %v357 = vpack.c.b16 %v327, %v326
  %v358 = vpack.c.b16 %v329, %v328
  %v359 = vpack.c.b16 %v331, %v330
  %v360 = vpack.c.b16 %v333, %v332
  %v361 = vpack.c.b16 %v335, %v334
  %v362 = vpack.c.b16 %v337, %v336
  %v363 = vpack.c.b16 %v339, %v338
  %388 = vmatprep.subr.bf16.mxu0 0
  %389 = vmatpush1.bf16.msra.mxu0 %v340
  %390 = vmatprep.subr.bf16.mxu0 0
  %391 = vmatpush1.bf16.msra.mxu0 %v341
  %392 = vmatprep.subr.bf16.mxu0 0
  %393 = vmatpush1.bf16.msra.mxu0 %v342
  %394 = vmatprep.subr.bf16.mxu0 0
  %395 = vmatpush1.bf16.msra.mxu0 %v343
  %396 = vmatprep.subr.bf16.mxu0 0
  %397 = vmatpush1.bf16.msra.mxu0 %v344
  %398 = vmatprep.subr.bf16.mxu0 0
  %399 = vmatpush1.bf16.msra.mxu0 %v345
  %400 = vmatprep.subr.bf16.mxu0 0
  %401 = vmatpush1.bf16.msra.mxu0 %v346
  %402 = vmatprep.subr.bf16.mxu0 0
  %403 = vmatpush1.bf16.msra.mxu0 %v347
  %404 = vmatprep.subr.bf16.mxu0 0
  %405 = vmatpush1.bf16.msra.mxu0 %v348
  %406 = vmatprep.subr.bf16.mxu0 0
  %407 = vmatpush1.bf16.msra.mxu0 %v349
  %408 = vmatprep.subr.bf16.mxu0 0
  %409 = vmatpush1.bf16.msra.mxu0 %v350
  %410 = vmatprep.subr.bf16.mxu0 0
  %411 = vmatpush1.bf16.msra.mxu0 %v351
  %412 = vmatprep.subr.bf16.mxu0 0
  %413 = vmatpush1.bf16.msra.mxu0 %v352
  %414 = vmatprep.subr.bf16.mxu0 0
  %415 = vmatpush1.bf16.msra.mxu0 %v353
  %416 = vmatprep.subr.bf16.mxu0 0
  %417 = vmatpush1.bf16.msra.mxu0 %v354
  %418 = vmatprep.subr.bf16.mxu0 0
  %419 = vmatpush1.bf16.msra.mxu0 %v355
  %420 = vmatprep.mubr.bf16.mxu0 %v233
  %421 = vmatmul.mubr.bf16.gmra.mrb[0].mxu0 %v232
  %v422 = vpop.f32.mrb[0].mxu0
  %v423 = vadd.f32 %v215, %v422
  %v424 = vpop.f32.mrb[0].mxu0
  %v425 = vpop.f32.mrb[0].mxu0
  %v426 = vadd.f32 %v215, %v425
  %v427 = vpop.f32.mrb[0].mxu0
  %428 = vmatprep.mubr.bf16.mxu0 %v236
  %429 = vmatmul.mubr.bf16.gmra.mrb[0].mxu0 %v235
  %v430 = vpop.f32.mrb[0].mxu0
  %v431 = vadd.f32 %v215, %v430
  %v432 = vpop.f32.mrb[0].mxu0
  %v433 = vpop.f32.mrb[0].mxu0
  %v434 = vpop.f32.mrb[0].mxu0
  %435 = vdwg.mxu0
  %436 = vmatprep.subr.bf16.mxu0 0
  %437 = vmatpush1.bf16.msra.mxu0 %v356
  %438 = vmatprep.subr.bf16.mxu0 0
  %439 = vmatpush1.bf16.msra.mxu0 %v357
  %440 = vmatprep.subr.bf16.mxu0 0
  %441 = vmatpush1.bf16.msra.mxu0 %v358
  %442 = vmatprep.subr.bf16.mxu0 0
  %443 = vmatpush1.bf16.msra.mxu0 %v359
  %444 = vmatprep.subr.bf16.mxu0 0
  %445 = vmatpush1.bf16.msra.mxu0 %v360
  %446 = vmatprep.subr.bf16.mxu0 0
  %447 = vmatpush1.bf16.msra.mxu0 %v361
  %448 = vmatprep.subr.bf16.mxu0 0
  %449 = vmatpush1.bf16.msra.mxu0 %v362
  %450 = vmatprep.subr.bf16.mxu0 0
  %451 = vmatpush1.bf16.msra.mxu0 %v363
  %452 = vmatprep.subr.bf16.mxu0 0
  %453 = vmatpush1.bf16.msra.mxu0 0
  %454 = vmatprep.subr.bf16.mxu0 0
  %455 = vmatpush1.bf16.msra.mxu0 0
  %456 = vmatprep.subr.bf16.mxu0 0
  %457 = vmatpush1.bf16.msra.mxu0 0
  %458 = vmatprep.subr.bf16.mxu0 0
  %459 = vmatpush1.bf16.msra.mxu0 0
  %460 = vmatprep.subr.bf16.mxu0 0
  %461 = vmatpush1.bf16.msra.mxu0 0
  %462 = vmatprep.subr.bf16.mxu0 0
  %463 = vmatpush1.bf16.msra.mxu0 0
  %464 = vmatprep.subr.bf16.mxu0 0
  %465 = vmatpush1.bf16.msra.mxu0 0
  %466 = vmatprep.subr.bf16.mxu0 0
  %467 = vmatpush1.bf16.msra.mxu0 0
  %468 = vmatprep.mubr.bf16.mxu0 0
  %469 = vmatmul.mubr.bf16.gmra.mrb[0].mxu0 %v234
  %v470 = vpop.f32.mrb[0].mxu0
  %v471 = vadd.f32 %v423, %v470
  %v472 = vpop.f32.mrb[0].mxu0
  %v473 = vpop.f32.mrb[0].mxu0
  %v474 = vadd.f32 %v426, %v473
  %v475 = vpop.f32.mrb[0].mxu0
  %476 = vmatprep.mubr.bf16.mxu0 0
  %477 = vmatmul.mubr.bf16.gmra.mrb[0].mxu0 %v237
  %v478 = vpop.f32.mrb[0].mxu0
  %v479 = vadd.f32 %v431, %v478
  %v480 = vpop.f32.mrb[0].mxu0
  %v481 = vpop.f32.mrb[0].mxu0
  %v482 = vpop.f32.mrb[0].mxu0
  %483 = vdwg.mxu0
  %v484 = vadd.f32 %v471, %v197
  %v485 = vadd.f32 %v474, %v200
  %v486 = vadd.f32 %v479, %v205
  %v487 = vmax.f32 %v484, 0.0
  %v488 = vmax.f32 %v485, 0.0
  %v489 = vmax.f32 %v486, 0.0
  %v490 = vpack.c.bf16 %v488, %v487
  %v491 = vpack.c.bf16 %v489, %v489
  %v494 = vunpack.c.l.b16 %v490
  %v495 = vunpack.c.h.b16 %v490
  %v496 = vunpack.c.l.b16 %v491
  %v497 = vpack.c.b16 %v494, %v494
  %v498 = vpack.c.b16 %v495, %v495
  %v499 = vpack.c.b16 %v496, %v496
  %503 = vst [vmem:[%s6] sm:$0xf] %v497
  %504 = vst [vmem:[%s6 + $0x4] sm:$0xf] %v498
  %505 = vst [vmem:[%s6 + $0x8] sm:$0xf] %v499
  // Predicated region
  $region26: #{triplet_net_forward.29} parent=0 // pred_check
    _
  $region27: #{triplet_net_forward.29} parent=0 // pred_check_branch
    %507 = sbr.rel (0) target = $region29
  $region28: #{triplet_net_forward.29} parent=0 // pred_region
    _
  $region29: #{triplet_net_forward.29} parent=0 // pred_fallthru
    _
  // Predicated region
  $region30: #{triplet_net_forward.29} parent=0 // pred_check
    _
  $region31: #{triplet_net_forward.29} parent=0 // pred_check_branch
    %509 = sbr.rel (0) target = $region33
  $region32: #{triplet_net_forward.29} parent=0 // pred_region
    _
  $region33: #{triplet_net_forward.29} parent=0 // pred_fallthru
    _

// kernel: triplet_net_forward.32
$region0: #{triplet_net_forward.32}
  #allocation0 [shape = 'u32[]', space=smem, size = 0x4, offset = 0x4, fixed_abs, tag = 'smem constant byte address 0x4 - core index']
  #allocation1 [shape = 'u32[144,128]{1,0:T(1,128)}', space=vmem, size = 0x12000, scoped, tag = 'internal scratch']
  %s0 = inlined_call_operand.vmem [shape: bf16[6,384], index: 0, kind: input, shape index: {}]
  %s1 = inlined_call_operand.vmem [shape: bf16[384,128], index: 1, kind: input, shape index: {}]
  %s2 = inlined_call_operand.vmem [shape: f32[1,128], index: 2, kind: input, shape index: {}]
  %s3 = inlined_call_operand.vmem [shape: bf16[6,128], index: 3, kind: output, shape index: {}]
  %s4 = sld [smem:[#allocation0]]
  $region22: #{triplet_net_forward.32} parent=0
    _
  %s6 = ssub.s32 1, %s4
  %s7 = scalar_select 0, %s6, %s4
  // Predicated region
  $region2: #{triplet_net_forward.32} parent=0 // pred_check
    _
  $region3: #{triplet_net_forward.32} parent=0 // pred_check_branch
    %9 = sbr.rel (0) target = $region5
  $region4: #{triplet_net_forward.32} parent=0 // pred_region
    _
  $region5: #{triplet_net_forward.32} parent=0 // pred_fallthru
    _
  // Predicated region
  $region6: #{triplet_net_forward.32} parent=0 // pred_check
    _
  $region7: #{triplet_net_forward.32} parent=0 // pred_check_branch
    %11 = sbr.rel (0) target = $region9
  $region8: #{triplet_net_forward.32} parent=0 // pred_region
    _
  $region9: #{triplet_net_forward.32} parent=0 // pred_fallthru
    _
  // Predicated region
  $region10: #{triplet_net_forward.32} parent=0 // pred_check
    _
  $region11: #{triplet_net_forward.32} parent=0 // pred_check_branch
    %13 = sbr.rel (0) target = $region13
  $region12: #{triplet_net_forward.32} parent=0 // pred_region
    _
  $region13: #{triplet_net_forward.32} parent=0 // pred_fallthru
    _
  %v15 = vld [vmem:[%s0] sm:$0x77]
  %v16 = vld [vmem:[%s0 + $0x8] sm:$0x7]
  %v17 = vld [vmem:[%s1] sm:$0xf]
  %v18 = vld [vmem:[%s1 + $0x4] sm:$0xf]
  %v19 = vld [vmem:[%s1 + $0x8] sm:$0xf]
  %v20 = vld [vmem:[%s1 + $0xc] sm:$0xf]
  %v21 = vld [vmem:[%s1 + $0x10] sm:$0xf]
  %v22 = vld [vmem:[%s1 + $0x14] sm:$0xf]
  %v23 = vld [vmem:[%s1 + $0x18] sm:$0xf]
  %v24 = vld [vmem:[%s1 + $0x1c] sm:$0xf]
  %v25 = vld [vmem:[%s1 + $0x20] sm:$0xf]
  %v26 = vld [vmem:[%s1 + $0x24] sm:$0xf]
  %v27 = vld [vmem:[%s1 + $0x28] sm:$0xf]
  %v28 = vld [vmem:[%s1 + $0x2c] sm:$0xf]
  %v29 = vld [vmem:[%s1 + $0x30] sm:$0xf]
  %v30 = vld [vmem:[%s1 + $0x34] sm:$0xf]
  %v31 = vld [vmem:[%s1 + $0x38] sm:$0xf]
  %v32 = vld [vmem:[%s1 + $0x3c] sm:$0xf]
  %v33 = vld [vmem:[%s1 + $0x40] sm:$0xf]
  %v34 = vld [vmem:[%s1 + $0x44] sm:$0xf]
  %v35 = vld [vmem:[%s1 + $0x48] sm:$0xf]
  %v36 = vld [vmem:[%s1 + $0x4c] sm:$0xf]
  %v37 = vld [vmem:[%s1 + $0x50] sm:$0xf]
  %v38 = vld [vmem:[%s1 + $0x54] sm:$0xf]
  %v39 = vld [vmem:[%s1 + $0x58] sm:$0xf]
  %v40 = vld [vmem:[%s1 + $0x5c] sm:$0xf]
  %v41 = vld [vmem:[%s1 + $0x60] sm:$0xf]
  %v42 = vld [vmem:[%s1 + $0x64] sm:$0xf]
  %v43 = vld [vmem:[%s1 + $0x68] sm:$0xf]
  %v44 = vld [vmem:[%s1 + $0x6c] sm:$0xf]
  %v45 = vld [vmem:[%s1 + $0x70] sm:$0xf]
  %v46 = vld [vmem:[%s1 + $0x74] sm:$0xf]
  %v47 = vld [vmem:[%s1 + $0x78] sm:$0xf]
  %v48 = vld [vmem:[%s1 + $0x7c] sm:$0xf]
  %v49 = vld [vmem:[%s1 + $0x80] sm:$0xf]
  %v50 = vld [vmem:[%s1 + $0x84] sm:$0xf]
  %v51 = vld [vmem:[%s1 + $0x88] sm:$0xf]
  %v52 = vld [vmem:[%s1 + $0x8c] sm:$0xf]
  %v53 = vld [vmem:[%s1 + $0x90] sm:$0xf]
  %v54 = vld [vmem:[%s1 + $0x94] sm:$0xf]
  %v55 = vld [vmem:[%s1 + $0x98] sm:$0xf]
  %v56 = vld [vmem:[%s1 + $0x9c] sm:$0xf]
  %v57 = vld [vmem:[%s1 + $0xa0] sm:$0xf]
  %v58 = vld [vmem:[%s1 + $0xa4] sm:$0xf]
  %v59 = vld [vmem:[%s1 + $0xa8] sm:$0xf]
  %v60 = vld [vmem:[%s1 + $0xac] sm:$0xf]
  %v61 = vld [vmem:[%s1 + $0xb0] sm:$0xf]
  %v62 = vld [vmem:[%s1 + $0xb4] sm:$0xf]
  %v63 = vld [vmem:[%s1 + $0xb8] sm:$0xf]
  %v64 = vld [vmem:[%s1 + $0xbc] sm:$0xf]
  %v65 = vld [vmem:[%s2] sm:$0x1]
  %v67 = vlaneseq
  %v68 = vshrl.u32 %v67, 7
  %v69 = vsub.s32 0, %v68
  %v70 = vrot.slane %v65, %v69
  %v74 = vunpack.c.l.b16 %v15
  %v75 = vunpack.c.h.b16 %v15
  %v76 = vunpack.c.l.b16 %v16
  %v77 = vpack.c.b16 %v74, %v74
  %v78 = vpack.c.b16 %v75, %v75
  %v79 = vpack.c.b16 %v76, %v76
  %v131 = vunpack.c.l.b16 %v17
  %v132 = vunpack.c.l.b16 %v18
  %v133 = vunpack.c.l.b16 %v19
  %v134 = vunpack.c.l.b16 %v20
  %v135 = vunpack.c.l.b16 %v21
  %v136 = vunpack.c.l.b16 %v22
  %v137 = vunpack.c.l.b16 %v23
  %v138 = vunpack.c.l.b16 %v24
  %v139 = vunpack.c.l.b16 %v25
  %v140 = vunpack.c.l.b16 %v26
  %v141 = vunpack.c.l.b16 %v27
  %v142 = vunpack.c.l.b16 %v28
  %v143 = vunpack.c.l.b16 %v29
  %v144 = vunpack.c.l.b16 %v30
  %v145 = vunpack.c.l.b16 %v31
  %v146 = vunpack.c.l.b16 %v32
  %v147 = vunpack.c.l.b16 %v33
  %v148 = vunpack.c.l.b16 %v34
  %v149 = vunpack.c.l.b16 %v35
  %v150 = vunpack.c.l.b16 %v36
  %v151 = vunpack.c.l.b16 %v37
  %v152 = vunpack.c.l.b16 %v38
  %v153 = vunpack.c.l.b16 %v39
  %v154 = vunpack.c.l.b16 %v40
  %v155 = vunpack.c.l.b16 %v41
  %v156 = vunpack.c.l.b16 %v42
  %v157 = vunpack.c.l.b16 %v43
  %v158 = vunpack.c.l.b16 %v44
  %v159 = vunpack.c.l.b16 %v45
  %v160 = vunpack.c.l.b16 %v46
  %v161 = vunpack.c.l.b16 %v47
  %v162 = vunpack.c.l.b16 %v48
  %v163 = vunpack.c.l.b16 %v49
  %v164 = vunpack.c.l.b16 %v50
  %v165 = vunpack.c.l.b16 %v51
  %v166 = vunpack.c.l.b16 %v52
  %v167 = vunpack.c.l.b16 %v53
  %v168 = vunpack.c.l.b16 %v54
  %v169 = vunpack.c.l.b16 %v55
  %v170 = vunpack.c.l.b16 %v56
  %v171 = vunpack.c.l.b16 %v57
  %v172 = vunpack.c.l.b16 %v58
  %v173 = vunpack.c.l.b16 %v59
  %v174 = vunpack.c.l.b16 %v60
  %v175 = vunpack.c.l.b16 %v61
  %v176 = vunpack.c.l.b16 %v62
  %v177 = vunpack.c.l.b16 %v63
  %v178 = vunpack.c.l.b16 %v64
  %v179 = vpack.c.b16 %v132, %v131
  %v180 = vpack.c.b16 %v134, %v133
  %v181 = vpack.c.b16 %v136, %v135
  %v182 = vpack.c.b16 %v138, %v137
  %v183 = vpack.c.b16 %v140, %v139
  %v184 = vpack.c.b16 %v142, %v141
  %v185 = vpack.c.b16 %v144, %v143
  %v186 = vpack.c.b16 %v146, %v145
  %v187 = vpack.c.b16 %v148, %v147
  %v188 = vpack.c.b16 %v150, %v149
  %v189 = vpack.c.b16 %v152, %v151
  %v190 = vpack.c.b16 %v154, %v153
  %v191 = vpack.c.b16 %v156, %v155
  %v192 = vpack.c.b16 %v158, %v157
  %v193 = vpack.c.b16 %v160, %v159
  %v194 = vpack.c.b16 %v162, %v161
  %v195 = vpack.c.b16 %v164, %v163
  %v196 = vpack.c.b16 %v166, %v165
  %v197 = vpack.c.b16 %v168, %v167
  %v198 = vpack.c.b16 %v170, %v169
  %v199 = vpack.c.b16 %v172, %v171
  %v200 = vpack.c.b16 %v174, %v173
  %v201 = vpack.c.b16 %v176, %v175
  %v202 = vpack.c.b16 %v178, %v177
  %227 = vmatprep.subr.bf16.mxu0 0
  %228 = vmatpush1.bf16.msra.mxu0 %v179
  %229 = vmatprep.subr.bf16.mxu0 0
  %230 = vmatpush1.bf16.msra.mxu0 %v180
  %231 = vmatprep.subr.bf16.mxu0 0
  %232 = vmatpush1.bf16.msra.mxu0 %v181
  %233 = vmatprep.subr.bf16.mxu0 0
  %234 = vmatpush1.bf16.msra.mxu0 %v182
  %235 = vmatprep.subr.bf16.mxu0 0
  %236 = vmatpush1.bf16.msra.mxu0 %v183
  %237 = vmatprep.subr.bf16.mxu0 0
  %238 = vmatpush1.bf16.msra.mxu0 %v184
  %239 = vmatprep.subr.bf16.mxu0 0
  %240 = vmatpush1.bf16.msra.mxu0 %v185
  %241 = vmatprep.subr.bf16.mxu0 0
  %242 = vmatpush1.bf16.msra.mxu0 %v186
  %243 = vmatprep.subr.bf16.mxu0 0
  %244 = vmatpush1.bf16.msra.mxu0 %v187
  %245 = vmatprep.subr.bf16.mxu0 0
  %246 = vmatpush1.bf16.msra.mxu0 %v188
  %247 = vmatprep.subr.bf16.mxu0 0
  %248 = vmatpush1.bf16.msra.mxu0 %v189
  %249 = vmatprep.subr.bf16.mxu0 0
  %250 = vmatpush1.bf16.msra.mxu0 %v190
  %251 = vmatprep.subr.bf16.mxu0 0
  %252 = vmatpush1.bf16.msra.mxu0 %v191
  %253 = vmatprep.subr.bf16.mxu0 0
  %254 = vmatpush1.bf16.msra.mxu0 %v192
  %255 = vmatprep.subr.bf16.mxu0 0
  %256 = vmatpush1.bf16.msra.mxu0 %v193
  %257 = vmatprep.subr.bf16.mxu0 0
  %258 = vmatpush1.bf16.msra.mxu0 %v194
  %259 = vmatprep.mubr.bf16.mxu0 %v78
  %260 = vmatmul.mubr.bf16.gmra.mrb[0].mxu0 %v77
  %v261 = vpop.f32.mrb[0].mxu0
  %v262 = vadd.f32 %v70, %v261
  %v263 = vpop.f32.mrb[0].mxu0
  %v264 = vpop.f32.mrb[0].mxu0
  %v265 = vpop.f32.mrb[0].mxu0
  %266 = vdwg.mxu0
  %267 = vmatprep.subr.bf16.mxu0 0
  %268 = vmatpush1.bf16.msra.mxu0 %v195
  %269 = vmatprep.subr.bf16.mxu0 0
  %270 = vmatpush1.bf16.msra.mxu0 %v196
  %271 = vmatprep.subr.bf16.mxu0 0
  %272 = vmatpush1.bf16.msra.mxu0 %v197
  %273 = vmatprep.subr.bf16.mxu0 0
  %274 = vmatpush1.bf16.msra.mxu0 %v198
  %275 = vmatprep.subr.bf16.mxu0 0
  %276 = vmatpush1.bf16.msra.mxu0 %v199
  %277 = vmatprep.subr.bf16.mxu0 0
  %278 = vmatpush1.bf16.msra.mxu0 %v200
  %279 = vmatprep.subr.bf16.mxu0 0
  %280 = vmatpush1.bf16.msra.mxu0 %v201
  %281 = vmatprep.subr.bf16.mxu0 0
  %282 = vmatpush1.bf16.msra.mxu0 %v202
  %283 = vmatprep.subr.bf16.mxu0 0
  %284 = vmatpush1.bf16.msra.mxu0 0
  %285 = vmatprep.subr.bf16.mxu0 0
  %286 = vmatpush1.bf16.msra.mxu0 0
  %287 = vmatprep.subr.bf16.mxu0 0
  %288 = vmatpush1.bf16.msra.mxu0 0
  %289 = vmatprep.subr.bf16.mxu0 0
  %290 = vmatpush1.bf16.msra.mxu0 0
  %291 = vmatprep.subr.bf16.mxu0 0
  %292 = vmatpush1.bf16.msra.mxu0 0
  %293 = vmatprep.subr.bf16.mxu0 0
  %294 = vmatpush1.bf16.msra.mxu0 0
  %295 = vmatprep.subr.bf16.mxu0 0
  %296 = vmatpush1.bf16.msra.mxu0 0
  %297 = vmatprep.subr.bf16.mxu0 0
  %298 = vmatpush1.bf16.msra.mxu0 0
  %299 = vmatprep.mubr.bf16.mxu0 0
  %300 = vmatmul.mubr.bf16.gmra.mrb[0].mxu0 %v79
  %v301 = vpop.f32.mrb[0].mxu0
  %v302 = vadd.f32 %v262, %v301
  %v303 = vpop.f32.mrb[0].mxu0
  %v304 = vpop.f32.mrb[0].mxu0
  %v305 = vpop.f32.mrb[0].mxu0
  %306 = vdwg.mxu0
  %v307 = vmax.f32 %v302, 0.0
  %v308 = vpack.c.bf16 %v307, %v307
  %309 = vst [vmem:[%s3] sm:$0x7] %v308
  // Predicated region
  $region14: #{triplet_net_forward.32} parent=0 // pred_check
    _
  $region15: #{triplet_net_forward.32} parent=0 // pred_check_branch
    %311 = sbr.rel (0) target = $region17
  $region16: #{triplet_net_forward.32} parent=0 // pred_region
    _
  $region17: #{triplet_net_forward.32} parent=0 // pred_fallthru
    _
  // Predicated region
  $region18: #{triplet_net_forward.32} parent=0 // pred_check
    _
  $region19: #{triplet_net_forward.32} parent=0 // pred_check_branch
    %313 = sbr.rel (0) target = $region21
  $region20: #{triplet_net_forward.32} parent=0 // pred_region
    _
  $region21: #{triplet_net_forward.32} parent=0 // pred_fallthru
    _

// kernel: triplet_net_forward.35
$region0: #{triplet_net_forward.35}
  #allocation0 [shape = 'u32[]', space=smem, size = 0x4, offset = 0x4, fixed_abs, tag = 'smem constant byte address 0x4 - core index']
  #allocation1 [shape = 'u32[144,128]{1,0:T(1,128)}', space=vmem, size = 0x12000, scoped, tag = 'internal scratch']
  %s0 = inlined_call_operand.vmem [shape: bf16[6,640], index: 0, kind: input, shape index: {}]
  %s1 = inlined_call_operand.vmem [shape: bf16[640,128], index: 1, kind: input, shape index: {}]
  %s2 = inlined_call_operand.vmem [shape: f32[1,128], index: 2, kind: input, shape index: {}]
  %s3 = inlined_call_operand.vmem [shape: bf16[6,128], index: 3, kind: input, shape index: {}]
  %s4 = inlined_call_operand.vmem [shape: f32[6,128], index: 4, kind: output, shape index: {}]
  %s5 = sld [smem:[#allocation0]]
  $region26: #{triplet_net_forward.35} parent=0
    _
  %s7 = ssub.s32 1, %s5
  %s8 = scalar_select 0, %s7, %s5
  // Predicated region
  $region2: #{triplet_net_forward.35} parent=0 // pred_check
    _
  $region3: #{triplet_net_forward.35} parent=0 // pred_check_branch
    %10 = sbr.rel (0) target = $region5
  $region4: #{triplet_net_forward.35} parent=0 // pred_region
    _
  $region5: #{triplet_net_forward.35} parent=0 // pred_fallthru
    _
  // Predicated region
  $region6: #{triplet_net_forward.35} parent=0 // pred_check
    _
  $region7: #{triplet_net_forward.35} parent=0 // pred_check_branch
    %12 = sbr.rel (0) target = $region9
  $region8: #{triplet_net_forward.35} parent=0 // pred_region
    _
  $region9: #{triplet_net_forward.35} parent=0 // pred_fallthru
    _
  // Predicated region
  $region10: #{triplet_net_forward.35} parent=0 // pred_check
    _
  $region11: #{triplet_net_forward.35} parent=0 // pred_check_branch
    %14 = sbr.rel (0) target = $region13
  $region12: #{triplet_net_forward.35} parent=0 // pred_region
    _
  $region13: #{triplet_net_forward.35} parent=0 // pred_fallthru
    _
  // Predicated region
  $region14: #{triplet_net_forward.35} parent=0 // pred_check
    _
  $region15: #{triplet_net_forward.35} parent=0 // pred_check_branch
    %16 = sbr.rel (0) target = $region17
  $region16: #{triplet_net_forward.35} parent=0 // pred_region
    _
  $region17: #{triplet_net_forward.35} parent=0 // pred_fallthru
    _
  %v18 = vld [vmem:[%s0] sm:$0x77]
  %v19 = vld [vmem:[%s0 + $0x8] sm:$0x77]
  %v20 = vld [vmem:[%s0 + $0x10] sm:$0x7]
  %v21 = vld [vmem:[%s1] sm:$0xf]
  %v22 = vld [vmem:[%s1 + $0x4] sm:$0xf]
  %v23 = vld [vmem:[%s1 + $0x8] sm:$0xf]
  %v24 = vld [vmem:[%s1 + $0xc] sm:$0xf]
  %v25 = vld [vmem:[%s1 + $0x10] sm:$0xf]
  %v26 = vld [vmem:[%s1 + $0x14] sm:$0xf]
  %v27 = vld [vmem:[%s1 + $0x18] sm:$0xf]
  %v28 = vld [vmem:[%s1 + $0x1c] sm:$0xf]
  %v29 = vld [vmem:[%s1 + $0x20] sm:$0xf]
  %v30 = vld [vmem:[%s1 + $0x24] sm:$0xf]
  %v31 = vld [vmem:[%s1 + $0x28] sm:$0xf]
  %v32 = vld [vmem:[%s1 + $0x2c] sm:$0xf]
  %v33 = vld [vmem:[%s1 + $0x30] sm:$0xf]
  %v34 = vld [vmem:[%s1 + $0x34] sm:$0xf]
  %v35 = vld [vmem:[%s1 + $0x38] sm:$0xf]
  %v36 = vld [vmem:[%s1 + $0x3c] sm:$0xf]
  %v37 = vld [vmem:[%s1 + $0x40] sm:$0xf]
  %v38 = vld [vmem:[%s1 + $0x44] sm:$0xf]
  %v39 = vld [vmem:[%s1 + $0x48] sm:$0xf]
  %v40 = vld [vmem:[%s1 + $0x4c] sm:$0xf]
  %v41 = vld [vmem:[%s1 + $0x50] sm:$0xf]
  %v42 = vld [vmem:[%s1 + $0x54] sm:$0xf]
  %v43 = vld [vmem:[%s1 + $0x58] sm:$0xf]
  %v44 = vld [vmem:[%s1 + $0x5c] sm:$0xf]
  %v45 = vld [vmem:[%s1 + $0x60] sm:$0xf]
  %v46 = vld [vmem:[%s1 + $0x64] sm:$0xf]
  %v47 = vld [vmem:[%s1 + $0x68] sm:$0xf]
  %v48 = vld [vmem:[%s1 + $0x6c] sm:$0xf]
  %v49 = vld [vmem:[%s1 + $0x70] sm:$0xf]
  %v50 = vld [vmem:[%s1 + $0x74] sm:$0xf]
  %v51 = vld [vmem:[%s1 + $0x78] sm:$0xf]
  %v52 = vld [vmem:[%s1 + $0x7c] sm:$0xf]
  %v53 = vld [vmem:[%s1 + $0x80] sm:$0xf]
  %v54 = vld [vmem:[%s1 + $0x84] sm:$0xf]
  %v55 = vld [vmem:[%s1 + $0x88] sm:$0xf]
  %v56 = vld [vmem:[%s1 + $0x8c] sm:$0xf]
  %v57 = vld [vmem:[%s1 + $0x90] sm:$0xf]
  %v58 = vld [vmem:[%s1 + $0x94] sm:$0xf]
  %v59 = vld [vmem:[%s1 + $0x98] sm:$0xf]
  %v60 = vld [vmem:[%s1 + $0x9c] sm:$0xf]
  %v61 = vld [vmem:[%s1 + $0xa0] sm:$0xf]
  %v62 = vld [vmem:[%s1 + $0xa4] sm:$0xf]
  %v63 = vld [vmem:[%s1 + $0xa8] sm:$0xf]
  %v64 = vld [vmem:[%s1 + $0xac] sm:$0xf]
  %v65 = vld [vmem:[%s1 + $0xb0] sm:$0xf]
  %v66 = vld [vmem:[%s1 + $0xb4] sm:$0xf]
  %v67 = vld [vmem:[%s1 + $0xb8] sm:$0xf]
  %v68 = vld [vmem:[%s1 + $0xbc] sm:$0xf]
  %v69 = vld [vmem:[%s1 + $0xc0] sm:$0xf]
  %v70 = vld [vmem:[%s1 + $0xc4] sm:$0xf]
  %v71 = vld [vmem:[%s1 + $0xc8] sm:$0xf]
  %v72 = vld [vmem:[%s1 + $0xcc] sm:$0xf]
  %v73 = vld [vmem:[%s1 + $0xd0] sm:$0xf]
  %v74 = vld [vmem:[%s1 + $0xd4] sm:$0xf]
  %v75 = vld [vmem:[%s1 + $0xd8] sm:$0xf]
  %v76 = vld [vmem:[%s1 + $0xdc] sm:$0xf]
  %v77 = vld [vmem:[%s1 + $0xe0] sm:$0xf]
  %v78 = vld [vmem:[%s1 + $0xe4] sm:$0xf]
  %v79 = vld [vmem:[%s1 + $0xe8] sm:$0xf]
  %v80 = vld [vmem:[%s1 + $0xec] sm:$0xf]
  %v81 = vld [vmem:[%s1 + $0xf0] sm:$0xf]
  %v82 = vld [vmem:[%s1 + $0xf4] sm:$0xf]
  %v83 = vld [vmem:[%s1 + $0xf8] sm:$0xf]
  %v84 = vld [vmem:[%s1 + $0xfc] sm:$0xf]
  %v85 = vld [vmem:[%s1 + $0x100] sm:$0xf]
  %v86 = vld [vmem:[%s1 + $0x104] sm:$0xf]
  %v87 = vld [vmem:[%s1 + $0x108] sm:$0xf]
  %v88 = vld [vmem:[%s1 + $0x10c] sm:$0xf]
  %v89 = vld [vmem:[%s1 + $0x110] sm:$0xf]
  %v90 = vld [vmem:[%s1 + $0x114] sm:$0xf]
  %v91 = vld [vmem:[%s1 + $0x118] sm:$0xf]
  %v92 = vld [vmem:[%s1 + $0x11c] sm:$0xf]
  %v93 = vld [vmem:[%s1 + $0x120] sm:$0xf]
  %v94 = vld [vmem:[%s1 + $0x124] sm:$0xf]
  %v95 = vld [vmem:[%s1 + $0x128] sm:$0xf]
  %v96 = vld [vmem:[%s1 + $0x12c] sm:$0xf]
  %v97 = vld [vmem:[%s1 + $0x130] sm:$0xf]
  %v98 = vld [vmem:[%s1 + $0x134] sm:$0xf]
  %v99 = vld [vmem:[%s1 + $0x138] sm:$0xf]
  %v100 = vld [vmem:[%s1 + $0x13c] sm:$0xf]
  %v101 = vld [vmem:[%s2] sm:$0x1]
  %v103 = vlaneseq
  %v104 = vshrl.u32 %v103, 7
  %v105 = vsub.s32 0, %v104
  %v106 = vrot.slane %v101, %v105
  %v111 = vunpack.c.l.b16 %v18
  %v112 = vunpack.c.h.b16 %v18
  %v113 = vunpack.c.l.b16 %v19
  %v114 = vunpack.c.h.b16 %v19
  %v115 = vunpack.c.l.b16 %v20
  %v116 = vpack.c.b16 %v111, %v111
  %v117 = vpack.c.b16 %v112, %v112
  %v118 = vpack.c.b16 %v113, %v113
  %v119 = vpack.c.b16 %v114, %v114
  %v120 = vpack.c.b16 %v115, %v115
  %v206 = vunpack.c.l.b16 %v21
  %v207 = vunpack.c.l.b16 %v22
  %v208 = vunpack.c.l.b16 %v23
  %v209 = vunpack.c.l.b16 %v24
  %v210 = vunpack.c.l.b16 %v25
  %v211 = vunpack.c.l.b16 %v26
  %v212 = vunpack.c.l.b16 %v27
  %v213 = vunpack.c.l.b16 %v28
  %v214 = vunpack.c.l.b16 %v29
  %v215 = vunpack.c.l.b16 %v30
  %v216 = vunpack.c.l.b16 %v31
  %v217 = vunpack.c.l.b16 %v32
  %v218 = vunpack.c.l.b16 %v33
  %v219 = vunpack.c.l.b16 %v34
  %v220 = vunpack.c.l.b16 %v35
  %v221 = vunpack.c.l.b16 %v36
  %v222 = vunpack.c.l.b16 %v37
  %v223 = vunpack.c.l.b16 %v38
  %v224 = vunpack.c.l.b16 %v39
  %v225 = vunpack.c.l.b16 %v40
  %v226 = vunpack.c.l.b16 %v41
  %v227 = vunpack.c.l.b16 %v42
  %v228 = vunpack.c.l.b16 %v43
  %v229 = vunpack.c.l.b16 %v44
  %v230 = vunpack.c.l.b16 %v45
  %v231 = vunpack.c.l.b16 %v46
  %v232 = vunpack.c.l.b16 %v47
  %v233 = vunpack.c.l.b16 %v48
  %v234 = vunpack.c.l.b16 %v49
  %v235 = vunpack.c.l.b16 %v50
  %v236 = vunpack.c.l.b16 %v51
  %v237 = vunpack.c.l.b16 %v52
  %v238 = vunpack.c.l.b16 %v53
  %v239 = vunpack.c.l.b16 %v54
  %v240 = vunpack.c.l.b16 %v55
  %v241 = vunpack.c.l.b16 %v56
  %v242 = vunpack.c.l.b16 %v57
  %v243 = vunpack.c.l.b16 %v58
  %v244 = vunpack.c.l.b16 %v59
  %v245 = vunpack.c.l.b16 %v60
  %v246 = vunpack.c.l.b16 %v61
  %v247 = vunpack.c.l.b16 %v62
  %v248 = vunpack.c.l.b16 %v63
  %v249 = vunpack.c.l.b16 %v64
  %v250 = vunpack.c.l.b16 %v65
  %v251 = vunpack.c.l.b16 %v66
  %v252 = vunpack.c.l.b16 %v67
  %v253 = vunpack.c.l.b16 %v68
  %v254 = vunpack.c.l.b16 %v69
  %v255 = vunpack.c.l.b16 %v70
  %v256 = vunpack.c.l.b16 %v71
  %v257 = vunpack.c.l.b16 %v72
  %v258 = vunpack.c.l.b16 %v73
  %v259 = vunpack.c.l.b16 %v74
  %v260 = vunpack.c.l.b16 %v75
  %v261 = vunpack.c.l.b16 %v76
  %v262 = vunpack.c.l.b16 %v77
  %v263 = vunpack.c.l.b16 %v78
  %v264 = vunpack.c.l.b16 %v79
  %v265 = vunpack.c.l.b16 %v80
  %v266 = vunpack.c.l.b16 %v81
  %v267 = vunpack.c.l.b16 %v82
  %v268 = vunpack.c.l.b16 %v83
  %v269 = vunpack.c.l.b16 %v84
  %v270 = vunpack.c.l.b16 %v85
  %v271 = vunpack.c.l.b16 %v86
  %v272 = vunpack.c.l.b16 %v87
  %v273 = vunpack.c.l.b16 %v88
  %v274 = vunpack.c.l.b16 %v89
  %v275 = vunpack.c.l.b16 %v90
  %v276 = vunpack.c.l.b16 %v91
  %v277 = vunpack.c.l.b16 %v92
  %v278 = vunpack.c.l.b16 %v93
  %v279 = vunpack.c.l.b16 %v94
  %v280 = vunpack.c.l.b16 %v95
  %v281 = vunpack.c.l.b16 %v96
  %v282 = vunpack.c.l.b16 %v97
  %v283 = vunpack.c.l.b16 %v98
  %v284 = vunpack.c.l.b16 %v99
  %v285 = vunpack.c.l.b16 %v100
  %v286 = vpack.c.b16 %v207, %v206
  %v287 = vpack.c.b16 %v209, %v208
  %v288 = vpack.c.b16 %v211, %v210
  %v289 = vpack.c.b16 %v213, %v212
  %v290 = vpack.c.b16 %v215, %v214
  %v291 = vpack.c.b16 %v217, %v216
  %v292 = vpack.c.b16 %v219, %v218
  %v293 = vpack.c.b16 %v221, %v220
  %v294 = vpack.c.b16 %v223, %v222
  %v295 = vpack.c.b16 %v225, %v224
  %v296 = vpack.c.b16 %v227, %v226
  %v297 = vpack.c.b16 %v229, %v228
  %v298 = vpack.c.b16 %v231, %v230
  %v299 = vpack.c.b16 %v233, %v232
  %v300 = vpack.c.b16 %v235, %v234
  %v301 = vpack.c.b16 %v237, %v236
  %v302 = vpack.c.b16 %v239, %v238
  %v303 = vpack.c.b16 %v241, %v240
  %v304 = vpack.c.b16 %v243, %v242
  %v305 = vpack.c.b16 %v245, %v244
  %v306 = vpack.c.b16 %v247, %v246
  %v307 = vpack.c.b16 %v249, %v248
  %v308 = vpack.c.b16 %v251, %v250
  %v309 = vpack.c.b16 %v253, %v252
  %v310 = vpack.c.b16 %v255, %v254
  %v311 = vpack.c.b16 %v257, %v256
  %v312 = vpack.c.b16 %v259, %v258
  %v313 = vpack.c.b16 %v261, %v260
  %v314 = vpack.c.b16 %v263, %v262
  %v315 = vpack.c.b16 %v265, %v264
  %v316 = vpack.c.b16 %v267, %v266
  %v317 = vpack.c.b16 %v269, %v268
  %v318 = vpack.c.b16 %v271, %v270
  %v319 = vpack.c.b16 %v273, %v272
  %v320 = vpack.c.b16 %v275, %v274
  %v321 = vpack.c.b16 %v277, %v276
  %v322 = vpack.c.b16 %v279, %v278
  %v323 = vpack.c.b16 %v281, %v280
  %v324 = vpack.c.b16 %v283, %v282
  %v325 = vpack.c.b16 %v285, %v284
  %366 = vmatprep.subr.bf16.mxu0 0
  %367 = vmatpush1.bf16.msra.mxu0 %v286
  %368 = vmatprep.subr.bf16.mxu0 0
  %369 = vmatpush1.bf16.msra.mxu0 %v287
  %370 = vmatprep.subr.bf16.mxu0 0
  %371 = vmatpush1.bf16.msra.mxu0 %v288
  %372 = vmatprep.subr.bf16.mxu0 0
  %373 = vmatpush1.bf16.msra.mxu0 %v289
  %374 = vmatprep.subr.bf16.mxu0 0
  %375 = vmatpush1.bf16.msra.mxu0 %v290
  %376 = vmatprep.subr.bf16.mxu0 0
  %377 = vmatpush1.bf16.msra.mxu0 %v291
  %378 = vmatprep.subr.bf16.mxu0 0
  %379 = vmatpush1.bf16.msra.mxu0 %v292
  %380 = vmatprep.subr.bf16.mxu0 0
  %381 = vmatpush1.bf16.msra.mxu0 %v293
  %382 = vmatprep.subr.bf16.mxu0 0
  %383 = vmatpush1.bf16.msra.mxu0 %v294
  %384 = vmatprep.subr.bf16.mxu0 0
  %385 = vmatpush1.bf16.msra.mxu0 %v295
  %386 = vmatprep.subr.bf16.mxu0 0
  %387 = vmatpush1.bf16.msra.mxu0 %v296
  %388 = vmatprep.subr.bf16.mxu0 0
  %389 = vmatpush1.bf16.msra.mxu0 %v297
  %390 = vmatprep.subr.bf16.mxu0 0
  %391 = vmatpush1.bf16.msra.mxu0 %v298
  %392 = vmatprep.subr.bf16.mxu0 0
  %393 = vmatpush1.bf16.msra.mxu0 %v299
  %394 = vmatprep.subr.bf16.mxu0 0
  %395 = vmatpush1.bf16.msra.mxu0 %v300
  %396 = vmatprep.subr.bf16.mxu0 0
  %397 = vmatpush1.bf16.msra.mxu0 %v301
  %398 = vmatprep.mubr.bf16.mxu0 %v117
  %399 = vmatmul.mubr.bf16.gmra.mrb[0].mxu0 %v116
  %v400 = vpop.f32.mrb[0].mxu0
  %v401 = vadd.f32 %v106, %v400
  %v402 = vpop.f32.mrb[0].mxu0
  %v403 = vpop.f32.mrb[0].mxu0
  %v404 = vpop.f32.mrb[0].mxu0
  %405 = vdwg.mxu0
  %406 = vmatprep.subr.bf16.mxu0 0
  %407 = vmatpush1.bf16.msra.mxu0 %v302
  %408 = vmatprep.subr.bf16.mxu0 0
  %409 = vmatpush1.bf16.msra.mxu0 %v303
  %410 = vmatprep.subr.bf16.mxu0 0
  %411 = vmatpush1.bf16.msra.mxu0 %v304
  %412 = vmatprep.subr.bf16.mxu0 0
  %413 = vmatpush1.bf16.msra.mxu0 %v305
  %414 = vmatprep.subr.bf16.mxu0 0
  %415 = vmatpush1.bf16.msra.mxu0 %v306
  %416 = vmatprep.subr.bf16.mxu0 0
  %417 = vmatpush1.bf16.msra.mxu0 %v307
  %418 = vmatprep.subr.bf16.mxu0 0
  %419 = vmatpush1.bf16.msra.mxu0 %v308
  %420 = vmatprep.subr.bf16.mxu0 0
  %421 = vmatpush1.bf16.msra.mxu0 %v309
  %422 = vmatprep.subr.bf16.mxu0 0
  %423 = vmatpush1.bf16.msra.mxu0 %v310
  %424 = vmatprep.subr.bf16.mxu0 0
  %425 = vmatpush1.bf16.msra.mxu0 %v311
  %426 = vmatprep.subr.bf16.mxu0 0
  %427 = vmatpush1.bf16.msra.mxu0 %v312
  %428 = vmatprep.subr.bf16.mxu0 0
  %429 = vmatpush1.bf16.msra.mxu0 %v313
  %430 = vmatprep.subr.bf16.mxu0 0
  %431 = vmatpush1.bf16.msra.mxu0 %v314
  %432 = vmatprep.subr.bf16.mxu0 0
  %433 = vmatpush1.bf16.msra.mxu0 %v315
  %434 = vmatprep.subr.bf16.mxu0 0
  %435 = vmatpush1.bf16.msra.mxu0 %v316
  %436 = vmatprep.subr.bf16.mxu0 0
  %437 = vmatpush1.bf16.msra.mxu0 %v317
  %438 = vmatprep.mubr.bf16.mxu0 %v119
  %439 = vmatmul.mubr.bf16.gmra.mrb[0].mxu0 %v118
  %v440 = vpop.f32.mrb[0].mxu0
  %v441 = vadd.f32 %v401, %v440
  %v442 = vpop.f32.mrb[0].mxu0
  %v443 = vpop.f32.mrb[0].mxu0
  %v444 = vpop.f32.mrb[0].mxu0
  %445 = vdwg.mxu0
  %446 = vmatprep.subr.bf16.mxu0 0
  %447 = vmatpush1.bf16.msra.mxu0 %v318
  %448 = vmatprep.subr.bf16.mxu0 0
  %449 = vmatpush1.bf16.msra.mxu0 %v319
  %450 = vmatprep.subr.bf16.mxu0 0
  %451 = vmatpush1.bf16.msra.mxu0 %v320
  %452 = vmatprep.subr.bf16.mxu0 0
  %453 = vmatpush1.bf16.msra.mxu0 %v321
  %454 = vmatprep.subr.bf16.mxu0 0
  %455 = vmatpush1.bf16.msra.mxu0 %v322
  %456 = vmatprep.subr.bf16.mxu0 0
  %457 = vmatpush1.bf16.msra.mxu0 %v323
  %458 = vmatprep.subr.bf16.mxu0 0
  %459 = vmatpush1.bf16.msra.mxu0 %v324
  %460 = vmatprep.subr.bf16.mxu0 0
  %461 = vmatpush1.bf16.msra.mxu0 %v325
  %462 = vmatprep.subr.bf16.mxu0 0
  %463 = vmatpush1.bf16.msra.mxu0 0
  %464 = vmatprep.subr.bf16.mxu0 0
  %465 = vmatpush1.bf16.msra.mxu0 0
  %466 = vmatprep.subr.bf16.mxu0 0
  %467 = vmatpush1.bf16.msra.mxu0 0
  %468 = vmatprep.subr.bf16.mxu0 0
  %469 = vmatpush1.bf16.msra.mxu0 0
  %470 = vmatprep.subr.bf16.mxu0 0
  %471 = vmatpush1.bf16.msra.mxu0 0
  %472 = vmatprep.subr.bf16.mxu0 0
  %473 = vmatpush1.bf16.msra.mxu0 0
  %474 = vmatprep.subr.bf16.mxu0 0
  %475 = vmatpush1.bf16.msra.mxu0 0
  %476 = vmatprep.subr.bf16.mxu0 0
  %477 = vmatpush1.bf16.msra.mxu0 0
  %478 = vmatprep.mubr.bf16.mxu0 0
  %479 = vmatmul.mubr.bf16.gmra.mrb[0].mxu0 %v120
  %v480 = vpop.f32.mrb[0].mxu0
  %v481 = vadd.f32 %v441, %v480
  %v482 = vpop.f32.mrb[0].mxu0
  %v483 = vpop.f32.mrb[0].mxu0
  %v484 = vpop.f32.mrb[0].mxu0
  %485 = vdwg.mxu0
  %v486 = vld [vmem:[%s3] sm:$0x7]
  %v487 = vunpack.c.l.bf16 %v486
  %v488 = vadd.f32 %v481, %v487
  %v489 = vmax.f32 %v488, 0.0
  %490 = vst [vmem:[%s4] sm:$0x3f] %v489
  // Predicated region
  $region18: #{triplet_net_forward.35} parent=0 // pred_check
    _
  $region19: #{triplet_net_forward.35} parent=0 // pred_check_branch
    %492 = sbr.rel (0) target = $region21
  $region20: #{triplet_net_forward.35} parent=0 // pred_region
    _
  $region21: #{triplet_net_forward.35} parent=0 // pred_fallthru
    _
  // Predicated region
  $region22: #{triplet_net_forward.35} parent=0 // pred_check
    _
  $region23: #{triplet_net_forward.35} parent=0 // pred_check_branch
    %494 = sbr.rel (0) target = $region25
  $region24: #{triplet_net_forward.35} parent=0 // pred_region
    _
  $region25: #{triplet_net_forward.35} parent=0 // pred_fallthru
    _

// kernel: triplet_net_forward.33
$region0: #{triplet_net_forward.33}
  #allocation0 [shape = 'u32[]', space=smem, size = 0x4, offset = 0x4, fixed_abs, tag = 'smem constant byte address 0x4 - core index']
  #allocation1 [shape = 'u32[144,128]{1,0:T(1,128)}', space=vmem, size = 0x12000, scoped, tag = 'internal scratch']
  %s0 = inlined_call_operand.vmem [shape: bf16[6,640], index: 0, kind: input, shape index: {}]
  %s1 = inlined_call_operand.vmem [shape: bf16[640,128], index: 1, kind: input, shape index: {}]
  %s2 = inlined_call_operand.vmem [shape: f32[1,128], index: 2, kind: input, shape index: {}]
  %s3 = inlined_call_operand.vmem [shape: bf16[6,128], index: 3, kind: input, shape index: {}]
  %s4 = inlined_call_operand.vmem [shape: bf16[128,128], index: 4, kind: input, shape index: {}]
  %s5 = inlined_call_operand.vmem [shape: f32[1,128], index: 5, kind: input, shape index: {}]
  %s6 = inlined_call_operand.vmem [shape: bf16[6,128], index: 6, kind: output, shape index: {}]
  %s7 = sld [smem:[#allocation0]]
  $region34: #{triplet_net_forward.33} parent=0
    _
  %s9 = ssub.s32 1, %s7
  %s10 = scalar_select 0, %s9, %s7
  // Predicated region
  $region2: #{triplet_net_forward.33} parent=0 // pred_check
    _
  $region3: #{triplet_net_forward.33} parent=0 // pred_check_branch
    %12 = sbr.rel (0) target = $region5
  $region4: #{triplet_net_forward.33} parent=0 // pred_region
    _
  $region5: #{triplet_net_forward.33} parent=0 // pred_fallthru
    _
  // Predicated region
  $region6: #{triplet_net_forward.33} parent=0 // pred_check
    _
  $region7: #{triplet_net_forward.33} parent=0 // pred_check_branch
    %14 = sbr.rel (0) target = $region9
  $region8: #{triplet_net_forward.33} parent=0 // pred_region
    _
  $region9: #{triplet_net_forward.33} parent=0 // pred_fallthru
    _
  // Predicated region
  $region10: #{triplet_net_forward.33} parent=0 // pred_check
    _
  $region11: #{triplet_net_forward.33} parent=0 // pred_check_branch
    %16 = sbr.rel (0) target = $region13
  $region12: #{triplet_net_forward.33} parent=0 // pred_region
    _
  $region13: #{triplet_net_forward.33} parent=0 // pred_fallthru
    _
  // Predicated region
  $region14: #{triplet_net_forward.33} parent=0 // pred_check
    _
  $region15: #{triplet_net_forward.33} parent=0 // pred_check_branch
    %18 = sbr.rel (0) target = $region17
  $region16: #{triplet_net_forward.33} parent=0 // pred_region
    _
  $region17: #{triplet_net_forward.33} parent=0 // pred_fallthru
    _
  // Predicated region
  $region18: #{triplet_net_forward.33} parent=0 // pred_check
    _
  $region19: #{triplet_net_forward.33} parent=0 // pred_check_branch
    %20 = sbr.rel (0) target = $region21
  $region20: #{triplet_net_forward.33} parent=0 // pred_region
    _
  $region21: #{triplet_net_forward.33} parent=0 // pred_fallthru
    _
  // Predicated region
  $region22: #{triplet_net_forward.33} parent=0 // pred_check
    _
  $region23: #{triplet_net_forward.33} parent=0 // pred_check_branch
    %22 = sbr.rel (0) target = $region25
  $region24: #{triplet_net_forward.33} parent=0 // pred_region
    _
  $region25: #{triplet_net_forward.33} parent=0 // pred_fallthru
    _
  %v24 = vld [vmem:[%s0] sm:$0x77]
  %v25 = vld [vmem:[%s0 + $0x8] sm:$0x77]
  %v26 = vld [vmem:[%s0 + $0x10] sm:$0x7]
  %v27 = vld [vmem:[%s1] sm:$0xf]
  %v28 = vld [vmem:[%s1 + $0x4] sm:$0xf]
  %v29 = vld [vmem:[%s1 + $0x8] sm:$0xf]
  %v30 = vld [vmem:[%s1 + $0xc] sm:$0xf]
  %v31 = vld [vmem:[%s1 + $0x10] sm:$0xf]
  %v32 = vld [vmem:[%s1 + $0x14] sm:$0xf]
  %v33 = vld [vmem:[%s1 + $0x18] sm:$0xf]
  %v34 = vld [vmem:[%s1 + $0x1c] sm:$0xf]
  %v35 = vld [vmem:[%s1 + $0x20] sm:$0xf]
  %v36 = vld [vmem:[%s1 + $0x24] sm:$0xf]
  %v37 = vld [vmem:[%s1 + $0x28] sm:$0xf]
  %v38 = vld [vmem:[%s1 + $0x2c] sm:$0xf]
  %v39 = vld [vmem:[%s1 + $0x30] sm:$0xf]
  %v40 = vld [vmem:[%s1 + $0x34] sm:$0xf]
  %v41 = vld [vmem:[%s1 + $0x38] sm:$0xf]
  %v42 = vld [vmem:[%s1 + $0x3c] sm:$0xf]
  %v43 = vld [vmem:[%s1 + $0x40] sm:$0xf]
  %v44 = vld [vmem:[%s1 + $0x44] sm:$0xf]
  %v45 = vld [vmem:[%s1 + $0x48] sm:$0xf]
  %v46 = vld [vmem:[%s1 + $0x4c] sm:$0xf]
  %v47 = vld [vmem:[%s1 + $0x50] sm:$0xf]
  %v48 = vld [vmem:[%s1 + $0x54] sm:$0xf]
  %v49 = vld [vmem:[%s1 + $0x58] sm:$0xf]
  %v50 = vld [vmem:[%s1 + $0x5c] sm:$0xf]
  %v51 = vld [vmem:[%s1 + $0x60] sm:$0xf]
  %v52 = vld [vmem:[%s1 + $0x64] sm:$0xf]
  %v53 = vld [vmem:[%s1 + $0x68] sm:$0xf]
  %v54 = vld [vmem:[%s1 + $0x6c] sm:$0xf]
  %v55 = vld [vmem:[%s1 + $0x70] sm:$0xf]
  %v56 = vld [vmem:[%s1 + $0x74] sm:$0xf]
  %v57 = vld [vmem:[%s1 + $0x78] sm:$0xf]
  %v58 = vld [vmem:[%s1 + $0x7c] sm:$0xf]
  %v59 = vld [vmem:[%s1 + $0x80] sm:$0xf]
  %v60 = vld [vmem:[%s1 + $0x84] sm:$0xf]
  %v61 = vld [vmem:[%s1 + $0x88] sm:$0xf]
  %v62 = vld [vmem:[%s1 + $0x8c] sm:$0xf]
  %v63 = vld [vmem:[%s1 + $0x90] sm:$0xf]
  %v64 = vld [vmem:[%s1 + $0x94] sm:$0xf]
  %v65 = vld [vmem:[%s1 + $0x98] sm:$0xf]
  %v66 = vld [vmem:[%s1 + $0x9c] sm:$0xf]
  %v67 = vld [vmem:[%s1 + $0xa0] sm:$0xf]
  %v68 = vld [vmem:[%s1 + $0xa4] sm:$0xf]
  %v69 = vld [vmem:[%s1 + $0xa8] sm:$0xf]
  %v70 = vld [vmem:[%s1 + $0xac] sm:$0xf]
  %v71 = vld [vmem:[%s1 + $0xb0] sm:$0xf]
  %v72 = vld [vmem:[%s1 + $0xb4] sm:$0xf]
  %v73 = vld [vmem:[%s1 + $0xb8] sm:$0xf]
  %v74 = vld [vmem:[%s1 + $0xbc] sm:$0xf]
  %v75 = vld [vmem:[%s1 + $0xc0] sm:$0xf]
  %v76 = vld [vmem:[%s1 + $0xc4] sm:$0xf]
  %v77 = vld [vmem:[%s1 + $0xc8] sm:$0xf]
  %v78 = vld [vmem:[%s1 + $0xcc] sm:$0xf]
  %v79 = vld [vmem:[%s1 + $0xd0] sm:$0xf]
  %v80 = vld [vmem:[%s1 + $0xd4] sm:$0xf]
  %v81 = vld [vmem:[%s1 + $0xd8] sm:$0xf]
  %v82 = vld [vmem:[%s1 + $0xdc] sm:$0xf]
  %v83 = vld [vmem:[%s1 + $0xe0] sm:$0xf]
  %v84 = vld [vmem:[%s1 + $0xe4] sm:$0xf]
  %v85 = vld [vmem:[%s1 + $0xe8] sm:$0xf]
  %v86 = vld [vmem:[%s1 + $0xec] sm:$0xf]
  %v87 = vld [vmem:[%s1 + $0xf0] sm:$0xf]
  %v88 = vld [vmem:[%s1 + $0xf4] sm:$0xf]
  %v89 = vld [vmem:[%s1 + $0xf8] sm:$0xf]
  %v90 = vld [vmem:[%s1 + $0xfc] sm:$0xf]
  %v91 = vld [vmem:[%s1 + $0x100] sm:$0xf]
  %v92 = vld [vmem:[%s1 + $0x104] sm:$0xf]
  %v93 = vld [vmem:[%s1 + $0x108] sm:$0xf]
  %v94 = vld [vmem:[%s1 + $0x10c] sm:$0xf]
  %v95 = vld [vmem:[%s1 + $0x110] sm:$0xf]
  %v96 = vld [vmem:[%s1 + $0x114] sm:$0xf]
  %v97 = vld [vmem:[%s1 + $0x118] sm:$0xf]
  %v98 = vld [vmem:[%s1 + $0x11c] sm:$0xf]
  %v99 = vld [vmem:[%s1 + $0x120] sm:$0xf]
  %v100 = vld [vmem:[%s1 + $0x124] sm:$0xf]
  %v101 = vld [vmem:[%s1 + $0x128] sm:$0xf]
  %v102 = vld [vmem:[%s1 + $0x12c] sm:$0xf]
  %v103 = vld [vmem:[%s1 + $0x130] sm:$0xf]
  %v104 = vld [vmem:[%s1 + $0x134] sm:$0xf]
  %v105 = vld [vmem:[%s1 + $0x138] sm:$0xf]
  %v106 = vld [vmem:[%s1 + $0x13c] sm:$0xf]
  %v107 = vld [vmem:[%s3] sm:$0x7]
  %v108 = vld [vmem:[%s4] sm:$0xf]
  %v109 = vld [vmem:[%s4 + $0x4] sm:$0xf]
  %v110 = vld [vmem:[%s4 + $0x8] sm:$0xf]
  %v111 = vld [vmem:[%s4 + $0xc] sm:$0xf]
  %v112 = vld [vmem:[%s4 + $0x10] sm:$0xf]
  %v113 = vld [vmem:[%s4 + $0x14] sm:$0xf]
  %v114 = vld [vmem:[%s4 + $0x18] sm:$0xf]
  %v115 = vld [vmem:[%s4 + $0x1c] sm:$0xf]
  %v116 = vld [vmem:[%s4 + $0x20] sm:$0xf]
  %v117 = vld [vmem:[%s4 + $0x24] sm:$0xf]
  %v118 = vld [vmem:[%s4 + $0x28] sm:$0xf]
  %v119 = vld [vmem:[%s4 + $0x2c] sm:$0xf]
  %v120 = vld [vmem:[%s4 + $0x30] sm:$0xf]
  %v121 = vld [vmem:[%s4 + $0x34] sm:$0xf]
  %v122 = vld [vmem:[%s4 + $0x38] sm:$0xf]
  %v123 = vld [vmem:[%s4 + $0x3c] sm:$0xf]
  %v124 = vld [vmem:[%s5] sm:$0x1]
  %v126 = vlaneseq
  %v127 = vshrl.u32 %v126, 7
  %v128 = vsub.s32 0, %v127
  %v129 = vrot.slane %v124, %v128
  %v147 = vunpack.c.l.b16 %v108
  %v148 = vunpack.c.l.b16 %v109
  %v149 = vunpack.c.l.b16 %v110
  %v150 = vunpack.c.l.b16 %v111
  %v151 = vunpack.c.l.b16 %v112
  %v152 = vunpack.c.l.b16 %v113
  %v153 = vunpack.c.l.b16 %v114
  %v154 = vunpack.c.l.b16 %v115
  %v155 = vunpack.c.l.b16 %v116
  %v156 = vunpack.c.l.b16 %v117
  %v157 = vunpack.c.l.b16 %v118
  %v158 = vunpack.c.l.b16 %v119
  %v159 = vunpack.c.l.b16 %v120
  %v160 = vunpack.c.l.b16 %v121
  %v161 = vunpack.c.l.b16 %v122
  %v162 = vunpack.c.l.b16 %v123
  %v163 = vpack.c.b16 %v148, %v147
  %v164 = vpack.c.b16 %v150, %v149
  %v165 = vpack.c.b16 %v152, %v151
  %v166 = vpack.c.b16 %v154, %v153
  %v167 = vpack.c.b16 %v156, %v155
  %v168 = vpack.c.b16 %v158, %v157
  %v169 = vpack.c.b16 %v160, %v159
  %v170 = vpack.c.b16 %v162, %v161
  %179 = vmatprep.subr.bf16.mxu0 0
  %180 = vmatpush1.bf16.msra.mxu0 %v163
  %181 = vmatprep.subr.bf16.mxu0 0
  %182 = vmatpush1.bf16.msra.mxu0 %v164
  %183 = vmatprep.subr.bf16.mxu0 0
  %184 = vmatpush1.bf16.msra.mxu0 %v165
  %185 = vmatprep.subr.bf16.mxu0 0
  %186 = vmatpush1.bf16.msra.mxu0 %v166
  %187 = vmatprep.subr.bf16.mxu0 0
  %188 = vmatpush1.bf16.msra.mxu0 %v167
  %189 = vmatprep.subr.bf16.mxu0 0
  %190 = vmatpush1.bf16.msra.mxu0 %v168
  %191 = vmatprep.subr.bf16.mxu0 0
  %192 = vmatpush1.bf16.msra.mxu0 %v169
  %193 = vmatprep.subr.bf16.mxu0 0
  %194 = vmatpush1.bf16.msra.mxu0 %v170
  %195 = vmatprep.subr.bf16.mxu0 0
  %196 = vmatpush1.bf16.msra.mxu0 0
  %197 = vmatprep.subr.bf16.mxu0 0
  %198 = vmatpush1.bf16.msra.mxu0 0
  %199 = vmatprep.subr.bf16.mxu0 0
  %200 = vmatpush1.bf16.msra.mxu0 0
  %201 = vmatprep.subr.bf16.mxu0 0
  %202 = vmatpush1.bf16.msra.mxu0 0
  %203 = vmatprep.subr.bf16.mxu0 0
  %204 = vmatpush1.bf16.msra.mxu0 0
  %205 = vmatprep.subr.bf16.mxu0 0
  %206 = vmatpush1.bf16.msra.mxu0 0
  %207 = vmatprep.subr.bf16.mxu0 0
  %208 = vmatpush1.bf16.msra.mxu0 0
  %209 = vmatprep.subr.bf16.mxu0 0
  %210 = vmatpush1.bf16.msra.mxu0 0
  %211 = vmatprep.mubr.bf16.mxu0 0
  %212 = vmatmul.mubr.bf16.gmra.mrb[0].mxu0 %v107
  %v213 = vpop.f32.mrb[0].mxu0
  %v214 = vadd.f32 %v129, %v213
  %v215 = vpop.f32.mrb[0].mxu0
  %v216 = vpop.f32.mrb[0].mxu0
  %v217 = vpop.f32.mrb[0].mxu0
  %218 = vdwg.mxu0
  %v219 = vld [vmem:[%s2] sm:$0x1]
  %v221 = vlaneseq
  %v222 = vshrl.u32 %v221, 7
  %v223 = vsub.s32 0, %v222
  %v224 = vrot.slane %v219, %v223
  %v229 = vunpack.c.l.b16 %v24
  %v230 = vunpack.c.h.b16 %v24
  %v231 = vunpack.c.l.b16 %v25
  %v232 = vunpack.c.h.b16 %v25
  %v233 = vunpack.c.l.b16 %v26
  %v234 = vpack.c.b16 %v229, %v229
  %v235 = vpack.c.b16 %v230, %v230
  %v236 = vpack.c.b16 %v231, %v231
  %v237 = vpack.c.b16 %v232, %v232
  %v238 = vpack.c.b16 %v233, %v233
  %v324 = vunpack.c.l.b16 %v27
  %v325 = vunpack.c.l.b16 %v28
  %v326 = vunpack.c.l.b16 %v29
  %v327 = vunpack.c.l.b16 %v30
  %v328 = vunpack.c.l.b16 %v31
  %v329 = vunpack.c.l.b16 %v32
  %v330 = vunpack.c.l.b16 %v33
  %v331 = vunpack.c.l.b16 %v34
  %v332 = vunpack.c.l.b16 %v35
  %v333 = vunpack.c.l.b16 %v36
  %v334 = vunpack.c.l.b16 %v37
  %v335 = vunpack.c.l.b16 %v38
  %v336 = vunpack.c.l.b16 %v39
  %v337 = vunpack.c.l.b16 %v40
  %v338 = vunpack.c.l.b16 %v41
  %v339 = vunpack.c.l.b16 %v42
  %v340 = vunpack.c.l.b16 %v43
  %v341 = vunpack.c.l.b16 %v44
  %v342 = vunpack.c.l.b16 %v45
  %v343 = vunpack.c.l.b16 %v46
  %v344 = vunpack.c.l.b16 %v47
  %v345 = vunpack.c.l.b16 %v48
  %v346 = vunpack.c.l.b16 %v49
  %v347 = vunpack.c.l.b16 %v50
  %v348 = vunpack.c.l.b16 %v51
  %v349 = vunpack.c.l.b16 %v52
  %v350 = vunpack.c.l.b16 %v53
  %v351 = vunpack.c.l.b16 %v54
  %v352 = vunpack.c.l.b16 %v55
  %v353 = vunpack.c.l.b16 %v56
  %v354 = vunpack.c.l.b16 %v57
  %v355 = vunpack.c.l.b16 %v58
  %v356 = vunpack.c.l.b16 %v59
  %v357 = vunpack.c.l.b16 %v60
  %v358 = vunpack.c.l.b16 %v61
  %v359 = vunpack.c.l.b16 %v62
  %v360 = vunpack.c.l.b16 %v63
  %v361 = vunpack.c.l.b16 %v64
  %v362 = vunpack.c.l.b16 %v65
  %v363 = vunpack.c.l.b16 %v66
  %v364 = vunpack.c.l.b16 %v67
  %v365 = vunpack.c.l.b16 %v68
  %v366 = vunpack.c.l.b16 %v69
  %v367 = vunpack.c.l.b16 %v70
  %v368 = vunpack.c.l.b16 %v71
  %v369 = vunpack.c.l.b16 %v72
  %v370 = vunpack.c.l.b16 %v73
  %v371 = vunpack.c.l.b16 %v74
  %v372 = vunpack.c.l.b16 %v75
  %v373 = vunpack.c.l.b16 %v76
  %v374 = vunpack.c.l.b16 %v77
  %v375 = vunpack.c.l.b16 %v78
  %v376 = vunpack.c.l.b16 %v79
  %v377 = vunpack.c.l.b16 %v80
  %v378 = vunpack.c.l.b16 %v81
  %v379 = vunpack.c.l.b16 %v82
  %v380 = vunpack.c.l.b16 %v83
  %v381 = vunpack.c.l.b16 %v84
  %v382 = vunpack.c.l.b16 %v85
  %v383 = vunpack.c.l.b16 %v86
  %v384 = vunpack.c.l.b16 %v87
  %v385 = vunpack.c.l.b16 %v88
  %v386 = vunpack.c.l.b16 %v89
  %v387 = vunpack.c.l.b16 %v90
  %v388 = vunpack.c.l.b16 %v91
  %v389 = vunpack.c.l.b16 %v92
  %v390 = vunpack.c.l.b16 %v93
  %v391 = vunpack.c.l.b16 %v94
  %v392 = vunpack.c.l.b16 %v95
  %v393 = vunpack.c.l.b16 %v96
  %v394 = vunpack.c.l.b16 %v97
  %v395 = vunpack.c.l.b16 %v98
  %v396 = vunpack.c.l.b16 %v99
  %v397 = vunpack.c.l.b16 %v100
  %v398 = vunpack.c.l.b16 %v101
  %v399 = vunpack.c.l.b16 %v102
  %v400 = vunpack.c.l.b16 %v103
  %v401 = vunpack.c.l.b16 %v104
  %v402 = vunpack.c.l.b16 %v105
  %v403 = vunpack.c.l.b16 %v106
  %v404 = vpack.c.b16 %v325, %v324
  %v405 = vpack.c.b16 %v327, %v326
  %v406 = vpack.c.b16 %v329, %v328
  %v407 = vpack.c.b16 %v331, %v330
  %v408 = vpack.c.b16 %v333, %v332
  %v409 = vpack.c.b16 %v335, %v334
  %v410 = vpack.c.b16 %v337, %v336
  %v411 = vpack.c.b16 %v339, %v338
  %v412 = vpack.c.b16 %v341, %v340
  %v413 = vpack.c.b16 %v343, %v342
  %v414 = vpack.c.b16 %v345, %v344
  %v415 = vpack.c.b16 %v347, %v346
  %v416 = vpack.c.b16 %v349, %v348
  %v417 = vpack.c.b16 %v351, %v350
  %v418 = vpack.c.b16 %v353, %v352
  %v419 = vpack.c.b16 %v355, %v354
  %v420 = vpack.c.b16 %v357, %v356
  %v421 = vpack.c.b16 %v359, %v358
  %v422 = vpack.c.b16 %v361, %v360
  %v423 = vpack.c.b16 %v363, %v362
  %v424 = vpack.c.b16 %v365, %v364
  %v425 = vpack.c.b16 %v367, %v366
  %v426 = vpack.c.b16 %v369, %v368
  %v427 = vpack.c.b16 %v371, %v370
  %v428 = vpack.c.b16 %v373, %v372
  %v429 = vpack.c.b16 %v375, %v374
  %v430 = vpack.c.b16 %v377, %v376
  %v431 = vpack.c.b16 %v379, %v378
  %v432 = vpack.c.b16 %v381, %v380
  %v433 = vpack.c.b16 %v383, %v382
  %v434 = vpack.c.b16 %v385, %v384
  %v435 = vpack.c.b16 %v387, %v386
  %v436 = vpack.c.b16 %v389, %v388
  %v437 = vpack.c.b16 %v391, %v390
  %v438 = vpack.c.b16 %v393, %v392
  %v439 = vpack.c.b16 %v395, %v394
  %v440 = vpack.c.b16 %v397, %v396
  %v441 = vpack.c.b16 %v399, %v398
  %v442 = vpack.c.b16 %v401, %v400
  %v443 = vpack.c.b16 %v403, %v402
  %484 = vmatprep.subr.bf16.mxu0 0
  %485 = vmatpush1.bf16.msra.mxu0 %v404
  %486 = vmatprep.subr.bf16.mxu0 0
  %487 = vmatpush1.bf16.msra.mxu0 %v405
  %488 = vmatprep.subr.bf16.mxu0 0
  %489 = vmatpush1.bf16.msra.mxu0 %v406
  %490 = vmatprep.subr.bf16.mxu0 0
  %491 = vmatpush1.bf16.msra.mxu0 %v407
  %492 = vmatprep.subr.bf16.mxu0 0
  %493 = vmatpush1.bf16.msra.mxu0 %v408
  %494 = vmatprep.subr.bf16.mxu0 0
  %495 = vmatpush1.bf16.msra.mxu0 %v409
  %496 = vmatprep.subr.bf16.mxu0 0
  %497 = vmatpush1.bf16.msra.mxu0 %v410
  %498 = vmatprep.subr.bf16.mxu0 0
  %499 = vmatpush1.bf16.msra.mxu0 %v411
  %500 = vmatprep.subr.bf16.mxu0 0
  %501 = vmatpush1.bf16.msra.mxu0 %v412
  %502 = vmatprep.subr.bf16.mxu0 0
  %503 = vmatpush1.bf16.msra.mxu0 %v413
  %504 = vmatprep.subr.bf16.mxu0 0
  %505 = vmatpush1.bf16.msra.mxu0 %v414
  %506 = vmatprep.subr.bf16.mxu0 0
  %507 = vmatpush1.bf16.msra.mxu0 %v415
  %508 = vmatprep.subr.bf16.mxu0 0
  %509 = vmatpush1.bf16.msra.mxu0 %v416
  %510 = vmatprep.subr.bf16.mxu0 0
  %511 = vmatpush1.bf16.msra.mxu0 %v417
  %512 = vmatprep.subr.bf16.mxu0 0
  %513 = vmatpush1.bf16.msra.mxu0 %v418
  %514 = vmatprep.subr.bf16.mxu0 0
  %515 = vmatpush1.bf16.msra.mxu0 %v419
  %516 = vmatprep.mubr.bf16.mxu0 %v235
  %517 = vmatmul.mubr.bf16.gmra.mrb[0].mxu0 %v234
  %v518 = vpop.f32.mrb[0].mxu0
  %v519 = vadd.f32 %v224, %v518
  %v520 = vpop.f32.mrb[0].mxu0
  %v521 = vpop.f32.mrb[0].mxu0
  %v522 = vpop.f32.mrb[0].mxu0
  %523 = vdwg.mxu0
  %524 = vmatprep.subr.bf16.mxu0 0
  %525 = vmatpush1.bf16.msra.mxu0 %v420
  %526 = vmatprep.subr.bf16.mxu0 0
  %527 = vmatpush1.bf16.msra.mxu0 %v421
  %528 = vmatprep.subr.bf16.mxu0 0
  %529 = vmatpush1.bf16.msra.mxu0 %v422
  %530 = vmatprep.subr.bf16.mxu0 0
  %531 = vmatpush1.bf16.msra.mxu0 %v423
  %532 = vmatprep.subr.bf16.mxu0 0
  %533 = vmatpush1.bf16.msra.mxu0 %v424
  %534 = vmatprep.subr.bf16.mxu0 0
  %535 = vmatpush1.bf16.msra.mxu0 %v425
  %536 = vmatprep.subr.bf16.mxu0 0
  %537 = vmatpush1.bf16.msra.mxu0 %v426
  %538 = vmatprep.subr.bf16.mxu0 0
  %539 = vmatpush1.bf16.msra.mxu0 %v427
  %540 = vmatprep.subr.bf16.mxu0 0
  %541 = vmatpush1.bf16.msra.mxu0 %v428
  %542 = vmatprep.subr.bf16.mxu0 0
  %543 = vmatpush1.bf16.msra.mxu0 %v429
  %544 = vmatprep.subr.bf16.mxu0 0
  %545 = vmatpush1.bf16.msra.mxu0 %v430
  %546 = vmatprep.subr.bf16.mxu0 0
  %547 = vmatpush1.bf16.msra.mxu0 %v431
  %548 = vmatprep.subr.bf16.mxu0 0
  %549 = vmatpush1.bf16.msra.mxu0 %v432
  %550 = vmatprep.subr.bf16.mxu0 0
  %551 = vmatpush1.bf16.msra.mxu0 %v433
  %552 = vmatprep.subr.bf16.mxu0 0
  %553 = vmatpush1.bf16.msra.mxu0 %v434
  %554 = vmatprep.subr.bf16.mxu0 0
  %555 = vmatpush1.bf16.msra.mxu0 %v435
  %556 = vmatprep.mubr.bf16.mxu0 %v237
  %557 = vmatmul.mubr.bf16.gmra.mrb[0].mxu0 %v236
  %v558 = vpop.f32.mrb[0].mxu0
  %v559 = vadd.f32 %v519, %v558
  %v560 = vpop.f32.mrb[0].mxu0
  %v561 = vpop.f32.mrb[0].mxu0
  %v562 = vpop.f32.mrb[0].mxu0
  %563 = vdwg.mxu0
  %564 = vmatprep.subr.bf16.mxu0 0
  %565 = vmatpush1.bf16.msra.mxu0 %v436
  %566 = vmatprep.subr.bf16.mxu0 0
  %567 = vmatpush1.bf16.msra.mxu0 %v437
  %568 = vmatprep.subr.bf16.mxu0 0
  %569 = vmatpush1.bf16.msra.mxu0 %v438
  %570 = vmatprep.subr.bf16.mxu0 0
  %571 = vmatpush1.bf16.msra.mxu0 %v439
  %572 = vmatprep.subr.bf16.mxu0 0
  %573 = vmatpush1.bf16.msra.mxu0 %v440
  %574 = vmatprep.subr.bf16.mxu0 0
  %575 = vmatpush1.bf16.msra.mxu0 %v441
  %576 = vmatprep.subr.bf16.mxu0 0
  %577 = vmatpush1.bf16.msra.mxu0 %v442
  %578 = vmatprep.subr.bf16.mxu0 0
  %579 = vmatpush1.bf16.msra.mxu0 %v443
  %580 = vmatprep.subr.bf16.mxu0 0
  %581 = vmatpush1.bf16.msra.mxu0 0
  %582 = vmatprep.subr.bf16.mxu0 0
  %583 = vmatpush1.bf16.msra.mxu0 0
  %584 = vmatprep.subr.bf16.mxu0 0
  %585 = vmatpush1.bf16.msra.mxu0 0
  %586 = vmatprep.subr.bf16.mxu0 0
  %587 = vmatpush1.bf16.msra.mxu0 0
  %588 = vmatprep.subr.bf16.mxu0 0
  %589 = vmatpush1.bf16.msra.mxu0 0
  %590 = vmatprep.subr.bf16.mxu0 0
  %591 = vmatpush1.bf16.msra.mxu0 0
  %592 = vmatprep.subr.bf16.mxu0 0
  %593 = vmatpush1.bf16.msra.mxu0 0
  %594 = vmatprep.subr.bf16.mxu0 0
  %595 = vmatpush1.bf16.msra.mxu0 0
  %596 = vmatprep.mubr.bf16.mxu0 0
  %597 = vmatmul.mubr.bf16.gmra.mrb[0].mxu0 %v238
  %v598 = vpop.f32.mrb[0].mxu0
  %v599 = vadd.f32 %v559, %v598
  %v600 = vpop.f32.mrb[0].mxu0
  %v601 = vpop.f32.mrb[0].mxu0
  %v602 = vpop.f32.mrb[0].mxu0
  %603 = vdwg.mxu0
  %v604 = vadd.f32 %v599, %v214
  %v605 = vmax.f32 %v604, 0.0
  %v606 = vpack.c.bf16 %v605, %v605
  %607 = vst [vmem:[%s6] sm:$0x7] %v606
  // Predicated region
  $region26: #{triplet_net_forward.33} parent=0 // pred_check
    _
  $region27: #{triplet_net_forward.33} parent=0 // pred_check_branch
    %609 = sbr.rel (0) target = $region29
  $region28: #{triplet_net_forward.33} parent=0 // pred_region
    _
  $region29: #{triplet_net_forward.33} parent=0 // pred_fallthru
    _
  // Predicated region
  $region30: #{triplet_net_forward.33} parent=0 // pred_check
    _
  $region31: #{triplet_net_forward.33} parent=0 // pred_check_branch
    %611 = sbr.rel (0) target = $region33
  $region32: #{triplet_net_forward.33} parent=0 // pred_region
    _
  $region33: #{triplet_net_forward.33} parent=0 // pred_fallthru
    _

// kernel: triplet_net_forward.34
$region0: #{triplet_net_forward.34}
  #allocation0 [shape = 'u32[]', space=smem, size = 0x4, offset = 0x4, fixed_abs, tag = 'smem constant byte address 0x4 - core index']
  #allocation1 [shape = 'u32[144,128]{1,0:T(1,128)}', space=vmem, size = 0x12000, scoped, tag = 'internal scratch']
  %s0 = inlined_call_operand.vmem [shape: bf16[6,640], index: 0, kind: input, shape index: {}]
  %s1 = inlined_call_operand.vmem [shape: bf16[640,128], index: 1, kind: input, shape index: {}]
  %s2 = inlined_call_operand.vmem [shape: f32[1,128], index: 2, kind: input, shape index: {}]
  %s3 = inlined_call_operand.vmem [shape: bf16[6,128], index: 3, kind: output, shape index: {}]
  %s4 = sld [smem:[#allocation0]]
  $region22: #{triplet_net_forward.34} parent=0
    _
  %s6 = ssub.s32 1, %s4
  %s7 = scalar_select 0, %s6, %s4
  // Predicated region
  $region2: #{triplet_net_forward.34} parent=0 // pred_check
    _
  $region3: #{triplet_net_forward.34} parent=0 // pred_check_branch
    %9 = sbr.rel (0) target = $region5
  $region4: #{triplet_net_forward.34} parent=0 // pred_region
    _
  $region5: #{triplet_net_forward.34} parent=0 // pred_fallthru
    _
  // Predicated region
  $region6: #{triplet_net_forward.34} parent=0 // pred_check
    _
  $region7: #{triplet_net_forward.34} parent=0 // pred_check_branch
    %11 = sbr.rel (0) target = $region9
  $region8: #{triplet_net_forward.34} parent=0 // pred_region
    _
  $region9: #{triplet_net_forward.34} parent=0 // pred_fallthru
    _
  // Predicated region
  $region10: #{triplet_net_forward.34} parent=0 // pred_check
    _
  $region11: #{triplet_net_forward.34} parent=0 // pred_check_branch
    %13 = sbr.rel (0) target = $region13
  $region12: #{triplet_net_forward.34} parent=0 // pred_region
    _
  $region13: #{triplet_net_forward.34} parent=0 // pred_fallthru
    _
  %v15 = vld [vmem:[%s0] sm:$0x77]
  %v16 = vld [vmem:[%s0 + $0x8] sm:$0x77]
  %v17 = vld [vmem:[%s0 + $0x10] sm:$0x7]
  %v18 = vld [vmem:[%s1] sm:$0xf]
  %v19 = vld [vmem:[%s1 + $0x4] sm:$0xf]
  %v20 = vld [vmem:[%s1 + $0x8] sm:$0xf]
  %v21 = vld [vmem:[%s1 + $0xc] sm:$0xf]
  %v22 = vld [vmem:[%s1 + $0x10] sm:$0xf]
  %v23 = vld [vmem:[%s1 + $0x14] sm:$0xf]
  %v24 = vld [vmem:[%s1 + $0x18] sm:$0xf]
  %v25 = vld [vmem:[%s1 + $0x1c] sm:$0xf]
  %v26 = vld [vmem:[%s1 + $0x20] sm:$0xf]
  %v27 = vld [vmem:[%s1 + $0x24] sm:$0xf]
  %v28 = vld [vmem:[%s1 + $0x28] sm:$0xf]
  %v29 = vld [vmem:[%s1 + $0x2c] sm:$0xf]
  %v30 = vld [vmem:[%s1 + $0x30] sm:$0xf]
  %v31 = vld [vmem:[%s1 + $0x34] sm:$0xf]
  %v32 = vld [vmem:[%s1 + $0x38] sm:$0xf]
  %v33 = vld [vmem:[%s1 + $0x3c] sm:$0xf]
  %v34 = vld [vmem:[%s1 + $0x40] sm:$0xf]
  %v35 = vld [vmem:[%s1 + $0x44] sm:$0xf]
  %v36 = vld [vmem:[%s1 + $0x48] sm:$0xf]
  %v37 = vld [vmem:[%s1 + $0x4c] sm:$0xf]
  %v38 = vld [vmem:[%s1 + $0x50] sm:$0xf]
  %v39 = vld [vmem:[%s1 + $0x54] sm:$0xf]
  %v40 = vld [vmem:[%s1 + $0x58] sm:$0xf]
  %v41 = vld [vmem:[%s1 + $0x5c] sm:$0xf]
  %v42 = vld [vmem:[%s1 + $0x60] sm:$0xf]
  %v43 = vld [vmem:[%s1 + $0x64] sm:$0xf]
  %v44 = vld [vmem:[%s1 + $0x68] sm:$0xf]
  %v45 = vld [vmem:[%s1 + $0x6c] sm:$0xf]
  %v46 = vld [vmem:[%s1 + $0x70] sm:$0xf]
  %v47 = vld [vmem:[%s1 + $0x74] sm:$0xf]
  %v48 = vld [vmem:[%s1 + $0x78] sm:$0xf]
  %v49 = vld [vmem:[%s1 + $0x7c] sm:$0xf]
  %v50 = vld [vmem:[%s1 + $0x80] sm:$0xf]
  %v51 = vld [vmem:[%s1 + $0x84] sm:$0xf]
  %v52 = vld [vmem:[%s1 + $0x88] sm:$0xf]
  %v53 = vld [vmem:[%s1 + $0x8c] sm:$0xf]
  %v54 = vld [vmem:[%s1 + $0x90] sm:$0xf]
  %v55 = vld [vmem:[%s1 + $0x94] sm:$0xf]
  %v56 = vld [vmem:[%s1 + $0x98] sm:$0xf]
  %v57 = vld [vmem:[%s1 + $0x9c] sm:$0xf]
  %v58 = vld [vmem:[%s1 + $0xa0] sm:$0xf]
  %v59 = vld [vmem:[%s1 + $0xa4] sm:$0xf]
  %v60 = vld [vmem:[%s1 + $0xa8] sm:$0xf]
  %v61 = vld [vmem:[%s1 + $0xac] sm:$0xf]
  %v62 = vld [vmem:[%s1 + $0xb0] sm:$0xf]
  %v63 = vld [vmem:[%s1 + $0xb4] sm:$0xf]
  %v64 = vld [vmem:[%s1 + $0xb8] sm:$0xf]
  %v65 = vld [vmem:[%s1 + $0xbc] sm:$0xf]
  %v66 = vld [vmem:[%s1 + $0xc0] sm:$0xf]
  %v67 = vld [vmem:[%s1 + $0xc4] sm:$0xf]
  %v68 = vld [vmem:[%s1 + $0xc8] sm:$0xf]
  %v69 = vld [vmem:[%s1 + $0xcc] sm:$0xf]
  %v70 = vld [vmem:[%s1 + $0xd0] sm:$0xf]
  %v71 = vld [vmem:[%s1 + $0xd4] sm:$0xf]
  %v72 = vld [vmem:[%s1 + $0xd8] sm:$0xf]
  %v73 = vld [vmem:[%s1 + $0xdc] sm:$0xf]
  %v74 = vld [vmem:[%s1 + $0xe0] sm:$0xf]
  %v75 = vld [vmem:[%s1 + $0xe4] sm:$0xf]
  %v76 = vld [vmem:[%s1 + $0xe8] sm:$0xf]
  %v77 = vld [vmem:[%s1 + $0xec] sm:$0xf]
  %v78 = vld [vmem:[%s1 + $0xf0] sm:$0xf]
  %v79 = vld [vmem:[%s1 + $0xf4] sm:$0xf]
  %v80 = vld [vmem:[%s1 + $0xf8] sm:$0xf]
  %v81 = vld [vmem:[%s1 + $0xfc] sm:$0xf]
  %v82 = vld [vmem:[%s1 + $0x100] sm:$0xf]
  %v83 = vld [vmem:[%s1 + $0x104] sm:$0xf]
  %v84 = vld [vmem:[%s1 + $0x108] sm:$0xf]
  %v85 = vld [vmem:[%s1 + $0x10c] sm:$0xf]
  %v86 = vld [vmem:[%s1 + $0x110] sm:$0xf]
  %v87 = vld [vmem:[%s1 + $0x114] sm:$0xf]
  %v88 = vld [vmem:[%s1 + $0x118] sm:$0xf]
  %v89 = vld [vmem:[%s1 + $0x11c] sm:$0xf]
  %v90 = vld [vmem:[%s1 + $0x120] sm:$0xf]
  %v91 = vld [vmem:[%s1 + $0x124] sm:$0xf]
  %v92 = vld [vmem:[%s1 + $0x128] sm:$0xf]
  %v93 = vld [vmem:[%s1 + $0x12c] sm:$0xf]
  %v94 = vld [vmem:[%s1 + $0x130] sm:$0xf]
  %v95 = vld [vmem:[%s1 + $0x134] sm:$0xf]
  %v96 = vld [vmem:[%s1 + $0x138] sm:$0xf]
  %v97 = vld [vmem:[%s1 + $0x13c] sm:$0xf]
  %v98 = vld [vmem:[%s2] sm:$0x1]
  %v100 = vlaneseq
  %v101 = vshrl.u32 %v100, 7
  %v102 = vsub.s32 0, %v101
  %v103 = vrot.slane %v98, %v102
  %v108 = vunpack.c.l.b16 %v15
  %v109 = vunpack.c.h.b16 %v15
  %v110 = vunpack.c.l.b16 %v16
  %v111 = vunpack.c.h.b16 %v16
  %v112 = vunpack.c.l.b16 %v17
  %v113 = vpack.c.b16 %v108, %v108
  %v114 = vpack.c.b16 %v109, %v109
  %v115 = vpack.c.b16 %v110, %v110
  %v116 = vpack.c.b16 %v111, %v111
  %v117 = vpack.c.b16 %v112, %v112
  %v203 = vunpack.c.l.b16 %v18
  %v204 = vunpack.c.l.b16 %v19
  %v205 = vunpack.c.l.b16 %v20
  %v206 = vunpack.c.l.b16 %v21
  %v207 = vunpack.c.l.b16 %v22
  %v208 = vunpack.c.l.b16 %v23
  %v209 = vunpack.c.l.b16 %v24
  %v210 = vunpack.c.l.b16 %v25
  %v211 = vunpack.c.l.b16 %v26
  %v212 = vunpack.c.l.b16 %v27
  %v213 = vunpack.c.l.b16 %v28
  %v214 = vunpack.c.l.b16 %v29
  %v215 = vunpack.c.l.b16 %v30
  %v216 = vunpack.c.l.b16 %v31
  %v217 = vunpack.c.l.b16 %v32
  %v218 = vunpack.c.l.b16 %v33
  %v219 = vunpack.c.l.b16 %v34
  %v220 = vunpack.c.l.b16 %v35
  %v221 = vunpack.c.l.b16 %v36
  %v222 = vunpack.c.l.b16 %v37
  %v223 = vunpack.c.l.b16 %v38
  %v224 = vunpack.c.l.b16 %v39
  %v225 = vunpack.c.l.b16 %v40
  %v226 = vunpack.c.l.b16 %v41
  %v227 = vunpack.c.l.b16 %v42
  %v228 = vunpack.c.l.b16 %v43
  %v229 = vunpack.c.l.b16 %v44
  %v230 = vunpack.c.l.b16 %v45
  %v231 = vunpack.c.l.b16 %v46
  %v232 = vunpack.c.l.b16 %v47
  %v233 = vunpack.c.l.b16 %v48
  %v234 = vunpack.c.l.b16 %v49
  %v235 = vunpack.c.l.b16 %v50
  %v236 = vunpack.c.l.b16 %v51
  %v237 = vunpack.c.l.b16 %v52
  %v238 = vunpack.c.l.b16 %v53
  %v239 = vunpack.c.l.b16 %v54
  %v240 = vunpack.c.l.b16 %v55
  %v241 = vunpack.c.l.b16 %v56
  %v242 = vunpack.c.l.b16 %v57
  %v243 = vunpack.c.l.b16 %v58
  %v244 = vunpack.c.l.b16 %v59
  %v245 = vunpack.c.l.b16 %v60
  %v246 = vunpack.c.l.b16 %v61
  %v247 = vunpack.c.l.b16 %v62
  %v248 = vunpack.c.l.b16 %v63
  %v249 = vunpack.c.l.b16 %v64
  %v250 = vunpack.c.l.b16 %v65
  %v251 = vunpack.c.l.b16 %v66
  %v252 = vunpack.c.l.b16 %v67
  %v253 = vunpack.c.l.b16 %v68
  %v254 = vunpack.c.l.b16 %v69
  %v255 = vunpack.c.l.b16 %v70
  %v256 = vunpack.c.l.b16 %v71
  %v257 = vunpack.c.l.b16 %v72
  %v258 = vunpack.c.l.b16 %v73
  %v259 = vunpack.c.l.b16 %v74
  %v260 = vunpack.c.l.b16 %v75
  %v261 = vunpack.c.l.b16 %v76
  %v262 = vunpack.c.l.b16 %v77
  %v263 = vunpack.c.l.b16 %v78
  %v264 = vunpack.c.l.b16 %v79
  %v265 = vunpack.c.l.b16 %v80
  %v266 = vunpack.c.l.b16 %v81
  %v267 = vunpack.c.l.b16 %v82
  %v268 = vunpack.c.l.b16 %v83
  %v269 = vunpack.c.l.b16 %v84
  %v270 = vunpack.c.l.b16 %v85
  %v271 = vunpack.c.l.b16 %v86
  %v272 = vunpack.c.l.b16 %v87
  %v273 = vunpack.c.l.b16 %v88
  %v274 = vunpack.c.l.b16 %v89
  %v275 = vunpack.c.l.b16 %v90
  %v276 = vunpack.c.l.b16 %v91
  %v277 = vunpack.c.l.b16 %v92
  %v278 = vunpack.c.l.b16 %v93
  %v279 = vunpack.c.l.b16 %v94
  %v280 = vunpack.c.l.b16 %v95
  %v281 = vunpack.c.l.b16 %v96
  %v282 = vunpack.c.l.b16 %v97
  %v283 = vpack.c.b16 %v204, %v203
  %v284 = vpack.c.b16 %v206, %v205
  %v285 = vpack.c.b16 %v208, %v207
  %v286 = vpack.c.b16 %v210, %v209
  %v287 = vpack.c.b16 %v212, %v211
  %v288 = vpack.c.b16 %v214, %v213
  %v289 = vpack.c.b16 %v216, %v215
  %v290 = vpack.c.b16 %v218, %v217
  %v291 = vpack.c.b16 %v220, %v219
  %v292 = vpack.c.b16 %v222, %v221
  %v293 = vpack.c.b16 %v224, %v223
  %v294 = vpack.c.b16 %v226, %v225
  %v295 = vpack.c.b16 %v228, %v227
  %v296 = vpack.c.b16 %v230, %v229
  %v297 = vpack.c.b16 %v232, %v231
  %v298 = vpack.c.b16 %v234, %v233
  %v299 = vpack.c.b16 %v236, %v235
  %v300 = vpack.c.b16 %v238, %v237
  %v301 = vpack.c.b16 %v240, %v239
  %v302 = vpack.c.b16 %v242, %v241
  %v303 = vpack.c.b16 %v244, %v243
  %v304 = vpack.c.b16 %v246, %v245
  %v305 = vpack.c.b16 %v248, %v247
  %v306 = vpack.c.b16 %v250, %v249
  %v307 = vpack.c.b16 %v252, %v251
  %v308 = vpack.c.b16 %v254, %v253
  %v309 = vpack.c.b16 %v256, %v255
  %v310 = vpack.c.b16 %v258, %v257
  %v311 = vpack.c.b16 %v260, %v259
  %v312 = vpack.c.b16 %v262, %v261
  %v313 = vpack.c.b16 %v264, %v263
  %v314 = vpack.c.b16 %v266, %v265
  %v315 = vpack.c.b16 %v268, %v267
  %v316 = vpack.c.b16 %v270, %v269
  %v317 = vpack.c.b16 %v272, %v271
  %v318 = vpack.c.b16 %v274, %v273
  %v319 = vpack.c.b16 %v276, %v275
  %v320 = vpack.c.b16 %v278, %v277
  %v321 = vpack.c.b16 %v280, %v279
  %v322 = vpack.c.b16 %v282, %v281
  %363 = vmatprep.subr.bf16.mxu0 0
  %364 = vmatpush1.bf16.msra.mxu0 %v283
  %365 = vmatprep.subr.bf16.mxu0 0
  %366 = vmatpush1.bf16.msra.mxu0 %v284
  %367 = vmatprep.subr.bf16.mxu0 0
  %368 = vmatpush1.bf16.msra.mxu0 %v285
  %369 = vmatprep.subr.bf16.mxu0 0
  %370 = vmatpush1.bf16.msra.mxu0 %v286
  %371 = vmatprep.subr.bf16.mxu0 0
  %372 = vmatpush1.bf16.msra.mxu0 %v287
  %373 = vmatprep.subr.bf16.mxu0 0
  %374 = vmatpush1.bf16.msra.mxu0 %v288
  %375 = vmatprep.subr.bf16.mxu0 0
  %376 = vmatpush1.bf16.msra.mxu0 %v289
  %377 = vmatprep.subr.bf16.mxu0 0
  %378 = vmatpush1.bf16.msra.mxu0 %v290
  %379 = vmatprep.subr.bf16.mxu0 0
  %380 = vmatpush1.bf16.msra.mxu0 %v291
  %381 = vmatprep.subr.bf16.mxu0 0
  %382 = vmatpush1.bf16.msra.mxu0 %v292
  %383 = vmatprep.subr.bf16.mxu0 0
  %384 = vmatpush1.bf16.msra.mxu0 %v293
  %385 = vmatprep.subr.bf16.mxu0 0
  %386 = vmatpush1.bf16.msra.mxu0 %v294
  %387 = vmatprep.subr.bf16.mxu0 0
  %388 = vmatpush1.bf16.msra.mxu0 %v295
  %389 = vmatprep.subr.bf16.mxu0 0
  %390 = vmatpush1.bf16.msra.mxu0 %v296
  %391 = vmatprep.subr.bf16.mxu0 0
  %392 = vmatpush1.bf16.msra.mxu0 %v297
  %393 = vmatprep.subr.bf16.mxu0 0
  %394 = vmatpush1.bf16.msra.mxu0 %v298
  %395 = vmatprep.mubr.bf16.mxu0 %v114
  %396 = vmatmul.mubr.bf16.gmra.mrb[0].mxu0 %v113
  %v397 = vpop.f32.mrb[0].mxu0
  %v398 = vadd.f32 %v103, %v397
  %v399 = vpop.f32.mrb[0].mxu0
  %v400 = vpop.f32.mrb[0].mxu0
  %v401 = vpop.f32.mrb[0].mxu0
  %402 = vdwg.mxu0
  %403 = vmatprep.subr.bf16.mxu0 0
  %404 = vmatpush1.bf16.msra.mxu0 %v299
  %405 = vmatprep.subr.bf16.mxu0 0
  %406 = vmatpush1.bf16.msra.mxu0 %v300
  %407 = vmatprep.subr.bf16.mxu0 0
  %408 = vmatpush1.bf16.msra.mxu0 %v301
  %409 = vmatprep.subr.bf16.mxu0 0
  %410 = vmatpush1.bf16.msra.mxu0 %v302
  %411 = vmatprep.subr.bf16.mxu0 0
  %412 = vmatpush1.bf16.msra.mxu0 %v303
  %413 = vmatprep.subr.bf16.mxu0 0
  %414 = vmatpush1.bf16.msra.mxu0 %v304
  %415 = vmatprep.subr.bf16.mxu0 0
  %416 = vmatpush1.bf16.msra.mxu0 %v305
  %417 = vmatprep.subr.bf16.mxu0 0
  %418 = vmatpush1.bf16.msra.mxu0 %v306
  %419 = vmatprep.subr.bf16.mxu0 0
  %420 = vmatpush1.bf16.msra.mxu0 %v307
  %421 = vmatprep.subr.bf16.mxu0 0
  %422 = vmatpush1.bf16.msra.mxu0 %v308
  %423 = vmatprep.subr.bf16.mxu0 0
  %424 = vmatpush1.bf16.msra.mxu0 %v309
  %425 = vmatprep.subr.bf16.mxu0 0
  %426 = vmatpush1.bf16.msra.mxu0 %v310
  %427 = vmatprep.subr.bf16.mxu0 0
  %428 = vmatpush1.bf16.msra.mxu0 %v311
  %429 = vmatprep.subr.bf16.mxu0 0
  %430 = vmatpush1.bf16.msra.mxu0 %v312
  %431 = vmatprep.subr.bf16.mxu0 0
  %432 = vmatpush1.bf16.msra.mxu0 %v313
  %433 = vmatprep.subr.bf16.mxu0 0
  %434 = vmatpush1.bf16.msra.mxu0 %v314
  %435 = vmatprep.mubr.bf16.mxu0 %v116
  %436 = vmatmul.mubr.bf16.gmra.mrb[0].mxu0 %v115
  %v437 = vpop.f32.mrb[0].mxu0
  %v438 = vadd.f32 %v398, %v437
  %v439 = vpop.f32.mrb[0].mxu0
  %v440 = vpop.f32.mrb[0].mxu0
  %v441 = vpop.f32.mrb[0].mxu0
  %442 = vdwg.mxu0
  %443 = vmatprep.subr.bf16.mxu0 0
  %444 = vmatpush1.bf16.msra.mxu0 %v315
  %445 = vmatprep.subr.bf16.mxu0 0
  %446 = vmatpush1.bf16.msra.mxu0 %v316
  %447 = vmatprep.subr.bf16.mxu0 0
  %448 = vmatpush1.bf16.msra.mxu0 %v317
  %449 = vmatprep.subr.bf16.mxu0 0
  %450 = vmatpush1.bf16.msra.mxu0 %v318
  %451 = vmatprep.subr.bf16.mxu0 0
  %452 = vmatpush1.bf16.msra.mxu0 %v319
  %453 = vmatprep.subr.bf16.mxu0 0
  %454 = vmatpush1.bf16.msra.mxu0 %v320
  %455 = vmatprep.subr.bf16.mxu0 0
  %456 = vmatpush1.bf16.msra.mxu0 %v321
  %457 = vmatprep.subr.bf16.mxu0 0
  %458 = vmatpush1.bf16.msra.mxu0 %v322
  %459 = vmatprep.subr.bf16.mxu0 0
  %460 = vmatpush1.bf16.msra.mxu0 0
  %461 = vmatprep.subr.bf16.mxu0 0
  %462 = vmatpush1.bf16.msra.mxu0 0
  %463 = vmatprep.subr.bf16.mxu0 0
  %464 = vmatpush1.bf16.msra.mxu0 0
  %465 = vmatprep.subr.bf16.mxu0 0
  %466 = vmatpush1.bf16.msra.mxu0 0
  %467 = vmatprep.subr.bf16.mxu0 0
  %468 = vmatpush1.bf16.msra.mxu0 0
  %469 = vmatprep.subr.bf16.mxu0 0
  %470 = vmatpush1.bf16.msra.mxu0 0
  %471 = vmatprep.subr.bf16.mxu0 0
  %472 = vmatpush1.bf16.msra.mxu0 0
  %473 = vmatprep.subr.bf16.mxu0 0
  %474 = vmatpush1.bf16.msra.mxu0 0
  %475 = vmatprep.mubr.bf16.mxu0 0
  %476 = vmatmul.mubr.bf16.gmra.mrb[0].mxu0 %v117
  %v477 = vpop.f32.mrb[0].mxu0
  %v478 = vadd.f32 %v438, %v477
  %v479 = vpop.f32.mrb[0].mxu0
  %v480 = vpop.f32.mrb[0].mxu0
  %v481 = vpop.f32.mrb[0].mxu0
  %482 = vdwg.mxu0
  %v483 = vmax.f32 %v478, 0.0
  %v484 = vpack.c.bf16 %v483, %v483
  %485 = vst [vmem:[%s3] sm:$0x7] %v484
  // Predicated region
  $region14: #{triplet_net_forward.34} parent=0 // pred_check
    _
  $region15: #{triplet_net_forward.34} parent=0 // pred_check_branch
    %487 = sbr.rel (0) target = $region17
  $region16: #{triplet_net_forward.34} parent=0 // pred_region
    _
  $region17: #{triplet_net_forward.34} parent=0 // pred_fallthru
    _
  // Predicated region
  $region18: #{triplet_net_forward.34} parent=0 // pred_check
    _
  $region19: #{triplet_net_forward.34} parent=0 // pred_check_branch
    %489 = sbr.rel (0) target = $region21
  $region20: #{triplet_net_forward.34} parent=0 // pred_region
    _
  $region21: #{triplet_net_forward.34} parent=0 // pred_fallthru
    _

</llo_original>
